<compile_context>
chip_gen: v7x
topology: tpu7x:2x2x1
jax: 0.10.0
libtpu: 0.0.40
codegen_flags: <defaults>
</compile_context>

<pallas_src>
import functools

import jax
import jax.numpy as jnp
from jax import lax
from jax.experimental import pallas as pl
from jax.experimental.pallas import tpu as pltpu


def _basic_block_kernel(xp_ref, w1_ref, b1_ref, w2_ref, b2_ref, o_ref,
                        slab_scr, mid_scr, *, H, W):
    """One batch element per grid step.

    xp_ref  : (H+2, W+2, C)  bf16  spatially pre-padded input
    w1_ref  : (9*C, C)       bf16  conv1 weight, BN1 scale folded, im2col order
    b1_ref  : (1, C)         f32   folded BN1 bias
    w2_ref  : (9*C, C)       bf16  conv2 weight, BN2 scale folded
    b2_ref  : (1, C)         f32   folded BN2 bias
    o_ref   : (H, W, C)      f32   output
    slab_scr: (H*W, 9*C)     bf16  im2col slab (shared by conv1 / conv2)
    mid_scr : (H+2, W+2, C)  bf16  padded conv1 output (bias + ReLU applied)
    """
    C = o_ref.shape[-1]

    # ---- conv1: build im2col slab, then one K=9*C matmul on the MXU --------
    for dy in range(3):
        for dx in range(3):
            tap = dy * 3 + dx
            slab_scr[:, tap * C:(tap + 1) * C] = (
                xp_ref[dy:dy + H, dx:dx + W, :].reshape(H * W, C))
    acc1 = jnp.dot(slab_scr[...], w1_ref[...],
                   preferred_element_type=jnp.float32)          # (H*W, C) f32

    # ---- BN1 bias + ReLU (fused), cast to bf16 for conv2 -------------------
    mid = jnp.maximum(acc1 + b1_ref[0], 0.0).astype(mid_scr.dtype)

    # Zero only the 1-pixel border of the padded scratch (interior is fully
    # overwritten each step) -- much cheaper than re-zeroing the whole buffer.
    zrow = jnp.zeros((1, W + 2, C), mid_scr.dtype)
    zcol = jnp.zeros((H, 1, C), mid_scr.dtype)
    mid_scr[0:1, :, :] = zrow
    mid_scr[H + 1:H + 2, :, :] = zrow
    mid_scr[1:H + 1, 0:1, :] = zcol
    mid_scr[1:H + 1, W + 1:W + 2, :] = zcol
    mid_scr[1:H + 1, 1:W + 1, :] = mid.reshape(H, W, C)

    # ---- conv2: same im2col + single matmul ---------------------------------
    for dy in range(3):
        for dx in range(3):
            tap = dy * 3 + dx
            slab_scr[:, tap * C:(tap + 1) * C] = (
                mid_scr[dy:dy + H, dx:dx + W, :].reshape(H * W, C))
    acc2 = jnp.dot(slab_scr[...], w2_ref[...],
                   preferred_element_type=jnp.float32)          # (H*W, C) f32

    # ---- fused epilogue: BN2 bias + residual + ReLU -------------------------
    out = (acc2 + b2_ref[0]).reshape(H, W, C)
    residual = xp_ref[1:H + 1, 1:W + 1, :].astype(jnp.float32)  # interior == x
    o_ref[...] = jnp.maximum(out + residual, 0.0).astype(o_ref.dtype)


def basic_block(x_nhwc, w1, s1, b1, w2, s2, b2):
    """BasicBlock forward (stride=1, downsample=None).

    x_nhwc : (N, H, W, C) f32   input, channels-last
    w1, w2 : (3, 3, C, C) f32   HWIO conv weights
    s1, b1, s2, b2 : (C,) f32   folded BatchNorm scale / bias (eval mode)
    """
    N, H, W, Cin = x_nhwc.shape
    Cout = w1.shape[-1]
    assert Cin == Cout, "downsample=None requires inplanes == planes"
    # TODO(synk): stride != 1 and the downsample path are not implemented.

    # Fold BN scales into the conv weights (one-time, outside the kernel) and
    # pre-reshape to the im2col contraction layout (9*C, C); cast to bf16.
    w1f = (w1 * s1.reshape(1, 1, 1, Cout)).astype(jnp.bfloat16)
    w2f = (w2 * s2.reshape(1, 1, 1, Cout)).astype(jnp.bfloat16)
    w1f = w1f.reshape(9 * Cin, Cout)
    w2f = w2f.reshape(9 * Cout, Cout)
    b1f = b1.reshape(1, Cout).astype(jnp.float32)
    b2f = b2.reshape(1, Cout).astype(jnp.float32)

    # bf16 activations for the MXU; spatial zero-pad (padding=1) done once here.
    xp = jnp.pad(x_nhwc.astype(jnp.bfloat16), ((0, 0), (1, 1), (1, 1), (0, 0)))

    kernel = functools.partial(_basic_block_kernel, H=H, W=W)
    const2 = lambda n: (0, 0)

    return pl.pallas_call(
        kernel,
        out_shape=jax.ShapeDtypeStruct((N, H, W, Cout), jnp.float32),
        grid_spec=pltpu.PrefetchScalarGridSpec(
            num_scalar_prefetch=0,
            grid=(N,),
            in_specs=[
                pl.BlockSpec((None, H + 2, W + 2, Cin), lambda n: (n, 0, 0, 0)),
                pl.BlockSpec((9 * Cin, Cout), const2),
                pl.BlockSpec((1, Cout), const2),
                pl.BlockSpec((9 * Cout, Cout), const2),
                pl.BlockSpec((1, Cout), const2),
            ],
            out_specs=pl.BlockSpec((None, H, W, Cout), lambda n: (n, 0, 0, 0)),
            scratch_shapes=[
                pltpu.VMEM((H * W, 9 * Cin), jnp.bfloat16),
                pltpu.VMEM((H + 2, W + 2, Cout), jnp.bfloat16),
            ],
        ),
        compiler_params=pltpu.CompilerParams(
            dimension_semantics=("parallel",)),
    )(xp, w1f, b1f, w2f, b2f)


def _reference(x_nhwc, w1, s1, b1, w2, s2, b2):
    """Pure-JAX reference mirroring the kernel's bf16-input / f32-accum path."""
    dn = ("NHWC", "HWIO", "NHWC")
    c = x_nhwc.shape[-1]
    xb = x_nhwc.astype(jnp.bfloat16)
    w1f = (w1 * s1.reshape(1, 1, 1, c)).astype(jnp.bfloat16)
    w2f = (w2 * s2.reshape(1, 1, 1, c)).astype(jnp.bfloat16)
    out = lax.conv_general_dilated(xb, w1f, (1, 1), "SAME", dimension_numbers=dn,
                                   preferred_element_type=jnp.float32)
    out = jnp.maximum(out + b1.reshape(1, 1, 1, c), 0.0).astype(jnp.bfloat16)
    out = lax.conv_general_dilated(out, w2f, (1, 1), "SAME", dimension_numbers=dn,
                                   preferred_element_type=jnp.float32)
    out = out + b2.reshape(1, 1, 1, c) + xb.astype(jnp.float32)
    return jnp.maximum(out, 0.0)


if __name__ == "__main__":
    # Small but ResNet-realistic shapes: batch=2, planes=64 (layer1), 16x16
    # spatial, stride=1, downsample=None.
    N, C, H, W = 2, 64, 16, 16
    key = jax.random.PRNGKey(0)
    kx, kw1, kw2, kg1, kb1, km1, kv1, kg2, kb2, km2, kv2 = jax.random.split(key, 11)

    # PyTorch-style NCHW input, converted to NHWC for the kernel.
    x_nchw = jax.random.normal(kx, (N, C, H, W), jnp.float32)
    x_nhwc = jnp.transpose(x_nchw, (0, 2, 3, 1))

    # Conv weights: PyTorch layout (Cout, Cin, 3, 3) -> HWIO (3, 3, Cin, Cout).
    w1_oihw = 0.1 * jax.random.normal(kw1, (C, C, 3, 3), jnp.float32)
    w2_oihw = 0.1 * jax.random.normal(kw2, (C, C, 3, 3), jnp.float32)
    w1 = jnp.transpose(w1_oihw, (2, 3, 1, 0))
    w2 = jnp.transpose(w2_oihw, (2, 3, 1, 0))

    # TODO(synk): eval-mode BatchNorm (running stats folded to scale/bias);
    # training-mode batch statistics are not reproduced.
    eps = 1e-5

    def fold_bn(kg, kb, km, kv):
        gamma = 1.0 + 0.1 * jax.random.normal(kg, (C,), jnp.float32)
        beta = 0.1 * jax.random.normal(kb, (C,), jnp.float32)
        mean = 0.1 * jax.random.normal(km, (C,), jnp.float32)
        var = jnp.abs(jax.random.normal(kv, (C,), jnp.float32)) + 0.5
        scale = gamma / jnp.sqrt(var + eps)
        bias = beta - mean * scale
        return scale, bias

    s1, b1 = fold_bn(kg1, kb1, km1, kv1)
    s2, b2 = fold_bn(kg2, kb2, km2, kv2)

    out = basic_block(x_nhwc, w1, s1, b1, w2, s2, b2)
    out = jax.block_until_ready(out)

    ref = _reference(x_nhwc, w1, s1, b1, w2, s2, b2)
    assert out.shape == (N, H, W, C)
    max_err = jnp.max(jnp.abs(out - ref))
    assert jnp.allclose(out, ref, atol=1e-2, rtol=1e-2), (
        f"mismatch vs reference, max abs err = {max_err}")

    print("KERNEL_OK")
</pallas_src>

<mosaic_0001>
module attributes {stable_mosaic.version = 11 : i64} {
  func.func @_basic_block_kernel(%arg0: i32, %arg1: memref<1x18x18x64xbf16, #tpu.memory_space<vmem>>, %arg2: memref<576x64xbf16, #tpu.memory_space<vmem>>, %arg3: memref<1x64xf32, #tpu.memory_space<vmem>>, %arg4: memref<576x64xbf16, #tpu.memory_space<vmem>>, %arg5: memref<1x64xf32, #tpu.memory_space<vmem>>, %arg6: memref<1x16x16x64xf32, #tpu.memory_space<vmem>>, %arg7: memref<256x576xbf16, #tpu.memory_space<vmem>>, %arg8: memref<18x18x64xbf16, #tpu.memory_space<vmem>>) attributes {dimension_semantics = [#tpu.dimension_semantics<parallel>], iteration_bounds = array<i64: 2>, scalar_prefetch = 0 : i64, scratch_operands = 2 : i64, tpu.core_type = #tpu.core_type<tc>, window_params = [{transform_indices = @transform_0, window_bounds = array<i64: 1, 18, 18, 64>}, {pipeline_mode = #tpu.pipeline_mode<synchronous>, transform_indices = @transform_1, window_bounds = array<i64: 576, 64>}, {pipeline_mode = #tpu.pipeline_mode<synchronous>, transform_indices = @transform_2, window_bounds = array<i64: 1, 64>}, {pipeline_mode = #tpu.pipeline_mode<synchronous>, transform_indices = @transform_3, window_bounds = array<i64: 576, 64>}, {pipeline_mode = #tpu.pipeline_mode<synchronous>, transform_indices = @transform_4, window_bounds = array<i64: 1, 64>}, {transform_indices = @transform_5, window_bounds = array<i64: 1, 16, 16, 64>}]} {
    %c0 = arith.constant 0 : index
    %c0_0 = arith.constant 0 : index
    %c0_1 = arith.constant 0 : index
    %c0_2 = arith.constant 0 : index
    %0 = vector.load %arg1[%c0, %c0_0, %c0_1, %c0_2] : memref<1x18x18x64xbf16, #tpu.memory_space<vmem>>, vector<1x16x16x64xbf16>
    %1 = vector.shape_cast %0 : vector<1x16x16x64xbf16> to vector<16x16x64xbf16>
    %2 = vector.shape_cast %1 : vector<16x16x64xbf16> to vector<256x64xbf16>
    %c0_3 = arith.constant 0 : index
    %c0_4 = arith.constant 0 : index
    %3 = vector.load %arg7[%c0_3, %c0_4] : memref<256x576xbf16, #tpu.memory_space<vmem>>, vector<256x64xbf16>
    tpu.vector_store %arg7[%c0_3, %c0_4], %2 {strides = array<i32>} : memref<256x576xbf16, #tpu.memory_space<vmem>>, vector<256x64xbf16>,
    %c0_5 = arith.constant 0 : index
    %c0_6 = arith.constant 0 : index
    %c1 = arith.constant 1 : index
    %c0_7 = arith.constant 0 : index
    %4 = vector.load %arg1[%c0_5, %c0_6, %c1, %c0_7] : memref<1x18x18x64xbf16, #tpu.memory_space<vmem>>, vector<1x16x16x64xbf16>
    %5 = vector.shape_cast %4 : vector<1x16x16x64xbf16> to vector<16x16x64xbf16>
    %6 = vector.shape_cast %5 : vector<16x16x64xbf16> to vector<256x64xbf16>
    %c0_8 = arith.constant 0 : index
    %c64 = arith.constant 64 : index
    %7 = vector.load %arg7[%c0_8, %c64] : memref<256x576xbf16, #tpu.memory_space<vmem>>, vector<256x64xbf16>
    tpu.vector_store %arg7[%c0_8, %c64], %6 {strides = array<i32>} : memref<256x576xbf16, #tpu.memory_space<vmem>>, vector<256x64xbf16>,
    %c0_9 = arith.constant 0 : index
    %c0_10 = arith.constant 0 : index
    %c2 = arith.constant 2 : index
    %c0_11 = arith.constant 0 : index
    %8 = vector.load %arg1[%c0_9, %c0_10, %c2, %c0_11] : memref<1x18x18x64xbf16, #tpu.memory_space<vmem>>, vector<1x16x16x64xbf16>
    %9 = vector.shape_cast %8 : vector<1x16x16x64xbf16> to vector<16x16x64xbf16>
    %10 = vector.shape_cast %9 : vector<16x16x64xbf16> to vector<256x64xbf16>
    %c0_12 = arith.constant 0 : index
    %c128 = arith.constant 128 : index
    %11 = vector.load %arg7[%c0_12, %c128] : memref<256x576xbf16, #tpu.memory_space<vmem>>, vector<256x64xbf16>
    tpu.vector_store %arg7[%c0_12, %c128], %10 {strides = array<i32>} : memref<256x576xbf16, #tpu.memory_space<vmem>>, vector<256x64xbf16>,
    %c0_13 = arith.constant 0 : index
    %c1_14 = arith.constant 1 : index
    %c0_15 = arith.constant 0 : index
    %c0_16 = arith.constant 0 : index
    %12 = vector.load %arg1[%c0_13, %c1_14, %c0_15, %c0_16] : memref<1x18x18x64xbf16, #tpu.memory_space<vmem>>, vector<1x16x16x64xbf16>
    %13 = vector.shape_cast %12 : vector<1x16x16x64xbf16> to vector<16x16x64xbf16>
    %14 = vector.shape_cast %13 : vector<16x16x64xbf16> to vector<256x64xbf16>
    %c0_17 = arith.constant 0 : index
    %c192 = arith.constant 192 : index
    %15 = vector.load %arg7[%c0_17, %c192] : memref<256x576xbf16, #tpu.memory_space<vmem>>, vector<256x64xbf16>
    tpu.vector_store %arg7[%c0_17, %c192], %14 {strides = array<i32>} : memref<256x576xbf16, #tpu.memory_space<vmem>>, vector<256x64xbf16>,
    %c0_18 = arith.constant 0 : index
    %c1_19 = arith.constant 1 : index
    %c1_20 = arith.constant 1 : index
    %c0_21 = arith.constant 0 : index
    %16 = vector.load %arg1[%c0_18, %c1_19, %c1_20, %c0_21] : memref<1x18x18x64xbf16, #tpu.memory_space<vmem>>, vector<1x16x16x64xbf16>
    %17 = vector.shape_cast %16 : vector<1x16x16x64xbf16> to vector<16x16x64xbf16>
    %18 = vector.shape_cast %17 : vector<16x16x64xbf16> to vector<256x64xbf16>
    %c0_22 = arith.constant 0 : index
    %c256 = arith.constant 256 : index
    %19 = vector.load %arg7[%c0_22, %c256] : memref<256x576xbf16, #tpu.memory_space<vmem>>, vector<256x64xbf16>
    tpu.vector_store %arg7[%c0_22, %c256], %18 {strides = array<i32>} : memref<256x576xbf16, #tpu.memory_space<vmem>>, vector<256x64xbf16>,
    %c0_23 = arith.constant 0 : index
    %c1_24 = arith.constant 1 : index
    %c2_25 = arith.constant 2 : index
    %c0_26 = arith.constant 0 : index
    %20 = vector.load %arg1[%c0_23, %c1_24, %c2_25, %c0_26] : memref<1x18x18x64xbf16, #tpu.memory_space<vmem>>, vector<1x16x16x64xbf16>
    %21 = vector.shape_cast %20 : vector<1x16x16x64xbf16> to vector<16x16x64xbf16>
    %22 = vector.shape_cast %21 : vector<16x16x64xbf16> to vector<256x64xbf16>
    %c0_27 = arith.constant 0 : index
    %c320 = arith.constant 320 : index
    %23 = vector.load %arg7[%c0_27, %c320] : memref<256x576xbf16, #tpu.memory_space<vmem>>, vector<256x64xbf16>
    tpu.vector_store %arg7[%c0_27, %c320], %22 {strides = array<i32>} : memref<256x576xbf16, #tpu.memory_space<vmem>>, vector<256x64xbf16>,
    %c0_28 = arith.constant 0 : index
    %c2_29 = arith.constant 2 : index
    %c0_30 = arith.constant 0 : index
    %c0_31 = arith.constant 0 : index
    %24 = vector.load %arg1[%c0_28, %c2_29, %c0_30, %c0_31] : memref<1x18x18x64xbf16, #tpu.memory_space<vmem>>, vector<1x16x16x64xbf16>
    %25 = vector.shape_cast %24 : vector<1x16x16x64xbf16> to vector<16x16x64xbf16>
    %26 = vector.shape_cast %25 : vector<16x16x64xbf16> to vector<256x64xbf16>
    %c0_32 = arith.constant 0 : index
    %c384 = arith.constant 384 : index
    %27 = vector.load %arg7[%c0_32, %c384] : memref<256x576xbf16, #tpu.memory_space<vmem>>, vector<256x64xbf16>
    tpu.vector_store %arg7[%c0_32, %c384], %26 {strides = array<i32>} : memref<256x576xbf16, #tpu.memory_space<vmem>>, vector<256x64xbf16>,
    %c0_33 = arith.constant 0 : index
    %c2_34 = arith.constant 2 : index
    %c1_35 = arith.constant 1 : index
    %c0_36 = arith.constant 0 : index
    %28 = vector.load %arg1[%c0_33, %c2_34, %c1_35, %c0_36] : memref<1x18x18x64xbf16, #tpu.memory_space<vmem>>, vector<1x16x16x64xbf16>
    %29 = vector.shape_cast %28 : vector<1x16x16x64xbf16> to vector<16x16x64xbf16>
    %30 = vector.shape_cast %29 : vector<16x16x64xbf16> to vector<256x64xbf16>
    %c0_37 = arith.constant 0 : index
    %c448 = arith.constant 448 : index
    %31 = vector.load %arg7[%c0_37, %c448] : memref<256x576xbf16, #tpu.memory_space<vmem>>, vector<256x64xbf16>
    tpu.vector_store %arg7[%c0_37, %c448], %30 {strides = array<i32>} : memref<256x576xbf16, #tpu.memory_space<vmem>>, vector<256x64xbf16>,
    %c0_38 = arith.constant 0 : index
    %c2_39 = arith.constant 2 : index
    %c2_40 = arith.constant 2 : index
    %c0_41 = arith.constant 0 : index
    %32 = vector.load %arg1[%c0_38, %c2_39, %c2_40, %c0_41] : memref<1x18x18x64xbf16, #tpu.memory_space<vmem>>, vector<1x16x16x64xbf16>
    %33 = vector.shape_cast %32 : vector<1x16x16x64xbf16> to vector<16x16x64xbf16>
    %34 = vector.shape_cast %33 : vector<16x16x64xbf16> to vector<256x64xbf16>
    %c0_42 = arith.constant 0 : index
    %c512 = arith.constant 512 : index
    %35 = vector.load %arg7[%c0_42, %c512] : memref<256x576xbf16, #tpu.memory_space<vmem>>, vector<256x64xbf16>
    tpu.vector_store %arg7[%c0_42, %c512], %34 {strides = array<i32>} : memref<256x576xbf16, #tpu.memory_space<vmem>>, vector<256x64xbf16>,
    %c0_43 = arith.constant 0 : index
    %c0_44 = arith.constant 0 : index
    %36 = vector.load %arg7[%c0_43, %c0_44] : memref<256x576xbf16, #tpu.memory_space<vmem>>, vector<256x576xbf16>
    %c0_45 = arith.constant 0 : index
    %c0_46 = arith.constant 0 : index
    %37 = vector.load %arg2[%c0_45, %c0_46] : memref<576x64xbf16, #tpu.memory_space<vmem>>, vector<576x64xbf16>
    %cst = arith.constant dense<0.000000e+00> : vector<256x64xf32>
    %38 = tpu.matmul %36, %37, %cst {dimension_numbers = #tpu.dot_dimension_numbers<[1], [0], [0], [1], [0, 0, 1, 1], [], []>} : vector<256x576xbf16>, vector<576x64xbf16>, vector<256x64xf32> -> vector<256x64xf32>
    %c0_47 = arith.constant 0 : index
    %c0_48 = arith.constant 0 : index
    %39 = vector.load %arg3[%c0_47, %c0_48] : memref<1x64xf32, #tpu.memory_space<vmem>>, vector<1x64xf32>
    %40 = vector.shape_cast %39 : vector<1x64xf32> to vector<64xf32>
    %41 = vector.shape_cast %40 : vector<64xf32> to vector<1x64xf32>
    %42 = vector.broadcast %41 : vector<1x64xf32> to vector<256x64xf32>
    %43 = arith.addf %38, %42 : vector<256x64xf32>
    %cst_49 = arith.constant 0.000000e+00 : f32
    %44 = vector.broadcast %cst_49 : f32 to vector<256x64xf32>
    %45 = arith.maximumf %43, %44 : vector<256x64xf32>
    %46 = arith.truncf %45 : vector<256x64xf32> to vector<256x64xbf16>
    %cst_50 = arith.constant 0.000000e+00 : bf16
    %47 = vector.broadcast %cst_50 : bf16 to vector<1x18x64xbf16>
    %cst_51 = arith.constant 0.000000e+00 : bf16
    %48 = vector.broadcast %cst_51 : bf16 to vector<16x1x64xbf16>
    %c0_52 = arith.constant 0 : index
    %c0_53 = arith.constant 0 : index
    %c0_54 = arith.constant 0 : index
    %49 = vector.load %arg8[%c0_52, %c0_53, %c0_54] : memref<18x18x64xbf16, #tpu.memory_space<vmem>>, vector<1x18x64xbf16>
    tpu.vector_store %arg8[%c0_52, %c0_53, %c0_54], %47 {strides = array<i32>} : memref<18x18x64xbf16, #tpu.memory_space<vmem>>, vector<1x18x64xbf16>,
    %c17 = arith.constant 17 : index
    %c0_55 = arith.constant 0 : index
    %c0_56 = arith.constant 0 : index
    %50 = vector.load %arg8[%c17, %c0_55, %c0_56] : memref<18x18x64xbf16, #tpu.memory_space<vmem>>, vector<1x18x64xbf16>
    tpu.vector_store %arg8[%c17, %c0_55, %c0_56], %47 {strides = array<i32>} : memref<18x18x64xbf16, #tpu.memory_space<vmem>>, vector<1x18x64xbf16>,
    %c1_57 = arith.constant 1 : index
    %c0_58 = arith.constant 0 : index
    %c0_59 = arith.constant 0 : index
    %51 = vector.load %arg8[%c1_57, %c0_58, %c0_59] : memref<18x18x64xbf16, #tpu.memory_space<vmem>>, vector<16x1x64xbf16>
    tpu.vector_store %arg8[%c1_57, %c0_58, %c0_59], %48 {strides = array<i32>} : memref<18x18x64xbf16, #tpu.memory_space<vmem>>, vector<16x1x64xbf16>,
    %c1_60 = arith.constant 1 : index
    %c17_61 = arith.constant 17 : index
    %c0_62 = arith.constant 0 : index
    %52 = vector.load %arg8[%c1_60, %c17_61, %c0_62] : memref<18x18x64xbf16, #tpu.memory_space<vmem>>, vector<16x1x64xbf16>
    tpu.vector_store %arg8[%c1_60, %c17_61, %c0_62], %48 {strides = array<i32>} : memref<18x18x64xbf16, #tpu.memory_space<vmem>>, vector<16x1x64xbf16>,
    %53 = vector.shape_cast %46 : vector<256x64xbf16> to vector<16x16x64xbf16>
    %c1_63 = arith.constant 1 : index
    %c1_64 = arith.constant 1 : index
    %c0_65 = arith.constant 0 : index
    %54 = vector.load %arg8[%c1_63, %c1_64, %c0_65] : memref<18x18x64xbf16, #tpu.memory_space<vmem>>, vector<16x16x64xbf16>
    tpu.vector_store %arg8[%c1_63, %c1_64, %c0_65], %53 {strides = array<i32>} : memref<18x18x64xbf16, #tpu.memory_space<vmem>>, vector<16x16x64xbf16>,
    %c0_66 = arith.constant 0 : index
    %c0_67 = arith.constant 0 : index
    %c0_68 = arith.constant 0 : index
    %55 = vector.load %arg8[%c0_66, %c0_67, %c0_68] : memref<18x18x64xbf16, #tpu.memory_space<vmem>>, vector<16x16x64xbf16>
    %56 = vector.shape_cast %55 : vector<16x16x64xbf16> to vector<256x64xbf16>
    %c0_69 = arith.constant 0 : index
    %c0_70 = arith.constant 0 : index
    %57 = vector.load %arg7[%c0_69, %c0_70] : memref<256x576xbf16, #tpu.memory_space<vmem>>, vector<256x64xbf16>
    tpu.vector_store %arg7[%c0_69, %c0_70], %56 {strides = array<i32>} : memref<256x576xbf16, #tpu.memory_space<vmem>>, vector<256x64xbf16>,
    %c0_71 = arith.constant 0 : index
    %c1_72 = arith.constant 1 : index
    %c0_73 = arith.constant 0 : index
    %58 = vector.load %arg8[%c0_71, %c1_72, %c0_73] : memref<18x18x64xbf16, #tpu.memory_space<vmem>>, vector<16x16x64xbf16>
    %59 = vector.shape_cast %58 : vector<16x16x64xbf16> to vector<256x64xbf16>
    %c0_74 = arith.constant 0 : index
    %c64_75 = arith.constant 64 : index
    %60 = vector.load %arg7[%c0_74, %c64_75] : memref<256x576xbf16, #tpu.memory_space<vmem>>, vector<256x64xbf16>
    tpu.vector_store %arg7[%c0_74, %c64_75], %59 {strides = array<i32>} : memref<256x576xbf16, #tpu.memory_space<vmem>>, vector<256x64xbf16>,
    %c0_76 = arith.constant 0 : index
    %c2_77 = arith.constant 2 : index
    %c0_78 = arith.constant 0 : index
    %61 = vector.load %arg8[%c0_76, %c2_77, %c0_78] : memref<18x18x64xbf16, #tpu.memory_space<vmem>>, vector<16x16x64xbf16>
    %62 = vector.shape_cast %61 : vector<16x16x64xbf16> to vector<256x64xbf16>
    %c0_79 = arith.constant 0 : index
    %c128_80 = arith.constant 128 : index
    %63 = vector.load %arg7[%c0_79, %c128_80] : memref<256x576xbf16, #tpu.memory_space<vmem>>, vector<256x64xbf16>
    tpu.vector_store %arg7[%c0_79, %c128_80], %62 {strides = array<i32>} : memref<256x576xbf16, #tpu.memory_space<vmem>>, vector<256x64xbf16>,
    %c1_81 = arith.constant 1 : index
    %c0_82 = arith.constant 0 : index
    %c0_83 = arith.constant 0 : index
    %64 = vector.load %arg8[%c1_81, %c0_82, %c0_83] : memref<18x18x64xbf16, #tpu.memory_space<vmem>>, vector<16x16x64xbf16>
    %65 = vector.shape_cast %64 : vector<16x16x64xbf16> to vector<256x64xbf16>
    %c0_84 = arith.constant 0 : index
    %c192_85 = arith.constant 192 : index
    %66 = vector.load %arg7[%c0_84, %c192_85] : memref<256x576xbf16, #tpu.memory_space<vmem>>, vector<256x64xbf16>
    tpu.vector_store %arg7[%c0_84, %c192_85], %65 {strides = array<i32>} : memref<256x576xbf16, #tpu.memory_space<vmem>>, vector<256x64xbf16>,
    %c1_86 = arith.constant 1 : index
    %c1_87 = arith.constant 1 : index
    %c0_88 = arith.constant 0 : index
    %67 = vector.load %arg8[%c1_86, %c1_87, %c0_88] : memref<18x18x64xbf16, #tpu.memory_space<vmem>>, vector<16x16x64xbf16>
    %68 = vector.shape_cast %67 : vector<16x16x64xbf16> to vector<256x64xbf16>
    %c0_89 = arith.constant 0 : index
    %c256_90 = arith.constant 256 : index
    %69 = vector.load %arg7[%c0_89, %c256_90] : memref<256x576xbf16, #tpu.memory_space<vmem>>, vector<256x64xbf16>
    tpu.vector_store %arg7[%c0_89, %c256_90], %68 {strides = array<i32>} : memref<256x576xbf16, #tpu.memory_space<vmem>>, vector<256x64xbf16>,
    %c1_91 = arith.constant 1 : index
    %c2_92 = arith.constant 2 : index
    %c0_93 = arith.constant 0 : index
    %70 = vector.load %arg8[%c1_91, %c2_92, %c0_93] : memref<18x18x64xbf16, #tpu.memory_space<vmem>>, vector<16x16x64xbf16>
    %71 = vector.shape_cast %70 : vector<16x16x64xbf16> to vector<256x64xbf16>
    %c0_94 = arith.constant 0 : index
    %c320_95 = arith.constant 320 : index
    %72 = vector.load %arg7[%c0_94, %c320_95] : memref<256x576xbf16, #tpu.memory_space<vmem>>, vector<256x64xbf16>
    tpu.vector_store %arg7[%c0_94, %c320_95], %71 {strides = array<i32>} : memref<256x576xbf16, #tpu.memory_space<vmem>>, vector<256x64xbf16>,
    %c2_96 = arith.constant 2 : index
    %c0_97 = arith.constant 0 : index
    %c0_98 = arith.constant 0 : index
    %73 = vector.load %arg8[%c2_96, %c0_97, %c0_98] : memref<18x18x64xbf16, #tpu.memory_space<vmem>>, vector<16x16x64xbf16>
    %74 = vector.shape_cast %73 : vector<16x16x64xbf16> to vector<256x64xbf16>
    %c0_99 = arith.constant 0 : index
    %c384_100 = arith.constant 384 : index
    %75 = vector.load %arg7[%c0_99, %c384_100] : memref<256x576xbf16, #tpu.memory_space<vmem>>, vector<256x64xbf16>
    tpu.vector_store %arg7[%c0_99, %c384_100], %74 {strides = array<i32>} : memref<256x576xbf16, #tpu.memory_space<vmem>>, vector<256x64xbf16>,
    %c2_101 = arith.constant 2 : index
    %c1_102 = arith.constant 1 : index
    %c0_103 = arith.constant 0 : index
    %76 = vector.load %arg8[%c2_101, %c1_102, %c0_103] : memref<18x18x64xbf16, #tpu.memory_space<vmem>>, vector<16x16x64xbf16>
    %77 = vector.shape_cast %76 : vector<16x16x64xbf16> to vector<256x64xbf16>
    %c0_104 = arith.constant 0 : index
    %c448_105 = arith.constant 448 : index
    %78 = vector.load %arg7[%c0_104, %c448_105] : memref<256x576xbf16, #tpu.memory_space<vmem>>, vector<256x64xbf16>
    tpu.vector_store %arg7[%c0_104, %c448_105], %77 {strides = array<i32>} : memref<256x576xbf16, #tpu.memory_space<vmem>>, vector<256x64xbf16>,
    %c2_106 = arith.constant 2 : index
    %c2_107 = arith.constant 2 : index
    %c0_108 = arith.constant 0 : index
    %79 = vector.load %arg8[%c2_106, %c2_107, %c0_108] : memref<18x18x64xbf16, #tpu.memory_space<vmem>>, vector<16x16x64xbf16>
    %80 = vector.shape_cast %79 : vector<16x16x64xbf16> to vector<256x64xbf16>
    %c0_109 = arith.constant 0 : index
    %c512_110 = arith.constant 512 : index
    %81 = vector.load %arg7[%c0_109, %c512_110] : memref<256x576xbf16, #tpu.memory_space<vmem>>, vector<256x64xbf16>
    tpu.vector_store %arg7[%c0_109, %c512_110], %80 {strides = array<i32>} : memref<256x576xbf16, #tpu.memory_space<vmem>>, vector<256x64xbf16>,
    %c0_111 = arith.constant 0 : index
    %c0_112 = arith.constant 0 : index
    %82 = vector.load %arg7[%c0_111, %c0_112] : memref<256x576xbf16, #tpu.memory_space<vmem>>, vector<256x576xbf16>
    %c0_113 = arith.constant 0 : index
    %c0_114 = arith.constant 0 : index
    %83 = vector.load %arg4[%c0_113, %c0_114] : memref<576x64xbf16, #tpu.memory_space<vmem>>, vector<576x64xbf16>
    %cst_115 = arith.constant dense<0.000000e+00> : vector<256x64xf32>
    %84 = tpu.matmul %82, %83, %cst_115 {dimension_numbers = #tpu.dot_dimension_numbers<[1], [0], [0], [1], [0, 0, 1, 1], [], []>} : vector<256x576xbf16>, vector<576x64xbf16>, vector<256x64xf32> -> vector<256x64xf32>
    %c0_116 = arith.constant 0 : index
    %c0_117 = arith.constant 0 : index
    %85 = vector.load %arg5[%c0_116, %c0_117] : memref<1x64xf32, #tpu.memory_space<vmem>>, vector<1x64xf32>
    %86 = vector.shape_cast %85 : vector<1x64xf32> to vector<64xf32>
    %87 = vector.shape_cast %86 : vector<64xf32> to vector<1x64xf32>
    %88 = vector.broadcast %87 : vector<1x64xf32> to vector<256x64xf32>
    %89 = arith.addf %84, %88 : vector<256x64xf32>
    %90 = vector.shape_cast %89 : vector<256x64xf32> to vector<16x16x64xf32>
    %c0_118 = arith.constant 0 : index
    %c1_119 = arith.constant 1 : index
    %c1_120 = arith.constant 1 : index
    %c0_121 = arith.constant 0 : index
    %91 = vector.load %arg1[%c0_118, %c1_119, %c1_120, %c0_121] : memref<1x18x18x64xbf16, #tpu.memory_space<vmem>>, vector<1x16x16x64xbf16>
    %92 = vector.shape_cast %91 : vector<1x16x16x64xbf16> to vector<16x16x64xbf16>
    %93 = arith.extf %92 : vector<16x16x64xbf16> to vector<16x16x64xf32>
    %94 = arith.addf %90, %93 : vector<16x16x64xf32>
    %cst_122 = arith.constant 0.000000e+00 : f32
    %95 = vector.broadcast %cst_122 : f32 to vector<16x16x64xf32>
    %96 = arith.maximumf %94, %95 : vector<16x16x64xf32>
    %c0_123 = arith.constant 0 : index
    %c0_124 = arith.constant 0 : index
    %c0_125 = arith.constant 0 : index
    %c0_126 = arith.constant 0 : index
    %97 = vector.load %arg6[%c0_123, %c0_124, %c0_125, %c0_126] : memref<1x16x16x64xf32, #tpu.memory_space<vmem>>, vector<1x16x16x64xf32>
    %98 = vector.shape_cast %97 : vector<1x16x16x64xf32> to vector<16x16x64xf32>
    %99 = vector.shape_cast %96 : vector<16x16x64xf32> to vector<1x16x16x64xf32>
    tpu.vector_store %arg6[%c0_123, %c0_124, %c0_125, %c0_126], %99 {strides = array<i32>} : memref<1x16x16x64xf32, #tpu.memory_space<vmem>>, vector<1x16x16x64xf32>,
    return
  }
  func.func @transform_0(%arg0: i32) -> (i32, i32, i32, i32) {
    %c0_i32 = arith.constant 0 : i32
    %c0_i32_0 = arith.constant 0 : i32
    %c0_i32_1 = arith.constant 0 : i32
    %c0_i32_2 = arith.constant 0 : i32
    return %arg0, %c0_i32, %c0_i32_0, %c0_i32_1 : i32, i32, i32, i32
  }
  func.func @transform_1(%arg0: i32) -> (i32, i32) {
    %c0_i32 = arith.constant 0 : i32
    %c0_i32_0 = arith.constant 0 : i32
    %c0_i32_1 = arith.constant 0 : i32
    return %c0_i32, %c0_i32_0 : i32, i32
  }
  func.func @transform_2(%arg0: i32) -> (i32, i32) {
    %c0_i32 = arith.constant 0 : i32
    %c0_i32_0 = arith.constant 0 : i32
    %c0_i32_1 = arith.constant 0 : i32
    return %c0_i32, %c0_i32_0 : i32, i32
  }
  func.func @transform_3(%arg0: i32) -> (i32, i32) {
    %c0_i32 = arith.constant 0 : i32
    %c0_i32_0 = arith.constant 0 : i32
    %c0_i32_1 = arith.constant 0 : i32
    return %c0_i32, %c0_i32_0 : i32, i32
  }
  func.func @transform_4(%arg0: i32) -> (i32, i32) {
    %c0_i32 = arith.constant 0 : i32
    %c0_i32_0 = arith.constant 0 : i32
    %c0_i32_1 = arith.constant 0 : i32
    return %c0_i32, %c0_i32_0 : i32, i32
  }
  func.func @transform_5(%arg0: i32) -> (i32, i32, i32, i32) {
    %c0_i32 = arith.constant 0 : i32
    %c0_i32_0 = arith.constant 0 : i32
    %c0_i32_1 = arith.constant 0 : i32
    %c0_i32_2 = arith.constant 0 : i32
    return %arg0, %c0_i32, %c0_i32_0, %c0_i32_1 : i32, i32, i32, i32
  }
}

</mosaic_0001>

<llo_original>
// kernel: tpu_custom_call.1
$region0: #{tpu_custom_call.1}
  #allocation0 [shape = 'u32[]', space=smem, size = 0x4, offset = 0x4, fixed_abs, tag = 'smem constant byte address 0x4 - core index']
  #allocation1 [shape = 'u32[144,128]{1,0:T(1,128)}', space=vmem, size = 0x12000, scoped, tag = 'internal scratch']
  #allocation2 [shape = 'bf16[256,576]{1,0:T(16,128)(2,1)}', space=vmem, size = 0x50000, scoped, tag = 'scratch operand']
  #allocation3 [shape = 'bf16[18,18,64]{2,1,0:T(8,128)(2,1)}', space=vmem, size = 0x1b000, scoped, tag = 'scratch operand']
  %s0 = inlined_call_operand.vmem [shape: bf16[2,18,18,64], index: 0, kind: input, shape index: {}]
  %s1 = inlined_call_operand.vmem [shape: bf16[576,64], index: 1, kind: input, shape index: {}]
  %s2 = inlined_call_operand.vmem [shape: f32[1,64], index: 2, kind: input, shape index: {}]
  %s3 = inlined_call_operand.vmem [shape: bf16[576,64], index: 3, kind: input, shape index: {}]
  %s4 = inlined_call_operand.vmem [shape: f32[1,64], index: 4, kind: input, shape index: {}]
  %s5 = inlined_call_operand.hbm [shape: f32[2,16,16,64], index: 5, kind: output, shape index: {}]
  %s6 = sld [smem:[#allocation0]]
  $region53: #{tpu_custom_call.1} parent=0
    _
  %s8 = ssub.s32 1, %s6
  %s9 = scalar_select 0, %s8, %s6
  $region1: #{tpu_custom_call.1} parent=0
    #allocation4 [shape = 'u8[262144]{0}', space=vmem, size = 0x40000, scoped, tag = 'output window, operand 0']
    #allocation5 [shape = 's32[2]{0}', space=sflag, size = 0x8, scoped, tag = 'scoped memory for tpu_custom_call.1']
    %10 = vsyncpa [#allocation5], 0
    %s11 = scalar_lea.sflag [#allocation5], 1
    %12 = vsyncpa %s11, 0
    loop: start=0, step=1, limit=4
    $region2: #{tpu_custom_call.1} parent=1 // loop_pre_header
      _
    $region3: #{tpu_custom_call.1} parent=1 // loop_header
      %s14 = sphi 0, %s18
      %p15 = scmp.ge.s32.totalorder %s14, 4
      %s24 = sphi 0, %s26
      %s27 = sphi 0, %s24
      %s28 = sphi 0, %s27
      %s44 = sphi 0, %s28
      %s48 = sphi 0, %s48
      %s50 = sphi 0, %s48
      %s51 = sphi 0, %s50
      %s65 = sphi 0, %s51
      %s69 = sphi 0, %s69
      %s71 = sphi 0, %s69
      %s72 = sphi 0, %s71
      %s86 = sphi 0, %s72
      %s90 = sphi 0, %s90
      %s92 = sphi 0, %s90
      %s93 = sphi 0, %s92
      %s107 = sphi 0, %s93
      %s111 = sphi 0, %s111
      %s113 = sphi 0, %s111
      %s114 = sphi 0, %s113
      %s128 = sphi 0, %s114
      %s134 = sphi 0, %s136
      %s137 = sphi 0, %s134
      %s138 = sphi 0, %s137
      %s154 = sphi 0, %s138
    $region4: #{tpu_custom_call.1} parent=1 // loop_header_branch
      %17 = sbr.rel (%p15) target = $region8
    $region5: #{tpu_custom_call.1} parent=1 // loop_body
      %s19 = ssub.s32 %s14, 1
      %s20 = ssub.s32 %s14, 2
      %s21 = sadd.s32 %s14, 1
      %s22 = ssub.s32 %s14, %s21
      %p23 = scmp.eq.s32.totalorder %s22, 0
      %s25 = sadd.s32 %s24, 1
      %s26 = scalar_select %p23, %s24, %s25
      %p29 = pneg %p23
      %p30 = scmp.eq.s32.totalorder %s14, 1
      %p31 = por %p29, %p30
      %p32 = scmp.ne.s32.totalorder %s24, %s27
      %p33 = scmp.eq.s32.totalorder %s14, 0
      %p34 = por %p32, %p33
      %p35 = scmp.ne.s32.totalorder %s24, %s27
      %p36 = scmp.eq.s32.totalorder %s19, 1
      %p37 = por %p35, %p36
      %p38 = scmp.ne.s32.totalorder %s27, %s28
      %p39 = scmp.eq.s32.totalorder %s19, 0
      %p40 = por %p38, %p39
      %p41 = scmp.ne.s32.totalorder %s27, %s28
      %p42 = scmp.eq.s32.totalorder %s20, 1
      %p43 = por %p41, %p42
      %p45 = scmp.ne.s32.totalorder %s28, %s44
      %p46 = scmp.eq.s32.totalorder %s20, 0
      %p47 = por %p45, %p46
      %s49 = sadd.s32 %s48, 1
      %p52 = scmp.eq.s32.totalorder %s14, 1
      %p53 = scmp.ne.s32.totalorder %s48, %s50
      %p54 = scmp.eq.s32.totalorder %s14, 0
      %p55 = por %p53, %p54
      %p56 = scmp.ne.s32.totalorder %s48, %s50
      %p57 = scmp.eq.s32.totalorder %s19, 1
      %p58 = por %p56, %p57
      %p59 = scmp.ne.s32.totalorder %s50, %s51
      %p60 = scmp.eq.s32.totalorder %s19, 0
      %p61 = por %p59, %p60
      %p62 = scmp.ne.s32.totalorder %s50, %s51
      %p63 = scmp.eq.s32.totalorder %s20, 1
      %p64 = por %p62, %p63
      %p66 = scmp.ne.s32.totalorder %s51, %s65
      %p67 = scmp.eq.s32.totalorder %s20, 0
      %p68 = por %p66, %p67
      %s70 = sadd.s32 %s69, 1
      %p73 = scmp.eq.s32.totalorder %s14, 1
      %p74 = scmp.ne.s32.totalorder %s69, %s71
      %p75 = scmp.eq.s32.totalorder %s14, 0
      %p76 = por %p74, %p75
      %p77 = scmp.ne.s32.totalorder %s69, %s71
      %p78 = scmp.eq.s32.totalorder %s19, 1
      %p79 = por %p77, %p78
      %p80 = scmp.ne.s32.totalorder %s71, %s72
      %p81 = scmp.eq.s32.totalorder %s19, 0
      %p82 = por %p80, %p81
      %p83 = scmp.ne.s32.totalorder %s71, %s72
      %p84 = scmp.eq.s32.totalorder %s20, 1
      %p85 = por %p83, %p84
      %p87 = scmp.ne.s32.totalorder %s72, %s86
      %p88 = scmp.eq.s32.totalorder %s20, 0
      %p89 = por %p87, %p88
      %s91 = sadd.s32 %s90, 1
      %p94 = scmp.eq.s32.totalorder %s14, 1
      %p95 = scmp.ne.s32.totalorder %s90, %s92
      %p96 = scmp.eq.s32.totalorder %s14, 0
      %p97 = por %p95, %p96
      %p98 = scmp.ne.s32.totalorder %s90, %s92
      %p99 = scmp.eq.s32.totalorder %s19, 1
      %p100 = por %p98, %p99
      %p101 = scmp.ne.s32.totalorder %s92, %s93
      %p102 = scmp.eq.s32.totalorder %s19, 0
      %p103 = por %p101, %p102
      %p104 = scmp.ne.s32.totalorder %s92, %s93
      %p105 = scmp.eq.s32.totalorder %s20, 1
      %p106 = por %p104, %p105
      %p108 = scmp.ne.s32.totalorder %s93, %s107
      %p109 = scmp.eq.s32.totalorder %s20, 0
      %p110 = por %p108, %p109
      %s112 = sadd.s32 %s111, 1
      %p115 = scmp.eq.s32.totalorder %s14, 1
      %p116 = scmp.ne.s32.totalorder %s111, %s113
      %p117 = scmp.eq.s32.totalorder %s14, 0
      %p118 = por %p116, %p117
      %p119 = scmp.ne.s32.totalorder %s111, %s113
      %p120 = scmp.eq.s32.totalorder %s19, 1
      %p121 = por %p119, %p120
      %p122 = scmp.ne.s32.totalorder %s113, %s114
      %p123 = scmp.eq.s32.totalorder %s19, 0
      %p124 = por %p122, %p123
      %p125 = scmp.ne.s32.totalorder %s113, %s114
      %p126 = scmp.eq.s32.totalorder %s20, 1
      %p127 = por %p125, %p126
      %p129 = scmp.ne.s32.totalorder %s114, %s128
      %p130 = scmp.eq.s32.totalorder %s20, 0
      %p131 = por %p129, %p130
      %s132 = ssub.s32 %s14, %s21
      %p133 = scmp.eq.s32.totalorder %s132, 0
      %s135 = sadd.s32 %s134, 1
      %s136 = scalar_select %p133, %s134, %s135
      %p139 = pneg %p133
      %p140 = scmp.eq.s32.totalorder %s14, 1
      %p141 = por %p139, %p140
      %p142 = scmp.ne.s32.totalorder %s134, %s137
      %p143 = scmp.eq.s32.totalorder %s14, 0
      %p144 = por %p142, %p143
      %p145 = scmp.ne.s32.totalorder %s134, %s137
      %p146 = scmp.eq.s32.totalorder %s19, 1
      %p147 = por %p145, %p146
      %p148 = scmp.ne.s32.totalorder %s137, %s138
      %p149 = scmp.eq.s32.totalorder %s19, 0
      %p150 = por %p148, %p149
      %p151 = scmp.ne.s32.totalorder %s137, %s138
      %p152 = scmp.eq.s32.totalorder %s20, 1
      %p153 = por %p151, %p152
      %p155 = scmp.ne.s32.totalorder %s138, %s154
      %p156 = scmp.eq.s32.totalorder %s20, 0
      %p157 = por %p155, %p156
      %p158 = scmp.le.s32.totalorder 1, %s14
      %p159 = scmp.lt.s32.totalorder %s14, 3
      %p160 = pnand %p158, %p159
      %p161 = pneg %p160
      // Predicated region
      $region9: #{tpu_custom_call.1} parent=5 // pred_check
        _
      $region10: #{tpu_custom_call.1} parent=5 // pred_check_branch
        %163 = sbr.rel (%p160) target = $region12
      $region11: #{tpu_custom_call.1} parent=5 // pred_region
        %s164 = ssub.s32 %s14, 1
        // Predicated region
        $region13: #{tpu_custom_call.1} parent=11 // pred_check
          %p165 = pneg %p61
        $region14: #{tpu_custom_call.1} parent=11 // pred_check_branch
          %167 = sbr.rel (%p165) target = $region16
        $region15: #{tpu_custom_call.1} parent=11 // pred_region
          _
        $region16: #{tpu_custom_call.1} parent=11 // pred_fallthru
          _
        // Predicated region
        $region17: #{tpu_custom_call.1} parent=11 // pred_check
          %p168 = pneg %p82
        $region18: #{tpu_custom_call.1} parent=11 // pred_check_branch
          %170 = sbr.rel (%p168) target = $region20
        $region19: #{tpu_custom_call.1} parent=11 // pred_region
          _
        $region20: #{tpu_custom_call.1} parent=11 // pred_fallthru
          _
        // Predicated region
        $region21: #{tpu_custom_call.1} parent=11 // pred_check
          %p171 = pneg %p103
        $region22: #{tpu_custom_call.1} parent=11 // pred_check_branch
          %173 = sbr.rel (%p171) target = $region24
        $region23: #{tpu_custom_call.1} parent=11 // pred_region
          _
        $region24: #{tpu_custom_call.1} parent=11 // pred_fallthru
          _
        // Predicated region
        $region25: #{tpu_custom_call.1} parent=11 // pred_check
          %p174 = pneg %p124
        $region26: #{tpu_custom_call.1} parent=11 // pred_check_branch
          %176 = sbr.rel (%p174) target = $region28
        $region27: #{tpu_custom_call.1} parent=11 // pred_region
          _
        $region28: #{tpu_custom_call.1} parent=11 // pred_fallthru
          _
      $region12: #{tpu_custom_call.1} parent=5 // pred_fallthru
        _
      %p177 = scmp.lt.s32.totalorder %s14, 2
      // Predicated region
      $region29: #{tpu_custom_call.1} parent=5 // pred_check
        %p178 = pneg %p177
      $region30: #{tpu_custom_call.1} parent=5 // pred_check_branch
        %180 = sbr.rel (%p178) target = $region32
      $region31: #{tpu_custom_call.1} parent=5 // pred_region
        // Predicated region
        $region33: #{tpu_custom_call.1} parent=31 // pred_check
          %p181 = pneg %p34
        $region34: #{tpu_custom_call.1} parent=31 // pred_check_branch
          %183 = sbr.rel (%p181) target = $region36
        $region35: #{tpu_custom_call.1} parent=31 // pred_region
          %p184 = scmp.lt.s32.totalorder %s14, 1
          %s185 = scalar_select %p184, %s14, 1
          %s186 = smul.addr %s185, 54
          %s187 = smul.addr %s186, 4
          %s188 = scalar_lea.vmem %s0, %s187
        $region36: #{tpu_custom_call.1} parent=31 // pred_fallthru
          _
      $region32: #{tpu_custom_call.1} parent=5 // pred_fallthru
        _
      %p189 = scmp.le.s32.totalorder 1, %s14
      %p190 = scmp.lt.s32.totalorder %s14, 3
      %p191 = pnand %p189, %p190
      %p192 = pneg %p191
      // Predicated region
      $region37: #{tpu_custom_call.1} parent=5 // pred_check
        _
      $region38: #{tpu_custom_call.1} parent=5 // pred_check_branch
        %194 = sbr.rel (%p191) target = $region40
      $region39: #{tpu_custom_call.1} parent=5 // pred_region
        %s195 = ssub.s32 %s14, 1
        %p196 = scmp.lt.s32.totalorder %s19, 1
        %s197 = scalar_select %p196, %s19, 1
        %s198 = smul.addr %s197, 54
        %s199 = smul.addr %s198, 4
        %s200 = scalar_lea.vmem %s0, %s199
        %p201 = pneg %p40
        %p202 = pneg %p37
        %p203 = pneg %p61
        %p204 = pneg %p58
        %p205 = pneg %p82
        %p206 = pneg %p79
        %p207 = pneg %p103
        %p208 = pneg %p100
        %p209 = pneg %p124
        %p210 = pneg %p121
        %p211 = pneg %p150
        %p212 = pneg %p147
        %s213 = sand.u32 %s137, 1
        %s214 = scalar_lea.sflag [#allocation5], %s213
        %s215 = sand.u32 %s137, 1
        %s216 = smul.addr %s215, 256
        %s217 = scalar_lea.vmem [#allocation4], %s216
        %p218 = scmp.lt.s32.totalorder %s19, 1
        %s219 = scalar_select %p218, %s19, 1
        %s220 = smul.addr %s219, 54
        %s221 = smul.addr %s220, 4
        %s222 = scalar_lea.vmem %s0, %s221
        %v224 = vld [vmem:[%s222] sm:$0xf]
        %v225 = vld [vmem:[%s222 + $0x4] sm:$0xf]
        %v226 = vld [vmem:[%s222 + $0xc] sm:$0xf]
        %v227 = vld [vmem:[%s222 + $0x10] sm:$0xf]
        %v228 = vld [vmem:[%s222 + $0x18] sm:$0xf]
        %v229 = vld [vmem:[%s222 + $0x1c] sm:$0xf]
        %v230 = vld [vmem:[%s222 + $0x24] sm:$0xf]
        %v231 = vld [vmem:[%s222 + $0x28] sm:$0xf]
        %v232 = vld [vmem:[%s222 + $0x30] sm:$0xf]
        %v233 = vld [vmem:[%s222 + $0x34] sm:$0xf]
        %v234 = vld [vmem:[%s222 + $0x3c] sm:$0xf]
        %v235 = vld [vmem:[%s222 + $0x40] sm:$0xf]
        %v236 = vld [vmem:[%s222 + $0x48] sm:$0xf]
        %v237 = vld [vmem:[%s222 + $0x4c] sm:$0xf]
        %v238 = vld [vmem:[%s222 + $0x54] sm:$0xf]
        %v239 = vld [vmem:[%s222 + $0x58] sm:$0xf]
        %v240 = vld [vmem:[%s222 + $0x60] sm:$0xf]
        %v241 = vld [vmem:[%s222 + $0x64] sm:$0xf]
        %v242 = vld [vmem:[%s222 + $0x6c] sm:$0xf]
        %v243 = vld [vmem:[%s222 + $0x70] sm:$0xf]
        %v244 = vld [vmem:[%s222 + $0x78] sm:$0xf]
        %v245 = vld [vmem:[%s222 + $0x7c] sm:$0xf]
        %v246 = vld [vmem:[%s222 + $0x84] sm:$0xf]
        %v247 = vld [vmem:[%s222 + $0x88] sm:$0xf]
        %v248 = vld [vmem:[%s222 + $0x90] sm:$0xf]
        %v249 = vld [vmem:[%s222 + $0x94] sm:$0xf]
        %v250 = vld [vmem:[%s222 + $0x9c] sm:$0xf]
        %v251 = vld [vmem:[%s222 + $0xa0] sm:$0xf]
        %v252 = vld [vmem:[%s222 + $0xa8] sm:$0xf]
        %v253 = vld [vmem:[%s222 + $0xac] sm:$0xf]
        %v254 = vld [vmem:[%s222 + $0xb4] sm:$0xf]
        %v255 = vld [vmem:[%s222 + $0xb8] sm:$0xf]
        %v288 = vunpack.c.l.b16 %v224
        %v289 = vunpack.c.l.b16 %v225
        %v290 = vunpack.c.l.b16 %v226
        %v291 = vunpack.c.l.b16 %v227
        %v292 = vunpack.c.l.b16 %v228
        %v293 = vunpack.c.l.b16 %v229
        %v294 = vunpack.c.l.b16 %v230
        %v295 = vunpack.c.l.b16 %v231
        %v296 = vunpack.c.l.b16 %v232
        %v297 = vunpack.c.l.b16 %v233
        %v298 = vunpack.c.l.b16 %v234
        %v299 = vunpack.c.l.b16 %v235
        %v300 = vunpack.c.l.b16 %v236
        %v301 = vunpack.c.l.b16 %v237
        %v302 = vunpack.c.l.b16 %v238
        %v303 = vunpack.c.l.b16 %v239
        %v304 = vunpack.c.l.b16 %v240
        %v305 = vunpack.c.l.b16 %v241
        %v306 = vunpack.c.l.b16 %v242
        %v307 = vunpack.c.l.b16 %v243
        %v308 = vunpack.c.l.b16 %v244
        %v309 = vunpack.c.l.b16 %v245
        %v310 = vunpack.c.l.b16 %v246
        %v311 = vunpack.c.l.b16 %v247
        %v312 = vunpack.c.l.b16 %v248
        %v313 = vunpack.c.l.b16 %v249
        %v314 = vunpack.c.l.b16 %v250
        %v315 = vunpack.c.l.b16 %v251
        %v316 = vunpack.c.l.b16 %v252
        %v317 = vunpack.c.l.b16 %v253
        %v318 = vunpack.c.l.b16 %v254
        %v319 = vunpack.c.l.b16 %v255
        %v320 = vpack.c.b16 %v289, %v288
        %v321 = vpack.c.b16 %v291, %v290
        %v322 = vpack.c.b16 %v293, %v292
        %v323 = vpack.c.b16 %v295, %v294
        %v324 = vpack.c.b16 %v297, %v296
        %v325 = vpack.c.b16 %v299, %v298
        %v326 = vpack.c.b16 %v301, %v300
        %v327 = vpack.c.b16 %v303, %v302
        %v328 = vpack.c.b16 %v305, %v304
        %v329 = vpack.c.b16 %v307, %v306
        %v330 = vpack.c.b16 %v309, %v308
        %v331 = vpack.c.b16 %v311, %v310
        %v332 = vpack.c.b16 %v313, %v312
        %v333 = vpack.c.b16 %v315, %v314
        %v334 = vpack.c.b16 %v317, %v316
        %v335 = vpack.c.b16 %v319, %v318
        %vm352 = vcmask 523264
        %353 = vst.msk [vmem:[#allocation2] sm:$0xff] %vm352, %v320
        %354 = vst.msk [vmem:[#allocation2 + $0x28] sm:$0xff] %vm352, %v321
        %355 = vst.msk [vmem:[#allocation2 + $0x50] sm:$0xff] %vm352, %v322
        %356 = vst.msk [vmem:[#allocation2 + $0x78] sm:$0xff] %vm352, %v323
        %357 = vst.msk [vmem:[#allocation2 + $0xa0] sm:$0xff] %vm352, %v324
        %358 = vst.msk [vmem:[#allocation2 + $0xc8] sm:$0xff] %vm352, %v325
        %359 = vst.msk [vmem:[#allocation2 + $0xf0] sm:$0xff] %vm352, %v326
        %360 = vst.msk [vmem:[#allocation2 + $0x118] sm:$0xff] %vm352, %v327
        %361 = vst.msk [vmem:[#allocation2 + $0x140] sm:$0xff] %vm352, %v328
        %362 = vst.msk [vmem:[#allocation2 + $0x168] sm:$0xff] %vm352, %v329
        %363 = vst.msk [vmem:[#allocation2 + $0x190] sm:$0xff] %vm352, %v330
        %364 = vst.msk [vmem:[#allocation2 + $0x1b8] sm:$0xff] %vm352, %v331
        %365 = vst.msk [vmem:[#allocation2 + $0x1e0] sm:$0xff] %vm352, %v332
        %366 = vst.msk [vmem:[#allocation2 + $0x208] sm:$0xff] %vm352, %v333
        %367 = vst.msk [vmem:[#allocation2 + $0x230] sm:$0xff] %vm352, %v334
        %368 = vst.msk [vmem:[#allocation2 + $0x258] sm:$0xff] %vm352, %v335
        %v369 = vld [vmem:[%s222] sm:$0xf]
        %v370 = vld [vmem:[%s222 + $0x4] sm:$0xf]
        %v371 = vld [vmem:[%s222 + $0x8] sm:$0x1]
        %v372 = vld [vmem:[%s222 + $0xc] sm:$0xf]
        %v373 = vld [vmem:[%s222 + $0x10] sm:$0xf]
        %v374 = vld [vmem:[%s222 + $0x14] sm:$0x1]
        %v375 = vld [vmem:[%s222 + $0x18] sm:$0xf]
        %v376 = vld [vmem:[%s222 + $0x1c] sm:$0xf]
        %v377 = vld [vmem:[%s222 + $0x20] sm:$0x1]
        %v378 = vld [vmem:[%s222 + $0x24] sm:$0xf]
        %v379 = vld [vmem:[%s222 + $0x28] sm:$0xf]
        %v380 = vld [vmem:[%s222 + $0x2c] sm:$0x1]
        %v381 = vld [vmem:[%s222 + $0x30] sm:$0xf]
        %v382 = vld [vmem:[%s222 + $0x34] sm:$0xf]
        %v383 = vld [vmem:[%s222 + $0x38] sm:$0x1]
        %v384 = vld [vmem:[%s222 + $0x3c] sm:$0xf]
        %v385 = vld [vmem:[%s222 + $0x40] sm:$0xf]
        %v386 = vld [vmem:[%s222 + $0x44] sm:$0x1]
        %v387 = vld [vmem:[%s222 + $0x48] sm:$0xf]
        %v388 = vld [vmem:[%s222 + $0x4c] sm:$0xf]
        %v389 = vld [vmem:[%s222 + $0x50] sm:$0x1]
        %v390 = vld [vmem:[%s222 + $0x54] sm:$0xf]
        %v391 = vld [vmem:[%s222 + $0x58] sm:$0xf]
        %v392 = vld [vmem:[%s222 + $0x5c] sm:$0x1]
        %v393 = vld [vmem:[%s222 + $0x60] sm:$0xf]
        %v394 = vld [vmem:[%s222 + $0x64] sm:$0xf]
        %v395 = vld [vmem:[%s222 + $0x68] sm:$0x1]
        %v396 = vld [vmem:[%s222 + $0x6c] sm:$0xf]
        %v397 = vld [vmem:[%s222 + $0x70] sm:$0xf]
        %v398 = vld [vmem:[%s222 + $0x74] sm:$0x1]
        %v399 = vld [vmem:[%s222 + $0x78] sm:$0xf]
        %v400 = vld [vmem:[%s222 + $0x7c] sm:$0xf]
        %v401 = vld [vmem:[%s222 + $0x80] sm:$0x1]
        %v402 = vld [vmem:[%s222 + $0x84] sm:$0xf]
        %v403 = vld [vmem:[%s222 + $0x88] sm:$0xf]
        %v404 = vld [vmem:[%s222 + $0x8c] sm:$0x1]
        %v405 = vld [vmem:[%s222 + $0x90] sm:$0xf]
        %v406 = vld [vmem:[%s222 + $0x94] sm:$0xf]
        %v407 = vld [vmem:[%s222 + $0x98] sm:$0x1]
        %v408 = vld [vmem:[%s222 + $0x9c] sm:$0xf]
        %v409 = vld [vmem:[%s222 + $0xa0] sm:$0xf]
        %v410 = vld [vmem:[%s222 + $0xa4] sm:$0x1]
        %v411 = vld [vmem:[%s222 + $0xa8] sm:$0xf]
        %v412 = vld [vmem:[%s222 + $0xac] sm:$0xf]
        %v413 = vld [vmem:[%s222 + $0xb0] sm:$0x1]
        %v414 = vld [vmem:[%s222 + $0xb4] sm:$0xf]
        %v415 = vld [vmem:[%s222 + $0xb8] sm:$0xf]
        %v416 = vld [vmem:[%s222 + $0xbc] sm:$0x1]
        %vm417 = vsmask.f32 3328
        %vm418 = vsmask.f32 7440
        %vm419 = vmor %vm417, %vm418
        %v421 = vshrl.u32 %v369, 16
        %v423 = vrot.slane %v421, 4
        %v424 = vshll.u32 %v369, 16
        %v426 = vrot.slane %v424, 5
        %v427 = vor.u32 %v423, %v426
        %v428 = vrot.slane %v427, 4
        %v430 = vshll.u32 %v370, 16
        %v432 = vrot.slane %v430, 5
        %v433 = vsel %vm419, %v428, %v432
        %v434 = vshrl.u32 %v370, 16
        %v436 = vrot.slane %v434, 4
        %v437 = vor.u32 %v436, %v432
        %v438 = vrot.slane %v437, 4
        %v440 = vshll.u32 %v371, 16
        %v442 = vrot.slane %v440, 5
        %v443 = vsel %vm419, %v438, %v442
        %v445 = vshrl.u32 %v372, 16
        %v447 = vrot.slane %v445, 4
        %v448 = vshll.u32 %v372, 16
        %v450 = vrot.slane %v448, 5
        %v451 = vor.u32 %v447, %v450
        %v452 = vrot.slane %v451, 4
        %v454 = vshll.u32 %v373, 16
        %v456 = vrot.slane %v454, 5
        %v457 = vsel %vm419, %v452, %v456
        %v458 = vshrl.u32 %v373, 16
        %v460 = vrot.slane %v458, 4
        %v461 = vor.u32 %v460, %v456
        %v462 = vrot.slane %v461, 4
        %v464 = vshll.u32 %v374, 16
        %v466 = vrot.slane %v464, 5
        %v467 = vsel %vm419, %v462, %v466
        %v469 = vshrl.u32 %v375, 16
        %v471 = vrot.slane %v469, 4
        %v472 = vshll.u32 %v375, 16
        %v474 = vrot.slane %v472, 5
        %v475 = vor.u32 %v471, %v474
        %v476 = vrot.slane %v475, 4
        %v478 = vshll.u32 %v376, 16
        %v480 = vrot.slane %v478, 5
        %v481 = vsel %vm419, %v476, %v480
        %v482 = vshrl.u32 %v376, 16
        %v484 = vrot.slane %v482, 4
        %v485 = vor.u32 %v484, %v480
        %v486 = vrot.slane %v485, 4
        %v488 = vshll.u32 %v377, 16
        %v490 = vrot.slane %v488, 5
        %v491 = vsel %vm419, %v486, %v490
        %v493 = vshrl.u32 %v378, 16
        %v495 = vrot.slane %v493, 4
        %v496 = vshll.u32 %v378, 16
        %v498 = vrot.slane %v496, 5
        %v499 = vor.u32 %v495, %v498
        %v500 = vrot.slane %v499, 4
        %v502 = vshll.u32 %v379, 16
        %v504 = vrot.slane %v502, 5
        %v505 = vsel %vm419, %v500, %v504
        %v506 = vshrl.u32 %v379, 16
        %v508 = vrot.slane %v506, 4
        %v509 = vor.u32 %v508, %v504
        %v510 = vrot.slane %v509, 4
        %v512 = vshll.u32 %v380, 16
        %v514 = vrot.slane %v512, 5
        %v515 = vsel %vm419, %v510, %v514
        %v517 = vshrl.u32 %v381, 16
        %v519 = vrot.slane %v517, 4
        %v520 = vshll.u32 %v381, 16
        %v522 = vrot.slane %v520, 5
        %v523 = vor.u32 %v519, %v522
        %v524 = vrot.slane %v523, 4
        %v526 = vshll.u32 %v382, 16
        %v528 = vrot.slane %v526, 5
        %v529 = vsel %vm419, %v524, %v528
        %v530 = vshrl.u32 %v382, 16
        %v532 = vrot.slane %v530, 4
        %v533 = vor.u32 %v532, %v528
        %v534 = vrot.slane %v533, 4
        %v536 = vshll.u32 %v383, 16
        %v538 = vrot.slane %v536, 5
        %v539 = vsel %vm419, %v534, %v538
        %v541 = vshrl.u32 %v384, 16
        %v543 = vrot.slane %v541, 4
        %v544 = vshll.u32 %v384, 16
        %v546 = vrot.slane %v544, 5
        %v547 = vor.u32 %v543, %v546
        %v548 = vrot.slane %v547, 4
        %v550 = vshll.u32 %v385, 16
        %v552 = vrot.slane %v550, 5
        %v553 = vsel %vm419, %v548, %v552
        %v554 = vshrl.u32 %v385, 16
        %v556 = vrot.slane %v554, 4
        %v557 = vor.u32 %v556, %v552
        %v558 = vrot.slane %v557, 4
        %v560 = vshll.u32 %v386, 16
        %v562 = vrot.slane %v560, 5
        %v563 = vsel %vm419, %v558, %v562
        %v565 = vshrl.u32 %v387, 16
        %v567 = vrot.slane %v565, 4
        %v568 = vshll.u32 %v387, 16
        %v570 = vrot.slane %v568, 5
        %v571 = vor.u32 %v567, %v570
        %v572 = vrot.slane %v571, 4
        %v574 = vshll.u32 %v388, 16
        %v576 = vrot.slane %v574, 5
        %v577 = vsel %vm419, %v572, %v576
        %v578 = vshrl.u32 %v388, 16
        %v580 = vrot.slane %v578, 4
        %v581 = vor.u32 %v580, %v576
        %v582 = vrot.slane %v581, 4
        %v584 = vshll.u32 %v389, 16
        %v586 = vrot.slane %v584, 5
        %v587 = vsel %vm419, %v582, %v586
        %v589 = vshrl.u32 %v390, 16
        %v591 = vrot.slane %v589, 4
        %v592 = vshll.u32 %v390, 16
        %v594 = vrot.slane %v592, 5
        %v595 = vor.u32 %v591, %v594
        %v596 = vrot.slane %v595, 4
        %v598 = vshll.u32 %v391, 16
        %v600 = vrot.slane %v598, 5
        %v601 = vsel %vm419, %v596, %v600
        %v602 = vshrl.u32 %v391, 16
        %v604 = vrot.slane %v602, 4
        %v605 = vor.u32 %v604, %v600
        %v606 = vrot.slane %v605, 4
        %v608 = vshll.u32 %v392, 16
        %v610 = vrot.slane %v608, 5
        %v611 = vsel %vm419, %v606, %v610
        %v613 = vshrl.u32 %v393, 16
        %v615 = vrot.slane %v613, 4
        %v616 = vshll.u32 %v393, 16
        %v618 = vrot.slane %v616, 5
        %v619 = vor.u32 %v615, %v618
        %v620 = vrot.slane %v619, 4
        %v622 = vshll.u32 %v394, 16
        %v624 = vrot.slane %v622, 5
        %v625 = vsel %vm419, %v620, %v624
        %v626 = vshrl.u32 %v394, 16
        %v628 = vrot.slane %v626, 4
        %v629 = vor.u32 %v628, %v624
        %v630 = vrot.slane %v629, 4
        %v632 = vshll.u32 %v395, 16
        %v634 = vrot.slane %v632, 5
        %v635 = vsel %vm419, %v630, %v634
        %v637 = vshrl.u32 %v396, 16
        %v639 = vrot.slane %v637, 4
        %v640 = vshll.u32 %v396, 16
        %v642 = vrot.slane %v640, 5
        %v643 = vor.u32 %v639, %v642
        %v644 = vrot.slane %v643, 4
        %v646 = vshll.u32 %v397, 16
        %v648 = vrot.slane %v646, 5
        %v649 = vsel %vm419, %v644, %v648
        %v650 = vshrl.u32 %v397, 16
        %v652 = vrot.slane %v650, 4
        %v653 = vor.u32 %v652, %v648
        %v654 = vrot.slane %v653, 4
        %v656 = vshll.u32 %v398, 16
        %v658 = vrot.slane %v656, 5
        %v659 = vsel %vm419, %v654, %v658
        %v661 = vshrl.u32 %v399, 16
        %v663 = vrot.slane %v661, 4
        %v664 = vshll.u32 %v399, 16
        %v666 = vrot.slane %v664, 5
        %v667 = vor.u32 %v663, %v666
        %v668 = vrot.slane %v667, 4
        %v670 = vshll.u32 %v400, 16
        %v672 = vrot.slane %v670, 5
        %v673 = vsel %vm419, %v668, %v672
        %v674 = vshrl.u32 %v400, 16
        %v676 = vrot.slane %v674, 4
        %v677 = vor.u32 %v676, %v672
        %v678 = vrot.slane %v677, 4
        %v680 = vshll.u32 %v401, 16
        %v682 = vrot.slane %v680, 5
        %v683 = vsel %vm419, %v678, %v682
        %v685 = vshrl.u32 %v402, 16
        %v687 = vrot.slane %v685, 4
        %v688 = vshll.u32 %v402, 16
        %v690 = vrot.slane %v688, 5
        %v691 = vor.u32 %v687, %v690
        %v692 = vrot.slane %v691, 4
        %v694 = vshll.u32 %v403, 16
        %v696 = vrot.slane %v694, 5
        %v697 = vsel %vm419, %v692, %v696
        %v698 = vshrl.u32 %v403, 16
        %v700 = vrot.slane %v698, 4
        %v701 = vor.u32 %v700, %v696
        %v702 = vrot.slane %v701, 4
        %v704 = vshll.u32 %v404, 16
        %v706 = vrot.slane %v704, 5
        %v707 = vsel %vm419, %v702, %v706
        %v709 = vshrl.u32 %v405, 16
        %v711 = vrot.slane %v709, 4
        %v712 = vshll.u32 %v405, 16
        %v714 = vrot.slane %v712, 5
        %v715 = vor.u32 %v711, %v714
        %v716 = vrot.slane %v715, 4
        %v718 = vshll.u32 %v406, 16
        %v720 = vrot.slane %v718, 5
        %v721 = vsel %vm419, %v716, %v720
        %v722 = vshrl.u32 %v406, 16
        %v724 = vrot.slane %v722, 4
        %v725 = vor.u32 %v724, %v720
        %v726 = vrot.slane %v725, 4
        %v728 = vshll.u32 %v407, 16
        %v730 = vrot.slane %v728, 5
        %v731 = vsel %vm419, %v726, %v730
        %v733 = vshrl.u32 %v408, 16
        %v735 = vrot.slane %v733, 4
        %v736 = vshll.u32 %v408, 16
        %v738 = vrot.slane %v736, 5
        %v739 = vor.u32 %v735, %v738
        %v740 = vrot.slane %v739, 4
        %v742 = vshll.u32 %v409, 16
        %v744 = vrot.slane %v742, 5
        %v745 = vsel %vm419, %v740, %v744
        %v746 = vshrl.u32 %v409, 16
        %v748 = vrot.slane %v746, 4
        %v749 = vor.u32 %v748, %v744
        %v750 = vrot.slane %v749, 4
        %v752 = vshll.u32 %v410, 16
        %v754 = vrot.slane %v752, 5
        %v755 = vsel %vm419, %v750, %v754
        %v757 = vshrl.u32 %v411, 16
        %v759 = vrot.slane %v757, 4
        %v760 = vshll.u32 %v411, 16
        %v762 = vrot.slane %v760, 5
        %v763 = vor.u32 %v759, %v762
        %v764 = vrot.slane %v763, 4
        %v766 = vshll.u32 %v412, 16
        %v768 = vrot.slane %v766, 5
        %v769 = vsel %vm419, %v764, %v768
        %v770 = vshrl.u32 %v412, 16
        %v772 = vrot.slane %v770, 4
        %v773 = vor.u32 %v772, %v768
        %v774 = vrot.slane %v773, 4
        %v776 = vshll.u32 %v413, 16
        %v778 = vrot.slane %v776, 5
        %v779 = vsel %vm419, %v774, %v778
        %v781 = vshrl.u32 %v414, 16
        %v783 = vrot.slane %v781, 4
        %v784 = vshll.u32 %v414, 16
        %v786 = vrot.slane %v784, 5
        %v787 = vor.u32 %v783, %v786
        %v788 = vrot.slane %v787, 4
        %v790 = vshll.u32 %v415, 16
        %v792 = vrot.slane %v790, 5
        %v793 = vsel %vm419, %v788, %v792
        %v794 = vshrl.u32 %v415, 16
        %v796 = vrot.slane %v794, 4
        %v797 = vor.u32 %v796, %v792
        %v798 = vrot.slane %v797, 4
        %v800 = vshll.u32 %v416, 16
        %v802 = vrot.slane %v800, 5
        %v803 = vsel %vm419, %v798, %v802
        %v804 = vunpack.c.l.b16 %v433
        %v805 = vunpack.c.l.b16 %v443
        %v806 = vunpack.c.l.b16 %v457
        %v807 = vunpack.c.l.b16 %v467
        %v808 = vunpack.c.l.b16 %v481
        %v809 = vunpack.c.l.b16 %v491
        %v810 = vunpack.c.l.b16 %v505
        %v811 = vunpack.c.l.b16 %v515
        %v812 = vunpack.c.l.b16 %v529
        %v813 = vunpack.c.l.b16 %v539
        %v814 = vunpack.c.l.b16 %v553
        %v815 = vunpack.c.l.b16 %v563
        %v816 = vunpack.c.l.b16 %v577
        %v817 = vunpack.c.l.b16 %v587
        %v818 = vunpack.c.l.b16 %v601
        %v819 = vunpack.c.l.b16 %v611
        %v820 = vunpack.c.l.b16 %v625
        %v821 = vunpack.c.l.b16 %v635
        %v822 = vunpack.c.l.b16 %v649
        %v823 = vunpack.c.l.b16 %v659
        %v824 = vunpack.c.l.b16 %v673
        %v825 = vunpack.c.l.b16 %v683
        %v826 = vunpack.c.l.b16 %v697
        %v827 = vunpack.c.l.b16 %v707
        %v828 = vunpack.c.l.b16 %v721
        %v829 = vunpack.c.l.b16 %v731
        %v830 = vunpack.c.l.b16 %v745
        %v831 = vunpack.c.l.b16 %v755
        %v832 = vunpack.c.l.b16 %v769
        %v833 = vunpack.c.l.b16 %v779
        %v834 = vunpack.c.l.b16 %v793
        %v835 = vunpack.c.l.b16 %v803
        %v836 = vpack.c.b16 %v805, %v804
        %v837 = vpack.c.b16 %v807, %v806
        %v838 = vpack.c.b16 %v809, %v808
        %v839 = vpack.c.b16 %v811, %v810
        %v840 = vpack.c.b16 %v813, %v812
        %v841 = vpack.c.b16 %v815, %v814
        %v842 = vpack.c.b16 %v817, %v816
        %v843 = vpack.c.b16 %v819, %v818
        %v844 = vpack.c.b16 %v821, %v820
        %v845 = vpack.c.b16 %v823, %v822
        %v846 = vpack.c.b16 %v825, %v824
        %v847 = vpack.c.b16 %v827, %v826
        %v848 = vpack.c.b16 %v829, %v828
        %v849 = vpack.c.b16 %v831, %v830
        %v850 = vpack.c.b16 %v833, %v832
        %v851 = vpack.c.b16 %v835, %v834
        %852 = vrot.lane.b32.xlu0 %v836, 64
        %v853 = vpop.permute.xlu0 %852
        %854 = vrot.lane.b32.xlu0 %v837, 64
        %v855 = vpop.permute.xlu0 %854
        %856 = vrot.lane.b32.xlu0 %v838, 64
        %v857 = vpop.permute.xlu0 %856
        %858 = vrot.lane.b32.xlu0 %v839, 64
        %v859 = vpop.permute.xlu0 %858
        %860 = vrot.lane.b32.xlu0 %v840, 64
        %v861 = vpop.permute.xlu0 %860
        %862 = vrot.lane.b32.xlu0 %v841, 64
        %v863 = vpop.permute.xlu0 %862
        %864 = vrot.lane.b32.xlu0 %v842, 64
        %v865 = vpop.permute.xlu0 %864
        %866 = vrot.lane.b32.xlu0 %v843, 64
        %v867 = vpop.permute.xlu0 %866
        %868 = vrot.lane.b32.xlu0 %v844, 64
        %v869 = vpop.permute.xlu0 %868
        %870 = vrot.lane.b32.xlu0 %v845, 64
        %v871 = vpop.permute.xlu0 %870
        %872 = vrot.lane.b32.xlu0 %v846, 64
        %v873 = vpop.permute.xlu0 %872
        %874 = vrot.lane.b32.xlu0 %v847, 64
        %v875 = vpop.permute.xlu0 %874
        %876 = vrot.lane.b32.xlu0 %v848, 64
        %v877 = vpop.permute.xlu0 %876
        %878 = vrot.lane.b32.xlu0 %v849, 64
        %v879 = vpop.permute.xlu0 %878
        %880 = vrot.lane.b32.xlu0 %v850, 64
        %v881 = vpop.permute.xlu0 %880
        %882 = vrot.lane.b32.xlu0 %v851, 64
        %v883 = vpop.permute.xlu0 %882
        %vm900 = vcmask 1048064
        %901 = vst.msk [vmem:[#allocation2] sm:$0xff] %vm900, %v853
        %902 = vst.msk [vmem:[#allocation2 + $0x28] sm:$0xff] %vm900, %v855
        %903 = vst.msk [vmem:[#allocation2 + $0x50] sm:$0xff] %vm900, %v857
        %904 = vst.msk [vmem:[#allocation2 + $0x78] sm:$0xff] %vm900, %v859
        %905 = vst.msk [vmem:[#allocation2 + $0xa0] sm:$0xff] %vm900, %v861
        %906 = vst.msk [vmem:[#allocation2 + $0xc8] sm:$0xff] %vm900, %v863
        %907 = vst.msk [vmem:[#allocation2 + $0xf0] sm:$0xff] %vm900, %v865
        %908 = vst.msk [vmem:[#allocation2 + $0x118] sm:$0xff] %vm900, %v867
        %909 = vst.msk [vmem:[#allocation2 + $0x140] sm:$0xff] %vm900, %v869
        %910 = vst.msk [vmem:[#allocation2 + $0x168] sm:$0xff] %vm900, %v871
        %911 = vst.msk [vmem:[#allocation2 + $0x190] sm:$0xff] %vm900, %v873
        %912 = vst.msk [vmem:[#allocation2 + $0x1b8] sm:$0xff] %vm900, %v875
        %913 = vst.msk [vmem:[#allocation2 + $0x1e0] sm:$0xff] %vm900, %v877
        %914 = vst.msk [vmem:[#allocation2 + $0x208] sm:$0xff] %vm900, %v879
        %915 = vst.msk [vmem:[#allocation2 + $0x230] sm:$0xff] %vm900, %v881
        %916 = vst.msk [vmem:[#allocation2 + $0x258] sm:$0xff] %vm900, %v883
        %v917 = vld [vmem:[%s222] sm:$0xe]
        %v918 = vld [vmem:[%s222 + $0x4] sm:$0xf]
        %v919 = vld [vmem:[%s222 + $0x8] sm:$0x1]
        %v920 = vld [vmem:[%s222 + $0xc] sm:$0xe]
        %v921 = vld [vmem:[%s222 + $0x10] sm:$0xf]
        %v922 = vld [vmem:[%s222 + $0x14] sm:$0x1]
        %v923 = vld [vmem:[%s222 + $0x18] sm:$0xe]
        %v924 = vld [vmem:[%s222 + $0x1c] sm:$0xf]
        %v925 = vld [vmem:[%s222 + $0x20] sm:$0x1]
        %v926 = vld [vmem:[%s222 + $0x24] sm:$0xe]
        %v927 = vld [vmem:[%s222 + $0x28] sm:$0xf]
        %v928 = vld [vmem:[%s222 + $0x2c] sm:$0x1]
        %v929 = vld [vmem:[%s222 + $0x30] sm:$0xe]
        %v930 = vld [vmem:[%s222 + $0x34] sm:$0xf]
        %v931 = vld [vmem:[%s222 + $0x38] sm:$0x1]
        %v932 = vld [vmem:[%s222 + $0x3c] sm:$0xe]
        %v933 = vld [vmem:[%s222 + $0x40] sm:$0xf]
        %v934 = vld [vmem:[%s222 + $0x44] sm:$0x1]
        %v935 = vld [vmem:[%s222 + $0x48] sm:$0xe]
        %v936 = vld [vmem:[%s222 + $0x4c] sm:$0xf]
        %v937 = vld [vmem:[%s222 + $0x50] sm:$0x1]
        %v938 = vld [vmem:[%s222 + $0x54] sm:$0xe]
        %v939 = vld [vmem:[%s222 + $0x58] sm:$0xf]
        %v940 = vld [vmem:[%s222 + $0x5c] sm:$0x1]
        %v941 = vld [vmem:[%s222 + $0x60] sm:$0xe]
        %v942 = vld [vmem:[%s222 + $0x64] sm:$0xf]
        %v943 = vld [vmem:[%s222 + $0x68] sm:$0x1]
        %v944 = vld [vmem:[%s222 + $0x6c] sm:$0xe]
        %v945 = vld [vmem:[%s222 + $0x70] sm:$0xf]
        %v946 = vld [vmem:[%s222 + $0x74] sm:$0x1]
        %v947 = vld [vmem:[%s222 + $0x78] sm:$0xe]
        %v948 = vld [vmem:[%s222 + $0x7c] sm:$0xf]
        %v949 = vld [vmem:[%s222 + $0x80] sm:$0x1]
        %v950 = vld [vmem:[%s222 + $0x84] sm:$0xe]
        %v951 = vld [vmem:[%s222 + $0x88] sm:$0xf]
        %v952 = vld [vmem:[%s222 + $0x8c] sm:$0x1]
        %v953 = vld [vmem:[%s222 + $0x90] sm:$0xe]
        %v954 = vld [vmem:[%s222 + $0x94] sm:$0xf]
        %v955 = vld [vmem:[%s222 + $0x98] sm:$0x1]
        %v956 = vld [vmem:[%s222 + $0x9c] sm:$0xe]
        %v957 = vld [vmem:[%s222 + $0xa0] sm:$0xf]
        %v958 = vld [vmem:[%s222 + $0xa4] sm:$0x1]
        %v959 = vld [vmem:[%s222 + $0xa8] sm:$0xe]
        %v960 = vld [vmem:[%s222 + $0xac] sm:$0xf]
        %v961 = vld [vmem:[%s222 + $0xb0] sm:$0x1]
        %v962 = vld [vmem:[%s222 + $0xb4] sm:$0xe]
        %v963 = vld [vmem:[%s222 + $0xb8] sm:$0xf]
        %v964 = vld [vmem:[%s222 + $0xbc] sm:$0x1]
        %vm1013 = vcmask 1042432
        %vm1014 = vcmask 1046532
        %vm1015 = vmor %vm1013, %vm1014
        %v1016 = vrot.slane %v917, 5
        %v1017 = vrot.slane %v1016, 4
        %v1018 = vrot.slane %v918, 5
        %v1019 = vsel %vm1015, %v1017, %v1018
        %v1020 = vrot.slane %v1018, 4
        %v1021 = vrot.slane %v919, 5
        %v1022 = vsel %vm1015, %v1020, %v1021
        %v1023 = vrot.slane %v920, 5
        %v1024 = vrot.slane %v1023, 4
        %v1025 = vrot.slane %v921, 5
        %v1026 = vsel %vm1015, %v1024, %v1025
        %v1027 = vrot.slane %v1025, 4
        %v1028 = vrot.slane %v922, 5
        %v1029 = vsel %vm1015, %v1027, %v1028
        %v1030 = vrot.slane %v923, 5
        %v1031 = vrot.slane %v1030, 4
        %v1032 = vrot.slane %v924, 5
        %v1033 = vsel %vm1015, %v1031, %v1032
        %v1034 = vrot.slane %v1032, 4
        %v1035 = vrot.slane %v925, 5
        %v1036 = vsel %vm1015, %v1034, %v1035
        %v1037 = vrot.slane %v926, 5
        %v1038 = vrot.slane %v1037, 4
        %v1039 = vrot.slane %v927, 5
        %v1040 = vsel %vm1015, %v1038, %v1039
        %v1041 = vrot.slane %v1039, 4
        %v1042 = vrot.slane %v928, 5
        %v1043 = vsel %vm1015, %v1041, %v1042
        %v1044 = vrot.slane %v929, 5
        %v1045 = vrot.slane %v1044, 4
        %v1046 = vrot.slane %v930, 5
        %v1047 = vsel %vm1015, %v1045, %v1046
        %v1048 = vrot.slane %v1046, 4
        %v1049 = vrot.slane %v931, 5
        %v1050 = vsel %vm1015, %v1048, %v1049
        %v1051 = vrot.slane %v932, 5
        %v1052 = vrot.slane %v1051, 4
        %v1053 = vrot.slane %v933, 5
        %v1054 = vsel %vm1015, %v1052, %v1053
        %v1055 = vrot.slane %v1053, 4
        %v1056 = vrot.slane %v934, 5
        %v1057 = vsel %vm1015, %v1055, %v1056
        %v1058 = vrot.slane %v935, 5
        %v1059 = vrot.slane %v1058, 4
        %v1060 = vrot.slane %v936, 5
        %v1061 = vsel %vm1015, %v1059, %v1060
        %v1062 = vrot.slane %v1060, 4
        %v1063 = vrot.slane %v937, 5
        %v1064 = vsel %vm1015, %v1062, %v1063
        %v1065 = vrot.slane %v938, 5
        %v1066 = vrot.slane %v1065, 4
        %v1067 = vrot.slane %v939, 5
        %v1068 = vsel %vm1015, %v1066, %v1067
        %v1069 = vrot.slane %v1067, 4
        %v1070 = vrot.slane %v940, 5
        %v1071 = vsel %vm1015, %v1069, %v1070
        %v1072 = vrot.slane %v941, 5
        %v1073 = vrot.slane %v1072, 4
        %v1074 = vrot.slane %v942, 5
        %v1075 = vsel %vm1015, %v1073, %v1074
        %v1076 = vrot.slane %v1074, 4
        %v1077 = vrot.slane %v943, 5
        %v1078 = vsel %vm1015, %v1076, %v1077
        %v1079 = vrot.slane %v944, 5
        %v1080 = vrot.slane %v1079, 4
        %v1081 = vrot.slane %v945, 5
        %v1082 = vsel %vm1015, %v1080, %v1081
        %v1083 = vrot.slane %v1081, 4
        %v1084 = vrot.slane %v946, 5
        %v1085 = vsel %vm1015, %v1083, %v1084
        %v1086 = vrot.slane %v947, 5
        %v1087 = vrot.slane %v1086, 4
        %v1088 = vrot.slane %v948, 5
        %v1089 = vsel %vm1015, %v1087, %v1088
        %v1090 = vrot.slane %v1088, 4
        %v1091 = vrot.slane %v949, 5
        %v1092 = vsel %vm1015, %v1090, %v1091
        %v1093 = vrot.slane %v950, 5
        %v1094 = vrot.slane %v1093, 4
        %v1095 = vrot.slane %v951, 5
        %v1096 = vsel %vm1015, %v1094, %v1095
        %v1097 = vrot.slane %v1095, 4
        %v1098 = vrot.slane %v952, 5
        %v1099 = vsel %vm1015, %v1097, %v1098
        %v1100 = vrot.slane %v953, 5
        %v1101 = vrot.slane %v1100, 4
        %v1102 = vrot.slane %v954, 5
        %v1103 = vsel %vm1015, %v1101, %v1102
        %v1104 = vrot.slane %v1102, 4
        %v1105 = vrot.slane %v955, 5
        %v1106 = vsel %vm1015, %v1104, %v1105
        %v1107 = vrot.slane %v956, 5
        %v1108 = vrot.slane %v1107, 4
        %v1109 = vrot.slane %v957, 5
        %v1110 = vsel %vm1015, %v1108, %v1109
        %v1111 = vrot.slane %v1109, 4
        %v1112 = vrot.slane %v958, 5
        %v1113 = vsel %vm1015, %v1111, %v1112
        %v1114 = vrot.slane %v959, 5
        %v1115 = vrot.slane %v1114, 4
        %v1116 = vrot.slane %v960, 5
        %v1117 = vsel %vm1015, %v1115, %v1116
        %v1118 = vrot.slane %v1116, 4
        %v1119 = vrot.slane %v961, 5
        %v1120 = vsel %vm1015, %v1118, %v1119
        %v1121 = vrot.slane %v962, 5
        %v1122 = vrot.slane %v1121, 4
        %v1123 = vrot.slane %v963, 5
        %v1124 = vsel %vm1015, %v1122, %v1123
        %v1125 = vrot.slane %v1123, 4
        %v1126 = vrot.slane %v964, 5
        %v1127 = vsel %vm1015, %v1125, %v1126
        %v1128 = vunpack.c.l.b16 %v1019
        %v1129 = vunpack.c.l.b16 %v1022
        %v1130 = vunpack.c.l.b16 %v1026
        %v1131 = vunpack.c.l.b16 %v1029
        %v1132 = vunpack.c.l.b16 %v1033
        %v1133 = vunpack.c.l.b16 %v1036
        %v1134 = vunpack.c.l.b16 %v1040
        %v1135 = vunpack.c.l.b16 %v1043
        %v1136 = vunpack.c.l.b16 %v1047
        %v1137 = vunpack.c.l.b16 %v1050
        %v1138 = vunpack.c.l.b16 %v1054
        %v1139 = vunpack.c.l.b16 %v1057
        %v1140 = vunpack.c.l.b16 %v1061
        %v1141 = vunpack.c.l.b16 %v1064
        %v1142 = vunpack.c.l.b16 %v1068
        %v1143 = vunpack.c.l.b16 %v1071
        %v1144 = vunpack.c.l.b16 %v1075
        %v1145 = vunpack.c.l.b16 %v1078
        %v1146 = vunpack.c.l.b16 %v1082
        %v1147 = vunpack.c.l.b16 %v1085
        %v1148 = vunpack.c.l.b16 %v1089
        %v1149 = vunpack.c.l.b16 %v1092
        %v1150 = vunpack.c.l.b16 %v1096
        %v1151 = vunpack.c.l.b16 %v1099
        %v1152 = vunpack.c.l.b16 %v1103
        %v1153 = vunpack.c.l.b16 %v1106
        %v1154 = vunpack.c.l.b16 %v1110
        %v1155 = vunpack.c.l.b16 %v1113
        %v1156 = vunpack.c.l.b16 %v1117
        %v1157 = vunpack.c.l.b16 %v1120
        %v1158 = vunpack.c.l.b16 %v1124
        %v1159 = vunpack.c.l.b16 %v1127
        %v1160 = vpack.c.b16 %v1129, %v1128
        %v1161 = vpack.c.b16 %v1131, %v1130
        %v1162 = vpack.c.b16 %v1133, %v1132
        %v1163 = vpack.c.b16 %v1135, %v1134
        %v1164 = vpack.c.b16 %v1137, %v1136
        %v1165 = vpack.c.b16 %v1139, %v1138
        %v1166 = vpack.c.b16 %v1141, %v1140
        %v1167 = vpack.c.b16 %v1143, %v1142
        %v1168 = vpack.c.b16 %v1145, %v1144
        %v1169 = vpack.c.b16 %v1147, %v1146
        %v1170 = vpack.c.b16 %v1149, %v1148
        %v1171 = vpack.c.b16 %v1151, %v1150
        %v1172 = vpack.c.b16 %v1153, %v1152
        %v1173 = vpack.c.b16 %v1155, %v1154
        %v1174 = vpack.c.b16 %v1157, %v1156
        %v1175 = vpack.c.b16 %v1159, %v1158
        %1192 = vst.msk [vmem:[#allocation2 + $0x8] sm:$0xff] %vm352, %v1160
        %1193 = vst.msk [vmem:[#allocation2 + $0x30] sm:$0xff] %vm352, %v1161
        %1194 = vst.msk [vmem:[#allocation2 + $0x58] sm:$0xff] %vm352, %v1162
        %1195 = vst.msk [vmem:[#allocation2 + $0x80] sm:$0xff] %vm352, %v1163
        %1196 = vst.msk [vmem:[#allocation2 + $0xa8] sm:$0xff] %vm352, %v1164
        %1197 = vst.msk [vmem:[#allocation2 + $0xd0] sm:$0xff] %vm352, %v1165
        %1198 = vst.msk [vmem:[#allocation2 + $0xf8] sm:$0xff] %vm352, %v1166
        %1199 = vst.msk [vmem:[#allocation2 + $0x120] sm:$0xff] %vm352, %v1167
        %1200 = vst.msk [vmem:[#allocation2 + $0x148] sm:$0xff] %vm352, %v1168
        %1201 = vst.msk [vmem:[#allocation2 + $0x170] sm:$0xff] %vm352, %v1169
        %1202 = vst.msk [vmem:[#allocation2 + $0x198] sm:$0xff] %vm352, %v1170
        %1203 = vst.msk [vmem:[#allocation2 + $0x1c0] sm:$0xff] %vm352, %v1171
        %1204 = vst.msk [vmem:[#allocation2 + $0x1e8] sm:$0xff] %vm352, %v1172
        %1205 = vst.msk [vmem:[#allocation2 + $0x210] sm:$0xff] %vm352, %v1173
        %1206 = vst.msk [vmem:[#allocation2 + $0x238] sm:$0xff] %vm352, %v1174
        %1207 = vst.msk [vmem:[#allocation2 + $0x260] sm:$0xff] %vm352, %v1175
        %s1208 = scalar_lea.vmem %s222, 12
        %v1209 = vld [vmem:[%s1208] sm:$0xf]
        %v1210 = vld [vmem:[%s1208 + $0x4] sm:$0xf]
        %v1211 = vld [vmem:[%s1208 + $0xc] sm:$0xf]
        %v1212 = vld [vmem:[%s1208 + $0x10] sm:$0xf]
        %v1213 = vld [vmem:[%s1208 + $0x18] sm:$0xf]
        %v1214 = vld [vmem:[%s1208 + $0x1c] sm:$0xf]
        %v1215 = vld [vmem:[%s1208 + $0x24] sm:$0xf]
        %v1216 = vld [vmem:[%s1208 + $0x28] sm:$0xf]
        %v1217 = vld [vmem:[%s1208 + $0x30] sm:$0xf]
        %v1218 = vld [vmem:[%s1208 + $0x34] sm:$0xf]
        %v1219 = vld [vmem:[%s1208 + $0x3c] sm:$0xf]
        %v1220 = vld [vmem:[%s1208 + $0x40] sm:$0xf]
        %v1221 = vld [vmem:[%s1208 + $0x48] sm:$0xf]
        %v1222 = vld [vmem:[%s1208 + $0x4c] sm:$0xf]
        %v1223 = vld [vmem:[%s1208 + $0x54] sm:$0xf]
        %v1224 = vld [vmem:[%s1208 + $0x58] sm:$0xf]
        %v1225 = vld [vmem:[%s1208 + $0x60] sm:$0xf]
        %v1226 = vld [vmem:[%s1208 + $0x64] sm:$0xf]
        %v1227 = vld [vmem:[%s1208 + $0x6c] sm:$0xf]
        %v1228 = vld [vmem:[%s1208 + $0x70] sm:$0xf]
        %v1229 = vld [vmem:[%s1208 + $0x78] sm:$0xf]
        %v1230 = vld [vmem:[%s1208 + $0x7c] sm:$0xf]
        %v1231 = vld [vmem:[%s1208 + $0x84] sm:$0xf]
        %v1232 = vld [vmem:[%s1208 + $0x88] sm:$0xf]
        %v1233 = vld [vmem:[%s1208 + $0x90] sm:$0xf]
        %v1234 = vld [vmem:[%s1208 + $0x94] sm:$0xf]
        %v1235 = vld [vmem:[%s1208 + $0x9c] sm:$0xf]
        %v1236 = vld [vmem:[%s1208 + $0xa0] sm:$0xf]
        %v1237 = vld [vmem:[%s1208 + $0xa8] sm:$0xf]
        %v1238 = vld [vmem:[%s1208 + $0xac] sm:$0xf]
        %v1239 = vld [vmem:[%s1208 + $0xb4] sm:$0xf]
        %v1240 = vld [vmem:[%s1208 + $0xb8] sm:$0xf]
        %v1273 = vunpack.c.l.b16 %v1209
        %v1274 = vunpack.c.l.b16 %v1210
        %v1275 = vunpack.c.l.b16 %v1211
        %v1276 = vunpack.c.l.b16 %v1212
        %v1277 = vunpack.c.l.b16 %v1213
        %v1278 = vunpack.c.l.b16 %v1214
        %v1279 = vunpack.c.l.b16 %v1215
        %v1280 = vunpack.c.l.b16 %v1216
        %v1281 = vunpack.c.l.b16 %v1217
        %v1282 = vunpack.c.l.b16 %v1218
        %v1283 = vunpack.c.l.b16 %v1219
        %v1284 = vunpack.c.l.b16 %v1220
        %v1285 = vunpack.c.l.b16 %v1221
        %v1286 = vunpack.c.l.b16 %v1222
        %v1287 = vunpack.c.l.b16 %v1223
        %v1288 = vunpack.c.l.b16 %v1224
        %v1289 = vunpack.c.l.b16 %v1225
        %v1290 = vunpack.c.l.b16 %v1226
        %v1291 = vunpack.c.l.b16 %v1227
        %v1292 = vunpack.c.l.b16 %v1228
        %v1293 = vunpack.c.l.b16 %v1229
        %v1294 = vunpack.c.l.b16 %v1230
        %v1295 = vunpack.c.l.b16 %v1231
        %v1296 = vunpack.c.l.b16 %v1232
        %v1297 = vunpack.c.l.b16 %v1233
        %v1298 = vunpack.c.l.b16 %v1234
        %v1299 = vunpack.c.l.b16 %v1235
        %v1300 = vunpack.c.l.b16 %v1236
        %v1301 = vunpack.c.l.b16 %v1237
        %v1302 = vunpack.c.l.b16 %v1238
        %v1303 = vunpack.c.l.b16 %v1239
        %v1304 = vunpack.c.l.b16 %v1240
        %v1305 = vpack.c.b16 %v1274, %v1273
        %v1306 = vpack.c.b16 %v1276, %v1275
        %v1307 = vpack.c.b16 %v1278, %v1277
        %v1308 = vpack.c.b16 %v1280, %v1279
        %v1309 = vpack.c.b16 %v1282, %v1281
        %v1310 = vpack.c.b16 %v1284, %v1283
        %v1311 = vpack.c.b16 %v1286, %v1285
        %v1312 = vpack.c.b16 %v1288, %v1287
        %v1313 = vpack.c.b16 %v1290, %v1289
        %v1314 = vpack.c.b16 %v1292, %v1291
        %v1315 = vpack.c.b16 %v1294, %v1293
        %v1316 = vpack.c.b16 %v1296, %v1295
        %v1317 = vpack.c.b16 %v1298, %v1297
        %v1318 = vpack.c.b16 %v1300, %v1299
        %v1319 = vpack.c.b16 %v1302, %v1301
        %v1320 = vpack.c.b16 %v1304, %v1303
        %1321 = vrot.lane.b32.xlu0 %v1305, 64
        %v1322 = vpop.permute.xlu0 %1321
        %1323 = vrot.lane.b32.xlu0 %v1306, 64
        %v1324 = vpop.permute.xlu0 %1323
        %1325 = vrot.lane.b32.xlu0 %v1307, 64
        %v1326 = vpop.permute.xlu0 %1325
        %1327 = vrot.lane.b32.xlu0 %v1308, 64
        %v1328 = vpop.permute.xlu0 %1327
        %1329 = vrot.lane.b32.xlu0 %v1309, 64
        %v1330 = vpop.permute.xlu0 %1329
        %1331 = vrot.lane.b32.xlu0 %v1310, 64
        %v1332 = vpop.permute.xlu0 %1331
        %1333 = vrot.lane.b32.xlu0 %v1311, 64
        %v1334 = vpop.permute.xlu0 %1333
        %1335 = vrot.lane.b32.xlu0 %v1312, 64
        %v1336 = vpop.permute.xlu0 %1335
        %1337 = vrot.lane.b32.xlu0 %v1313, 64
        %v1338 = vpop.permute.xlu0 %1337
        %1339 = vrot.lane.b32.xlu0 %v1314, 64
        %v1340 = vpop.permute.xlu0 %1339
        %1341 = vrot.lane.b32.xlu0 %v1315, 64
        %v1342 = vpop.permute.xlu0 %1341
        %1343 = vrot.lane.b32.xlu0 %v1316, 64
        %v1344 = vpop.permute.xlu0 %1343
        %1345 = vrot.lane.b32.xlu0 %v1317, 64
        %v1346 = vpop.permute.xlu0 %1345
        %1347 = vrot.lane.b32.xlu0 %v1318, 64
        %v1348 = vpop.permute.xlu0 %1347
        %1349 = vrot.lane.b32.xlu0 %v1319, 64
        %v1350 = vpop.permute.xlu0 %1349
        %1351 = vrot.lane.b32.xlu0 %v1320, 64
        %v1352 = vpop.permute.xlu0 %1351
        %1369 = vst.msk [vmem:[#allocation2 + $0x8] sm:$0xff] %vm900, %v1322
        %1370 = vst.msk [vmem:[#allocation2 + $0x30] sm:$0xff] %vm900, %v1324
        %1371 = vst.msk [vmem:[#allocation2 + $0x58] sm:$0xff] %vm900, %v1326
        %1372 = vst.msk [vmem:[#allocation2 + $0x80] sm:$0xff] %vm900, %v1328
        %1373 = vst.msk [vmem:[#allocation2 + $0xa8] sm:$0xff] %vm900, %v1330
        %1374 = vst.msk [vmem:[#allocation2 + $0xd0] sm:$0xff] %vm900, %v1332
        %1375 = vst.msk [vmem:[#allocation2 + $0xf8] sm:$0xff] %vm900, %v1334
        %1376 = vst.msk [vmem:[#allocation2 + $0x120] sm:$0xff] %vm900, %v1336
        %1377 = vst.msk [vmem:[#allocation2 + $0x148] sm:$0xff] %vm900, %v1338
        %1378 = vst.msk [vmem:[#allocation2 + $0x170] sm:$0xff] %vm900, %v1340
        %1379 = vst.msk [vmem:[#allocation2 + $0x198] sm:$0xff] %vm900, %v1342
        %1380 = vst.msk [vmem:[#allocation2 + $0x1c0] sm:$0xff] %vm900, %v1344
        %1381 = vst.msk [vmem:[#allocation2 + $0x1e8] sm:$0xff] %vm900, %v1346
        %1382 = vst.msk [vmem:[#allocation2 + $0x210] sm:$0xff] %vm900, %v1348
        %1383 = vst.msk [vmem:[#allocation2 + $0x238] sm:$0xff] %vm900, %v1350
        %1384 = vst.msk [vmem:[#allocation2 + $0x260] sm:$0xff] %vm900, %v1352
        %v1385 = vld [vmem:[%s1208] sm:$0xf]
        %v1386 = vld [vmem:[%s1208 + $0x4] sm:$0xf]
        %v1387 = vld [vmem:[%s1208 + $0x8] sm:$0x1]
        %v1388 = vld [vmem:[%s1208 + $0xc] sm:$0xf]
        %v1389 = vld [vmem:[%s1208 + $0x10] sm:$0xf]
        %v1390 = vld [vmem:[%s1208 + $0x14] sm:$0x1]
        %v1391 = vld [vmem:[%s1208 + $0x18] sm:$0xf]
        %v1392 = vld [vmem:[%s1208 + $0x1c] sm:$0xf]
        %v1393 = vld [vmem:[%s1208 + $0x20] sm:$0x1]
        %v1394 = vld [vmem:[%s1208 + $0x24] sm:$0xf]
        %v1395 = vld [vmem:[%s1208 + $0x28] sm:$0xf]
        %v1396 = vld [vmem:[%s1208 + $0x2c] sm:$0x1]
        %v1397 = vld [vmem:[%s1208 + $0x30] sm:$0xf]
        %v1398 = vld [vmem:[%s1208 + $0x34] sm:$0xf]
        %v1399 = vld [vmem:[%s1208 + $0x38] sm:$0x1]
        %v1400 = vld [vmem:[%s1208 + $0x3c] sm:$0xf]
        %v1401 = vld [vmem:[%s1208 + $0x40] sm:$0xf]
        %v1402 = vld [vmem:[%s1208 + $0x44] sm:$0x1]
        %v1403 = vld [vmem:[%s1208 + $0x48] sm:$0xf]
        %v1404 = vld [vmem:[%s1208 + $0x4c] sm:$0xf]
        %v1405 = vld [vmem:[%s1208 + $0x50] sm:$0x1]
        %v1406 = vld [vmem:[%s1208 + $0x54] sm:$0xf]
        %v1407 = vld [vmem:[%s1208 + $0x58] sm:$0xf]
        %v1408 = vld [vmem:[%s1208 + $0x5c] sm:$0x1]
        %v1409 = vld [vmem:[%s1208 + $0x60] sm:$0xf]
        %v1410 = vld [vmem:[%s1208 + $0x64] sm:$0xf]
        %v1411 = vld [vmem:[%s1208 + $0x68] sm:$0x1]
        %v1412 = vld [vmem:[%s1208 + $0x6c] sm:$0xf]
        %v1413 = vld [vmem:[%s1208 + $0x70] sm:$0xf]
        %v1414 = vld [vmem:[%s1208 + $0x74] sm:$0x1]
        %v1415 = vld [vmem:[%s1208 + $0x78] sm:$0xf]
        %v1416 = vld [vmem:[%s1208 + $0x7c] sm:$0xf]
        %v1417 = vld [vmem:[%s1208 + $0x80] sm:$0x1]
        %v1418 = vld [vmem:[%s1208 + $0x84] sm:$0xf]
        %v1419 = vld [vmem:[%s1208 + $0x88] sm:$0xf]
        %v1420 = vld [vmem:[%s1208 + $0x8c] sm:$0x1]
        %v1421 = vld [vmem:[%s1208 + $0x90] sm:$0xf]
        %v1422 = vld [vmem:[%s1208 + $0x94] sm:$0xf]
        %v1423 = vld [vmem:[%s1208 + $0x98] sm:$0x1]
        %v1424 = vld [vmem:[%s1208 + $0x9c] sm:$0xf]
        %v1425 = vld [vmem:[%s1208 + $0xa0] sm:$0xf]
        %v1426 = vld [vmem:[%s1208 + $0xa4] sm:$0x1]
        %v1427 = vld [vmem:[%s1208 + $0xa8] sm:$0xf]
        %v1428 = vld [vmem:[%s1208 + $0xac] sm:$0xf]
        %v1429 = vld [vmem:[%s1208 + $0xb0] sm:$0x1]
        %v1430 = vld [vmem:[%s1208 + $0xb4] sm:$0xf]
        %v1431 = vld [vmem:[%s1208 + $0xb8] sm:$0xf]
        %v1432 = vld [vmem:[%s1208 + $0xbc] sm:$0x1]
        %v1434 = vshrl.u32 %v1385, 16
        %v1436 = vrot.slane %v1434, 4
        %v1437 = vshll.u32 %v1385, 16
        %v1439 = vrot.slane %v1437, 5
        %v1440 = vor.u32 %v1436, %v1439
        %v1441 = vrot.slane %v1440, 4
        %v1443 = vshll.u32 %v1386, 16
        %v1445 = vrot.slane %v1443, 5
        %v1446 = vsel %vm419, %v1441, %v1445
        %v1447 = vshrl.u32 %v1386, 16
        %v1449 = vrot.slane %v1447, 4
        %v1450 = vor.u32 %v1449, %v1445
        %v1451 = vrot.slane %v1450, 4
        %v1453 = vshll.u32 %v1387, 16
        %v1455 = vrot.slane %v1453, 5
        %v1456 = vsel %vm419, %v1451, %v1455
        %v1458 = vshrl.u32 %v1388, 16
        %v1460 = vrot.slane %v1458, 4
        %v1461 = vshll.u32 %v1388, 16
        %v1463 = vrot.slane %v1461, 5
        %v1464 = vor.u32 %v1460, %v1463
        %v1465 = vrot.slane %v1464, 4
        %v1467 = vshll.u32 %v1389, 16
        %v1469 = vrot.slane %v1467, 5
        %v1470 = vsel %vm419, %v1465, %v1469
        %v1471 = vshrl.u32 %v1389, 16
        %v1473 = vrot.slane %v1471, 4
        %v1474 = vor.u32 %v1473, %v1469
        %v1475 = vrot.slane %v1474, 4
        %v1477 = vshll.u32 %v1390, 16
        %v1479 = vrot.slane %v1477, 5
        %v1480 = vsel %vm419, %v1475, %v1479
        %v1482 = vshrl.u32 %v1391, 16
        %v1484 = vrot.slane %v1482, 4
        %v1485 = vshll.u32 %v1391, 16
        %v1487 = vrot.slane %v1485, 5
        %v1488 = vor.u32 %v1484, %v1487
        %v1489 = vrot.slane %v1488, 4
        %v1491 = vshll.u32 %v1392, 16
        %v1493 = vrot.slane %v1491, 5
        %v1494 = vsel %vm419, %v1489, %v1493
        %v1495 = vshrl.u32 %v1392, 16
        %v1497 = vrot.slane %v1495, 4
        %v1498 = vor.u32 %v1497, %v1493
        %v1499 = vrot.slane %v1498, 4
        %v1501 = vshll.u32 %v1393, 16
        %v1503 = vrot.slane %v1501, 5
        %v1504 = vsel %vm419, %v1499, %v1503
        %v1506 = vshrl.u32 %v1394, 16
        %v1508 = vrot.slane %v1506, 4
        %v1509 = vshll.u32 %v1394, 16
        %v1511 = vrot.slane %v1509, 5
        %v1512 = vor.u32 %v1508, %v1511
        %v1513 = vrot.slane %v1512, 4
        %v1515 = vshll.u32 %v1395, 16
        %v1517 = vrot.slane %v1515, 5
        %v1518 = vsel %vm419, %v1513, %v1517
        %v1519 = vshrl.u32 %v1395, 16
        %v1521 = vrot.slane %v1519, 4
        %v1522 = vor.u32 %v1521, %v1517
        %v1523 = vrot.slane %v1522, 4
        %v1525 = vshll.u32 %v1396, 16
        %v1527 = vrot.slane %v1525, 5
        %v1528 = vsel %vm419, %v1523, %v1527
        %v1530 = vshrl.u32 %v1397, 16
        %v1532 = vrot.slane %v1530, 4
        %v1533 = vshll.u32 %v1397, 16
        %v1535 = vrot.slane %v1533, 5
        %v1536 = vor.u32 %v1532, %v1535
        %v1537 = vrot.slane %v1536, 4
        %v1539 = vshll.u32 %v1398, 16
        %v1541 = vrot.slane %v1539, 5
        %v1542 = vsel %vm419, %v1537, %v1541
        %v1543 = vshrl.u32 %v1398, 16
        %v1545 = vrot.slane %v1543, 4
        %v1546 = vor.u32 %v1545, %v1541
        %v1547 = vrot.slane %v1546, 4
        %v1549 = vshll.u32 %v1399, 16
        %v1551 = vrot.slane %v1549, 5
        %v1552 = vsel %vm419, %v1547, %v1551
        %v1554 = vshrl.u32 %v1400, 16
        %v1556 = vrot.slane %v1554, 4
        %v1557 = vshll.u32 %v1400, 16
        %v1559 = vrot.slane %v1557, 5
        %v1560 = vor.u32 %v1556, %v1559
        %v1561 = vrot.slane %v1560, 4
        %v1563 = vshll.u32 %v1401, 16
        %v1565 = vrot.slane %v1563, 5
        %v1566 = vsel %vm419, %v1561, %v1565
        %v1567 = vshrl.u32 %v1401, 16
        %v1569 = vrot.slane %v1567, 4
        %v1570 = vor.u32 %v1569, %v1565
        %v1571 = vrot.slane %v1570, 4
        %v1573 = vshll.u32 %v1402, 16
        %v1575 = vrot.slane %v1573, 5
        %v1576 = vsel %vm419, %v1571, %v1575
        %v1578 = vshrl.u32 %v1403, 16
        %v1580 = vrot.slane %v1578, 4
        %v1581 = vshll.u32 %v1403, 16
        %v1583 = vrot.slane %v1581, 5
        %v1584 = vor.u32 %v1580, %v1583
        %v1585 = vrot.slane %v1584, 4
        %v1587 = vshll.u32 %v1404, 16
        %v1589 = vrot.slane %v1587, 5
        %v1590 = vsel %vm419, %v1585, %v1589
        %v1591 = vshrl.u32 %v1404, 16
        %v1593 = vrot.slane %v1591, 4
        %v1594 = vor.u32 %v1593, %v1589
        %v1595 = vrot.slane %v1594, 4
        %v1597 = vshll.u32 %v1405, 16
        %v1599 = vrot.slane %v1597, 5
        %v1600 = vsel %vm419, %v1595, %v1599
        %v1602 = vshrl.u32 %v1406, 16
        %v1604 = vrot.slane %v1602, 4
        %v1605 = vshll.u32 %v1406, 16
        %v1607 = vrot.slane %v1605, 5
        %v1608 = vor.u32 %v1604, %v1607
        %v1609 = vrot.slane %v1608, 4
        %v1611 = vshll.u32 %v1407, 16
        %v1613 = vrot.slane %v1611, 5
        %v1614 = vsel %vm419, %v1609, %v1613
        %v1615 = vshrl.u32 %v1407, 16
        %v1617 = vrot.slane %v1615, 4
        %v1618 = vor.u32 %v1617, %v1613
        %v1619 = vrot.slane %v1618, 4
        %v1621 = vshll.u32 %v1408, 16
        %v1623 = vrot.slane %v1621, 5
        %v1624 = vsel %vm419, %v1619, %v1623
        %v1626 = vshrl.u32 %v1409, 16
        %v1628 = vrot.slane %v1626, 4
        %v1629 = vshll.u32 %v1409, 16
        %v1631 = vrot.slane %v1629, 5
        %v1632 = vor.u32 %v1628, %v1631
        %v1633 = vrot.slane %v1632, 4
        %v1635 = vshll.u32 %v1410, 16
        %v1637 = vrot.slane %v1635, 5
        %v1638 = vsel %vm419, %v1633, %v1637
        %v1639 = vshrl.u32 %v1410, 16
        %v1641 = vrot.slane %v1639, 4
        %v1642 = vor.u32 %v1641, %v1637
        %v1643 = vrot.slane %v1642, 4
        %v1645 = vshll.u32 %v1411, 16
        %v1647 = vrot.slane %v1645, 5
        %v1648 = vsel %vm419, %v1643, %v1647
        %v1650 = vshrl.u32 %v1412, 16
        %v1652 = vrot.slane %v1650, 4
        %v1653 = vshll.u32 %v1412, 16
        %v1655 = vrot.slane %v1653, 5
        %v1656 = vor.u32 %v1652, %v1655
        %v1657 = vrot.slane %v1656, 4
        %v1659 = vshll.u32 %v1413, 16
        %v1661 = vrot.slane %v1659, 5
        %v1662 = vsel %vm419, %v1657, %v1661
        %v1663 = vshrl.u32 %v1413, 16
        %v1665 = vrot.slane %v1663, 4
        %v1666 = vor.u32 %v1665, %v1661
        %v1667 = vrot.slane %v1666, 4
        %v1669 = vshll.u32 %v1414, 16
        %v1671 = vrot.slane %v1669, 5
        %v1672 = vsel %vm419, %v1667, %v1671
        %v1674 = vshrl.u32 %v1415, 16
        %v1676 = vrot.slane %v1674, 4
        %v1677 = vshll.u32 %v1415, 16
        %v1679 = vrot.slane %v1677, 5
        %v1680 = vor.u32 %v1676, %v1679
        %v1681 = vrot.slane %v1680, 4
        %v1683 = vshll.u32 %v1416, 16
        %v1685 = vrot.slane %v1683, 5
        %v1686 = vsel %vm419, %v1681, %v1685
        %v1687 = vshrl.u32 %v1416, 16
        %v1689 = vrot.slane %v1687, 4
        %v1690 = vor.u32 %v1689, %v1685
        %v1691 = vrot.slane %v1690, 4
        %v1693 = vshll.u32 %v1417, 16
        %v1695 = vrot.slane %v1693, 5
        %v1696 = vsel %vm419, %v1691, %v1695
        %v1698 = vshrl.u32 %v1418, 16
        %v1700 = vrot.slane %v1698, 4
        %v1701 = vshll.u32 %v1418, 16
        %v1703 = vrot.slane %v1701, 5
        %v1704 = vor.u32 %v1700, %v1703
        %v1705 = vrot.slane %v1704, 4
        %v1707 = vshll.u32 %v1419, 16
        %v1709 = vrot.slane %v1707, 5
        %v1710 = vsel %vm419, %v1705, %v1709
        %v1711 = vshrl.u32 %v1419, 16
        %v1713 = vrot.slane %v1711, 4
        %v1714 = vor.u32 %v1713, %v1709
        %v1715 = vrot.slane %v1714, 4
        %v1717 = vshll.u32 %v1420, 16
        %v1719 = vrot.slane %v1717, 5
        %v1720 = vsel %vm419, %v1715, %v1719
        %v1722 = vshrl.u32 %v1421, 16
        %v1724 = vrot.slane %v1722, 4
        %v1725 = vshll.u32 %v1421, 16
        %v1727 = vrot.slane %v1725, 5
        %v1728 = vor.u32 %v1724, %v1727
        %v1729 = vrot.slane %v1728, 4
        %v1731 = vshll.u32 %v1422, 16
        %v1733 = vrot.slane %v1731, 5
        %v1734 = vsel %vm419, %v1729, %v1733
        %v1735 = vshrl.u32 %v1422, 16
        %v1737 = vrot.slane %v1735, 4
        %v1738 = vor.u32 %v1737, %v1733
        %v1739 = vrot.slane %v1738, 4
        %v1741 = vshll.u32 %v1423, 16
        %v1743 = vrot.slane %v1741, 5
        %v1744 = vsel %vm419, %v1739, %v1743
        %v1746 = vshrl.u32 %v1424, 16
        %v1748 = vrot.slane %v1746, 4
        %v1749 = vshll.u32 %v1424, 16
        %v1751 = vrot.slane %v1749, 5
        %v1752 = vor.u32 %v1748, %v1751
        %v1753 = vrot.slane %v1752, 4
        %v1755 = vshll.u32 %v1425, 16
        %v1757 = vrot.slane %v1755, 5
        %v1758 = vsel %vm419, %v1753, %v1757
        %v1759 = vshrl.u32 %v1425, 16
        %v1761 = vrot.slane %v1759, 4
        %v1762 = vor.u32 %v1761, %v1757
        %v1763 = vrot.slane %v1762, 4
        %v1765 = vshll.u32 %v1426, 16
        %v1767 = vrot.slane %v1765, 5
        %v1768 = vsel %vm419, %v1763, %v1767
        %v1770 = vshrl.u32 %v1427, 16
        %v1772 = vrot.slane %v1770, 4
        %v1773 = vshll.u32 %v1427, 16
        %v1775 = vrot.slane %v1773, 5
        %v1776 = vor.u32 %v1772, %v1775
        %v1777 = vrot.slane %v1776, 4
        %v1779 = vshll.u32 %v1428, 16
        %v1781 = vrot.slane %v1779, 5
        %v1782 = vsel %vm419, %v1777, %v1781
        %v1783 = vshrl.u32 %v1428, 16
        %v1785 = vrot.slane %v1783, 4
        %v1786 = vor.u32 %v1785, %v1781
        %v1787 = vrot.slane %v1786, 4
        %v1789 = vshll.u32 %v1429, 16
        %v1791 = vrot.slane %v1789, 5
        %v1792 = vsel %vm419, %v1787, %v1791
        %v1794 = vshrl.u32 %v1430, 16
        %v1796 = vrot.slane %v1794, 4
        %v1797 = vshll.u32 %v1430, 16
        %v1799 = vrot.slane %v1797, 5
        %v1800 = vor.u32 %v1796, %v1799
        %v1801 = vrot.slane %v1800, 4
        %v1803 = vshll.u32 %v1431, 16
        %v1805 = vrot.slane %v1803, 5
        %v1806 = vsel %vm419, %v1801, %v1805
        %v1807 = vshrl.u32 %v1431, 16
        %v1809 = vrot.slane %v1807, 4
        %v1810 = vor.u32 %v1809, %v1805
        %v1811 = vrot.slane %v1810, 4
        %v1813 = vshll.u32 %v1432, 16
        %v1815 = vrot.slane %v1813, 5
        %v1816 = vsel %vm419, %v1811, %v1815
        %v1817 = vunpack.c.l.b16 %v1446
        %v1818 = vunpack.c.l.b16 %v1456
        %v1819 = vunpack.c.l.b16 %v1470
        %v1820 = vunpack.c.l.b16 %v1480
        %v1821 = vunpack.c.l.b16 %v1494
        %v1822 = vunpack.c.l.b16 %v1504
        %v1823 = vunpack.c.l.b16 %v1518
        %v1824 = vunpack.c.l.b16 %v1528
        %v1825 = vunpack.c.l.b16 %v1542
        %v1826 = vunpack.c.l.b16 %v1552
        %v1827 = vunpack.c.l.b16 %v1566
        %v1828 = vunpack.c.l.b16 %v1576
        %v1829 = vunpack.c.l.b16 %v1590
        %v1830 = vunpack.c.l.b16 %v1600
        %v1831 = vunpack.c.l.b16 %v1614
        %v1832 = vunpack.c.l.b16 %v1624
        %v1833 = vunpack.c.l.b16 %v1638
        %v1834 = vunpack.c.l.b16 %v1648
        %v1835 = vunpack.c.l.b16 %v1662
        %v1836 = vunpack.c.l.b16 %v1672
        %v1837 = vunpack.c.l.b16 %v1686
        %v1838 = vunpack.c.l.b16 %v1696
        %v1839 = vunpack.c.l.b16 %v1710
        %v1840 = vunpack.c.l.b16 %v1720
        %v1841 = vunpack.c.l.b16 %v1734
        %v1842 = vunpack.c.l.b16 %v1744
        %v1843 = vunpack.c.l.b16 %v1758
        %v1844 = vunpack.c.l.b16 %v1768
        %v1845 = vunpack.c.l.b16 %v1782
        %v1846 = vunpack.c.l.b16 %v1792
        %v1847 = vunpack.c.l.b16 %v1806
        %v1848 = vunpack.c.l.b16 %v1816
        %v1849 = vpack.c.b16 %v1818, %v1817
        %v1850 = vpack.c.b16 %v1820, %v1819
        %v1851 = vpack.c.b16 %v1822, %v1821
        %v1852 = vpack.c.b16 %v1824, %v1823
        %v1853 = vpack.c.b16 %v1826, %v1825
        %v1854 = vpack.c.b16 %v1828, %v1827
        %v1855 = vpack.c.b16 %v1830, %v1829
        %v1856 = vpack.c.b16 %v1832, %v1831
        %v1857 = vpack.c.b16 %v1834, %v1833
        %v1858 = vpack.c.b16 %v1836, %v1835
        %v1859 = vpack.c.b16 %v1838, %v1837
        %v1860 = vpack.c.b16 %v1840, %v1839
        %v1861 = vpack.c.b16 %v1842, %v1841
        %v1862 = vpack.c.b16 %v1844, %v1843
        %v1863 = vpack.c.b16 %v1846, %v1845
        %v1864 = vpack.c.b16 %v1848, %v1847
        %1881 = vst.msk [vmem:[#allocation2 + $0x10] sm:$0xff] %vm352, %v1849
        %1882 = vst.msk [vmem:[#allocation2 + $0x38] sm:$0xff] %vm352, %v1850
        %1883 = vst.msk [vmem:[#allocation2 + $0x60] sm:$0xff] %vm352, %v1851
        %1884 = vst.msk [vmem:[#allocation2 + $0x88] sm:$0xff] %vm352, %v1852
        %1885 = vst.msk [vmem:[#allocation2 + $0xb0] sm:$0xff] %vm352, %v1853
        %1886 = vst.msk [vmem:[#allocation2 + $0xd8] sm:$0xff] %vm352, %v1854
        %1887 = vst.msk [vmem:[#allocation2 + $0x100] sm:$0xff] %vm352, %v1855
        %1888 = vst.msk [vmem:[#allocation2 + $0x128] sm:$0xff] %vm352, %v1856
        %1889 = vst.msk [vmem:[#allocation2 + $0x150] sm:$0xff] %vm352, %v1857
        %1890 = vst.msk [vmem:[#allocation2 + $0x178] sm:$0xff] %vm352, %v1858
        %1891 = vst.msk [vmem:[#allocation2 + $0x1a0] sm:$0xff] %vm352, %v1859
        %1892 = vst.msk [vmem:[#allocation2 + $0x1c8] sm:$0xff] %vm352, %v1860
        %1893 = vst.msk [vmem:[#allocation2 + $0x1f0] sm:$0xff] %vm352, %v1861
        %1894 = vst.msk [vmem:[#allocation2 + $0x218] sm:$0xff] %vm352, %v1862
        %1895 = vst.msk [vmem:[#allocation2 + $0x240] sm:$0xff] %vm352, %v1863
        %1896 = vst.msk [vmem:[#allocation2 + $0x268] sm:$0xff] %vm352, %v1864
        %v1897 = vld [vmem:[%s1208] sm:$0xe]
        %v1898 = vld [vmem:[%s1208 + $0x4] sm:$0xf]
        %v1899 = vld [vmem:[%s1208 + $0x8] sm:$0x1]
        %v1900 = vld [vmem:[%s1208 + $0xc] sm:$0xe]
        %v1901 = vld [vmem:[%s1208 + $0x10] sm:$0xf]
        %v1902 = vld [vmem:[%s1208 + $0x14] sm:$0x1]
        %v1903 = vld [vmem:[%s1208 + $0x18] sm:$0xe]
        %v1904 = vld [vmem:[%s1208 + $0x1c] sm:$0xf]
        %v1905 = vld [vmem:[%s1208 + $0x20] sm:$0x1]
        %v1906 = vld [vmem:[%s1208 + $0x24] sm:$0xe]
        %v1907 = vld [vmem:[%s1208 + $0x28] sm:$0xf]
        %v1908 = vld [vmem:[%s1208 + $0x2c] sm:$0x1]
        %v1909 = vld [vmem:[%s1208 + $0x30] sm:$0xe]
        %v1910 = vld [vmem:[%s1208 + $0x34] sm:$0xf]
        %v1911 = vld [vmem:[%s1208 + $0x38] sm:$0x1]
        %v1912 = vld [vmem:[%s1208 + $0x3c] sm:$0xe]
        %v1913 = vld [vmem:[%s1208 + $0x40] sm:$0xf]
        %v1914 = vld [vmem:[%s1208 + $0x44] sm:$0x1]
        %v1915 = vld [vmem:[%s1208 + $0x48] sm:$0xe]
        %v1916 = vld [vmem:[%s1208 + $0x4c] sm:$0xf]
        %v1917 = vld [vmem:[%s1208 + $0x50] sm:$0x1]
        %v1918 = vld [vmem:[%s1208 + $0x54] sm:$0xe]
        %v1919 = vld [vmem:[%s1208 + $0x58] sm:$0xf]
        %v1920 = vld [vmem:[%s1208 + $0x5c] sm:$0x1]
        %v1921 = vld [vmem:[%s1208 + $0x60] sm:$0xe]
        %v1922 = vld [vmem:[%s1208 + $0x64] sm:$0xf]
        %v1923 = vld [vmem:[%s1208 + $0x68] sm:$0x1]
        %v1924 = vld [vmem:[%s1208 + $0x6c] sm:$0xe]
        %v1925 = vld [vmem:[%s1208 + $0x70] sm:$0xf]
        %v1926 = vld [vmem:[%s1208 + $0x74] sm:$0x1]
        %v1927 = vld [vmem:[%s1208 + $0x78] sm:$0xe]
        %v1928 = vld [vmem:[%s1208 + $0x7c] sm:$0xf]
        %v1929 = vld [vmem:[%s1208 + $0x80] sm:$0x1]
        %v1930 = vld [vmem:[%s1208 + $0x84] sm:$0xe]
        %v1931 = vld [vmem:[%s1208 + $0x88] sm:$0xf]
        %v1932 = vld [vmem:[%s1208 + $0x8c] sm:$0x1]
        %v1933 = vld [vmem:[%s1208 + $0x90] sm:$0xe]
        %v1934 = vld [vmem:[%s1208 + $0x94] sm:$0xf]
        %v1935 = vld [vmem:[%s1208 + $0x98] sm:$0x1]
        %v1936 = vld [vmem:[%s1208 + $0x9c] sm:$0xe]
        %v1937 = vld [vmem:[%s1208 + $0xa0] sm:$0xf]
        %v1938 = vld [vmem:[%s1208 + $0xa4] sm:$0x1]
        %v1939 = vld [vmem:[%s1208 + $0xa8] sm:$0xe]
        %v1940 = vld [vmem:[%s1208 + $0xac] sm:$0xf]
        %v1941 = vld [vmem:[%s1208 + $0xb0] sm:$0x1]
        %v1942 = vld [vmem:[%s1208 + $0xb4] sm:$0xe]
        %v1943 = vld [vmem:[%s1208 + $0xb8] sm:$0xf]
        %v1944 = vld [vmem:[%s1208 + $0xbc] sm:$0x1]
        %v1993 = vrot.slane %v1897, 5
        %v1994 = vrot.slane %v1993, 4
        %v1995 = vrot.slane %v1898, 5
        %v1996 = vsel %vm1015, %v1994, %v1995
        %v1997 = vrot.slane %v1995, 4
        %v1998 = vrot.slane %v1899, 5
        %v1999 = vsel %vm1015, %v1997, %v1998
        %v2000 = vrot.slane %v1900, 5
        %v2001 = vrot.slane %v2000, 4
        %v2002 = vrot.slane %v1901, 5
        %v2003 = vsel %vm1015, %v2001, %v2002
        %v2004 = vrot.slane %v2002, 4
        %v2005 = vrot.slane %v1902, 5
        %v2006 = vsel %vm1015, %v2004, %v2005
        %v2007 = vrot.slane %v1903, 5
        %v2008 = vrot.slane %v2007, 4
        %v2009 = vrot.slane %v1904, 5
        %v2010 = vsel %vm1015, %v2008, %v2009
        %v2011 = vrot.slane %v2009, 4
        %v2012 = vrot.slane %v1905, 5
        %v2013 = vsel %vm1015, %v2011, %v2012
        %v2014 = vrot.slane %v1906, 5
        %v2015 = vrot.slane %v2014, 4
        %v2016 = vrot.slane %v1907, 5
        %v2017 = vsel %vm1015, %v2015, %v2016
        %v2018 = vrot.slane %v2016, 4
        %v2019 = vrot.slane %v1908, 5
        %v2020 = vsel %vm1015, %v2018, %v2019
        %v2021 = vrot.slane %v1909, 5
        %v2022 = vrot.slane %v2021, 4
        %v2023 = vrot.slane %v1910, 5
        %v2024 = vsel %vm1015, %v2022, %v2023
        %v2025 = vrot.slane %v2023, 4
        %v2026 = vrot.slane %v1911, 5
        %v2027 = vsel %vm1015, %v2025, %v2026
        %v2028 = vrot.slane %v1912, 5
        %v2029 = vrot.slane %v2028, 4
        %v2030 = vrot.slane %v1913, 5
        %v2031 = vsel %vm1015, %v2029, %v2030
        %v2032 = vrot.slane %v2030, 4
        %v2033 = vrot.slane %v1914, 5
        %v2034 = vsel %vm1015, %v2032, %v2033
        %v2035 = vrot.slane %v1915, 5
        %v2036 = vrot.slane %v2035, 4
        %v2037 = vrot.slane %v1916, 5
        %v2038 = vsel %vm1015, %v2036, %v2037
        %v2039 = vrot.slane %v2037, 4
        %v2040 = vrot.slane %v1917, 5
        %v2041 = vsel %vm1015, %v2039, %v2040
        %v2042 = vrot.slane %v1918, 5
        %v2043 = vrot.slane %v2042, 4
        %v2044 = vrot.slane %v1919, 5
        %v2045 = vsel %vm1015, %v2043, %v2044
        %v2046 = vrot.slane %v2044, 4
        %v2047 = vrot.slane %v1920, 5
        %v2048 = vsel %vm1015, %v2046, %v2047
        %v2049 = vrot.slane %v1921, 5
        %v2050 = vrot.slane %v2049, 4
        %v2051 = vrot.slane %v1922, 5
        %v2052 = vsel %vm1015, %v2050, %v2051
        %v2053 = vrot.slane %v2051, 4
        %v2054 = vrot.slane %v1923, 5
        %v2055 = vsel %vm1015, %v2053, %v2054
        %v2056 = vrot.slane %v1924, 5
        %v2057 = vrot.slane %v2056, 4
        %v2058 = vrot.slane %v1925, 5
        %v2059 = vsel %vm1015, %v2057, %v2058
        %v2060 = vrot.slane %v2058, 4
        %v2061 = vrot.slane %v1926, 5
        %v2062 = vsel %vm1015, %v2060, %v2061
        %v2063 = vrot.slane %v1927, 5
        %v2064 = vrot.slane %v2063, 4
        %v2065 = vrot.slane %v1928, 5
        %v2066 = vsel %vm1015, %v2064, %v2065
        %v2067 = vrot.slane %v2065, 4
        %v2068 = vrot.slane %v1929, 5
        %v2069 = vsel %vm1015, %v2067, %v2068
        %v2070 = vrot.slane %v1930, 5
        %v2071 = vrot.slane %v2070, 4
        %v2072 = vrot.slane %v1931, 5
        %v2073 = vsel %vm1015, %v2071, %v2072
        %v2074 = vrot.slane %v2072, 4
        %v2075 = vrot.slane %v1932, 5
        %v2076 = vsel %vm1015, %v2074, %v2075
        %v2077 = vrot.slane %v1933, 5
        %v2078 = vrot.slane %v2077, 4
        %v2079 = vrot.slane %v1934, 5
        %v2080 = vsel %vm1015, %v2078, %v2079
        %v2081 = vrot.slane %v2079, 4
        %v2082 = vrot.slane %v1935, 5
        %v2083 = vsel %vm1015, %v2081, %v2082
        %v2084 = vrot.slane %v1936, 5
        %v2085 = vrot.slane %v2084, 4
        %v2086 = vrot.slane %v1937, 5
        %v2087 = vsel %vm1015, %v2085, %v2086
        %v2088 = vrot.slane %v2086, 4
        %v2089 = vrot.slane %v1938, 5
        %v2090 = vsel %vm1015, %v2088, %v2089
        %v2091 = vrot.slane %v1939, 5
        %v2092 = vrot.slane %v2091, 4
        %v2093 = vrot.slane %v1940, 5
        %v2094 = vsel %vm1015, %v2092, %v2093
        %v2095 = vrot.slane %v2093, 4
        %v2096 = vrot.slane %v1941, 5
        %v2097 = vsel %vm1015, %v2095, %v2096
        %v2098 = vrot.slane %v1942, 5
        %v2099 = vrot.slane %v2098, 4
        %v2100 = vrot.slane %v1943, 5
        %v2101 = vsel %vm1015, %v2099, %v2100
        %v2102 = vrot.slane %v2100, 4
        %v2103 = vrot.slane %v1944, 5
        %v2104 = vsel %vm1015, %v2102, %v2103
        %v2105 = vunpack.c.l.b16 %v1996
        %v2106 = vunpack.c.l.b16 %v1999
        %v2107 = vunpack.c.l.b16 %v2003
        %v2108 = vunpack.c.l.b16 %v2006
        %v2109 = vunpack.c.l.b16 %v2010
        %v2110 = vunpack.c.l.b16 %v2013
        %v2111 = vunpack.c.l.b16 %v2017
        %v2112 = vunpack.c.l.b16 %v2020
        %v2113 = vunpack.c.l.b16 %v2024
        %v2114 = vunpack.c.l.b16 %v2027
        %v2115 = vunpack.c.l.b16 %v2031
        %v2116 = vunpack.c.l.b16 %v2034
        %v2117 = vunpack.c.l.b16 %v2038
        %v2118 = vunpack.c.l.b16 %v2041
        %v2119 = vunpack.c.l.b16 %v2045
        %v2120 = vunpack.c.l.b16 %v2048
        %v2121 = vunpack.c.l.b16 %v2052
        %v2122 = vunpack.c.l.b16 %v2055
        %v2123 = vunpack.c.l.b16 %v2059
        %v2124 = vunpack.c.l.b16 %v2062
        %v2125 = vunpack.c.l.b16 %v2066
        %v2126 = vunpack.c.l.b16 %v2069
        %v2127 = vunpack.c.l.b16 %v2073
        %v2128 = vunpack.c.l.b16 %v2076
        %v2129 = vunpack.c.l.b16 %v2080
        %v2130 = vunpack.c.l.b16 %v2083
        %v2131 = vunpack.c.l.b16 %v2087
        %v2132 = vunpack.c.l.b16 %v2090
        %v2133 = vunpack.c.l.b16 %v2094
        %v2134 = vunpack.c.l.b16 %v2097
        %v2135 = vunpack.c.l.b16 %v2101
        %v2136 = vunpack.c.l.b16 %v2104
        %v2137 = vpack.c.b16 %v2106, %v2105
        %v2138 = vpack.c.b16 %v2108, %v2107
        %v2139 = vpack.c.b16 %v2110, %v2109
        %v2140 = vpack.c.b16 %v2112, %v2111
        %v2141 = vpack.c.b16 %v2114, %v2113
        %v2142 = vpack.c.b16 %v2116, %v2115
        %v2143 = vpack.c.b16 %v2118, %v2117
        %v2144 = vpack.c.b16 %v2120, %v2119
        %v2145 = vpack.c.b16 %v2122, %v2121
        %v2146 = vpack.c.b16 %v2124, %v2123
        %v2147 = vpack.c.b16 %v2126, %v2125
        %v2148 = vpack.c.b16 %v2128, %v2127
        %v2149 = vpack.c.b16 %v2130, %v2129
        %v2150 = vpack.c.b16 %v2132, %v2131
        %v2151 = vpack.c.b16 %v2134, %v2133
        %v2152 = vpack.c.b16 %v2136, %v2135
        %2153 = vrot.lane.b32.xlu0 %v2137, 64
        %v2154 = vpop.permute.xlu0 %2153
        %2155 = vrot.lane.b32.xlu0 %v2138, 64
        %v2156 = vpop.permute.xlu0 %2155
        %2157 = vrot.lane.b32.xlu0 %v2139, 64
        %v2158 = vpop.permute.xlu0 %2157
        %2159 = vrot.lane.b32.xlu0 %v2140, 64
        %v2160 = vpop.permute.xlu0 %2159
        %2161 = vrot.lane.b32.xlu0 %v2141, 64
        %v2162 = vpop.permute.xlu0 %2161
        %2163 = vrot.lane.b32.xlu0 %v2142, 64
        %v2164 = vpop.permute.xlu0 %2163
        %2165 = vrot.lane.b32.xlu0 %v2143, 64
        %v2166 = vpop.permute.xlu0 %2165
        %2167 = vrot.lane.b32.xlu0 %v2144, 64
        %v2168 = vpop.permute.xlu0 %2167
        %2169 = vrot.lane.b32.xlu0 %v2145, 64
        %v2170 = vpop.permute.xlu0 %2169
        %2171 = vrot.lane.b32.xlu0 %v2146, 64
        %v2172 = vpop.permute.xlu0 %2171
        %2173 = vrot.lane.b32.xlu0 %v2147, 64
        %v2174 = vpop.permute.xlu0 %2173
        %2175 = vrot.lane.b32.xlu0 %v2148, 64
        %v2176 = vpop.permute.xlu0 %2175
        %2177 = vrot.lane.b32.xlu0 %v2149, 64
        %v2178 = vpop.permute.xlu0 %2177
        %2179 = vrot.lane.b32.xlu0 %v2150, 64
        %v2180 = vpop.permute.xlu0 %2179
        %2181 = vrot.lane.b32.xlu0 %v2151, 64
        %v2182 = vpop.permute.xlu0 %2181
        %2183 = vrot.lane.b32.xlu0 %v2152, 64
        %v2184 = vpop.permute.xlu0 %2183
        %2201 = vst.msk [vmem:[#allocation2 + $0x10] sm:$0xff] %vm900, %v2154
        %2202 = vst.msk [vmem:[#allocation2 + $0x38] sm:$0xff] %vm900, %v2156
        %2203 = vst.msk [vmem:[#allocation2 + $0x60] sm:$0xff] %vm900, %v2158
        %2204 = vst.msk [vmem:[#allocation2 + $0x88] sm:$0xff] %vm900, %v2160
        %2205 = vst.msk [vmem:[#allocation2 + $0xb0] sm:$0xff] %vm900, %v2162
        %2206 = vst.msk [vmem:[#allocation2 + $0xd8] sm:$0xff] %vm900, %v2164
        %2207 = vst.msk [vmem:[#allocation2 + $0x100] sm:$0xff] %vm900, %v2166
        %2208 = vst.msk [vmem:[#allocation2 + $0x128] sm:$0xff] %vm900, %v2168
        %2209 = vst.msk [vmem:[#allocation2 + $0x150] sm:$0xff] %vm900, %v2170
        %2210 = vst.msk [vmem:[#allocation2 + $0x178] sm:$0xff] %vm900, %v2172
        %2211 = vst.msk [vmem:[#allocation2 + $0x1a0] sm:$0xff] %vm900, %v2174
        %2212 = vst.msk [vmem:[#allocation2 + $0x1c8] sm:$0xff] %vm900, %v2176
        %2213 = vst.msk [vmem:[#allocation2 + $0x1f0] sm:$0xff] %vm900, %v2178
        %2214 = vst.msk [vmem:[#allocation2 + $0x218] sm:$0xff] %vm900, %v2180
        %2215 = vst.msk [vmem:[#allocation2 + $0x240] sm:$0xff] %vm900, %v2182
        %2216 = vst.msk [vmem:[#allocation2 + $0x268] sm:$0xff] %vm900, %v2184
        %s2217 = scalar_lea.vmem %s222, 24
        %v2218 = vld [vmem:[%s2217] sm:$0xf]
        %v2219 = vld [vmem:[%s2217 + $0x4] sm:$0xf]
        %v2220 = vld [vmem:[%s2217 + $0xc] sm:$0xf]
        %v2221 = vld [vmem:[%s2217 + $0x10] sm:$0xf]
        %v2222 = vld [vmem:[%s2217 + $0x18] sm:$0xf]
        %v2223 = vld [vmem:[%s2217 + $0x1c] sm:$0xf]
        %v2224 = vld [vmem:[%s2217 + $0x24] sm:$0xf]
        %v2225 = vld [vmem:[%s2217 + $0x28] sm:$0xf]
        %v2226 = vld [vmem:[%s2217 + $0x30] sm:$0xf]
        %v2227 = vld [vmem:[%s2217 + $0x34] sm:$0xf]
        %v2228 = vld [vmem:[%s2217 + $0x3c] sm:$0xf]
        %v2229 = vld [vmem:[%s2217 + $0x40] sm:$0xf]
        %v2230 = vld [vmem:[%s2217 + $0x48] sm:$0xf]
        %v2231 = vld [vmem:[%s2217 + $0x4c] sm:$0xf]
        %v2232 = vld [vmem:[%s2217 + $0x54] sm:$0xf]
        %v2233 = vld [vmem:[%s2217 + $0x58] sm:$0xf]
        %v2234 = vld [vmem:[%s2217 + $0x60] sm:$0xf]
        %v2235 = vld [vmem:[%s2217 + $0x64] sm:$0xf]
        %v2236 = vld [vmem:[%s2217 + $0x6c] sm:$0xf]
        %v2237 = vld [vmem:[%s2217 + $0x70] sm:$0xf]
        %v2238 = vld [vmem:[%s2217 + $0x78] sm:$0xf]
        %v2239 = vld [vmem:[%s2217 + $0x7c] sm:$0xf]
        %v2240 = vld [vmem:[%s2217 + $0x84] sm:$0xf]
        %v2241 = vld [vmem:[%s2217 + $0x88] sm:$0xf]
        %v2242 = vld [vmem:[%s2217 + $0x90] sm:$0xf]
        %v2243 = vld [vmem:[%s2217 + $0x94] sm:$0xf]
        %v2244 = vld [vmem:[%s2217 + $0x9c] sm:$0xf]
        %v2245 = vld [vmem:[%s2217 + $0xa0] sm:$0xf]
        %v2246 = vld [vmem:[%s2217 + $0xa8] sm:$0xf]
        %v2247 = vld [vmem:[%s2217 + $0xac] sm:$0xf]
        %v2248 = vld [vmem:[%s2217 + $0xb4] sm:$0xf]
        %v2249 = vld [vmem:[%s2217 + $0xb8] sm:$0xf]
        %v2282 = vunpack.c.l.b16 %v2218
        %v2283 = vunpack.c.l.b16 %v2219
        %v2284 = vunpack.c.l.b16 %v2220
        %v2285 = vunpack.c.l.b16 %v2221
        %v2286 = vunpack.c.l.b16 %v2222
        %v2287 = vunpack.c.l.b16 %v2223
        %v2288 = vunpack.c.l.b16 %v2224
        %v2289 = vunpack.c.l.b16 %v2225
        %v2290 = vunpack.c.l.b16 %v2226
        %v2291 = vunpack.c.l.b16 %v2227
        %v2292 = vunpack.c.l.b16 %v2228
        %v2293 = vunpack.c.l.b16 %v2229
        %v2294 = vunpack.c.l.b16 %v2230
        %v2295 = vunpack.c.l.b16 %v2231
        %v2296 = vunpack.c.l.b16 %v2232
        %v2297 = vunpack.c.l.b16 %v2233
        %v2298 = vunpack.c.l.b16 %v2234
        %v2299 = vunpack.c.l.b16 %v2235
        %v2300 = vunpack.c.l.b16 %v2236
        %v2301 = vunpack.c.l.b16 %v2237
        %v2302 = vunpack.c.l.b16 %v2238
        %v2303 = vunpack.c.l.b16 %v2239
        %v2304 = vunpack.c.l.b16 %v2240
        %v2305 = vunpack.c.l.b16 %v2241
        %v2306 = vunpack.c.l.b16 %v2242
        %v2307 = vunpack.c.l.b16 %v2243
        %v2308 = vunpack.c.l.b16 %v2244
        %v2309 = vunpack.c.l.b16 %v2245
        %v2310 = vunpack.c.l.b16 %v2246
        %v2311 = vunpack.c.l.b16 %v2247
        %v2312 = vunpack.c.l.b16 %v2248
        %v2313 = vunpack.c.l.b16 %v2249
        %v2314 = vpack.c.b16 %v2283, %v2282
        %v2315 = vpack.c.b16 %v2285, %v2284
        %v2316 = vpack.c.b16 %v2287, %v2286
        %v2317 = vpack.c.b16 %v2289, %v2288
        %v2318 = vpack.c.b16 %v2291, %v2290
        %v2319 = vpack.c.b16 %v2293, %v2292
        %v2320 = vpack.c.b16 %v2295, %v2294
        %v2321 = vpack.c.b16 %v2297, %v2296
        %v2322 = vpack.c.b16 %v2299, %v2298
        %v2323 = vpack.c.b16 %v2301, %v2300
        %v2324 = vpack.c.b16 %v2303, %v2302
        %v2325 = vpack.c.b16 %v2305, %v2304
        %v2326 = vpack.c.b16 %v2307, %v2306
        %v2327 = vpack.c.b16 %v2309, %v2308
        %v2328 = vpack.c.b16 %v2311, %v2310
        %v2329 = vpack.c.b16 %v2313, %v2312
        %2346 = vst.msk [vmem:[#allocation2 + $0x18] sm:$0xff] %vm352, %v2314
        %2347 = vst.msk [vmem:[#allocation2 + $0x40] sm:$0xff] %vm352, %v2315
        %2348 = vst.msk [vmem:[#allocation2 + $0x68] sm:$0xff] %vm352, %v2316
        %2349 = vst.msk [vmem:[#allocation2 + $0x90] sm:$0xff] %vm352, %v2317
        %2350 = vst.msk [vmem:[#allocation2 + $0xb8] sm:$0xff] %vm352, %v2318
        %2351 = vst.msk [vmem:[#allocation2 + $0xe0] sm:$0xff] %vm352, %v2319
        %2352 = vst.msk [vmem:[#allocation2 + $0x108] sm:$0xff] %vm352, %v2320
        %2353 = vst.msk [vmem:[#allocation2 + $0x130] sm:$0xff] %vm352, %v2321
        %2354 = vst.msk [vmem:[#allocation2 + $0x158] sm:$0xff] %vm352, %v2322
        %2355 = vst.msk [vmem:[#allocation2 + $0x180] sm:$0xff] %vm352, %v2323
        %2356 = vst.msk [vmem:[#allocation2 + $0x1a8] sm:$0xff] %vm352, %v2324
        %2357 = vst.msk [vmem:[#allocation2 + $0x1d0] sm:$0xff] %vm352, %v2325
        %2358 = vst.msk [vmem:[#allocation2 + $0x1f8] sm:$0xff] %vm352, %v2326
        %2359 = vst.msk [vmem:[#allocation2 + $0x220] sm:$0xff] %vm352, %v2327
        %2360 = vst.msk [vmem:[#allocation2 + $0x248] sm:$0xff] %vm352, %v2328
        %2361 = vst.msk [vmem:[#allocation2 + $0x270] sm:$0xff] %vm352, %v2329
        %v2362 = vld [vmem:[%s2217] sm:$0xf]
        %v2363 = vld [vmem:[%s2217 + $0x4] sm:$0xf]
        %v2364 = vld [vmem:[%s2217 + $0x8] sm:$0x1]
        %v2365 = vld [vmem:[%s2217 + $0xc] sm:$0xf]
        %v2366 = vld [vmem:[%s2217 + $0x10] sm:$0xf]
        %v2367 = vld [vmem:[%s2217 + $0x14] sm:$0x1]
        %v2368 = vld [vmem:[%s2217 + $0x18] sm:$0xf]
        %v2369 = vld [vmem:[%s2217 + $0x1c] sm:$0xf]
        %v2370 = vld [vmem:[%s2217 + $0x20] sm:$0x1]
        %v2371 = vld [vmem:[%s2217 + $0x24] sm:$0xf]
        %v2372 = vld [vmem:[%s2217 + $0x28] sm:$0xf]
        %v2373 = vld [vmem:[%s2217 + $0x2c] sm:$0x1]
        %v2374 = vld [vmem:[%s2217 + $0x30] sm:$0xf]
        %v2375 = vld [vmem:[%s2217 + $0x34] sm:$0xf]
        %v2376 = vld [vmem:[%s2217 + $0x38] sm:$0x1]
        %v2377 = vld [vmem:[%s2217 + $0x3c] sm:$0xf]
        %v2378 = vld [vmem:[%s2217 + $0x40] sm:$0xf]
        %v2379 = vld [vmem:[%s2217 + $0x44] sm:$0x1]
        %v2380 = vld [vmem:[%s2217 + $0x48] sm:$0xf]
        %v2381 = vld [vmem:[%s2217 + $0x4c] sm:$0xf]
        %v2382 = vld [vmem:[%s2217 + $0x50] sm:$0x1]
        %v2383 = vld [vmem:[%s2217 + $0x54] sm:$0xf]
        %v2384 = vld [vmem:[%s2217 + $0x58] sm:$0xf]
        %v2385 = vld [vmem:[%s2217 + $0x5c] sm:$0x1]
        %v2386 = vld [vmem:[%s2217 + $0x60] sm:$0xf]
        %v2387 = vld [vmem:[%s2217 + $0x64] sm:$0xf]
        %v2388 = vld [vmem:[%s2217 + $0x68] sm:$0x1]
        %v2389 = vld [vmem:[%s2217 + $0x6c] sm:$0xf]
        %v2390 = vld [vmem:[%s2217 + $0x70] sm:$0xf]
        %v2391 = vld [vmem:[%s2217 + $0x74] sm:$0x1]
        %v2392 = vld [vmem:[%s2217 + $0x78] sm:$0xf]
        %v2393 = vld [vmem:[%s2217 + $0x7c] sm:$0xf]
        %v2394 = vld [vmem:[%s2217 + $0x80] sm:$0x1]
        %v2395 = vld [vmem:[%s2217 + $0x84] sm:$0xf]
        %v2396 = vld [vmem:[%s2217 + $0x88] sm:$0xf]
        %v2397 = vld [vmem:[%s2217 + $0x8c] sm:$0x1]
        %v2398 = vld [vmem:[%s2217 + $0x90] sm:$0xf]
        %v2399 = vld [vmem:[%s2217 + $0x94] sm:$0xf]
        %v2400 = vld [vmem:[%s2217 + $0x98] sm:$0x1]
        %v2401 = vld [vmem:[%s2217 + $0x9c] sm:$0xf]
        %v2402 = vld [vmem:[%s2217 + $0xa0] sm:$0xf]
        %v2403 = vld [vmem:[%s2217 + $0xa4] sm:$0x1]
        %v2404 = vld [vmem:[%s2217 + $0xa8] sm:$0xf]
        %v2405 = vld [vmem:[%s2217 + $0xac] sm:$0xf]
        %v2406 = vld [vmem:[%s2217 + $0xb0] sm:$0x1]
        %v2407 = vld [vmem:[%s2217 + $0xb4] sm:$0xf]
        %v2408 = vld [vmem:[%s2217 + $0xb8] sm:$0xf]
        %v2409 = vld [vmem:[%s2217 + $0xbc] sm:$0x1]
        %v2411 = vshrl.u32 %v2362, 16
        %v2413 = vrot.slane %v2411, 4
        %v2414 = vshll.u32 %v2362, 16
        %v2416 = vrot.slane %v2414, 5
        %v2417 = vor.u32 %v2413, %v2416
        %v2418 = vrot.slane %v2417, 4
        %v2420 = vshll.u32 %v2363, 16
        %v2422 = vrot.slane %v2420, 5
        %v2423 = vsel %vm419, %v2418, %v2422
        %v2424 = vshrl.u32 %v2363, 16
        %v2426 = vrot.slane %v2424, 4
        %v2427 = vor.u32 %v2426, %v2422
        %v2428 = vrot.slane %v2427, 4
        %v2430 = vshll.u32 %v2364, 16
        %v2432 = vrot.slane %v2430, 5
        %v2433 = vsel %vm419, %v2428, %v2432
        %v2435 = vshrl.u32 %v2365, 16
        %v2437 = vrot.slane %v2435, 4
        %v2438 = vshll.u32 %v2365, 16
        %v2440 = vrot.slane %v2438, 5
        %v2441 = vor.u32 %v2437, %v2440
        %v2442 = vrot.slane %v2441, 4
        %v2444 = vshll.u32 %v2366, 16
        %v2446 = vrot.slane %v2444, 5
        %v2447 = vsel %vm419, %v2442, %v2446
        %v2448 = vshrl.u32 %v2366, 16
        %v2450 = vrot.slane %v2448, 4
        %v2451 = vor.u32 %v2450, %v2446
        %v2452 = vrot.slane %v2451, 4
        %v2454 = vshll.u32 %v2367, 16
        %v2456 = vrot.slane %v2454, 5
        %v2457 = vsel %vm419, %v2452, %v2456
        %v2459 = vshrl.u32 %v2368, 16
        %v2461 = vrot.slane %v2459, 4
        %v2462 = vshll.u32 %v2368, 16
        %v2464 = vrot.slane %v2462, 5
        %v2465 = vor.u32 %v2461, %v2464
        %v2466 = vrot.slane %v2465, 4
        %v2468 = vshll.u32 %v2369, 16
        %v2470 = vrot.slane %v2468, 5
        %v2471 = vsel %vm419, %v2466, %v2470
        %v2472 = vshrl.u32 %v2369, 16
        %v2474 = vrot.slane %v2472, 4
        %v2475 = vor.u32 %v2474, %v2470
        %v2476 = vrot.slane %v2475, 4
        %v2478 = vshll.u32 %v2370, 16
        %v2480 = vrot.slane %v2478, 5
        %v2481 = vsel %vm419, %v2476, %v2480
        %v2483 = vshrl.u32 %v2371, 16
        %v2485 = vrot.slane %v2483, 4
        %v2486 = vshll.u32 %v2371, 16
        %v2488 = vrot.slane %v2486, 5
        %v2489 = vor.u32 %v2485, %v2488
        %v2490 = vrot.slane %v2489, 4
        %v2492 = vshll.u32 %v2372, 16
        %v2494 = vrot.slane %v2492, 5
        %v2495 = vsel %vm419, %v2490, %v2494
        %v2496 = vshrl.u32 %v2372, 16
        %v2498 = vrot.slane %v2496, 4
        %v2499 = vor.u32 %v2498, %v2494
        %v2500 = vrot.slane %v2499, 4
        %v2502 = vshll.u32 %v2373, 16
        %v2504 = vrot.slane %v2502, 5
        %v2505 = vsel %vm419, %v2500, %v2504
        %v2507 = vshrl.u32 %v2374, 16
        %v2509 = vrot.slane %v2507, 4
        %v2510 = vshll.u32 %v2374, 16
        %v2512 = vrot.slane %v2510, 5
        %v2513 = vor.u32 %v2509, %v2512
        %v2514 = vrot.slane %v2513, 4
        %v2516 = vshll.u32 %v2375, 16
        %v2518 = vrot.slane %v2516, 5
        %v2519 = vsel %vm419, %v2514, %v2518
        %v2520 = vshrl.u32 %v2375, 16
        %v2522 = vrot.slane %v2520, 4
        %v2523 = vor.u32 %v2522, %v2518
        %v2524 = vrot.slane %v2523, 4
        %v2526 = vshll.u32 %v2376, 16
        %v2528 = vrot.slane %v2526, 5
        %v2529 = vsel %vm419, %v2524, %v2528
        %v2531 = vshrl.u32 %v2377, 16
        %v2533 = vrot.slane %v2531, 4
        %v2534 = vshll.u32 %v2377, 16
        %v2536 = vrot.slane %v2534, 5
        %v2537 = vor.u32 %v2533, %v2536
        %v2538 = vrot.slane %v2537, 4
        %v2540 = vshll.u32 %v2378, 16
        %v2542 = vrot.slane %v2540, 5
        %v2543 = vsel %vm419, %v2538, %v2542
        %v2544 = vshrl.u32 %v2378, 16
        %v2546 = vrot.slane %v2544, 4
        %v2547 = vor.u32 %v2546, %v2542
        %v2548 = vrot.slane %v2547, 4
        %v2550 = vshll.u32 %v2379, 16
        %v2552 = vrot.slane %v2550, 5
        %v2553 = vsel %vm419, %v2548, %v2552
        %v2555 = vshrl.u32 %v2380, 16
        %v2557 = vrot.slane %v2555, 4
        %v2558 = vshll.u32 %v2380, 16
        %v2560 = vrot.slane %v2558, 5
        %v2561 = vor.u32 %v2557, %v2560
        %v2562 = vrot.slane %v2561, 4
        %v2564 = vshll.u32 %v2381, 16
        %v2566 = vrot.slane %v2564, 5
        %v2567 = vsel %vm419, %v2562, %v2566
        %v2568 = vshrl.u32 %v2381, 16
        %v2570 = vrot.slane %v2568, 4
        %v2571 = vor.u32 %v2570, %v2566
        %v2572 = vrot.slane %v2571, 4
        %v2574 = vshll.u32 %v2382, 16
        %v2576 = vrot.slane %v2574, 5
        %v2577 = vsel %vm419, %v2572, %v2576
        %v2579 = vshrl.u32 %v2383, 16
        %v2581 = vrot.slane %v2579, 4
        %v2582 = vshll.u32 %v2383, 16
        %v2584 = vrot.slane %v2582, 5
        %v2585 = vor.u32 %v2581, %v2584
        %v2586 = vrot.slane %v2585, 4
        %v2588 = vshll.u32 %v2384, 16
        %v2590 = vrot.slane %v2588, 5
        %v2591 = vsel %vm419, %v2586, %v2590
        %v2592 = vshrl.u32 %v2384, 16
        %v2594 = vrot.slane %v2592, 4
        %v2595 = vor.u32 %v2594, %v2590
        %v2596 = vrot.slane %v2595, 4
        %v2598 = vshll.u32 %v2385, 16
        %v2600 = vrot.slane %v2598, 5
        %v2601 = vsel %vm419, %v2596, %v2600
        %v2603 = vshrl.u32 %v2386, 16
        %v2605 = vrot.slane %v2603, 4
        %v2606 = vshll.u32 %v2386, 16
        %v2608 = vrot.slane %v2606, 5
        %v2609 = vor.u32 %v2605, %v2608
        %v2610 = vrot.slane %v2609, 4
        %v2612 = vshll.u32 %v2387, 16
        %v2614 = vrot.slane %v2612, 5
        %v2615 = vsel %vm419, %v2610, %v2614
        %v2616 = vshrl.u32 %v2387, 16
        %v2618 = vrot.slane %v2616, 4
        %v2619 = vor.u32 %v2618, %v2614
        %v2620 = vrot.slane %v2619, 4
        %v2622 = vshll.u32 %v2388, 16
        %v2624 = vrot.slane %v2622, 5
        %v2625 = vsel %vm419, %v2620, %v2624
        %v2627 = vshrl.u32 %v2389, 16
        %v2629 = vrot.slane %v2627, 4
        %v2630 = vshll.u32 %v2389, 16
        %v2632 = vrot.slane %v2630, 5
        %v2633 = vor.u32 %v2629, %v2632
        %v2634 = vrot.slane %v2633, 4
        %v2636 = vshll.u32 %v2390, 16
        %v2638 = vrot.slane %v2636, 5
        %v2639 = vsel %vm419, %v2634, %v2638
        %v2640 = vshrl.u32 %v2390, 16
        %v2642 = vrot.slane %v2640, 4
        %v2643 = vor.u32 %v2642, %v2638
        %v2644 = vrot.slane %v2643, 4
        %v2646 = vshll.u32 %v2391, 16
        %v2648 = vrot.slane %v2646, 5
        %v2649 = vsel %vm419, %v2644, %v2648
        %v2651 = vshrl.u32 %v2392, 16
        %v2653 = vrot.slane %v2651, 4
        %v2654 = vshll.u32 %v2392, 16
        %v2656 = vrot.slane %v2654, 5
        %v2657 = vor.u32 %v2653, %v2656
        %v2658 = vrot.slane %v2657, 4
        %v2660 = vshll.u32 %v2393, 16
        %v2662 = vrot.slane %v2660, 5
        %v2663 = vsel %vm419, %v2658, %v2662
        %v2664 = vshrl.u32 %v2393, 16
        %v2666 = vrot.slane %v2664, 4
        %v2667 = vor.u32 %v2666, %v2662
        %v2668 = vrot.slane %v2667, 4
        %v2670 = vshll.u32 %v2394, 16
        %v2672 = vrot.slane %v2670, 5
        %v2673 = vsel %vm419, %v2668, %v2672
        %v2675 = vshrl.u32 %v2395, 16
        %v2677 = vrot.slane %v2675, 4
        %v2678 = vshll.u32 %v2395, 16
        %v2680 = vrot.slane %v2678, 5
        %v2681 = vor.u32 %v2677, %v2680
        %v2682 = vrot.slane %v2681, 4
        %v2684 = vshll.u32 %v2396, 16
        %v2686 = vrot.slane %v2684, 5
        %v2687 = vsel %vm419, %v2682, %v2686
        %v2688 = vshrl.u32 %v2396, 16
        %v2690 = vrot.slane %v2688, 4
        %v2691 = vor.u32 %v2690, %v2686
        %v2692 = vrot.slane %v2691, 4
        %v2694 = vshll.u32 %v2397, 16
        %v2696 = vrot.slane %v2694, 5
        %v2697 = vsel %vm419, %v2692, %v2696
        %v2699 = vshrl.u32 %v2398, 16
        %v2701 = vrot.slane %v2699, 4
        %v2702 = vshll.u32 %v2398, 16
        %v2704 = vrot.slane %v2702, 5
        %v2705 = vor.u32 %v2701, %v2704
        %v2706 = vrot.slane %v2705, 4
        %v2708 = vshll.u32 %v2399, 16
        %v2710 = vrot.slane %v2708, 5
        %v2711 = vsel %vm419, %v2706, %v2710
        %v2712 = vshrl.u32 %v2399, 16
        %v2714 = vrot.slane %v2712, 4
        %v2715 = vor.u32 %v2714, %v2710
        %v2716 = vrot.slane %v2715, 4
        %v2718 = vshll.u32 %v2400, 16
        %v2720 = vrot.slane %v2718, 5
        %v2721 = vsel %vm419, %v2716, %v2720
        %v2723 = vshrl.u32 %v2401, 16
        %v2725 = vrot.slane %v2723, 4
        %v2726 = vshll.u32 %v2401, 16
        %v2728 = vrot.slane %v2726, 5
        %v2729 = vor.u32 %v2725, %v2728
        %v2730 = vrot.slane %v2729, 4
        %v2732 = vshll.u32 %v2402, 16
        %v2734 = vrot.slane %v2732, 5
        %v2735 = vsel %vm419, %v2730, %v2734
        %v2736 = vshrl.u32 %v2402, 16
        %v2738 = vrot.slane %v2736, 4
        %v2739 = vor.u32 %v2738, %v2734
        %v2740 = vrot.slane %v2739, 4
        %v2742 = vshll.u32 %v2403, 16
        %v2744 = vrot.slane %v2742, 5
        %v2745 = vsel %vm419, %v2740, %v2744
        %v2747 = vshrl.u32 %v2404, 16
        %v2749 = vrot.slane %v2747, 4
        %v2750 = vshll.u32 %v2404, 16
        %v2752 = vrot.slane %v2750, 5
        %v2753 = vor.u32 %v2749, %v2752
        %v2754 = vrot.slane %v2753, 4
        %v2756 = vshll.u32 %v2405, 16
        %v2758 = vrot.slane %v2756, 5
        %v2759 = vsel %vm419, %v2754, %v2758
        %v2760 = vshrl.u32 %v2405, 16
        %v2762 = vrot.slane %v2760, 4
        %v2763 = vor.u32 %v2762, %v2758
        %v2764 = vrot.slane %v2763, 4
        %v2766 = vshll.u32 %v2406, 16
        %v2768 = vrot.slane %v2766, 5
        %v2769 = vsel %vm419, %v2764, %v2768
        %v2771 = vshrl.u32 %v2407, 16
        %v2773 = vrot.slane %v2771, 4
        %v2774 = vshll.u32 %v2407, 16
        %v2776 = vrot.slane %v2774, 5
        %v2777 = vor.u32 %v2773, %v2776
        %v2778 = vrot.slane %v2777, 4
        %v2780 = vshll.u32 %v2408, 16
        %v2782 = vrot.slane %v2780, 5
        %v2783 = vsel %vm419, %v2778, %v2782
        %v2784 = vshrl.u32 %v2408, 16
        %v2786 = vrot.slane %v2784, 4
        %v2787 = vor.u32 %v2786, %v2782
        %v2788 = vrot.slane %v2787, 4
        %v2790 = vshll.u32 %v2409, 16
        %v2792 = vrot.slane %v2790, 5
        %v2793 = vsel %vm419, %v2788, %v2792
        %v2794 = vunpack.c.l.b16 %v2423
        %v2795 = vunpack.c.l.b16 %v2433
        %v2796 = vunpack.c.l.b16 %v2447
        %v2797 = vunpack.c.l.b16 %v2457
        %v2798 = vunpack.c.l.b16 %v2471
        %v2799 = vunpack.c.l.b16 %v2481
        %v2800 = vunpack.c.l.b16 %v2495
        %v2801 = vunpack.c.l.b16 %v2505
        %v2802 = vunpack.c.l.b16 %v2519
        %v2803 = vunpack.c.l.b16 %v2529
        %v2804 = vunpack.c.l.b16 %v2543
        %v2805 = vunpack.c.l.b16 %v2553
        %v2806 = vunpack.c.l.b16 %v2567
        %v2807 = vunpack.c.l.b16 %v2577
        %v2808 = vunpack.c.l.b16 %v2591
        %v2809 = vunpack.c.l.b16 %v2601
        %v2810 = vunpack.c.l.b16 %v2615
        %v2811 = vunpack.c.l.b16 %v2625
        %v2812 = vunpack.c.l.b16 %v2639
        %v2813 = vunpack.c.l.b16 %v2649
        %v2814 = vunpack.c.l.b16 %v2663
        %v2815 = vunpack.c.l.b16 %v2673
        %v2816 = vunpack.c.l.b16 %v2687
        %v2817 = vunpack.c.l.b16 %v2697
        %v2818 = vunpack.c.l.b16 %v2711
        %v2819 = vunpack.c.l.b16 %v2721
        %v2820 = vunpack.c.l.b16 %v2735
        %v2821 = vunpack.c.l.b16 %v2745
        %v2822 = vunpack.c.l.b16 %v2759
        %v2823 = vunpack.c.l.b16 %v2769
        %v2824 = vunpack.c.l.b16 %v2783
        %v2825 = vunpack.c.l.b16 %v2793
        %v2826 = vpack.c.b16 %v2795, %v2794
        %v2827 = vpack.c.b16 %v2797, %v2796
        %v2828 = vpack.c.b16 %v2799, %v2798
        %v2829 = vpack.c.b16 %v2801, %v2800
        %v2830 = vpack.c.b16 %v2803, %v2802
        %v2831 = vpack.c.b16 %v2805, %v2804
        %v2832 = vpack.c.b16 %v2807, %v2806
        %v2833 = vpack.c.b16 %v2809, %v2808
        %v2834 = vpack.c.b16 %v2811, %v2810
        %v2835 = vpack.c.b16 %v2813, %v2812
        %v2836 = vpack.c.b16 %v2815, %v2814
        %v2837 = vpack.c.b16 %v2817, %v2816
        %v2838 = vpack.c.b16 %v2819, %v2818
        %v2839 = vpack.c.b16 %v2821, %v2820
        %v2840 = vpack.c.b16 %v2823, %v2822
        %v2841 = vpack.c.b16 %v2825, %v2824
        %2842 = vrot.lane.b32.xlu0 %v2826, 64
        %v2843 = vpop.permute.xlu0 %2842
        %2844 = vrot.lane.b32.xlu0 %v2827, 64
        %v2845 = vpop.permute.xlu0 %2844
        %2846 = vrot.lane.b32.xlu0 %v2828, 64
        %v2847 = vpop.permute.xlu0 %2846
        %2848 = vrot.lane.b32.xlu0 %v2829, 64
        %v2849 = vpop.permute.xlu0 %2848
        %2850 = vrot.lane.b32.xlu0 %v2830, 64
        %v2851 = vpop.permute.xlu0 %2850
        %2852 = vrot.lane.b32.xlu0 %v2831, 64
        %v2853 = vpop.permute.xlu0 %2852
        %2854 = vrot.lane.b32.xlu0 %v2832, 64
        %v2855 = vpop.permute.xlu0 %2854
        %2856 = vrot.lane.b32.xlu0 %v2833, 64
        %v2857 = vpop.permute.xlu0 %2856
        %2858 = vrot.lane.b32.xlu0 %v2834, 64
        %v2859 = vpop.permute.xlu0 %2858
        %2860 = vrot.lane.b32.xlu0 %v2835, 64
        %v2861 = vpop.permute.xlu0 %2860
        %2862 = vrot.lane.b32.xlu0 %v2836, 64
        %v2863 = vpop.permute.xlu0 %2862
        %2864 = vrot.lane.b32.xlu0 %v2837, 64
        %v2865 = vpop.permute.xlu0 %2864
        %2866 = vrot.lane.b32.xlu0 %v2838, 64
        %v2867 = vpop.permute.xlu0 %2866
        %2868 = vrot.lane.b32.xlu0 %v2839, 64
        %v2869 = vpop.permute.xlu0 %2868
        %2870 = vrot.lane.b32.xlu0 %v2840, 64
        %v2871 = vpop.permute.xlu0 %2870
        %2872 = vrot.lane.b32.xlu0 %v2841, 64
        %v2873 = vpop.permute.xlu0 %2872
        %2890 = vst.msk [vmem:[#allocation2 + $0x18] sm:$0xff] %vm900, %v2843
        %2891 = vst.msk [vmem:[#allocation2 + $0x40] sm:$0xff] %vm900, %v2845
        %2892 = vst.msk [vmem:[#allocation2 + $0x68] sm:$0xff] %vm900, %v2847
        %2893 = vst.msk [vmem:[#allocation2 + $0x90] sm:$0xff] %vm900, %v2849
        %2894 = vst.msk [vmem:[#allocation2 + $0xb8] sm:$0xff] %vm900, %v2851
        %2895 = vst.msk [vmem:[#allocation2 + $0xe0] sm:$0xff] %vm900, %v2853
        %2896 = vst.msk [vmem:[#allocation2 + $0x108] sm:$0xff] %vm900, %v2855
        %2897 = vst.msk [vmem:[#allocation2 + $0x130] sm:$0xff] %vm900, %v2857
        %2898 = vst.msk [vmem:[#allocation2 + $0x158] sm:$0xff] %vm900, %v2859
        %2899 = vst.msk [vmem:[#allocation2 + $0x180] sm:$0xff] %vm900, %v2861
        %2900 = vst.msk [vmem:[#allocation2 + $0x1a8] sm:$0xff] %vm900, %v2863
        %2901 = vst.msk [vmem:[#allocation2 + $0x1d0] sm:$0xff] %vm900, %v2865
        %2902 = vst.msk [vmem:[#allocation2 + $0x1f8] sm:$0xff] %vm900, %v2867
        %2903 = vst.msk [vmem:[#allocation2 + $0x220] sm:$0xff] %vm900, %v2869
        %2904 = vst.msk [vmem:[#allocation2 + $0x248] sm:$0xff] %vm900, %v2871
        %2905 = vst.msk [vmem:[#allocation2 + $0x270] sm:$0xff] %vm900, %v2873
        %v2906 = vld [vmem:[%s2217] sm:$0xe]
        %v2907 = vld [vmem:[%s2217 + $0x4] sm:$0xf]
        %v2908 = vld [vmem:[%s2217 + $0x8] sm:$0x1]
        %v2909 = vld [vmem:[%s2217 + $0xc] sm:$0xe]
        %v2910 = vld [vmem:[%s2217 + $0x10] sm:$0xf]
        %v2911 = vld [vmem:[%s2217 + $0x14] sm:$0x1]
        %v2912 = vld [vmem:[%s2217 + $0x18] sm:$0xe]
        %v2913 = vld [vmem:[%s2217 + $0x1c] sm:$0xf]
        %v2914 = vld [vmem:[%s2217 + $0x20] sm:$0x1]
        %v2915 = vld [vmem:[%s2217 + $0x24] sm:$0xe]
        %v2916 = vld [vmem:[%s2217 + $0x28] sm:$0xf]
        %v2917 = vld [vmem:[%s2217 + $0x2c] sm:$0x1]
        %v2918 = vld [vmem:[%s2217 + $0x30] sm:$0xe]
        %v2919 = vld [vmem:[%s2217 + $0x34] sm:$0xf]
        %v2920 = vld [vmem:[%s2217 + $0x38] sm:$0x1]
        %v2921 = vld [vmem:[%s2217 + $0x3c] sm:$0xe]
        %v2922 = vld [vmem:[%s2217 + $0x40] sm:$0xf]
        %v2923 = vld [vmem:[%s2217 + $0x44] sm:$0x1]
        %v2924 = vld [vmem:[%s2217 + $0x48] sm:$0xe]
        %v2925 = vld [vmem:[%s2217 + $0x4c] sm:$0xf]
        %v2926 = vld [vmem:[%s2217 + $0x50] sm:$0x1]
        %v2927 = vld [vmem:[%s2217 + $0x54] sm:$0xe]
        %v2928 = vld [vmem:[%s2217 + $0x58] sm:$0xf]
        %v2929 = vld [vmem:[%s2217 + $0x5c] sm:$0x1]
        %v2930 = vld [vmem:[%s2217 + $0x60] sm:$0xe]
        %v2931 = vld [vmem:[%s2217 + $0x64] sm:$0xf]
        %v2932 = vld [vmem:[%s2217 + $0x68] sm:$0x1]
        %v2933 = vld [vmem:[%s2217 + $0x6c] sm:$0xe]
        %v2934 = vld [vmem:[%s2217 + $0x70] sm:$0xf]
        %v2935 = vld [vmem:[%s2217 + $0x74] sm:$0x1]
        %v2936 = vld [vmem:[%s2217 + $0x78] sm:$0xe]
        %v2937 = vld [vmem:[%s2217 + $0x7c] sm:$0xf]
        %v2938 = vld [vmem:[%s2217 + $0x80] sm:$0x1]
        %v2939 = vld [vmem:[%s2217 + $0x84] sm:$0xe]
        %v2940 = vld [vmem:[%s2217 + $0x88] sm:$0xf]
        %v2941 = vld [vmem:[%s2217 + $0x8c] sm:$0x1]
        %v2942 = vld [vmem:[%s2217 + $0x90] sm:$0xe]
        %v2943 = vld [vmem:[%s2217 + $0x94] sm:$0xf]
        %v2944 = vld [vmem:[%s2217 + $0x98] sm:$0x1]
        %v2945 = vld [vmem:[%s2217 + $0x9c] sm:$0xe]
        %v2946 = vld [vmem:[%s2217 + $0xa0] sm:$0xf]
        %v2947 = vld [vmem:[%s2217 + $0xa4] sm:$0x1]
        %v2948 = vld [vmem:[%s2217 + $0xa8] sm:$0xe]
        %v2949 = vld [vmem:[%s2217 + $0xac] sm:$0xf]
        %v2950 = vld [vmem:[%s2217 + $0xb0] sm:$0x1]
        %v2951 = vld [vmem:[%s2217 + $0xb4] sm:$0xe]
        %v2952 = vld [vmem:[%s2217 + $0xb8] sm:$0xf]
        %v2953 = vld [vmem:[%s2217 + $0xbc] sm:$0x1]
        %v3002 = vrot.slane %v2906, 5
        %v3003 = vrot.slane %v3002, 4
        %v3004 = vrot.slane %v2907, 5
        %v3005 = vsel %vm1015, %v3003, %v3004
        %v3006 = vrot.slane %v3004, 4
        %v3007 = vrot.slane %v2908, 5
        %v3008 = vsel %vm1015, %v3006, %v3007
        %v3009 = vrot.slane %v2909, 5
        %v3010 = vrot.slane %v3009, 4
        %v3011 = vrot.slane %v2910, 5
        %v3012 = vsel %vm1015, %v3010, %v3011
        %v3013 = vrot.slane %v3011, 4
        %v3014 = vrot.slane %v2911, 5
        %v3015 = vsel %vm1015, %v3013, %v3014
        %v3016 = vrot.slane %v2912, 5
        %v3017 = vrot.slane %v3016, 4
        %v3018 = vrot.slane %v2913, 5
        %v3019 = vsel %vm1015, %v3017, %v3018
        %v3020 = vrot.slane %v3018, 4
        %v3021 = vrot.slane %v2914, 5
        %v3022 = vsel %vm1015, %v3020, %v3021
        %v3023 = vrot.slane %v2915, 5
        %v3024 = vrot.slane %v3023, 4
        %v3025 = vrot.slane %v2916, 5
        %v3026 = vsel %vm1015, %v3024, %v3025
        %v3027 = vrot.slane %v3025, 4
        %v3028 = vrot.slane %v2917, 5
        %v3029 = vsel %vm1015, %v3027, %v3028
        %v3030 = vrot.slane %v2918, 5
        %v3031 = vrot.slane %v3030, 4
        %v3032 = vrot.slane %v2919, 5
        %v3033 = vsel %vm1015, %v3031, %v3032
        %v3034 = vrot.slane %v3032, 4
        %v3035 = vrot.slane %v2920, 5
        %v3036 = vsel %vm1015, %v3034, %v3035
        %v3037 = vrot.slane %v2921, 5
        %v3038 = vrot.slane %v3037, 4
        %v3039 = vrot.slane %v2922, 5
        %v3040 = vsel %vm1015, %v3038, %v3039
        %v3041 = vrot.slane %v3039, 4
        %v3042 = vrot.slane %v2923, 5
        %v3043 = vsel %vm1015, %v3041, %v3042
        %v3044 = vrot.slane %v2924, 5
        %v3045 = vrot.slane %v3044, 4
        %v3046 = vrot.slane %v2925, 5
        %v3047 = vsel %vm1015, %v3045, %v3046
        %v3048 = vrot.slane %v3046, 4
        %v3049 = vrot.slane %v2926, 5
        %v3050 = vsel %vm1015, %v3048, %v3049
        %v3051 = vrot.slane %v2927, 5
        %v3052 = vrot.slane %v3051, 4
        %v3053 = vrot.slane %v2928, 5
        %v3054 = vsel %vm1015, %v3052, %v3053
        %v3055 = vrot.slane %v3053, 4
        %v3056 = vrot.slane %v2929, 5
        %v3057 = vsel %vm1015, %v3055, %v3056
        %v3058 = vrot.slane %v2930, 5
        %v3059 = vrot.slane %v3058, 4
        %v3060 = vrot.slane %v2931, 5
        %v3061 = vsel %vm1015, %v3059, %v3060
        %v3062 = vrot.slane %v3060, 4
        %v3063 = vrot.slane %v2932, 5
        %v3064 = vsel %vm1015, %v3062, %v3063
        %v3065 = vrot.slane %v2933, 5
        %v3066 = vrot.slane %v3065, 4
        %v3067 = vrot.slane %v2934, 5
        %v3068 = vsel %vm1015, %v3066, %v3067
        %v3069 = vrot.slane %v3067, 4
        %v3070 = vrot.slane %v2935, 5
        %v3071 = vsel %vm1015, %v3069, %v3070
        %v3072 = vrot.slane %v2936, 5
        %v3073 = vrot.slane %v3072, 4
        %v3074 = vrot.slane %v2937, 5
        %v3075 = vsel %vm1015, %v3073, %v3074
        %v3076 = vrot.slane %v3074, 4
        %v3077 = vrot.slane %v2938, 5
        %v3078 = vsel %vm1015, %v3076, %v3077
        %v3079 = vrot.slane %v2939, 5
        %v3080 = vrot.slane %v3079, 4
        %v3081 = vrot.slane %v2940, 5
        %v3082 = vsel %vm1015, %v3080, %v3081
        %v3083 = vrot.slane %v3081, 4
        %v3084 = vrot.slane %v2941, 5
        %v3085 = vsel %vm1015, %v3083, %v3084
        %v3086 = vrot.slane %v2942, 5
        %v3087 = vrot.slane %v3086, 4
        %v3088 = vrot.slane %v2943, 5
        %v3089 = vsel %vm1015, %v3087, %v3088
        %v3090 = vrot.slane %v3088, 4
        %v3091 = vrot.slane %v2944, 5
        %v3092 = vsel %vm1015, %v3090, %v3091
        %v3093 = vrot.slane %v2945, 5
        %v3094 = vrot.slane %v3093, 4
        %v3095 = vrot.slane %v2946, 5
        %v3096 = vsel %vm1015, %v3094, %v3095
        %v3097 = vrot.slane %v3095, 4
        %v3098 = vrot.slane %v2947, 5
        %v3099 = vsel %vm1015, %v3097, %v3098
        %v3100 = vrot.slane %v2948, 5
        %v3101 = vrot.slane %v3100, 4
        %v3102 = vrot.slane %v2949, 5
        %v3103 = vsel %vm1015, %v3101, %v3102
        %v3104 = vrot.slane %v3102, 4
        %v3105 = vrot.slane %v2950, 5
        %v3106 = vsel %vm1015, %v3104, %v3105
        %v3107 = vrot.slane %v2951, 5
        %v3108 = vrot.slane %v3107, 4
        %v3109 = vrot.slane %v2952, 5
        %v3110 = vsel %vm1015, %v3108, %v3109
        %v3111 = vrot.slane %v3109, 4
        %v3112 = vrot.slane %v2953, 5
        %v3113 = vsel %vm1015, %v3111, %v3112
        %v3114 = vunpack.c.l.b16 %v3005
        %v3115 = vunpack.c.l.b16 %v3008
        %v3116 = vunpack.c.l.b16 %v3012
        %v3117 = vunpack.c.l.b16 %v3015
        %v3118 = vunpack.c.l.b16 %v3019
        %v3119 = vunpack.c.l.b16 %v3022
        %v3120 = vunpack.c.l.b16 %v3026
        %v3121 = vunpack.c.l.b16 %v3029
        %v3122 = vunpack.c.l.b16 %v3033
        %v3123 = vunpack.c.l.b16 %v3036
        %v3124 = vunpack.c.l.b16 %v3040
        %v3125 = vunpack.c.l.b16 %v3043
        %v3126 = vunpack.c.l.b16 %v3047
        %v3127 = vunpack.c.l.b16 %v3050
        %v3128 = vunpack.c.l.b16 %v3054
        %v3129 = vunpack.c.l.b16 %v3057
        %v3130 = vunpack.c.l.b16 %v3061
        %v3131 = vunpack.c.l.b16 %v3064
        %v3132 = vunpack.c.l.b16 %v3068
        %v3133 = vunpack.c.l.b16 %v3071
        %v3134 = vunpack.c.l.b16 %v3075
        %v3135 = vunpack.c.l.b16 %v3078
        %v3136 = vunpack.c.l.b16 %v3082
        %v3137 = vunpack.c.l.b16 %v3085
        %v3138 = vunpack.c.l.b16 %v3089
        %v3139 = vunpack.c.l.b16 %v3092
        %v3140 = vunpack.c.l.b16 %v3096
        %v3141 = vunpack.c.l.b16 %v3099
        %v3142 = vunpack.c.l.b16 %v3103
        %v3143 = vunpack.c.l.b16 %v3106
        %v3144 = vunpack.c.l.b16 %v3110
        %v3145 = vunpack.c.l.b16 %v3113
        %v3146 = vpack.c.b16 %v3115, %v3114
        %v3147 = vpack.c.b16 %v3117, %v3116
        %v3148 = vpack.c.b16 %v3119, %v3118
        %v3149 = vpack.c.b16 %v3121, %v3120
        %v3150 = vpack.c.b16 %v3123, %v3122
        %v3151 = vpack.c.b16 %v3125, %v3124
        %v3152 = vpack.c.b16 %v3127, %v3126
        %v3153 = vpack.c.b16 %v3129, %v3128
        %v3154 = vpack.c.b16 %v3131, %v3130
        %v3155 = vpack.c.b16 %v3133, %v3132
        %v3156 = vpack.c.b16 %v3135, %v3134
        %v3157 = vpack.c.b16 %v3137, %v3136
        %v3158 = vpack.c.b16 %v3139, %v3138
        %v3159 = vpack.c.b16 %v3141, %v3140
        %v3160 = vpack.c.b16 %v3143, %v3142
        %v3161 = vpack.c.b16 %v3145, %v3144
        %3178 = vst.msk [vmem:[#allocation2 + $0x20] sm:$0xff] %vm352, %v3146
        %3179 = vst.msk [vmem:[#allocation2 + $0x48] sm:$0xff] %vm352, %v3147
        %3180 = vst.msk [vmem:[#allocation2 + $0x70] sm:$0xff] %vm352, %v3148
        %3181 = vst.msk [vmem:[#allocation2 + $0x98] sm:$0xff] %vm352, %v3149
        %3182 = vst.msk [vmem:[#allocation2 + $0xc0] sm:$0xff] %vm352, %v3150
        %3183 = vst.msk [vmem:[#allocation2 + $0xe8] sm:$0xff] %vm352, %v3151
        %3184 = vst.msk [vmem:[#allocation2 + $0x110] sm:$0xff] %vm352, %v3152
        %3185 = vst.msk [vmem:[#allocation2 + $0x138] sm:$0xff] %vm352, %v3153
        %3186 = vst.msk [vmem:[#allocation2 + $0x160] sm:$0xff] %vm352, %v3154
        %3187 = vst.msk [vmem:[#allocation2 + $0x188] sm:$0xff] %vm352, %v3155
        %3188 = vst.msk [vmem:[#allocation2 + $0x1b0] sm:$0xff] %vm352, %v3156
        %3189 = vst.msk [vmem:[#allocation2 + $0x1d8] sm:$0xff] %vm352, %v3157
        %3190 = vst.msk [vmem:[#allocation2 + $0x200] sm:$0xff] %vm352, %v3158
        %3191 = vst.msk [vmem:[#allocation2 + $0x228] sm:$0xff] %vm352, %v3159
        %3192 = vst.msk [vmem:[#allocation2 + $0x250] sm:$0xff] %vm352, %v3160
        %3193 = vst.msk [vmem:[#allocation2 + $0x278] sm:$0xff] %vm352, %v3161
        %v3194 = vld [vmem:[#allocation2] sm:$0xff]
        %v3195 = vld [vmem:[#allocation2 + $0x8] sm:$0xff]
        %v3196 = vld [vmem:[#allocation2 + $0x10] sm:$0xff]
        %v3197 = vld [vmem:[#allocation2 + $0x18] sm:$0xff]
        %v3198 = vld [vmem:[#allocation2 + $0x20] sm:$0xff]
        %v3199 = vld [vmem:[#allocation2 + $0x28] sm:$0xff]
        %v3200 = vld [vmem:[#allocation2 + $0x30] sm:$0xff]
        %v3201 = vld [vmem:[#allocation2 + $0x38] sm:$0xff]
        %v3202 = vld [vmem:[#allocation2 + $0x40] sm:$0xff]
        %v3203 = vld [vmem:[#allocation2 + $0x48] sm:$0xff]
        %v3204 = vld [vmem:[#allocation2 + $0x50] sm:$0xff]
        %v3205 = vld [vmem:[#allocation2 + $0x58] sm:$0xff]
        %v3206 = vld [vmem:[#allocation2 + $0x60] sm:$0xff]
        %v3207 = vld [vmem:[#allocation2 + $0x68] sm:$0xff]
        %v3208 = vld [vmem:[#allocation2 + $0x70] sm:$0xff]
        %v3209 = vld [vmem:[#allocation2 + $0x78] sm:$0xff]
        %v3210 = vld [vmem:[#allocation2 + $0x80] sm:$0xff]
        %v3211 = vld [vmem:[#allocation2 + $0x88] sm:$0xff]
        %v3212 = vld [vmem:[#allocation2 + $0x90] sm:$0xff]
        %v3213 = vld [vmem:[#allocation2 + $0x98] sm:$0xff]
        %v3214 = vld [vmem:[#allocation2 + $0xa0] sm:$0xff]
        %v3215 = vld [vmem:[#allocation2 + $0xa8] sm:$0xff]
        %v3216 = vld [vmem:[#allocation2 + $0xb0] sm:$0xff]
        %v3217 = vld [vmem:[#allocation2 + $0xb8] sm:$0xff]
        %v3218 = vld [vmem:[#allocation2 + $0xc0] sm:$0xff]
        %v3219 = vld [vmem:[#allocation2 + $0xc8] sm:$0xff]
        %v3220 = vld [vmem:[#allocation2 + $0xd0] sm:$0xff]
        %v3221 = vld [vmem:[#allocation2 + $0xd8] sm:$0xff]
        %v3222 = vld [vmem:[#allocation2 + $0xe0] sm:$0xff]
        %v3223 = vld [vmem:[#allocation2 + $0xe8] sm:$0xff]
        %v3224 = vld [vmem:[#allocation2 + $0xf0] sm:$0xff]
        %v3225 = vld [vmem:[#allocation2 + $0xf8] sm:$0xff]
        %v3226 = vld [vmem:[#allocation2 + $0x100] sm:$0xff]
        %v3227 = vld [vmem:[#allocation2 + $0x108] sm:$0xff]
        %v3228 = vld [vmem:[#allocation2 + $0x110] sm:$0xff]
        %v3229 = vld [vmem:[#allocation2 + $0x118] sm:$0xff]
        %v3230 = vld [vmem:[#allocation2 + $0x120] sm:$0xff]
        %v3231 = vld [vmem:[#allocation2 + $0x128] sm:$0xff]
        %v3232 = vld [vmem:[#allocation2 + $0x130] sm:$0xff]
        %v3233 = vld [vmem:[#allocation2 + $0x138] sm:$0xff]
        %v3234 = vld [vmem:[#allocation2 + $0x140] sm:$0xff]
        %v3235 = vld [vmem:[#allocation2 + $0x148] sm:$0xff]
        %v3236 = vld [vmem:[#allocation2 + $0x150] sm:$0xff]
        %v3237 = vld [vmem:[#allocation2 + $0x158] sm:$0xff]
        %v3238 = vld [vmem:[#allocation2 + $0x160] sm:$0xff]
        %v3239 = vld [vmem:[#allocation2 + $0x168] sm:$0xff]
        %v3240 = vld [vmem:[#allocation2 + $0x170] sm:$0xff]
        %v3241 = vld [vmem:[#allocation2 + $0x178] sm:$0xff]
        %v3242 = vld [vmem:[#allocation2 + $0x180] sm:$0xff]
        %v3243 = vld [vmem:[#allocation2 + $0x188] sm:$0xff]
        %v3244 = vld [vmem:[#allocation2 + $0x190] sm:$0xff]
        %v3245 = vld [vmem:[#allocation2 + $0x198] sm:$0xff]
        %v3246 = vld [vmem:[#allocation2 + $0x1a0] sm:$0xff]
        %v3247 = vld [vmem:[#allocation2 + $0x1a8] sm:$0xff]
        %v3248 = vld [vmem:[#allocation2 + $0x1b0] sm:$0xff]
        %v3249 = vld [vmem:[#allocation2 + $0x1b8] sm:$0xff]
        %v3250 = vld [vmem:[#allocation2 + $0x1c0] sm:$0xff]
        %v3251 = vld [vmem:[#allocation2 + $0x1c8] sm:$0xff]
        %v3252 = vld [vmem:[#allocation2 + $0x1d0] sm:$0xff]
        %v3253 = vld [vmem:[#allocation2 + $0x1d8] sm:$0xff]
        %v3254 = vld [vmem:[#allocation2 + $0x1e0] sm:$0xff]
        %v3255 = vld [vmem:[#allocation2 + $0x1e8] sm:$0xff]
        %v3256 = vld [vmem:[#allocation2 + $0x1f0] sm:$0xff]
        %v3257 = vld [vmem:[#allocation2 + $0x1f8] sm:$0xff]
        %v3258 = vld [vmem:[#allocation2 + $0x200] sm:$0xff]
        %v3259 = vld [vmem:[#allocation2 + $0x208] sm:$0xff]
        %v3260 = vld [vmem:[#allocation2 + $0x210] sm:$0xff]
        %v3261 = vld [vmem:[#allocation2 + $0x218] sm:$0xff]
        %v3262 = vld [vmem:[#allocation2 + $0x220] sm:$0xff]
        %v3263 = vld [vmem:[#allocation2 + $0x228] sm:$0xff]
        %v3264 = vld [vmem:[#allocation2 + $0x230] sm:$0xff]
        %v3265 = vld [vmem:[#allocation2 + $0x238] sm:$0xff]
        %v3266 = vld [vmem:[#allocation2 + $0x240] sm:$0xff]
        %v3267 = vld [vmem:[#allocation2 + $0x248] sm:$0xff]
        %v3268 = vld [vmem:[#allocation2 + $0x250] sm:$0xff]
        %v3269 = vld [vmem:[#allocation2 + $0x258] sm:$0xff]
        %v3270 = vld [vmem:[#allocation2 + $0x260] sm:$0xff]
        %v3271 = vld [vmem:[#allocation2 + $0x268] sm:$0xff]
        %v3272 = vld [vmem:[#allocation2 + $0x270] sm:$0xff]
        %v3273 = vld [vmem:[#allocation2 + $0x278] sm:$0xff]
        %v3274 = vld [vmem:[%s1] sm:$0xf]
        %v3275 = vld [vmem:[%s1 + $0x4] sm:$0xf]
        %v3276 = vld [vmem:[%s1 + $0x8] sm:$0xf]
        %v3277 = vld [vmem:[%s1 + $0xc] sm:$0xf]
        %v3278 = vld [vmem:[%s1 + $0x10] sm:$0xf]
        %v3279 = vld [vmem:[%s1 + $0x14] sm:$0xf]
        %v3280 = vld [vmem:[%s1 + $0x18] sm:$0xf]
        %v3281 = vld [vmem:[%s1 + $0x1c] sm:$0xf]
        %v3282 = vld [vmem:[%s1 + $0x20] sm:$0xf]
        %v3283 = vld [vmem:[%s1 + $0x24] sm:$0xf]
        %v3284 = vld [vmem:[%s1 + $0x28] sm:$0xf]
        %v3285 = vld [vmem:[%s1 + $0x2c] sm:$0xf]
        %v3286 = vld [vmem:[%s1 + $0x30] sm:$0xf]
        %v3287 = vld [vmem:[%s1 + $0x34] sm:$0xf]
        %v3288 = vld [vmem:[%s1 + $0x38] sm:$0xf]
        %v3289 = vld [vmem:[%s1 + $0x3c] sm:$0xf]
        %v3290 = vld [vmem:[%s1 + $0x40] sm:$0xf]
        %v3291 = vld [vmem:[%s1 + $0x44] sm:$0xf]
        %v3292 = vld [vmem:[%s1 + $0x48] sm:$0xf]
        %v3293 = vld [vmem:[%s1 + $0x4c] sm:$0xf]
        %v3294 = vld [vmem:[%s1 + $0x50] sm:$0xf]
        %v3295 = vld [vmem:[%s1 + $0x54] sm:$0xf]
        %v3296 = vld [vmem:[%s1 + $0x58] sm:$0xf]
        %v3297 = vld [vmem:[%s1 + $0x5c] sm:$0xf]
        %v3298 = vld [vmem:[%s1 + $0x60] sm:$0xf]
        %v3299 = vld [vmem:[%s1 + $0x64] sm:$0xf]
        %v3300 = vld [vmem:[%s1 + $0x68] sm:$0xf]
        %v3301 = vld [vmem:[%s1 + $0x6c] sm:$0xf]
        %v3302 = vld [vmem:[%s1 + $0x70] sm:$0xf]
        %v3303 = vld [vmem:[%s1 + $0x74] sm:$0xf]
        %v3304 = vld [vmem:[%s1 + $0x78] sm:$0xf]
        %v3305 = vld [vmem:[%s1 + $0x7c] sm:$0xf]
        %v3306 = vld [vmem:[%s1 + $0x80] sm:$0xf]
        %v3307 = vld [vmem:[%s1 + $0x84] sm:$0xf]
        %v3308 = vld [vmem:[%s1 + $0x88] sm:$0xf]
        %v3309 = vld [vmem:[%s1 + $0x8c] sm:$0xf]
        %v3310 = vld [vmem:[%s1 + $0x90] sm:$0xf]
        %v3311 = vld [vmem:[%s1 + $0x94] sm:$0xf]
        %v3312 = vld [vmem:[%s1 + $0x98] sm:$0xf]
        %v3313 = vld [vmem:[%s1 + $0x9c] sm:$0xf]
        %v3314 = vld [vmem:[%s1 + $0xa0] sm:$0xf]
        %v3315 = vld [vmem:[%s1 + $0xa4] sm:$0xf]
        %v3316 = vld [vmem:[%s1 + $0xa8] sm:$0xf]
        %v3317 = vld [vmem:[%s1 + $0xac] sm:$0xf]
        %v3318 = vld [vmem:[%s1 + $0xb0] sm:$0xf]
        %v3319 = vld [vmem:[%s1 + $0xb4] sm:$0xf]
        %v3320 = vld [vmem:[%s1 + $0xb8] sm:$0xf]
        %v3321 = vld [vmem:[%s1 + $0xbc] sm:$0xf]
        %v3322 = vld [vmem:[%s1 + $0xc0] sm:$0xf]
        %v3323 = vld [vmem:[%s1 + $0xc4] sm:$0xf]
        %v3324 = vld [vmem:[%s1 + $0xc8] sm:$0xf]
        %v3325 = vld [vmem:[%s1 + $0xcc] sm:$0xf]
        %v3326 = vld [vmem:[%s1 + $0xd0] sm:$0xf]
        %v3327 = vld [vmem:[%s1 + $0xd4] sm:$0xf]
        %v3328 = vld [vmem:[%s1 + $0xd8] sm:$0xf]
        %v3329 = vld [vmem:[%s1 + $0xdc] sm:$0xf]
        %v3330 = vld [vmem:[%s1 + $0xe0] sm:$0xf]
        %v3331 = vld [vmem:[%s1 + $0xe4] sm:$0xf]
        %v3332 = vld [vmem:[%s1 + $0xe8] sm:$0xf]
        %v3333 = vld [vmem:[%s1 + $0xec] sm:$0xf]
        %v3334 = vld [vmem:[%s1 + $0xf0] sm:$0xf]
        %v3335 = vld [vmem:[%s1 + $0xf4] sm:$0xf]
        %v3336 = vld [vmem:[%s1 + $0xf8] sm:$0xf]
        %v3337 = vld [vmem:[%s1 + $0xfc] sm:$0xf]
        %v3338 = vld [vmem:[%s1 + $0x100] sm:$0xf]
        %v3339 = vld [vmem:[%s1 + $0x104] sm:$0xf]
        %v3340 = vld [vmem:[%s1 + $0x108] sm:$0xf]
        %v3341 = vld [vmem:[%s1 + $0x10c] sm:$0xf]
        %v3342 = vld [vmem:[%s1 + $0x110] sm:$0xf]
        %v3343 = vld [vmem:[%s1 + $0x114] sm:$0xf]
        %v3344 = vld [vmem:[%s1 + $0x118] sm:$0xf]
        %v3345 = vld [vmem:[%s1 + $0x11c] sm:$0xf]
        %v3346 = vld [vmem:[%s2] sm:$0x1]
        %v3348 = vlaneseq
        %v3349 = vshrl.u32 %v3348, 7
        %v3350 = vsub.s32 0, %v3349
        %v3351 = vrot.slane %v3346, %v3350
        %v3425 = vunpack.c.l.b16 %v3274
        %v3426 = vunpack.c.l.b16 %v3275
        %v3427 = vunpack.c.l.b16 %v3276
        %v3428 = vunpack.c.l.b16 %v3277
        %v3429 = vunpack.c.l.b16 %v3278
        %v3430 = vunpack.c.l.b16 %v3279
        %v3431 = vunpack.c.l.b16 %v3280
        %v3432 = vunpack.c.l.b16 %v3281
        %v3433 = vunpack.c.l.b16 %v3282
        %v3434 = vunpack.c.l.b16 %v3283
        %v3435 = vunpack.c.l.b16 %v3284
        %v3436 = vunpack.c.l.b16 %v3285
        %v3437 = vunpack.c.l.b16 %v3286
        %v3438 = vunpack.c.l.b16 %v3287
        %v3439 = vunpack.c.l.b16 %v3288
        %v3440 = vunpack.c.l.b16 %v3289
        %v3441 = vunpack.c.l.b16 %v3290
        %v3442 = vunpack.c.l.b16 %v3291
        %v3443 = vunpack.c.l.b16 %v3292
        %v3444 = vunpack.c.l.b16 %v3293
        %v3445 = vunpack.c.l.b16 %v3294
        %v3446 = vunpack.c.l.b16 %v3295
        %v3447 = vunpack.c.l.b16 %v3296
        %v3448 = vunpack.c.l.b16 %v3297
        %v3449 = vunpack.c.l.b16 %v3298
        %v3450 = vunpack.c.l.b16 %v3299
        %v3451 = vunpack.c.l.b16 %v3300
        %v3452 = vunpack.c.l.b16 %v3301
        %v3453 = vunpack.c.l.b16 %v3302
        %v3454 = vunpack.c.l.b16 %v3303
        %v3455 = vunpack.c.l.b16 %v3304
        %v3456 = vunpack.c.l.b16 %v3305
        %v3457 = vunpack.c.l.b16 %v3306
        %v3458 = vunpack.c.l.b16 %v3307
        %v3459 = vunpack.c.l.b16 %v3308
        %v3460 = vunpack.c.l.b16 %v3309
        %v3461 = vunpack.c.l.b16 %v3310
        %v3462 = vunpack.c.l.b16 %v3311
        %v3463 = vunpack.c.l.b16 %v3312
        %v3464 = vunpack.c.l.b16 %v3313
        %v3465 = vunpack.c.l.b16 %v3314
        %v3466 = vunpack.c.l.b16 %v3315
        %v3467 = vunpack.c.l.b16 %v3316
        %v3468 = vunpack.c.l.b16 %v3317
        %v3469 = vunpack.c.l.b16 %v3318
        %v3470 = vunpack.c.l.b16 %v3319
        %v3471 = vunpack.c.l.b16 %v3320
        %v3472 = vunpack.c.l.b16 %v3321
        %v3473 = vunpack.c.l.b16 %v3322
        %v3474 = vunpack.c.l.b16 %v3323
        %v3475 = vunpack.c.l.b16 %v3324
        %v3476 = vunpack.c.l.b16 %v3325
        %v3477 = vunpack.c.l.b16 %v3326
        %v3478 = vunpack.c.l.b16 %v3327
        %v3479 = vunpack.c.l.b16 %v3328
        %v3480 = vunpack.c.l.b16 %v3329
        %v3481 = vunpack.c.l.b16 %v3330
        %v3482 = vunpack.c.l.b16 %v3331
        %v3483 = vunpack.c.l.b16 %v3332
        %v3484 = vunpack.c.l.b16 %v3333
        %v3485 = vunpack.c.l.b16 %v3334
        %v3486 = vunpack.c.l.b16 %v3335
        %v3487 = vunpack.c.l.b16 %v3336
        %v3488 = vunpack.c.l.b16 %v3337
        %v3489 = vunpack.c.l.b16 %v3338
        %v3490 = vunpack.c.l.b16 %v3339
        %v3491 = vunpack.c.l.b16 %v3340
        %v3492 = vunpack.c.l.b16 %v3341
        %v3493 = vunpack.c.l.b16 %v3342
        %v3494 = vunpack.c.l.b16 %v3343
        %v3495 = vunpack.c.l.b16 %v3344
        %v3496 = vunpack.c.l.b16 %v3345
        %v3497 = vpack.c.b16 %v3426, %v3425
        %v3498 = vpack.c.b16 %v3428, %v3427
        %v3499 = vpack.c.b16 %v3430, %v3429
        %v3500 = vpack.c.b16 %v3432, %v3431
        %v3501 = vpack.c.b16 %v3434, %v3433
        %v3502 = vpack.c.b16 %v3436, %v3435
        %v3503 = vpack.c.b16 %v3438, %v3437
        %v3504 = vpack.c.b16 %v3440, %v3439
        %v3505 = vpack.c.b16 %v3442, %v3441
        %v3506 = vpack.c.b16 %v3444, %v3443
        %v3507 = vpack.c.b16 %v3446, %v3445
        %v3508 = vpack.c.b16 %v3448, %v3447
        %v3509 = vpack.c.b16 %v3450, %v3449
        %v3510 = vpack.c.b16 %v3452, %v3451
        %v3511 = vpack.c.b16 %v3454, %v3453
        %v3512 = vpack.c.b16 %v3456, %v3455
        %v3513 = vpack.c.b16 %v3458, %v3457
        %v3514 = vpack.c.b16 %v3460, %v3459
        %v3515 = vpack.c.b16 %v3462, %v3461
        %v3516 = vpack.c.b16 %v3464, %v3463
        %v3517 = vpack.c.b16 %v3466, %v3465
        %v3518 = vpack.c.b16 %v3468, %v3467
        %v3519 = vpack.c.b16 %v3470, %v3469
        %v3520 = vpack.c.b16 %v3472, %v3471
        %v3521 = vpack.c.b16 %v3474, %v3473
        %v3522 = vpack.c.b16 %v3476, %v3475
        %v3523 = vpack.c.b16 %v3478, %v3477
        %v3524 = vpack.c.b16 %v3480, %v3479
        %v3525 = vpack.c.b16 %v3482, %v3481
        %v3526 = vpack.c.b16 %v3484, %v3483
        %v3527 = vpack.c.b16 %v3486, %v3485
        %v3528 = vpack.c.b16 %v3488, %v3487
        %v3529 = vpack.c.b16 %v3490, %v3489
        %v3530 = vpack.c.b16 %v3492, %v3491
        %v3531 = vpack.c.b16 %v3494, %v3493
        %v3532 = vpack.c.b16 %v3496, %v3495
        %v3570 = vsel %vm352, %v3198, 0
        %v3573 = vsel %vm352, %v3203, 0
        %v3576 = vsel %vm352, %v3208, 0
        %v3579 = vsel %vm352, %v3213, 0
        %v3582 = vsel %vm352, %v3218, 0
        %v3585 = vsel %vm352, %v3223, 0
        %v3588 = vsel %vm352, %v3228, 0
        %v3591 = vsel %vm352, %v3233, 0
        %v3594 = vsel %vm352, %v3238, 0
        %v3597 = vsel %vm352, %v3243, 0
        %v3600 = vsel %vm352, %v3248, 0
        %v3603 = vsel %vm352, %v3253, 0
        %v3606 = vsel %vm352, %v3258, 0
        %v3609 = vsel %vm352, %v3263, 0
        %v3612 = vsel %vm352, %v3268, 0
        %v3615 = vsel %vm352, %v3273, 0
        %3617 = vmatprep.subr.bf16.mxu0 0
        %3618 = vmatpush1.bf16.msra.mxu0 %v3497
        %3619 = vmatprep.subr.bf16.mxu0 0
        %3620 = vmatpush1.bf16.msra.mxu0 %v3498
        %3621 = vmatprep.subr.bf16.mxu0 0
        %3622 = vmatpush1.bf16.msra.mxu0 %v3499
        %3623 = vmatprep.subr.bf16.mxu0 0
        %3624 = vmatpush1.bf16.msra.mxu0 %v3500
        %3625 = vmatprep.subr.bf16.mxu0 0
        %3626 = vmatpush1.bf16.msra.mxu0 %v3501
        %3627 = vmatprep.subr.bf16.mxu0 0
        %3628 = vmatpush1.bf16.msra.mxu0 %v3502
        %3629 = vmatprep.subr.bf16.mxu0 0
        %3630 = vmatpush1.bf16.msra.mxu0 %v3503
        %3631 = vmatprep.subr.bf16.mxu0 0
        %3632 = vmatpush1.bf16.msra.mxu0 %v3504
        %3633 = vmatprep.subr.bf16.mxu0 0
        %3634 = vmatpush1.bf16.msra.mxu0 %v3505
        %3635 = vmatprep.subr.bf16.mxu0 0
        %3636 = vmatpush1.bf16.msra.mxu0 %v3506
        %3637 = vmatprep.subr.bf16.mxu0 0
        %3638 = vmatpush1.bf16.msra.mxu0 %v3507
        %3639 = vmatprep.subr.bf16.mxu0 0
        %3640 = vmatpush1.bf16.msra.mxu0 %v3508
        %3641 = vmatprep.subr.bf16.mxu0 0
        %3642 = vmatpush1.bf16.msra.mxu0 %v3509
        %3643 = vmatprep.subr.bf16.mxu0 0
        %3644 = vmatpush1.bf16.msra.mxu0 %v3510
        %3645 = vmatprep.subr.bf16.mxu0 0
        %3646 = vmatpush1.bf16.msra.mxu0 %v3511
        %3647 = vmatprep.subr.bf16.mxu0 0
        %3648 = vmatpush1.bf16.msra.mxu0 %v3512
        %3649 = vmatprep.mubr.bf16.mxu0 %v3195
        %3650 = vmatmul.mubr.bf16.gmra.mrb[0].mxu0 %v3194
        %v3651 = vpop.f32.mrb[0].mxu0
        %v3652 = vadd.f32 %v3351, %v3651
        %v3653 = vpop.f32.mrb[0].mxu0
        %v3654 = vpop.f32.mrb[0].mxu0
        %v3655 = vadd.f32 %v3351, %v3654
        %v3656 = vpop.f32.mrb[0].mxu0
        %3657 = vmatprep.mubr.bf16.mxu0 %v3200
        %3658 = vmatmul.mubr.bf16.gmra.mrb[0].mxu0 %v3199
        %v3659 = vpop.f32.mrb[0].mxu0
        %v3660 = vadd.f32 %v3351, %v3659
        %v3661 = vpop.f32.mrb[0].mxu0
        %v3662 = vpop.f32.mrb[0].mxu0
        %v3663 = vadd.f32 %v3351, %v3662
        %v3664 = vpop.f32.mrb[0].mxu0
        %3665 = vmatprep.mubr.bf16.mxu0 %v3205
        %3666 = vmatmul.mubr.bf16.gmra.mrb[0].mxu0 %v3204
        %v3667 = vpop.f32.mrb[0].mxu0
        %v3668 = vadd.f32 %v3351, %v3667
        %v3669 = vpop.f32.mrb[0].mxu0
        %v3670 = vpop.f32.mrb[0].mxu0
        %v3671 = vadd.f32 %v3351, %v3670
        %v3672 = vpop.f32.mrb[0].mxu0
        %3673 = vmatprep.mubr.bf16.mxu0 %v3210
        %3674 = vmatmul.mubr.bf16.gmra.mrb[0].mxu0 %v3209
        %v3675 = vpop.f32.mrb[0].mxu0
        %v3676 = vadd.f32 %v3351, %v3675
        %v3677 = vpop.f32.mrb[0].mxu0
        %v3678 = vpop.f32.mrb[0].mxu0
        %v3679 = vadd.f32 %v3351, %v3678
        %v3680 = vpop.f32.mrb[0].mxu0
        %3681 = vmatprep.mubr.bf16.mxu0 %v3215
        %3682 = vmatmul.mubr.bf16.gmra.mrb[0].mxu0 %v3214
        %v3683 = vpop.f32.mrb[0].mxu0
        %v3684 = vadd.f32 %v3351, %v3683
        %v3685 = vpop.f32.mrb[0].mxu0
        %v3686 = vpop.f32.mrb[0].mxu0
        %v3687 = vadd.f32 %v3351, %v3686
        %v3688 = vpop.f32.mrb[0].mxu0
        %3689 = vmatprep.mubr.bf16.mxu0 %v3220
        %3690 = vmatmul.mubr.bf16.gmra.mrb[0].mxu0 %v3219
        %v3691 = vpop.f32.mrb[0].mxu0
        %v3692 = vadd.f32 %v3351, %v3691
        %v3693 = vpop.f32.mrb[0].mxu0
        %v3694 = vpop.f32.mrb[0].mxu0
        %v3695 = vadd.f32 %v3351, %v3694
        %v3696 = vpop.f32.mrb[0].mxu0
        %3697 = vmatprep.mubr.bf16.mxu0 %v3225
        %3698 = vmatmul.mubr.bf16.gmra.mrb[0].mxu0 %v3224
        %v3699 = vpop.f32.mrb[0].mxu0
        %v3700 = vadd.f32 %v3351, %v3699
        %v3701 = vpop.f32.mrb[0].mxu0
        %v3702 = vpop.f32.mrb[0].mxu0
        %v3703 = vadd.f32 %v3351, %v3702
        %v3704 = vpop.f32.mrb[0].mxu0
        %3705 = vmatprep.mubr.bf16.mxu0 %v3230
        %3706 = vmatmul.mubr.bf16.gmra.mrb[0].mxu0 %v3229
        %v3707 = vpop.f32.mrb[0].mxu0
        %v3708 = vadd.f32 %v3351, %v3707
        %v3709 = vpop.f32.mrb[0].mxu0
        %v3710 = vpop.f32.mrb[0].mxu0
        %v3711 = vadd.f32 %v3351, %v3710
        %v3712 = vpop.f32.mrb[0].mxu0
        %3713 = vmatprep.mubr.bf16.mxu0 %v3235
        %3714 = vmatmul.mubr.bf16.gmra.mrb[0].mxu0 %v3234
        %v3715 = vpop.f32.mrb[0].mxu0
        %v3716 = vadd.f32 %v3351, %v3715
        %v3717 = vpop.f32.mrb[0].mxu0
        %v3718 = vpop.f32.mrb[0].mxu0
        %v3719 = vadd.f32 %v3351, %v3718
        %v3720 = vpop.f32.mrb[0].mxu0
        %3721 = vmatprep.mubr.bf16.mxu0 %v3240
        %3722 = vmatmul.mubr.bf16.gmra.mrb[0].mxu0 %v3239
        %v3723 = vpop.f32.mrb[0].mxu0
        %v3724 = vadd.f32 %v3351, %v3723
        %v3725 = vpop.f32.mrb[0].mxu0
        %v3726 = vpop.f32.mrb[0].mxu0
        %v3727 = vadd.f32 %v3351, %v3726
        %v3728 = vpop.f32.mrb[0].mxu0
        %3729 = vmatprep.mubr.bf16.mxu0 %v3245
        %3730 = vmatmul.mubr.bf16.gmra.mrb[0].mxu0 %v3244
        %v3731 = vpop.f32.mrb[0].mxu0
        %v3732 = vadd.f32 %v3351, %v3731
        %v3733 = vpop.f32.mrb[0].mxu0
        %v3734 = vpop.f32.mrb[0].mxu0
        %v3735 = vadd.f32 %v3351, %v3734
        %v3736 = vpop.f32.mrb[0].mxu0
        %3737 = vmatprep.mubr.bf16.mxu0 %v3250
        %3738 = vmatmul.mubr.bf16.gmra.mrb[0].mxu0 %v3249
        %v3739 = vpop.f32.mrb[0].mxu0
        %v3740 = vadd.f32 %v3351, %v3739
        %v3741 = vpop.f32.mrb[0].mxu0
        %v3742 = vpop.f32.mrb[0].mxu0
        %v3743 = vadd.f32 %v3351, %v3742
        %v3744 = vpop.f32.mrb[0].mxu0
        %3745 = vmatprep.mubr.bf16.mxu0 %v3255
        %3746 = vmatmul.mubr.bf16.gmra.mrb[0].mxu0 %v3254
        %v3747 = vpop.f32.mrb[0].mxu0
        %v3748 = vadd.f32 %v3351, %v3747
        %v3749 = vpop.f32.mrb[0].mxu0
        %v3750 = vpop.f32.mrb[0].mxu0
        %v3751 = vadd.f32 %v3351, %v3750
        %v3752 = vpop.f32.mrb[0].mxu0
        %3753 = vmatprep.mubr.bf16.mxu0 %v3260
        %3754 = vmatmul.mubr.bf16.gmra.mrb[0].mxu0 %v3259
        %v3755 = vpop.f32.mrb[0].mxu0
        %v3756 = vadd.f32 %v3351, %v3755
        %v3757 = vpop.f32.mrb[0].mxu0
        %v3758 = vpop.f32.mrb[0].mxu0
        %v3759 = vadd.f32 %v3351, %v3758
        %v3760 = vpop.f32.mrb[0].mxu0
        %3761 = vmatprep.mubr.bf16.mxu0 %v3265
        %3762 = vmatmul.mubr.bf16.gmra.mrb[0].mxu0 %v3264
        %v3763 = vpop.f32.mrb[0].mxu0
        %v3764 = vadd.f32 %v3351, %v3763
        %v3765 = vpop.f32.mrb[0].mxu0
        %v3766 = vpop.f32.mrb[0].mxu0
        %v3767 = vadd.f32 %v3351, %v3766
        %v3768 = vpop.f32.mrb[0].mxu0
        %3769 = vmatprep.mubr.bf16.mxu0 %v3270
        %3770 = vmatmul.mubr.bf16.gmra.mrb[0].mxu0 %v3269
        %v3771 = vpop.f32.mrb[0].mxu0
        %v3772 = vadd.f32 %v3351, %v3771
        %v3773 = vpop.f32.mrb[0].mxu0
        %v3774 = vpop.f32.mrb[0].mxu0
        %v3775 = vadd.f32 %v3351, %v3774
        %v3776 = vpop.f32.mrb[0].mxu0
        %3777 = vdwg.mxu0
        %3778 = vmatprep.subr.bf16.mxu0 0
        %3779 = vmatpush1.bf16.msra.mxu0 %v3513
        %3780 = vmatprep.subr.bf16.mxu0 0
        %3781 = vmatpush1.bf16.msra.mxu0 %v3514
        %3782 = vmatprep.subr.bf16.mxu0 0
        %3783 = vmatpush1.bf16.msra.mxu0 %v3515
        %3784 = vmatprep.subr.bf16.mxu0 0
        %3785 = vmatpush1.bf16.msra.mxu0 %v3516
        %3786 = vmatprep.subr.bf16.mxu0 0
        %3787 = vmatpush1.bf16.msra.mxu0 %v3517
        %3788 = vmatprep.subr.bf16.mxu0 0
        %3789 = vmatpush1.bf16.msra.mxu0 %v3518
        %3790 = vmatprep.subr.bf16.mxu0 0
        %3791 = vmatpush1.bf16.msra.mxu0 %v3519
        %3792 = vmatprep.subr.bf16.mxu0 0
        %3793 = vmatpush1.bf16.msra.mxu0 %v3520
        %3794 = vmatprep.subr.bf16.mxu0 0
        %3795 = vmatpush1.bf16.msra.mxu0 %v3521
        %3796 = vmatprep.subr.bf16.mxu0 0
        %3797 = vmatpush1.bf16.msra.mxu0 %v3522
        %3798 = vmatprep.subr.bf16.mxu0 0
        %3799 = vmatpush1.bf16.msra.mxu0 %v3523
        %3800 = vmatprep.subr.bf16.mxu0 0
        %3801 = vmatpush1.bf16.msra.mxu0 %v3524
        %3802 = vmatprep.subr.bf16.mxu0 0
        %3803 = vmatpush1.bf16.msra.mxu0 %v3525
        %3804 = vmatprep.subr.bf16.mxu0 0
        %3805 = vmatpush1.bf16.msra.mxu0 %v3526
        %3806 = vmatprep.subr.bf16.mxu0 0
        %3807 = vmatpush1.bf16.msra.mxu0 %v3527
        %3808 = vmatprep.subr.bf16.mxu0 0
        %3809 = vmatpush1.bf16.msra.mxu0 %v3528
        %3810 = vmatprep.mubr.bf16.mxu0 %v3197
        %3811 = vmatmul.mubr.bf16.gmra.mrb[0].mxu0 %v3196
        %v3812 = vpop.f32.mrb[0].mxu0
        %v3813 = vadd.f32 %v3652, %v3812
        %v3814 = vpop.f32.mrb[0].mxu0
        %v3815 = vpop.f32.mrb[0].mxu0
        %v3816 = vadd.f32 %v3655, %v3815
        %v3817 = vpop.f32.mrb[0].mxu0
        %3818 = vmatprep.mubr.bf16.mxu0 %v3202
        %3819 = vmatmul.mubr.bf16.gmra.mrb[0].mxu0 %v3201
        %v3820 = vpop.f32.mrb[0].mxu0
        %v3821 = vadd.f32 %v3660, %v3820
        %v3822 = vpop.f32.mrb[0].mxu0
        %v3823 = vpop.f32.mrb[0].mxu0
        %v3824 = vadd.f32 %v3663, %v3823
        %v3825 = vpop.f32.mrb[0].mxu0
        %3826 = vmatprep.mubr.bf16.mxu0 %v3207
        %3827 = vmatmul.mubr.bf16.gmra.mrb[0].mxu0 %v3206
        %v3828 = vpop.f32.mrb[0].mxu0
        %v3829 = vadd.f32 %v3668, %v3828
        %v3830 = vpop.f32.mrb[0].mxu0
        %v3831 = vpop.f32.mrb[0].mxu0
        %v3832 = vadd.f32 %v3671, %v3831
        %v3833 = vpop.f32.mrb[0].mxu0
        %3834 = vmatprep.mubr.bf16.mxu0 %v3212
        %3835 = vmatmul.mubr.bf16.gmra.mrb[0].mxu0 %v3211
        %v3836 = vpop.f32.mrb[0].mxu0
        %v3837 = vadd.f32 %v3676, %v3836
        %v3838 = vpop.f32.mrb[0].mxu0
        %v3839 = vpop.f32.mrb[0].mxu0
        %v3840 = vadd.f32 %v3679, %v3839
        %v3841 = vpop.f32.mrb[0].mxu0
        %3842 = vmatprep.mubr.bf16.mxu0 %v3217
        %3843 = vmatmul.mubr.bf16.gmra.mrb[0].mxu0 %v3216
        %v3844 = vpop.f32.mrb[0].mxu0
        %v3845 = vadd.f32 %v3684, %v3844
        %v3846 = vpop.f32.mrb[0].mxu0
        %v3847 = vpop.f32.mrb[0].mxu0
        %v3848 = vadd.f32 %v3687, %v3847
        %v3849 = vpop.f32.mrb[0].mxu0
        %3850 = vmatprep.mubr.bf16.mxu0 %v3222
        %3851 = vmatmul.mubr.bf16.gmra.mrb[0].mxu0 %v3221
        %v3852 = vpop.f32.mrb[0].mxu0
        %v3853 = vadd.f32 %v3692, %v3852
        %v3854 = vpop.f32.mrb[0].mxu0
        %v3855 = vpop.f32.mrb[0].mxu0
        %v3856 = vadd.f32 %v3695, %v3855
        %v3857 = vpop.f32.mrb[0].mxu0
        %3858 = vmatprep.mubr.bf16.mxu0 %v3227
        %3859 = vmatmul.mubr.bf16.gmra.mrb[0].mxu0 %v3226
        %v3860 = vpop.f32.mrb[0].mxu0
        %v3861 = vadd.f32 %v3700, %v3860
        %v3862 = vpop.f32.mrb[0].mxu0
        %v3863 = vpop.f32.mrb[0].mxu0
        %v3864 = vadd.f32 %v3703, %v3863
        %v3865 = vpop.f32.mrb[0].mxu0
        %3866 = vmatprep.mubr.bf16.mxu0 %v3232
        %3867 = vmatmul.mubr.bf16.gmra.mrb[0].mxu0 %v3231
        %v3868 = vpop.f32.mrb[0].mxu0
        %v3869 = vadd.f32 %v3708, %v3868
        %v3870 = vpop.f32.mrb[0].mxu0
        %v3871 = vpop.f32.mrb[0].mxu0
        %v3872 = vadd.f32 %v3711, %v3871
        %v3873 = vpop.f32.mrb[0].mxu0
        %3874 = vmatprep.mubr.bf16.mxu0 %v3237
        %3875 = vmatmul.mubr.bf16.gmra.mrb[0].mxu0 %v3236
        %v3876 = vpop.f32.mrb[0].mxu0
        %v3877 = vadd.f32 %v3716, %v3876
        %v3878 = vpop.f32.mrb[0].mxu0
        %v3879 = vpop.f32.mrb[0].mxu0
        %v3880 = vadd.f32 %v3719, %v3879
        %v3881 = vpop.f32.mrb[0].mxu0
        %3882 = vmatprep.mubr.bf16.mxu0 %v3242
        %3883 = vmatmul.mubr.bf16.gmra.mrb[0].mxu0 %v3241
        %v3884 = vpop.f32.mrb[0].mxu0
        %v3885 = vadd.f32 %v3724, %v3884
        %v3886 = vpop.f32.mrb[0].mxu0
        %v3887 = vpop.f32.mrb[0].mxu0
        %v3888 = vadd.f32 %v3727, %v3887
        %v3889 = vpop.f32.mrb[0].mxu0
        %3890 = vmatprep.mubr.bf16.mxu0 %v3247
        %3891 = vmatmul.mubr.bf16.gmra.mrb[0].mxu0 %v3246
        %v3892 = vpop.f32.mrb[0].mxu0
        %v3893 = vadd.f32 %v3732, %v3892
        %v3894 = vpop.f32.mrb[0].mxu0
        %v3895 = vpop.f32.mrb[0].mxu0
        %v3896 = vadd.f32 %v3735, %v3895
        %v3897 = vpop.f32.mrb[0].mxu0
        %3898 = vmatprep.mubr.bf16.mxu0 %v3252
        %3899 = vmatmul.mubr.bf16.gmra.mrb[0].mxu0 %v3251
        %v3900 = vpop.f32.mrb[0].mxu0
        %v3901 = vadd.f32 %v3740, %v3900
        %v3902 = vpop.f32.mrb[0].mxu0
        %v3903 = vpop.f32.mrb[0].mxu0
        %v3904 = vadd.f32 %v3743, %v3903
        %v3905 = vpop.f32.mrb[0].mxu0
        %3906 = vmatprep.mubr.bf16.mxu0 %v3257
        %3907 = vmatmul.mubr.bf16.gmra.mrb[0].mxu0 %v3256
        %v3908 = vpop.f32.mrb[0].mxu0
        %v3909 = vadd.f32 %v3748, %v3908
        %v3910 = vpop.f32.mrb[0].mxu0
        %v3911 = vpop.f32.mrb[0].mxu0
        %v3912 = vadd.f32 %v3751, %v3911
        %v3913 = vpop.f32.mrb[0].mxu0
        %3914 = vmatprep.mubr.bf16.mxu0 %v3262
        %3915 = vmatmul.mubr.bf16.gmra.mrb[0].mxu0 %v3261
        %v3916 = vpop.f32.mrb[0].mxu0
        %v3917 = vadd.f32 %v3756, %v3916
        %v3918 = vpop.f32.mrb[0].mxu0
        %v3919 = vpop.f32.mrb[0].mxu0
        %v3920 = vadd.f32 %v3759, %v3919
        %v3921 = vpop.f32.mrb[0].mxu0
        %3922 = vmatprep.mubr.bf16.mxu0 %v3267
        %3923 = vmatmul.mubr.bf16.gmra.mrb[0].mxu0 %v3266
        %v3924 = vpop.f32.mrb[0].mxu0
        %v3925 = vadd.f32 %v3764, %v3924
        %v3926 = vpop.f32.mrb[0].mxu0
        %v3927 = vpop.f32.mrb[0].mxu0
        %v3928 = vadd.f32 %v3767, %v3927
        %v3929 = vpop.f32.mrb[0].mxu0
        %3930 = vmatprep.mubr.bf16.mxu0 %v3272
        %3931 = vmatmul.mubr.bf16.gmra.mrb[0].mxu0 %v3271
        %v3932 = vpop.f32.mrb[0].mxu0
        %v3933 = vadd.f32 %v3772, %v3932
        %v3934 = vpop.f32.mrb[0].mxu0
        %v3935 = vpop.f32.mrb[0].mxu0
        %v3936 = vadd.f32 %v3775, %v3935
        %v3937 = vpop.f32.mrb[0].mxu0
        %3938 = vdwg.mxu0
        %3939 = vmatprep.subr.bf16.mxu0 0
        %3940 = vmatpush1.bf16.msra.mxu0 %v3529
        %3941 = vmatprep.subr.bf16.mxu0 0
        %3942 = vmatpush1.bf16.msra.mxu0 %v3530
        %3943 = vmatprep.subr.bf16.mxu0 0
        %3944 = vmatpush1.bf16.msra.mxu0 %v3531
        %3945 = vmatprep.subr.bf16.mxu0 0
        %3946 = vmatpush1.bf16.msra.mxu0 %v3532
        %3947 = vmatprep.subr.bf16.mxu0 0
        %3948 = vmatpush1.bf16.msra.mxu0 0
        %3949 = vmatprep.subr.bf16.mxu0 0
        %3950 = vmatpush1.bf16.msra.mxu0 0
        %3951 = vmatprep.subr.bf16.mxu0 0
        %3952 = vmatpush1.bf16.msra.mxu0 0
        %3953 = vmatprep.subr.bf16.mxu0 0
        %3954 = vmatpush1.bf16.msra.mxu0 0
        %3955 = vmatprep.subr.bf16.mxu0 0
        %3956 = vmatpush1.bf16.msra.mxu0 0
        %3957 = vmatprep.subr.bf16.mxu0 0
        %3958 = vmatpush1.bf16.msra.mxu0 0
        %3959 = vmatprep.subr.bf16.mxu0 0
        %3960 = vmatpush1.bf16.msra.mxu0 0
        %3961 = vmatprep.subr.bf16.mxu0 0
        %3962 = vmatpush1.bf16.msra.mxu0 0
        %3963 = vmatprep.subr.bf16.mxu0 0
        %3964 = vmatpush1.bf16.msra.mxu0 0
        %3965 = vmatprep.subr.bf16.mxu0 0
        %3966 = vmatpush1.bf16.msra.mxu0 0
        %3967 = vmatprep.subr.bf16.mxu0 0
        %3968 = vmatpush1.bf16.msra.mxu0 0
        %3969 = vmatprep.subr.bf16.mxu0 0
        %3970 = vmatpush1.bf16.msra.mxu0 0
        %3971 = vmatprep.mubr.bf16.mxu0 0
        %3972 = vmatmul.mubr.bf16.gmra.mrb[0].mxu0 %v3570
        %v3973 = vpop.f32.mrb[0].mxu0
        %v3974 = vadd.f32 %v3813, %v3973
        %v3975 = vpop.f32.mrb[0].mxu0
        %v3976 = vpop.f32.mrb[0].mxu0
        %v3977 = vadd.f32 %v3816, %v3976
        %v3978 = vpop.f32.mrb[0].mxu0
        %3979 = vmatprep.mubr.bf16.mxu0 0
        %3980 = vmatmul.mubr.bf16.gmra.mrb[0].mxu0 %v3573
        %v3981 = vpop.f32.mrb[0].mxu0
        %v3982 = vadd.f32 %v3821, %v3981
        %v3983 = vpop.f32.mrb[0].mxu0
        %v3984 = vpop.f32.mrb[0].mxu0
        %v3985 = vadd.f32 %v3824, %v3984
        %v3986 = vpop.f32.mrb[0].mxu0
        %3987 = vmatprep.mubr.bf16.mxu0 0
        %3988 = vmatmul.mubr.bf16.gmra.mrb[0].mxu0 %v3576
        %v3989 = vpop.f32.mrb[0].mxu0
        %v3990 = vadd.f32 %v3829, %v3989
        %v3991 = vpop.f32.mrb[0].mxu0
        %v3992 = vpop.f32.mrb[0].mxu0
        %v3993 = vadd.f32 %v3832, %v3992
        %v3994 = vpop.f32.mrb[0].mxu0
        %3995 = vmatprep.mubr.bf16.mxu0 0
        %3996 = vmatmul.mubr.bf16.gmra.mrb[0].mxu0 %v3579
        %v3997 = vpop.f32.mrb[0].mxu0
        %v3998 = vadd.f32 %v3837, %v3997
        %v3999 = vpop.f32.mrb[0].mxu0
        %v4000 = vpop.f32.mrb[0].mxu0
        %v4001 = vadd.f32 %v3840, %v4000
        %v4002 = vpop.f32.mrb[0].mxu0
        %4003 = vmatprep.mubr.bf16.mxu0 0
        %4004 = vmatmul.mubr.bf16.gmra.mrb[0].mxu0 %v3582
        %v4005 = vpop.f32.mrb[0].mxu0
        %v4006 = vadd.f32 %v3845, %v4005
        %v4007 = vpop.f32.mrb[0].mxu0
        %v4008 = vpop.f32.mrb[0].mxu0
        %v4009 = vadd.f32 %v3848, %v4008
        %v4010 = vpop.f32.mrb[0].mxu0
        %4011 = vmatprep.mubr.bf16.mxu0 0
        %4012 = vmatmul.mubr.bf16.gmra.mrb[0].mxu0 %v3585
        %v4013 = vpop.f32.mrb[0].mxu0
        %v4014 = vadd.f32 %v3853, %v4013
        %v4015 = vpop.f32.mrb[0].mxu0
        %v4016 = vpop.f32.mrb[0].mxu0
        %v4017 = vadd.f32 %v3856, %v4016
        %v4018 = vpop.f32.mrb[0].mxu0
        %4019 = vmatprep.mubr.bf16.mxu0 0
        %4020 = vmatmul.mubr.bf16.gmra.mrb[0].mxu0 %v3588
        %v4021 = vpop.f32.mrb[0].mxu0
        %v4022 = vadd.f32 %v3861, %v4021
        %v4023 = vpop.f32.mrb[0].mxu0
        %v4024 = vpop.f32.mrb[0].mxu0
        %v4025 = vadd.f32 %v3864, %v4024
        %v4026 = vpop.f32.mrb[0].mxu0
        %4027 = vmatprep.mubr.bf16.mxu0 0
        %4028 = vmatmul.mubr.bf16.gmra.mrb[0].mxu0 %v3591
        %v4029 = vpop.f32.mrb[0].mxu0
        %v4030 = vadd.f32 %v3869, %v4029
        %v4031 = vpop.f32.mrb[0].mxu0
        %v4032 = vpop.f32.mrb[0].mxu0
        %v4033 = vadd.f32 %v3872, %v4032
        %v4034 = vpop.f32.mrb[0].mxu0
        %4035 = vmatprep.mubr.bf16.mxu0 0
        %4036 = vmatmul.mubr.bf16.gmra.mrb[0].mxu0 %v3594
        %v4037 = vpop.f32.mrb[0].mxu0
        %v4038 = vadd.f32 %v3877, %v4037
        %v4039 = vpop.f32.mrb[0].mxu0
        %v4040 = vpop.f32.mrb[0].mxu0
        %v4041 = vadd.f32 %v3880, %v4040
        %v4042 = vpop.f32.mrb[0].mxu0
        %4043 = vmatprep.mubr.bf16.mxu0 0
        %4044 = vmatmul.mubr.bf16.gmra.mrb[0].mxu0 %v3597
        %v4045 = vpop.f32.mrb[0].mxu0
        %v4046 = vadd.f32 %v3885, %v4045
        %v4047 = vpop.f32.mrb[0].mxu0
        %v4048 = vpop.f32.mrb[0].mxu0
        %v4049 = vadd.f32 %v3888, %v4048
        %v4050 = vpop.f32.mrb[0].mxu0
        %4051 = vmatprep.mubr.bf16.mxu0 0
        %4052 = vmatmul.mubr.bf16.gmra.mrb[0].mxu0 %v3600
        %v4053 = vpop.f32.mrb[0].mxu0
        %v4054 = vadd.f32 %v3893, %v4053
        %v4055 = vpop.f32.mrb[0].mxu0
        %v4056 = vpop.f32.mrb[0].mxu0
        %v4057 = vadd.f32 %v3896, %v4056
        %v4058 = vpop.f32.mrb[0].mxu0
        %4059 = vmatprep.mubr.bf16.mxu0 0
        %4060 = vmatmul.mubr.bf16.gmra.mrb[0].mxu0 %v3603
        %v4061 = vpop.f32.mrb[0].mxu0
        %v4062 = vadd.f32 %v3901, %v4061
        %v4063 = vpop.f32.mrb[0].mxu0
        %v4064 = vpop.f32.mrb[0].mxu0
        %v4065 = vadd.f32 %v3904, %v4064
        %v4066 = vpop.f32.mrb[0].mxu0
        %4067 = vmatprep.mubr.bf16.mxu0 0
        %4068 = vmatmul.mubr.bf16.gmra.mrb[0].mxu0 %v3606
        %v4069 = vpop.f32.mrb[0].mxu0
        %v4070 = vadd.f32 %v3909, %v4069
        %v4071 = vpop.f32.mrb[0].mxu0
        %v4072 = vpop.f32.mrb[0].mxu0
        %v4073 = vadd.f32 %v3912, %v4072
        %v4074 = vpop.f32.mrb[0].mxu0
        %4075 = vmatprep.mubr.bf16.mxu0 0
        %4076 = vmatmul.mubr.bf16.gmra.mrb[0].mxu0 %v3609
        %v4077 = vpop.f32.mrb[0].mxu0
        %v4078 = vadd.f32 %v3917, %v4077
        %v4079 = vpop.f32.mrb[0].mxu0
        %v4080 = vpop.f32.mrb[0].mxu0
        %v4081 = vadd.f32 %v3920, %v4080
        %v4082 = vpop.f32.mrb[0].mxu0
        %4083 = vmatprep.mubr.bf16.mxu0 0
        %4084 = vmatmul.mubr.bf16.gmra.mrb[0].mxu0 %v3612
        %v4085 = vpop.f32.mrb[0].mxu0
        %v4086 = vadd.f32 %v3925, %v4085
        %v4087 = vpop.f32.mrb[0].mxu0
        %v4088 = vpop.f32.mrb[0].mxu0
        %v4089 = vadd.f32 %v3928, %v4088
        %v4090 = vpop.f32.mrb[0].mxu0
        %4091 = vmatprep.mubr.bf16.mxu0 0
        %4092 = vmatmul.mubr.bf16.gmra.mrb[0].mxu0 %v3615
        %v4093 = vpop.f32.mrb[0].mxu0
        %v4094 = vadd.f32 %v3933, %v4093
        %v4095 = vpop.f32.mrb[0].mxu0
        %v4096 = vpop.f32.mrb[0].mxu0
        %v4097 = vadd.f32 %v3936, %v4096
        %v4098 = vpop.f32.mrb[0].mxu0
        %4099 = vdwg.mxu0
        %v4100 = vmax.f32 %v3974, 0.0
        %v4101 = vmax.f32 %v3977, 0.0
        %v4102 = vmax.f32 %v3982, 0.0
        %v4103 = vmax.f32 %v3985, 0.0
        %v4104 = vmax.f32 %v3990, 0.0
        %v4105 = vmax.f32 %v3993, 0.0
        %v4106 = vmax.f32 %v3998, 0.0
        %v4107 = vmax.f32 %v4001, 0.0
        %v4108 = vmax.f32 %v4006, 0.0
        %v4109 = vmax.f32 %v4009, 0.0
        %v4110 = vmax.f32 %v4014, 0.0
        %v4111 = vmax.f32 %v4017, 0.0
        %v4112 = vmax.f32 %v4022, 0.0
        %v4113 = vmax.f32 %v4025, 0.0
        %v4114 = vmax.f32 %v4030, 0.0
        %v4115 = vmax.f32 %v4033, 0.0
        %v4116 = vmax.f32 %v4038, 0.0
        %v4117 = vmax.f32 %v4041, 0.0
        %v4118 = vmax.f32 %v4046, 0.0
        %v4119 = vmax.f32 %v4049, 0.0
        %v4120 = vmax.f32 %v4054, 0.0
        %v4121 = vmax.f32 %v4057, 0.0
        %v4122 = vmax.f32 %v4062, 0.0
        %v4123 = vmax.f32 %v4065, 0.0
        %v4124 = vmax.f32 %v4070, 0.0
        %v4125 = vmax.f32 %v4073, 0.0
        %v4126 = vmax.f32 %v4078, 0.0
        %v4127 = vmax.f32 %v4081, 0.0
        %v4128 = vmax.f32 %v4086, 0.0
        %v4129 = vmax.f32 %v4089, 0.0
        %v4130 = vmax.f32 %v4094, 0.0
        %v4131 = vmax.f32 %v4097, 0.0
        %v4132 = vpack.c.bf16 %v4101, %v4100
        %v4133 = vpack.c.bf16 %v4103, %v4102
        %v4134 = vpack.c.bf16 %v4105, %v4104
        %v4135 = vpack.c.bf16 %v4107, %v4106
        %v4136 = vpack.c.bf16 %v4109, %v4108
        %v4137 = vpack.c.bf16 %v4111, %v4110
        %v4138 = vpack.c.bf16 %v4113, %v4112
        %v4139 = vpack.c.bf16 %v4115, %v4114
        %v4140 = vpack.c.bf16 %v4117, %v4116
        %v4141 = vpack.c.bf16 %v4119, %v4118
        %v4142 = vpack.c.bf16 %v4121, %v4120
        %v4143 = vpack.c.bf16 %v4123, %v4122
        %v4144 = vpack.c.bf16 %v4125, %v4124
        %v4145 = vpack.c.bf16 %v4127, %v4126
        %v4146 = vpack.c.bf16 %v4129, %v4128
        %v4147 = vpack.c.bf16 %v4131, %v4130
        %vm4148 = vcmask 519168
        %4149 = vst.msk [vmem:[#allocation3] sm:$0xf] %vm4148, 0
        %4150 = vst.msk [vmem:[#allocation3 + $0x4] sm:$0xf] %vm4148, 0
        %vm4151 = vcmask 516096
        %4152 = vst.msk [vmem:[#allocation3 + $0x8] sm:$0x1] %vm4151, 0
        %s4153 = scalar_lea.vmem [#allocation3], 204
        %4154 = vst.msk [vmem:[%s4153] sm:$0xf] %vm4148, 0
        %4155 = vst.msk [vmem:[%s4153 + $0x4] sm:$0xf] %vm4148, 0
        %4156 = vst.msk [vmem:[%s4153 + $0x8] sm:$0x1] %vm4151, 0
        %s4157 = scalar_lea.vmem [#allocation3], 12
        %vm4158 = vcmask 516096
        %vm4159 = vsmask.f32 256
        %vm4160 = vmand %vm4158, %vm4159
        %v4161 = vld [vmem:[%s4157] sm:$0x1]
        %v4162 = vsel %vm4160, 0, %v4161
        %4163 = vst [vmem:[%s4157] sm:$0x1] %v4162
        %v4164 = vld [vmem:[%s4157 + $0xc] sm:$0x1]
        %v4165 = vsel %vm4160, 0, %v4164
        %4166 = vst [vmem:[%s4157 + $0xc] sm:$0x1] %v4165
        %v4167 = vld [vmem:[%s4157 + $0x18] sm:$0x1]
        %v4168 = vsel %vm4160, 0, %v4167
        %4169 = vst [vmem:[%s4157 + $0x18] sm:$0x1] %v4168
        %v4170 = vld [vmem:[%s4157 + $0x24] sm:$0x1]
        %v4171 = vsel %vm4160, 0, %v4170
        %4172 = vst [vmem:[%s4157 + $0x24] sm:$0x1] %v4171
        %v4173 = vld [vmem:[%s4157 + $0x30] sm:$0x1]
        %v4174 = vsel %vm4160, 0, %v4173
        %4175 = vst [vmem:[%s4157 + $0x30] sm:$0x1] %v4174
        %v4176 = vld [vmem:[%s4157 + $0x3c] sm:$0x1]
        %v4177 = vsel %vm4160, 0, %v4176
        %4178 = vst [vmem:[%s4157 + $0x3c] sm:$0x1] %v4177
        %v4179 = vld [vmem:[%s4157 + $0x48] sm:$0x1]
        %v4180 = vsel %vm4160, 0, %v4179
        %4181 = vst [vmem:[%s4157 + $0x48] sm:$0x1] %v4180
        %v4182 = vld [vmem:[%s4157 + $0x54] sm:$0x1]
        %v4183 = vsel %vm4160, 0, %v4182
        %4184 = vst [vmem:[%s4157 + $0x54] sm:$0x1] %v4183
        %v4185 = vld [vmem:[%s4157 + $0x60] sm:$0x1]
        %v4186 = vsel %vm4160, 0, %v4185
        %4187 = vst [vmem:[%s4157 + $0x60] sm:$0x1] %v4186
        %v4188 = vld [vmem:[%s4157 + $0x6c] sm:$0x1]
        %v4189 = vsel %vm4160, 0, %v4188
        %4190 = vst [vmem:[%s4157 + $0x6c] sm:$0x1] %v4189
        %v4191 = vld [vmem:[%s4157 + $0x78] sm:$0x1]
        %v4192 = vsel %vm4160, 0, %v4191
        %4193 = vst [vmem:[%s4157 + $0x78] sm:$0x1] %v4192
        %v4194 = vld [vmem:[%s4157 + $0x84] sm:$0x1]
        %v4195 = vsel %vm4160, 0, %v4194
        %4196 = vst [vmem:[%s4157 + $0x84] sm:$0x1] %v4195
        %v4197 = vld [vmem:[%s4157 + $0x90] sm:$0x1]
        %v4198 = vsel %vm4160, 0, %v4197
        %4199 = vst [vmem:[%s4157 + $0x90] sm:$0x1] %v4198
        %v4200 = vld [vmem:[%s4157 + $0x9c] sm:$0x1]
        %v4201 = vsel %vm4160, 0, %v4200
        %4202 = vst [vmem:[%s4157 + $0x9c] sm:$0x1] %v4201
        %v4203 = vld [vmem:[%s4157 + $0xa8] sm:$0x1]
        %v4204 = vsel %vm4160, 0, %v4203
        %4205 = vst [vmem:[%s4157 + $0xa8] sm:$0x1] %v4204
        %v4206 = vld [vmem:[%s4157 + $0xb4] sm:$0x1]
        %v4207 = vsel %vm4160, 0, %v4206
        %4208 = vst [vmem:[%s4157 + $0xb4] sm:$0x1] %v4207
        %vm4209 = vsmask.f32 7938
        %vm4210 = vmand %vm4158, %vm4209
        %v4211 = vld [vmem:[%s4157 + $0x8] sm:$0x1]
        %v4212 = vsel %vm4210, 0, %v4211
        %4213 = vst [vmem:[%s4157 + $0x8] sm:$0x1] %v4212
        %v4214 = vld [vmem:[%s4157 + $0x14] sm:$0x1]
        %v4215 = vsel %vm4210, 0, %v4214
        %4216 = vst [vmem:[%s4157 + $0x14] sm:$0x1] %v4215
        %v4217 = vld [vmem:[%s4157 + $0x20] sm:$0x1]
        %v4218 = vsel %vm4210, 0, %v4217
        %4219 = vst [vmem:[%s4157 + $0x20] sm:$0x1] %v4218
        %v4220 = vld [vmem:[%s4157 + $0x2c] sm:$0x1]
        %v4221 = vsel %vm4210, 0, %v4220
        %4222 = vst [vmem:[%s4157 + $0x2c] sm:$0x1] %v4221
        %v4223 = vld [vmem:[%s4157 + $0x38] sm:$0x1]
        %v4224 = vsel %vm4210, 0, %v4223
        %4225 = vst [vmem:[%s4157 + $0x38] sm:$0x1] %v4224
        %v4226 = vld [vmem:[%s4157 + $0x44] sm:$0x1]
        %v4227 = vsel %vm4210, 0, %v4226
        %4228 = vst [vmem:[%s4157 + $0x44] sm:$0x1] %v4227
        %v4229 = vld [vmem:[%s4157 + $0x50] sm:$0x1]
        %v4230 = vsel %vm4210, 0, %v4229
        %4231 = vst [vmem:[%s4157 + $0x50] sm:$0x1] %v4230
        %v4232 = vld [vmem:[%s4157 + $0x5c] sm:$0x1]
        %v4233 = vsel %vm4210, 0, %v4232
        %4234 = vst [vmem:[%s4157 + $0x5c] sm:$0x1] %v4233
        %v4235 = vld [vmem:[%s4157 + $0x68] sm:$0x1]
        %v4236 = vsel %vm4210, 0, %v4235
        %4237 = vst [vmem:[%s4157 + $0x68] sm:$0x1] %v4236
        %v4238 = vld [vmem:[%s4157 + $0x74] sm:$0x1]
        %v4239 = vsel %vm4210, 0, %v4238
        %4240 = vst [vmem:[%s4157 + $0x74] sm:$0x1] %v4239
        %v4241 = vld [vmem:[%s4157 + $0x80] sm:$0x1]
        %v4242 = vsel %vm4210, 0, %v4241
        %4243 = vst [vmem:[%s4157 + $0x80] sm:$0x1] %v4242
        %v4244 = vld [vmem:[%s4157 + $0x8c] sm:$0x1]
        %v4245 = vsel %vm4210, 0, %v4244
        %4246 = vst [vmem:[%s4157 + $0x8c] sm:$0x1] %v4245
        %v4247 = vld [vmem:[%s4157 + $0x98] sm:$0x1]
        %v4248 = vsel %vm4210, 0, %v4247
        %4249 = vst [vmem:[%s4157 + $0x98] sm:$0x1] %v4248
        %v4250 = vld [vmem:[%s4157 + $0xa4] sm:$0x1]
        %v4251 = vsel %vm4210, 0, %v4250
        %4252 = vst [vmem:[%s4157 + $0xa4] sm:$0x1] %v4251
        %v4253 = vld [vmem:[%s4157 + $0xb0] sm:$0x1]
        %v4254 = vsel %vm4210, 0, %v4253
        %4255 = vst [vmem:[%s4157 + $0xb0] sm:$0x1] %v4254
        %v4256 = vld [vmem:[%s4157 + $0xbc] sm:$0x1]
        %v4257 = vsel %vm4210, 0, %v4256
        %4258 = vst [vmem:[%s4157 + $0xbc] sm:$0x1] %v4257
        %v4275 = vunpack.c.l.b16 %v4132
        %v4276 = vunpack.c.h.b16 %v4132
        %v4277 = vunpack.c.l.b16 %v4133
        %v4278 = vunpack.c.h.b16 %v4133
        %v4279 = vunpack.c.l.b16 %v4134
        %v4280 = vunpack.c.h.b16 %v4134
        %v4281 = vunpack.c.l.b16 %v4135
        %v4282 = vunpack.c.h.b16 %v4135
        %v4283 = vunpack.c.l.b16 %v4136
        %v4284 = vunpack.c.h.b16 %v4136
        %v4285 = vunpack.c.l.b16 %v4137
        %v4286 = vunpack.c.h.b16 %v4137
        %v4287 = vunpack.c.l.b16 %v4138
        %v4288 = vunpack.c.h.b16 %v4138
        %v4289 = vunpack.c.l.b16 %v4139
        %v4290 = vunpack.c.h.b16 %v4139
        %v4291 = vunpack.c.l.b16 %v4140
        %v4292 = vunpack.c.h.b16 %v4140
        %v4293 = vunpack.c.l.b16 %v4141
        %v4294 = vunpack.c.h.b16 %v4141
        %v4295 = vunpack.c.l.b16 %v4142
        %v4296 = vunpack.c.h.b16 %v4142
        %v4297 = vunpack.c.l.b16 %v4143
        %v4298 = vunpack.c.h.b16 %v4143
        %v4299 = vunpack.c.l.b16 %v4144
        %v4300 = vunpack.c.h.b16 %v4144
        %v4301 = vunpack.c.l.b16 %v4145
        %v4302 = vunpack.c.h.b16 %v4145
        %v4303 = vunpack.c.l.b16 %v4146
        %v4304 = vunpack.c.h.b16 %v4146
        %v4305 = vunpack.c.l.b16 %v4147
        %v4306 = vunpack.c.h.b16 %v4147
        %v4307 = vpack.c.b16 %v4275, %v4275
        %v4308 = vpack.c.b16 %v4276, %v4276
        %v4309 = vpack.c.b16 %v4277, %v4277
        %v4310 = vpack.c.b16 %v4278, %v4278
        %v4311 = vpack.c.b16 %v4279, %v4279
        %v4312 = vpack.c.b16 %v4280, %v4280
        %v4313 = vpack.c.b16 %v4281, %v4281
        %v4314 = vpack.c.b16 %v4282, %v4282
        %v4315 = vpack.c.b16 %v4283, %v4283
        %v4316 = vpack.c.b16 %v4284, %v4284
        %v4317 = vpack.c.b16 %v4285, %v4285
        %v4318 = vpack.c.b16 %v4286, %v4286
        %v4319 = vpack.c.b16 %v4287, %v4287
        %v4320 = vpack.c.b16 %v4288, %v4288
        %v4321 = vpack.c.b16 %v4289, %v4289
        %v4322 = vpack.c.b16 %v4290, %v4290
        %v4323 = vpack.c.b16 %v4291, %v4291
        %v4324 = vpack.c.b16 %v4292, %v4292
        %v4325 = vpack.c.b16 %v4293, %v4293
        %v4326 = vpack.c.b16 %v4294, %v4294
        %v4327 = vpack.c.b16 %v4295, %v4295
        %v4328 = vpack.c.b16 %v4296, %v4296
        %v4329 = vpack.c.b16 %v4297, %v4297
        %v4330 = vpack.c.b16 %v4298, %v4298
        %v4331 = vpack.c.b16 %v4299, %v4299
        %v4332 = vpack.c.b16 %v4300, %v4300
        %v4333 = vpack.c.b16 %v4301, %v4301
        %v4334 = vpack.c.b16 %v4302, %v4302
        %v4335 = vpack.c.b16 %v4303, %v4303
        %v4336 = vpack.c.b16 %v4304, %v4304
        %v4337 = vpack.c.b16 %v4305, %v4305
        %v4338 = vpack.c.b16 %v4306, %v4306
        %vm4339 = vsmask.f32 4368
        %vm4340 = vmor %vm4159, %vm4339
        %v4342 = vshrl.u32 %v4307, 16
        %v4344 = vrot.slane %v4342, 7
        %v4345 = vshll.u32 %v4307, 16
        %v4347 = vor.u32 %v4344, %v4345
        %v4348 = vrot.slane %v4344, 4
        %v4350 = vshrl.u32 %v4308, 16
        %v4352 = vrot.slane %v4350, 7
        %v4353 = vshll.u32 %v4308, 16
        %v4355 = vor.u32 %v4352, %v4353
        %v4356 = vsel %vm4340, %v4348, %v4355
        %v4357 = vrot.slane %v4352, 4
        %v4359 = vshrl.u32 %v4309, 16
        %v4361 = vrot.slane %v4359, 7
        %v4362 = vshll.u32 %v4309, 16
        %v4364 = vor.u32 %v4361, %v4362
        %v4365 = vrot.slane %v4361, 4
        %v4367 = vshrl.u32 %v4310, 16
        %v4369 = vrot.slane %v4367, 7
        %v4370 = vshll.u32 %v4310, 16
        %v4372 = vor.u32 %v4369, %v4370
        %v4373 = vsel %vm4340, %v4365, %v4372
        %v4374 = vrot.slane %v4369, 4
        %v4376 = vshrl.u32 %v4311, 16
        %v4378 = vrot.slane %v4376, 7
        %v4379 = vshll.u32 %v4311, 16
        %v4381 = vor.u32 %v4378, %v4379
        %v4382 = vrot.slane %v4378, 4
        %v4384 = vshrl.u32 %v4312, 16
        %v4386 = vrot.slane %v4384, 7
        %v4387 = vshll.u32 %v4312, 16
        %v4389 = vor.u32 %v4386, %v4387
        %v4390 = vsel %vm4340, %v4382, %v4389
        %v4391 = vrot.slane %v4386, 4
        %v4393 = vshrl.u32 %v4313, 16
        %v4395 = vrot.slane %v4393, 7
        %v4396 = vshll.u32 %v4313, 16
        %v4398 = vor.u32 %v4395, %v4396
        %v4399 = vrot.slane %v4395, 4
        %v4401 = vshrl.u32 %v4314, 16
        %v4403 = vrot.slane %v4401, 7
        %v4404 = vshll.u32 %v4314, 16
        %v4406 = vor.u32 %v4403, %v4404
        %v4407 = vsel %vm4340, %v4399, %v4406
        %v4408 = vrot.slane %v4403, 4
        %v4410 = vshrl.u32 %v4315, 16
        %v4412 = vrot.slane %v4410, 7
        %v4413 = vshll.u32 %v4315, 16
        %v4415 = vor.u32 %v4412, %v4413
        %v4416 = vrot.slane %v4412, 4
        %v4418 = vshrl.u32 %v4316, 16
        %v4420 = vrot.slane %v4418, 7
        %v4421 = vshll.u32 %v4316, 16
        %v4423 = vor.u32 %v4420, %v4421
        %v4424 = vsel %vm4340, %v4416, %v4423
        %v4425 = vrot.slane %v4420, 4
        %v4427 = vshrl.u32 %v4317, 16
        %v4429 = vrot.slane %v4427, 7
        %v4430 = vshll.u32 %v4317, 16
        %v4432 = vor.u32 %v4429, %v4430
        %v4433 = vrot.slane %v4429, 4
        %v4435 = vshrl.u32 %v4318, 16
        %v4437 = vrot.slane %v4435, 7
        %v4438 = vshll.u32 %v4318, 16
        %v4440 = vor.u32 %v4437, %v4438
        %v4441 = vsel %vm4340, %v4433, %v4440
        %v4442 = vrot.slane %v4437, 4
        %v4444 = vshrl.u32 %v4319, 16
        %v4446 = vrot.slane %v4444, 7
        %v4447 = vshll.u32 %v4319, 16
        %v4449 = vor.u32 %v4446, %v4447
        %v4450 = vrot.slane %v4446, 4
        %v4452 = vshrl.u32 %v4320, 16
        %v4454 = vrot.slane %v4452, 7
        %v4455 = vshll.u32 %v4320, 16
        %v4457 = vor.u32 %v4454, %v4455
        %v4458 = vsel %vm4340, %v4450, %v4457
        %v4459 = vrot.slane %v4454, 4
        %v4461 = vshrl.u32 %v4321, 16
        %v4463 = vrot.slane %v4461, 7
        %v4464 = vshll.u32 %v4321, 16
        %v4466 = vor.u32 %v4463, %v4464
        %v4467 = vrot.slane %v4463, 4
        %v4469 = vshrl.u32 %v4322, 16
        %v4471 = vrot.slane %v4469, 7
        %v4472 = vshll.u32 %v4322, 16
        %v4474 = vor.u32 %v4471, %v4472
        %v4475 = vsel %vm4340, %v4467, %v4474
        %v4476 = vrot.slane %v4471, 4
        %v4478 = vshrl.u32 %v4323, 16
        %v4480 = vrot.slane %v4478, 7
        %v4481 = vshll.u32 %v4323, 16
        %v4483 = vor.u32 %v4480, %v4481
        %v4484 = vrot.slane %v4480, 4
        %v4486 = vshrl.u32 %v4324, 16
        %v4488 = vrot.slane %v4486, 7
        %v4489 = vshll.u32 %v4324, 16
        %v4491 = vor.u32 %v4488, %v4489
        %v4492 = vsel %vm4340, %v4484, %v4491
        %v4493 = vrot.slane %v4488, 4
        %v4495 = vshrl.u32 %v4325, 16
        %v4497 = vrot.slane %v4495, 7
        %v4498 = vshll.u32 %v4325, 16
        %v4500 = vor.u32 %v4497, %v4498
        %v4501 = vrot.slane %v4497, 4
        %v4503 = vshrl.u32 %v4326, 16
        %v4505 = vrot.slane %v4503, 7
        %v4506 = vshll.u32 %v4326, 16
        %v4508 = vor.u32 %v4505, %v4506
        %v4509 = vsel %vm4340, %v4501, %v4508
        %v4510 = vrot.slane %v4505, 4
        %v4512 = vshrl.u32 %v4327, 16
        %v4514 = vrot.slane %v4512, 7
        %v4515 = vshll.u32 %v4327, 16
        %v4517 = vor.u32 %v4514, %v4515
        %v4518 = vrot.slane %v4514, 4
        %v4520 = vshrl.u32 %v4328, 16
        %v4522 = vrot.slane %v4520, 7
        %v4523 = vshll.u32 %v4328, 16
        %v4525 = vor.u32 %v4522, %v4523
        %v4526 = vsel %vm4340, %v4518, %v4525
        %v4527 = vrot.slane %v4522, 4
        %v4529 = vshrl.u32 %v4329, 16
        %v4531 = vrot.slane %v4529, 7
        %v4532 = vshll.u32 %v4329, 16
        %v4534 = vor.u32 %v4531, %v4532
        %v4535 = vrot.slane %v4531, 4
        %v4537 = vshrl.u32 %v4330, 16
        %v4539 = vrot.slane %v4537, 7
        %v4540 = vshll.u32 %v4330, 16
        %v4542 = vor.u32 %v4539, %v4540
        %v4543 = vsel %vm4340, %v4535, %v4542
        %v4544 = vrot.slane %v4539, 4
        %v4546 = vshrl.u32 %v4331, 16
        %v4548 = vrot.slane %v4546, 7
        %v4549 = vshll.u32 %v4331, 16
        %v4551 = vor.u32 %v4548, %v4549
        %v4552 = vrot.slane %v4548, 4
        %v4554 = vshrl.u32 %v4332, 16
        %v4556 = vrot.slane %v4554, 7
        %v4557 = vshll.u32 %v4332, 16
        %v4559 = vor.u32 %v4556, %v4557
        %v4560 = vsel %vm4340, %v4552, %v4559
        %v4561 = vrot.slane %v4556, 4
        %v4563 = vshrl.u32 %v4333, 16
        %v4565 = vrot.slane %v4563, 7
        %v4566 = vshll.u32 %v4333, 16
        %v4568 = vor.u32 %v4565, %v4566
        %v4569 = vrot.slane %v4565, 4
        %v4571 = vshrl.u32 %v4334, 16
        %v4573 = vrot.slane %v4571, 7
        %v4574 = vshll.u32 %v4334, 16
        %v4576 = vor.u32 %v4573, %v4574
        %v4577 = vsel %vm4340, %v4569, %v4576
        %v4578 = vrot.slane %v4573, 4
        %v4580 = vshrl.u32 %v4335, 16
        %v4582 = vrot.slane %v4580, 7
        %v4583 = vshll.u32 %v4335, 16
        %v4585 = vor.u32 %v4582, %v4583
        %v4586 = vrot.slane %v4582, 4
        %v4588 = vshrl.u32 %v4336, 16
        %v4590 = vrot.slane %v4588, 7
        %v4591 = vshll.u32 %v4336, 16
        %v4593 = vor.u32 %v4590, %v4591
        %v4594 = vsel %vm4340, %v4586, %v4593
        %v4595 = vrot.slane %v4590, 4
        %v4597 = vshrl.u32 %v4337, 16
        %v4599 = vrot.slane %v4597, 7
        %v4600 = vshll.u32 %v4337, 16
        %v4602 = vor.u32 %v4599, %v4600
        %v4603 = vrot.slane %v4599, 4
        %v4605 = vshrl.u32 %v4338, 16
        %v4607 = vrot.slane %v4605, 7
        %v4608 = vshll.u32 %v4338, 16
        %v4610 = vor.u32 %v4607, %v4608
        %v4611 = vsel %vm4340, %v4603, %v4610
        %v4612 = vrot.slane %v4607, 4
        %vm4661 = vcmask 519168
        %vm4662 = vmand %vm4661, %vm4209
        %v4663 = vld [vmem:[%s4157] sm:$0xf]
        %v4664 = vsel %vm4662, %v4347, %v4663
        %4665 = vst [vmem:[%s4157] sm:$0xf] %v4664
        %4666 = vst.msk [vmem:[%s4157 + $0x4] sm:$0xf] %vm4148, %v4356
        %v4667 = vld [vmem:[%s4157 + $0x8] sm:$0x1]
        %v4668 = vsel %vm4160, %v4357, %v4667
        %4669 = vst [vmem:[%s4157 + $0x8] sm:$0x1] %v4668
        %v4670 = vld [vmem:[%s4157 + $0xc] sm:$0xf]
        %v4671 = vsel %vm4662, %v4364, %v4670
        %4672 = vst [vmem:[%s4157 + $0xc] sm:$0xf] %v4671
        %4673 = vst.msk [vmem:[%s4157 + $0x10] sm:$0xf] %vm4148, %v4373
        %v4674 = vld [vmem:[%s4157 + $0x14] sm:$0x1]
        %v4675 = vsel %vm4160, %v4374, %v4674
        %4676 = vst [vmem:[%s4157 + $0x14] sm:$0x1] %v4675
        %v4677 = vld [vmem:[%s4157 + $0x18] sm:$0xf]
        %v4678 = vsel %vm4662, %v4381, %v4677
        %4679 = vst [vmem:[%s4157 + $0x18] sm:$0xf] %v4678
        %4680 = vst.msk [vmem:[%s4157 + $0x1c] sm:$0xf] %vm4148, %v4390
        %v4681 = vld [vmem:[%s4157 + $0x20] sm:$0x1]
        %v4682 = vsel %vm4160, %v4391, %v4681
        %4683 = vst [vmem:[%s4157 + $0x20] sm:$0x1] %v4682
        %v4684 = vld [vmem:[%s4157 + $0x24] sm:$0xf]
        %v4685 = vsel %vm4662, %v4398, %v4684
        %4686 = vst [vmem:[%s4157 + $0x24] sm:$0xf] %v4685
        %4687 = vst.msk [vmem:[%s4157 + $0x28] sm:$0xf] %vm4148, %v4407
        %v4688 = vld [vmem:[%s4157 + $0x2c] sm:$0x1]
        %v4689 = vsel %vm4160, %v4408, %v4688
        %4690 = vst [vmem:[%s4157 + $0x2c] sm:$0x1] %v4689
        %v4691 = vld [vmem:[%s4157 + $0x30] sm:$0xf]
        %v4692 = vsel %vm4662, %v4415, %v4691
        %4693 = vst [vmem:[%s4157 + $0x30] sm:$0xf] %v4692
        %4694 = vst.msk [vmem:[%s4157 + $0x34] sm:$0xf] %vm4148, %v4424
        %v4695 = vld [vmem:[%s4157 + $0x38] sm:$0x1]
        %v4696 = vsel %vm4160, %v4425, %v4695
        %4697 = vst [vmem:[%s4157 + $0x38] sm:$0x1] %v4696
        %v4698 = vld [vmem:[%s4157 + $0x3c] sm:$0xf]
        %v4699 = vsel %vm4662, %v4432, %v4698
        %4700 = vst [vmem:[%s4157 + $0x3c] sm:$0xf] %v4699
        %4701 = vst.msk [vmem:[%s4157 + $0x40] sm:$0xf] %vm4148, %v4441
        %v4702 = vld [vmem:[%s4157 + $0x44] sm:$0x1]
        %v4703 = vsel %vm4160, %v4442, %v4702
        %4704 = vst [vmem:[%s4157 + $0x44] sm:$0x1] %v4703
        %v4705 = vld [vmem:[%s4157 + $0x48] sm:$0xf]
        %v4706 = vsel %vm4662, %v4449, %v4705
        %4707 = vst [vmem:[%s4157 + $0x48] sm:$0xf] %v4706
        %4708 = vst.msk [vmem:[%s4157 + $0x4c] sm:$0xf] %vm4148, %v4458
        %v4709 = vld [vmem:[%s4157 + $0x50] sm:$0x1]
        %v4710 = vsel %vm4160, %v4459, %v4709
        %4711 = vst [vmem:[%s4157 + $0x50] sm:$0x1] %v4710
        %v4712 = vld [vmem:[%s4157 + $0x54] sm:$0xf]
        %v4713 = vsel %vm4662, %v4466, %v4712
        %4714 = vst [vmem:[%s4157 + $0x54] sm:$0xf] %v4713
        %4715 = vst.msk [vmem:[%s4157 + $0x58] sm:$0xf] %vm4148, %v4475
        %v4716 = vld [vmem:[%s4157 + $0x5c] sm:$0x1]
        %v4717 = vsel %vm4160, %v4476, %v4716
        %4718 = vst [vmem:[%s4157 + $0x5c] sm:$0x1] %v4717
        %v4719 = vld [vmem:[%s4157 + $0x60] sm:$0xf]
        %v4720 = vsel %vm4662, %v4483, %v4719
        %4721 = vst [vmem:[%s4157 + $0x60] sm:$0xf] %v4720
        %4722 = vst.msk [vmem:[%s4157 + $0x64] sm:$0xf] %vm4148, %v4492
        %v4723 = vld [vmem:[%s4157 + $0x68] sm:$0x1]
        %v4724 = vsel %vm4160, %v4493, %v4723
        %4725 = vst [vmem:[%s4157 + $0x68] sm:$0x1] %v4724
        %v4726 = vld [vmem:[%s4157 + $0x6c] sm:$0xf]
        %v4727 = vsel %vm4662, %v4500, %v4726
        %4728 = vst [vmem:[%s4157 + $0x6c] sm:$0xf] %v4727
        %4729 = vst.msk [vmem:[%s4157 + $0x70] sm:$0xf] %vm4148, %v4509
        %v4730 = vld [vmem:[%s4157 + $0x74] sm:$0x1]
        %v4731 = vsel %vm4160, %v4510, %v4730
        %4732 = vst [vmem:[%s4157 + $0x74] sm:$0x1] %v4731
        %v4733 = vld [vmem:[%s4157 + $0x78] sm:$0xf]
        %v4734 = vsel %vm4662, %v4517, %v4733
        %4735 = vst [vmem:[%s4157 + $0x78] sm:$0xf] %v4734
        %4736 = vst.msk [vmem:[%s4157 + $0x7c] sm:$0xf] %vm4148, %v4526
        %v4737 = vld [vmem:[%s4157 + $0x80] sm:$0x1]
        %v4738 = vsel %vm4160, %v4527, %v4737
        %4739 = vst [vmem:[%s4157 + $0x80] sm:$0x1] %v4738
        %v4740 = vld [vmem:[%s4157 + $0x84] sm:$0xf]
        %v4741 = vsel %vm4662, %v4534, %v4740
        %4742 = vst [vmem:[%s4157 + $0x84] sm:$0xf] %v4741
        %4743 = vst.msk [vmem:[%s4157 + $0x88] sm:$0xf] %vm4148, %v4543
        %v4744 = vld [vmem:[%s4157 + $0x8c] sm:$0x1]
        %v4745 = vsel %vm4160, %v4544, %v4744
        %4746 = vst [vmem:[%s4157 + $0x8c] sm:$0x1] %v4745
        %v4747 = vld [vmem:[%s4157 + $0x90] sm:$0xf]
        %v4748 = vsel %vm4662, %v4551, %v4747
        %4749 = vst [vmem:[%s4157 + $0x90] sm:$0xf] %v4748
        %4750 = vst.msk [vmem:[%s4157 + $0x94] sm:$0xf] %vm4148, %v4560
        %v4751 = vld [vmem:[%s4157 + $0x98] sm:$0x1]
        %v4752 = vsel %vm4160, %v4561, %v4751
        %4753 = vst [vmem:[%s4157 + $0x98] sm:$0x1] %v4752
        %v4754 = vld [vmem:[%s4157 + $0x9c] sm:$0xf]
        %v4755 = vsel %vm4662, %v4568, %v4754
        %4756 = vst [vmem:[%s4157 + $0x9c] sm:$0xf] %v4755
        %4757 = vst.msk [vmem:[%s4157 + $0xa0] sm:$0xf] %vm4148, %v4577
        %v4758 = vld [vmem:[%s4157 + $0xa4] sm:$0x1]
        %v4759 = vsel %vm4160, %v4578, %v4758
        %4760 = vst [vmem:[%s4157 + $0xa4] sm:$0x1] %v4759
        %v4761 = vld [vmem:[%s4157 + $0xa8] sm:$0xf]
        %v4762 = vsel %vm4662, %v4585, %v4761
        %4763 = vst [vmem:[%s4157 + $0xa8] sm:$0xf] %v4762
        %4764 = vst.msk [vmem:[%s4157 + $0xac] sm:$0xf] %vm4148, %v4594
        %v4765 = vld [vmem:[%s4157 + $0xb0] sm:$0x1]
        %v4766 = vsel %vm4160, %v4595, %v4765
        %4767 = vst [vmem:[%s4157 + $0xb0] sm:$0x1] %v4766
        %v4768 = vld [vmem:[%s4157 + $0xb4] sm:$0xf]
        %v4769 = vsel %vm4662, %v4602, %v4768
        %4770 = vst [vmem:[%s4157 + $0xb4] sm:$0xf] %v4769
        %4771 = vst.msk [vmem:[%s4157 + $0xb8] sm:$0xf] %vm4148, %v4611
        %v4772 = vld [vmem:[%s4157 + $0xbc] sm:$0x1]
        %v4773 = vsel %vm4160, %v4612, %v4772
        %4774 = vst [vmem:[%s4157 + $0xbc] sm:$0x1] %v4773
        %v4775 = vld [vmem:[#allocation3] sm:$0xf]
        %v4776 = vld [vmem:[#allocation3 + $0x4] sm:$0xf]
        %v4777 = vld [vmem:[#allocation3 + $0xc] sm:$0xf]
        %v4778 = vld [vmem:[#allocation3 + $0x10] sm:$0xf]
        %v4779 = vld [vmem:[#allocation3 + $0x18] sm:$0xf]
        %v4780 = vld [vmem:[#allocation3 + $0x1c] sm:$0xf]
        %v4781 = vld [vmem:[#allocation3 + $0x24] sm:$0xf]
        %v4782 = vld [vmem:[#allocation3 + $0x28] sm:$0xf]
        %v4783 = vld [vmem:[#allocation3 + $0x30] sm:$0xf]
        %v4784 = vld [vmem:[#allocation3 + $0x34] sm:$0xf]
        %v4785 = vld [vmem:[#allocation3 + $0x3c] sm:$0xf]
        %v4786 = vld [vmem:[#allocation3 + $0x40] sm:$0xf]
        %v4787 = vld [vmem:[#allocation3 + $0x48] sm:$0xf]
        %v4788 = vld [vmem:[#allocation3 + $0x4c] sm:$0xf]
        %v4789 = vld [vmem:[#allocation3 + $0x54] sm:$0xf]
        %v4790 = vld [vmem:[#allocation3 + $0x58] sm:$0xf]
        %v4791 = vld [vmem:[#allocation3 + $0x60] sm:$0xf]
        %v4792 = vld [vmem:[#allocation3 + $0x64] sm:$0xf]
        %v4793 = vld [vmem:[#allocation3 + $0x6c] sm:$0xf]
        %v4794 = vld [vmem:[#allocation3 + $0x70] sm:$0xf]
        %v4795 = vld [vmem:[#allocation3 + $0x78] sm:$0xf]
        %v4796 = vld [vmem:[#allocation3 + $0x7c] sm:$0xf]
        %v4797 = vld [vmem:[#allocation3 + $0x84] sm:$0xf]
        %v4798 = vld [vmem:[#allocation3 + $0x88] sm:$0xf]
        %v4799 = vld [vmem:[#allocation3 + $0x90] sm:$0xf]
        %v4800 = vld [vmem:[#allocation3 + $0x94] sm:$0xf]
        %v4801 = vld [vmem:[#allocation3 + $0x9c] sm:$0xf]
        %v4802 = vld [vmem:[#allocation3 + $0xa0] sm:$0xf]
        %v4803 = vld [vmem:[#allocation3 + $0xa8] sm:$0xf]
        %v4804 = vld [vmem:[#allocation3 + $0xac] sm:$0xf]
        %v4805 = vld [vmem:[#allocation3 + $0xb4] sm:$0xf]
        %v4806 = vld [vmem:[#allocation3 + $0xb8] sm:$0xf]
        %v4839 = vunpack.c.l.b16 %v4775
        %v4840 = vunpack.c.l.b16 %v4776
        %v4841 = vunpack.c.l.b16 %v4777
        %v4842 = vunpack.c.l.b16 %v4778
        %v4843 = vunpack.c.l.b16 %v4779
        %v4844 = vunpack.c.l.b16 %v4780
        %v4845 = vunpack.c.l.b16 %v4781
        %v4846 = vunpack.c.l.b16 %v4782
        %v4847 = vunpack.c.l.b16 %v4783
        %v4848 = vunpack.c.l.b16 %v4784
        %v4849 = vunpack.c.l.b16 %v4785
        %v4850 = vunpack.c.l.b16 %v4786
        %v4851 = vunpack.c.l.b16 %v4787
        %v4852 = vunpack.c.l.b16 %v4788
        %v4853 = vunpack.c.l.b16 %v4789
        %v4854 = vunpack.c.l.b16 %v4790
        %v4855 = vunpack.c.l.b16 %v4791
        %v4856 = vunpack.c.l.b16 %v4792
        %v4857 = vunpack.c.l.b16 %v4793
        %v4858 = vunpack.c.l.b16 %v4794
        %v4859 = vunpack.c.l.b16 %v4795
        %v4860 = vunpack.c.l.b16 %v4796
        %v4861 = vunpack.c.l.b16 %v4797
        %v4862 = vunpack.c.l.b16 %v4798
        %v4863 = vunpack.c.l.b16 %v4799
        %v4864 = vunpack.c.l.b16 %v4800
        %v4865 = vunpack.c.l.b16 %v4801
        %v4866 = vunpack.c.l.b16 %v4802
        %v4867 = vunpack.c.l.b16 %v4803
        %v4868 = vunpack.c.l.b16 %v4804
        %v4869 = vunpack.c.l.b16 %v4805
        %v4870 = vunpack.c.l.b16 %v4806
        %v4871 = vpack.c.b16 %v4840, %v4839
        %v4872 = vpack.c.b16 %v4842, %v4841
        %v4873 = vpack.c.b16 %v4844, %v4843
        %v4874 = vpack.c.b16 %v4846, %v4845
        %v4875 = vpack.c.b16 %v4848, %v4847
        %v4876 = vpack.c.b16 %v4850, %v4849
        %v4877 = vpack.c.b16 %v4852, %v4851
        %v4878 = vpack.c.b16 %v4854, %v4853
        %v4879 = vpack.c.b16 %v4856, %v4855
        %v4880 = vpack.c.b16 %v4858, %v4857
        %v4881 = vpack.c.b16 %v4860, %v4859
        %v4882 = vpack.c.b16 %v4862, %v4861
        %v4883 = vpack.c.b16 %v4864, %v4863
        %v4884 = vpack.c.b16 %v4866, %v4865
        %v4885 = vpack.c.b16 %v4868, %v4867
        %v4886 = vpack.c.b16 %v4870, %v4869
        %4903 = vst.msk [vmem:[#allocation2] sm:$0xff] %vm352, %v4871
        %4904 = vst.msk [vmem:[#allocation2 + $0x28] sm:$0xff] %vm352, %v4872
        %4905 = vst.msk [vmem:[#allocation2 + $0x50] sm:$0xff] %vm352, %v4873
        %4906 = vst.msk [vmem:[#allocation2 + $0x78] sm:$0xff] %vm352, %v4874
        %4907 = vst.msk [vmem:[#allocation2 + $0xa0] sm:$0xff] %vm352, %v4875
        %4908 = vst.msk [vmem:[#allocation2 + $0xc8] sm:$0xff] %vm352, %v4876
        %4909 = vst.msk [vmem:[#allocation2 + $0xf0] sm:$0xff] %vm352, %v4877
        %4910 = vst.msk [vmem:[#allocation2 + $0x118] sm:$0xff] %vm352, %v4878
        %4911 = vst.msk [vmem:[#allocation2 + $0x140] sm:$0xff] %vm352, %v4879
        %4912 = vst.msk [vmem:[#allocation2 + $0x168] sm:$0xff] %vm352, %v4880
        %4913 = vst.msk [vmem:[#allocation2 + $0x190] sm:$0xff] %vm352, %v4881
        %4914 = vst.msk [vmem:[#allocation2 + $0x1b8] sm:$0xff] %vm352, %v4882
        %4915 = vst.msk [vmem:[#allocation2 + $0x1e0] sm:$0xff] %vm352, %v4883
        %4916 = vst.msk [vmem:[#allocation2 + $0x208] sm:$0xff] %vm352, %v4884
        %4917 = vst.msk [vmem:[#allocation2 + $0x230] sm:$0xff] %vm352, %v4885
        %4918 = vst.msk [vmem:[#allocation2 + $0x258] sm:$0xff] %vm352, %v4886
        %v4919 = vld [vmem:[#allocation3] sm:$0xf]
        %v4920 = vld [vmem:[#allocation3 + $0x4] sm:$0xf]
        %v4921 = vld [vmem:[#allocation3 + $0x8] sm:$0x1]
        %v4922 = vld [vmem:[#allocation3 + $0xc] sm:$0xf]
        %v4923 = vld [vmem:[#allocation3 + $0x10] sm:$0xf]
        %v4924 = vld [vmem:[#allocation3 + $0x14] sm:$0x1]
        %v4925 = vld [vmem:[#allocation3 + $0x18] sm:$0xf]
        %v4926 = vld [vmem:[#allocation3 + $0x1c] sm:$0xf]
        %v4927 = vld [vmem:[#allocation3 + $0x20] sm:$0x1]
        %v4928 = vld [vmem:[#allocation3 + $0x24] sm:$0xf]
        %v4929 = vld [vmem:[#allocation3 + $0x28] sm:$0xf]
        %v4930 = vld [vmem:[#allocation3 + $0x2c] sm:$0x1]
        %v4931 = vld [vmem:[#allocation3 + $0x30] sm:$0xf]
        %v4932 = vld [vmem:[#allocation3 + $0x34] sm:$0xf]
        %v4933 = vld [vmem:[#allocation3 + $0x38] sm:$0x1]
        %v4934 = vld [vmem:[#allocation3 + $0x3c] sm:$0xf]
        %v4935 = vld [vmem:[#allocation3 + $0x40] sm:$0xf]
        %v4936 = vld [vmem:[#allocation3 + $0x44] sm:$0x1]
        %v4937 = vld [vmem:[#allocation3 + $0x48] sm:$0xf]
        %v4938 = vld [vmem:[#allocation3 + $0x4c] sm:$0xf]
        %v4939 = vld [vmem:[#allocation3 + $0x50] sm:$0x1]
        %v4940 = vld [vmem:[#allocation3 + $0x54] sm:$0xf]
        %v4941 = vld [vmem:[#allocation3 + $0x58] sm:$0xf]
        %v4942 = vld [vmem:[#allocation3 + $0x5c] sm:$0x1]
        %v4943 = vld [vmem:[#allocation3 + $0x60] sm:$0xf]
        %v4944 = vld [vmem:[#allocation3 + $0x64] sm:$0xf]
        %v4945 = vld [vmem:[#allocation3 + $0x68] sm:$0x1]
        %v4946 = vld [vmem:[#allocation3 + $0x6c] sm:$0xf]
        %v4947 = vld [vmem:[#allocation3 + $0x70] sm:$0xf]
        %v4948 = vld [vmem:[#allocation3 + $0x74] sm:$0x1]
        %v4949 = vld [vmem:[#allocation3 + $0x78] sm:$0xf]
        %v4950 = vld [vmem:[#allocation3 + $0x7c] sm:$0xf]
        %v4951 = vld [vmem:[#allocation3 + $0x80] sm:$0x1]
        %v4952 = vld [vmem:[#allocation3 + $0x84] sm:$0xf]
        %v4953 = vld [vmem:[#allocation3 + $0x88] sm:$0xf]
        %v4954 = vld [vmem:[#allocation3 + $0x8c] sm:$0x1]
        %v4955 = vld [vmem:[#allocation3 + $0x90] sm:$0xf]
        %v4956 = vld [vmem:[#allocation3 + $0x94] sm:$0xf]
        %v4957 = vld [vmem:[#allocation3 + $0x98] sm:$0x1]
        %v4958 = vld [vmem:[#allocation3 + $0x9c] sm:$0xf]
        %v4959 = vld [vmem:[#allocation3 + $0xa0] sm:$0xf]
        %v4960 = vld [vmem:[#allocation3 + $0xa4] sm:$0x1]
        %v4961 = vld [vmem:[#allocation3 + $0xa8] sm:$0xf]
        %v4962 = vld [vmem:[#allocation3 + $0xac] sm:$0xf]
        %v4963 = vld [vmem:[#allocation3 + $0xb0] sm:$0x1]
        %v4964 = vld [vmem:[#allocation3 + $0xb4] sm:$0xf]
        %v4965 = vld [vmem:[#allocation3 + $0xb8] sm:$0xf]
        %v4966 = vld [vmem:[#allocation3 + $0xbc] sm:$0x1]
        %v4968 = vshrl.u32 %v4919, 16
        %v4970 = vrot.slane %v4968, 4
        %v4971 = vshll.u32 %v4919, 16
        %v4973 = vrot.slane %v4971, 5
        %v4974 = vor.u32 %v4970, %v4973
        %v4975 = vrot.slane %v4974, 4
        %v4977 = vshll.u32 %v4920, 16
        %v4979 = vrot.slane %v4977, 5
        %v4980 = vsel %vm419, %v4975, %v4979
        %v4981 = vshrl.u32 %v4920, 16
        %v4983 = vrot.slane %v4981, 4
        %v4984 = vor.u32 %v4983, %v4979
        %v4985 = vrot.slane %v4984, 4
        %v4987 = vshll.u32 %v4921, 16
        %v4989 = vrot.slane %v4987, 5
        %v4990 = vsel %vm419, %v4985, %v4989
        %v4992 = vshrl.u32 %v4922, 16
        %v4994 = vrot.slane %v4992, 4
        %v4995 = vshll.u32 %v4922, 16
        %v4997 = vrot.slane %v4995, 5
        %v4998 = vor.u32 %v4994, %v4997
        %v4999 = vrot.slane %v4998, 4
        %v5001 = vshll.u32 %v4923, 16
        %v5003 = vrot.slane %v5001, 5
        %v5004 = vsel %vm419, %v4999, %v5003
        %v5005 = vshrl.u32 %v4923, 16
        %v5007 = vrot.slane %v5005, 4
        %v5008 = vor.u32 %v5007, %v5003
        %v5009 = vrot.slane %v5008, 4
        %v5011 = vshll.u32 %v4924, 16
        %v5013 = vrot.slane %v5011, 5
        %v5014 = vsel %vm419, %v5009, %v5013
        %v5016 = vshrl.u32 %v4925, 16
        %v5018 = vrot.slane %v5016, 4
        %v5019 = vshll.u32 %v4925, 16
        %v5021 = vrot.slane %v5019, 5
        %v5022 = vor.u32 %v5018, %v5021
        %v5023 = vrot.slane %v5022, 4
        %v5025 = vshll.u32 %v4926, 16
        %v5027 = vrot.slane %v5025, 5
        %v5028 = vsel %vm419, %v5023, %v5027
        %v5029 = vshrl.u32 %v4926, 16
        %v5031 = vrot.slane %v5029, 4
        %v5032 = vor.u32 %v5031, %v5027
        %v5033 = vrot.slane %v5032, 4
        %v5035 = vshll.u32 %v4927, 16
        %v5037 = vrot.slane %v5035, 5
        %v5038 = vsel %vm419, %v5033, %v5037
        %v5040 = vshrl.u32 %v4928, 16
        %v5042 = vrot.slane %v5040, 4
        %v5043 = vshll.u32 %v4928, 16
        %v5045 = vrot.slane %v5043, 5
        %v5046 = vor.u32 %v5042, %v5045
        %v5047 = vrot.slane %v5046, 4
        %v5049 = vshll.u32 %v4929, 16
        %v5051 = vrot.slane %v5049, 5
        %v5052 = vsel %vm419, %v5047, %v5051
        %v5053 = vshrl.u32 %v4929, 16
        %v5055 = vrot.slane %v5053, 4
        %v5056 = vor.u32 %v5055, %v5051
        %v5057 = vrot.slane %v5056, 4
        %v5059 = vshll.u32 %v4930, 16
        %v5061 = vrot.slane %v5059, 5
        %v5062 = vsel %vm419, %v5057, %v5061
        %v5064 = vshrl.u32 %v4931, 16
        %v5066 = vrot.slane %v5064, 4
        %v5067 = vshll.u32 %v4931, 16
        %v5069 = vrot.slane %v5067, 5
        %v5070 = vor.u32 %v5066, %v5069
        %v5071 = vrot.slane %v5070, 4
        %v5073 = vshll.u32 %v4932, 16
        %v5075 = vrot.slane %v5073, 5
        %v5076 = vsel %vm419, %v5071, %v5075
        %v5077 = vshrl.u32 %v4932, 16
        %v5079 = vrot.slane %v5077, 4
        %v5080 = vor.u32 %v5079, %v5075
        %v5081 = vrot.slane %v5080, 4
        %v5083 = vshll.u32 %v4933, 16
        %v5085 = vrot.slane %v5083, 5
        %v5086 = vsel %vm419, %v5081, %v5085
        %v5088 = vshrl.u32 %v4934, 16
        %v5090 = vrot.slane %v5088, 4
        %v5091 = vshll.u32 %v4934, 16
        %v5093 = vrot.slane %v5091, 5
        %v5094 = vor.u32 %v5090, %v5093
        %v5095 = vrot.slane %v5094, 4
        %v5097 = vshll.u32 %v4935, 16
        %v5099 = vrot.slane %v5097, 5
        %v5100 = vsel %vm419, %v5095, %v5099
        %v5101 = vshrl.u32 %v4935, 16
        %v5103 = vrot.slane %v5101, 4
        %v5104 = vor.u32 %v5103, %v5099
        %v5105 = vrot.slane %v5104, 4
        %v5107 = vshll.u32 %v4936, 16
        %v5109 = vrot.slane %v5107, 5
        %v5110 = vsel %vm419, %v5105, %v5109
        %v5112 = vshrl.u32 %v4937, 16
        %v5114 = vrot.slane %v5112, 4
        %v5115 = vshll.u32 %v4937, 16
        %v5117 = vrot.slane %v5115, 5
        %v5118 = vor.u32 %v5114, %v5117
        %v5119 = vrot.slane %v5118, 4
        %v5121 = vshll.u32 %v4938, 16
        %v5123 = vrot.slane %v5121, 5
        %v5124 = vsel %vm419, %v5119, %v5123
        %v5125 = vshrl.u32 %v4938, 16
        %v5127 = vrot.slane %v5125, 4
        %v5128 = vor.u32 %v5127, %v5123
        %v5129 = vrot.slane %v5128, 4
        %v5131 = vshll.u32 %v4939, 16
        %v5133 = vrot.slane %v5131, 5
        %v5134 = vsel %vm419, %v5129, %v5133
        %v5136 = vshrl.u32 %v4940, 16
        %v5138 = vrot.slane %v5136, 4
        %v5139 = vshll.u32 %v4940, 16
        %v5141 = vrot.slane %v5139, 5
        %v5142 = vor.u32 %v5138, %v5141
        %v5143 = vrot.slane %v5142, 4
        %v5145 = vshll.u32 %v4941, 16
        %v5147 = vrot.slane %v5145, 5
        %v5148 = vsel %vm419, %v5143, %v5147
        %v5149 = vshrl.u32 %v4941, 16
        %v5151 = vrot.slane %v5149, 4
        %v5152 = vor.u32 %v5151, %v5147
        %v5153 = vrot.slane %v5152, 4
        %v5155 = vshll.u32 %v4942, 16
        %v5157 = vrot.slane %v5155, 5
        %v5158 = vsel %vm419, %v5153, %v5157
        %v5160 = vshrl.u32 %v4943, 16
        %v5162 = vrot.slane %v5160, 4
        %v5163 = vshll.u32 %v4943, 16
        %v5165 = vrot.slane %v5163, 5
        %v5166 = vor.u32 %v5162, %v5165
        %v5167 = vrot.slane %v5166, 4
        %v5169 = vshll.u32 %v4944, 16
        %v5171 = vrot.slane %v5169, 5
        %v5172 = vsel %vm419, %v5167, %v5171
        %v5173 = vshrl.u32 %v4944, 16
        %v5175 = vrot.slane %v5173, 4
        %v5176 = vor.u32 %v5175, %v5171
        %v5177 = vrot.slane %v5176, 4
        %v5179 = vshll.u32 %v4945, 16
        %v5181 = vrot.slane %v5179, 5
        %v5182 = vsel %vm419, %v5177, %v5181
        %v5184 = vshrl.u32 %v4946, 16
        %v5186 = vrot.slane %v5184, 4
        %v5187 = vshll.u32 %v4946, 16
        %v5189 = vrot.slane %v5187, 5
        %v5190 = vor.u32 %v5186, %v5189
        %v5191 = vrot.slane %v5190, 4
        %v5193 = vshll.u32 %v4947, 16
        %v5195 = vrot.slane %v5193, 5
        %v5196 = vsel %vm419, %v5191, %v5195
        %v5197 = vshrl.u32 %v4947, 16
        %v5199 = vrot.slane %v5197, 4
        %v5200 = vor.u32 %v5199, %v5195
        %v5201 = vrot.slane %v5200, 4
        %v5203 = vshll.u32 %v4948, 16
        %v5205 = vrot.slane %v5203, 5
        %v5206 = vsel %vm419, %v5201, %v5205
        %v5208 = vshrl.u32 %v4949, 16
        %v5210 = vrot.slane %v5208, 4
        %v5211 = vshll.u32 %v4949, 16
        %v5213 = vrot.slane %v5211, 5
        %v5214 = vor.u32 %v5210, %v5213
        %v5215 = vrot.slane %v5214, 4
        %v5217 = vshll.u32 %v4950, 16
        %v5219 = vrot.slane %v5217, 5
        %v5220 = vsel %vm419, %v5215, %v5219
        %v5221 = vshrl.u32 %v4950, 16
        %v5223 = vrot.slane %v5221, 4
        %v5224 = vor.u32 %v5223, %v5219
        %v5225 = vrot.slane %v5224, 4
        %v5227 = vshll.u32 %v4951, 16
        %v5229 = vrot.slane %v5227, 5
        %v5230 = vsel %vm419, %v5225, %v5229
        %v5232 = vshrl.u32 %v4952, 16
        %v5234 = vrot.slane %v5232, 4
        %v5235 = vshll.u32 %v4952, 16
        %v5237 = vrot.slane %v5235, 5
        %v5238 = vor.u32 %v5234, %v5237
        %v5239 = vrot.slane %v5238, 4
        %v5241 = vshll.u32 %v4953, 16
        %v5243 = vrot.slane %v5241, 5
        %v5244 = vsel %vm419, %v5239, %v5243
        %v5245 = vshrl.u32 %v4953, 16
        %v5247 = vrot.slane %v5245, 4
        %v5248 = vor.u32 %v5247, %v5243
        %v5249 = vrot.slane %v5248, 4
        %v5251 = vshll.u32 %v4954, 16
        %v5253 = vrot.slane %v5251, 5
        %v5254 = vsel %vm419, %v5249, %v5253
        %v5256 = vshrl.u32 %v4955, 16
        %v5258 = vrot.slane %v5256, 4
        %v5259 = vshll.u32 %v4955, 16
        %v5261 = vrot.slane %v5259, 5
        %v5262 = vor.u32 %v5258, %v5261
        %v5263 = vrot.slane %v5262, 4
        %v5265 = vshll.u32 %v4956, 16
        %v5267 = vrot.slane %v5265, 5
        %v5268 = vsel %vm419, %v5263, %v5267
        %v5269 = vshrl.u32 %v4956, 16
        %v5271 = vrot.slane %v5269, 4
        %v5272 = vor.u32 %v5271, %v5267
        %v5273 = vrot.slane %v5272, 4
        %v5275 = vshll.u32 %v4957, 16
        %v5277 = vrot.slane %v5275, 5
        %v5278 = vsel %vm419, %v5273, %v5277
        %v5280 = vshrl.u32 %v4958, 16
        %v5282 = vrot.slane %v5280, 4
        %v5283 = vshll.u32 %v4958, 16
        %v5285 = vrot.slane %v5283, 5
        %v5286 = vor.u32 %v5282, %v5285
        %v5287 = vrot.slane %v5286, 4
        %v5289 = vshll.u32 %v4959, 16
        %v5291 = vrot.slane %v5289, 5
        %v5292 = vsel %vm419, %v5287, %v5291
        %v5293 = vshrl.u32 %v4959, 16
        %v5295 = vrot.slane %v5293, 4
        %v5296 = vor.u32 %v5295, %v5291
        %v5297 = vrot.slane %v5296, 4
        %v5299 = vshll.u32 %v4960, 16
        %v5301 = vrot.slane %v5299, 5
        %v5302 = vsel %vm419, %v5297, %v5301
        %v5304 = vshrl.u32 %v4961, 16
        %v5306 = vrot.slane %v5304, 4
        %v5307 = vshll.u32 %v4961, 16
        %v5309 = vrot.slane %v5307, 5
        %v5310 = vor.u32 %v5306, %v5309
        %v5311 = vrot.slane %v5310, 4
        %v5313 = vshll.u32 %v4962, 16
        %v5315 = vrot.slane %v5313, 5
        %v5316 = vsel %vm419, %v5311, %v5315
        %v5317 = vshrl.u32 %v4962, 16
        %v5319 = vrot.slane %v5317, 4
        %v5320 = vor.u32 %v5319, %v5315
        %v5321 = vrot.slane %v5320, 4
        %v5323 = vshll.u32 %v4963, 16
        %v5325 = vrot.slane %v5323, 5
        %v5326 = vsel %vm419, %v5321, %v5325
        %v5328 = vshrl.u32 %v4964, 16
        %v5330 = vrot.slane %v5328, 4
        %v5331 = vshll.u32 %v4964, 16
        %v5333 = vrot.slane %v5331, 5
        %v5334 = vor.u32 %v5330, %v5333
        %v5335 = vrot.slane %v5334, 4
        %v5337 = vshll.u32 %v4965, 16
        %v5339 = vrot.slane %v5337, 5
        %v5340 = vsel %vm419, %v5335, %v5339
        %v5341 = vshrl.u32 %v4965, 16
        %v5343 = vrot.slane %v5341, 4
        %v5344 = vor.u32 %v5343, %v5339
        %v5345 = vrot.slane %v5344, 4
        %v5347 = vshll.u32 %v4966, 16
        %v5349 = vrot.slane %v5347, 5
        %v5350 = vsel %vm419, %v5345, %v5349
        %v5351 = vunpack.c.l.b16 %v4980
        %v5352 = vunpack.c.l.b16 %v4990
        %v5353 = vunpack.c.l.b16 %v5004
        %v5354 = vunpack.c.l.b16 %v5014
        %v5355 = vunpack.c.l.b16 %v5028
        %v5356 = vunpack.c.l.b16 %v5038
        %v5357 = vunpack.c.l.b16 %v5052
        %v5358 = vunpack.c.l.b16 %v5062
        %v5359 = vunpack.c.l.b16 %v5076
        %v5360 = vunpack.c.l.b16 %v5086
        %v5361 = vunpack.c.l.b16 %v5100
        %v5362 = vunpack.c.l.b16 %v5110
        %v5363 = vunpack.c.l.b16 %v5124
        %v5364 = vunpack.c.l.b16 %v5134
        %v5365 = vunpack.c.l.b16 %v5148
        %v5366 = vunpack.c.l.b16 %v5158
        %v5367 = vunpack.c.l.b16 %v5172
        %v5368 = vunpack.c.l.b16 %v5182
        %v5369 = vunpack.c.l.b16 %v5196
        %v5370 = vunpack.c.l.b16 %v5206
        %v5371 = vunpack.c.l.b16 %v5220
        %v5372 = vunpack.c.l.b16 %v5230
        %v5373 = vunpack.c.l.b16 %v5244
        %v5374 = vunpack.c.l.b16 %v5254
        %v5375 = vunpack.c.l.b16 %v5268
        %v5376 = vunpack.c.l.b16 %v5278
        %v5377 = vunpack.c.l.b16 %v5292
        %v5378 = vunpack.c.l.b16 %v5302
        %v5379 = vunpack.c.l.b16 %v5316
        %v5380 = vunpack.c.l.b16 %v5326
        %v5381 = vunpack.c.l.b16 %v5340
        %v5382 = vunpack.c.l.b16 %v5350
        %v5383 = vpack.c.b16 %v5352, %v5351
        %v5384 = vpack.c.b16 %v5354, %v5353
        %v5385 = vpack.c.b16 %v5356, %v5355
        %v5386 = vpack.c.b16 %v5358, %v5357
        %v5387 = vpack.c.b16 %v5360, %v5359
        %v5388 = vpack.c.b16 %v5362, %v5361
        %v5389 = vpack.c.b16 %v5364, %v5363
        %v5390 = vpack.c.b16 %v5366, %v5365
        %v5391 = vpack.c.b16 %v5368, %v5367
        %v5392 = vpack.c.b16 %v5370, %v5369
        %v5393 = vpack.c.b16 %v5372, %v5371
        %v5394 = vpack.c.b16 %v5374, %v5373
        %v5395 = vpack.c.b16 %v5376, %v5375
        %v5396 = vpack.c.b16 %v5378, %v5377
        %v5397 = vpack.c.b16 %v5380, %v5379
        %v5398 = vpack.c.b16 %v5382, %v5381
        %5399 = vrot.lane.b32.xlu0 %v5383, 64
        %v5400 = vpop.permute.xlu0 %5399
        %5401 = vrot.lane.b32.xlu0 %v5384, 64
        %v5402 = vpop.permute.xlu0 %5401
        %5403 = vrot.lane.b32.xlu0 %v5385, 64
        %v5404 = vpop.permute.xlu0 %5403
        %5405 = vrot.lane.b32.xlu0 %v5386, 64
        %v5406 = vpop.permute.xlu0 %5405
        %5407 = vrot.lane.b32.xlu0 %v5387, 64
        %v5408 = vpop.permute.xlu0 %5407
        %5409 = vrot.lane.b32.xlu0 %v5388, 64
        %v5410 = vpop.permute.xlu0 %5409
        %5411 = vrot.lane.b32.xlu0 %v5389, 64
        %v5412 = vpop.permute.xlu0 %5411
        %5413 = vrot.lane.b32.xlu0 %v5390, 64
        %v5414 = vpop.permute.xlu0 %5413
        %5415 = vrot.lane.b32.xlu0 %v5391, 64
        %v5416 = vpop.permute.xlu0 %5415
        %5417 = vrot.lane.b32.xlu0 %v5392, 64
        %v5418 = vpop.permute.xlu0 %5417
        %5419 = vrot.lane.b32.xlu0 %v5393, 64
        %v5420 = vpop.permute.xlu0 %5419
        %5421 = vrot.lane.b32.xlu0 %v5394, 64
        %v5422 = vpop.permute.xlu0 %5421
        %5423 = vrot.lane.b32.xlu0 %v5395, 64
        %v5424 = vpop.permute.xlu0 %5423
        %5425 = vrot.lane.b32.xlu0 %v5396, 64
        %v5426 = vpop.permute.xlu0 %5425
        %5427 = vrot.lane.b32.xlu0 %v5397, 64
        %v5428 = vpop.permute.xlu0 %5427
        %5429 = vrot.lane.b32.xlu0 %v5398, 64
        %v5430 = vpop.permute.xlu0 %5429
        %5447 = vst.msk [vmem:[#allocation2] sm:$0xff] %vm900, %v5400
        %5448 = vst.msk [vmem:[#allocation2 + $0x28] sm:$0xff] %vm900, %v5402
        %5449 = vst.msk [vmem:[#allocation2 + $0x50] sm:$0xff] %vm900, %v5404
        %5450 = vst.msk [vmem:[#allocation2 + $0x78] sm:$0xff] %vm900, %v5406
        %5451 = vst.msk [vmem:[#allocation2 + $0xa0] sm:$0xff] %vm900, %v5408
        %5452 = vst.msk [vmem:[#allocation2 + $0xc8] sm:$0xff] %vm900, %v5410
        %5453 = vst.msk [vmem:[#allocation2 + $0xf0] sm:$0xff] %vm900, %v5412
        %5454 = vst.msk [vmem:[#allocation2 + $0x118] sm:$0xff] %vm900, %v5414
        %5455 = vst.msk [vmem:[#allocation2 + $0x140] sm:$0xff] %vm900, %v5416
        %5456 = vst.msk [vmem:[#allocation2 + $0x168] sm:$0xff] %vm900, %v5418
        %5457 = vst.msk [vmem:[#allocation2 + $0x190] sm:$0xff] %vm900, %v5420
        %5458 = vst.msk [vmem:[#allocation2 + $0x1b8] sm:$0xff] %vm900, %v5422
        %5459 = vst.msk [vmem:[#allocation2 + $0x1e0] sm:$0xff] %vm900, %v5424
        %5460 = vst.msk [vmem:[#allocation2 + $0x208] sm:$0xff] %vm900, %v5426
        %5461 = vst.msk [vmem:[#allocation2 + $0x230] sm:$0xff] %vm900, %v5428
        %5462 = vst.msk [vmem:[#allocation2 + $0x258] sm:$0xff] %vm900, %v5430
        %v5463 = vld [vmem:[#allocation3] sm:$0xe]
        %v5464 = vld [vmem:[#allocation3 + $0x4] sm:$0xf]
        %v5465 = vld [vmem:[#allocation3 + $0x8] sm:$0x1]
        %v5466 = vld [vmem:[#allocation3 + $0xc] sm:$0xe]
        %v5467 = vld [vmem:[#allocation3 + $0x10] sm:$0xf]
        %v5468 = vld [vmem:[#allocation3 + $0x14] sm:$0x1]
        %v5469 = vld [vmem:[#allocation3 + $0x18] sm:$0xe]
        %v5470 = vld [vmem:[#allocation3 + $0x1c] sm:$0xf]
        %v5471 = vld [vmem:[#allocation3 + $0x20] sm:$0x1]
        %v5472 = vld [vmem:[#allocation3 + $0x24] sm:$0xe]
        %v5473 = vld [vmem:[#allocation3 + $0x28] sm:$0xf]
        %v5474 = vld [vmem:[#allocation3 + $0x2c] sm:$0x1]
        %v5475 = vld [vmem:[#allocation3 + $0x30] sm:$0xe]
        %v5476 = vld [vmem:[#allocation3 + $0x34] sm:$0xf]
        %v5477 = vld [vmem:[#allocation3 + $0x38] sm:$0x1]
        %v5478 = vld [vmem:[#allocation3 + $0x3c] sm:$0xe]
        %v5479 = vld [vmem:[#allocation3 + $0x40] sm:$0xf]
        %v5480 = vld [vmem:[#allocation3 + $0x44] sm:$0x1]
        %v5481 = vld [vmem:[#allocation3 + $0x48] sm:$0xe]
        %v5482 = vld [vmem:[#allocation3 + $0x4c] sm:$0xf]
        %v5483 = vld [vmem:[#allocation3 + $0x50] sm:$0x1]
        %v5484 = vld [vmem:[#allocation3 + $0x54] sm:$0xe]
        %v5485 = vld [vmem:[#allocation3 + $0x58] sm:$0xf]
        %v5486 = vld [vmem:[#allocation3 + $0x5c] sm:$0x1]
        %v5487 = vld [vmem:[#allocation3 + $0x60] sm:$0xe]
        %v5488 = vld [vmem:[#allocation3 + $0x64] sm:$0xf]
        %v5489 = vld [vmem:[#allocation3 + $0x68] sm:$0x1]
        %v5490 = vld [vmem:[#allocation3 + $0x6c] sm:$0xe]
        %v5491 = vld [vmem:[#allocation3 + $0x70] sm:$0xf]
        %v5492 = vld [vmem:[#allocation3 + $0x74] sm:$0x1]
        %v5493 = vld [vmem:[#allocation3 + $0x78] sm:$0xe]
        %v5494 = vld [vmem:[#allocation3 + $0x7c] sm:$0xf]
        %v5495 = vld [vmem:[#allocation3 + $0x80] sm:$0x1]
        %v5496 = vld [vmem:[#allocation3 + $0x84] sm:$0xe]
        %v5497 = vld [vmem:[#allocation3 + $0x88] sm:$0xf]
        %v5498 = vld [vmem:[#allocation3 + $0x8c] sm:$0x1]
        %v5499 = vld [vmem:[#allocation3 + $0x90] sm:$0xe]
        %v5500 = vld [vmem:[#allocation3 + $0x94] sm:$0xf]
        %v5501 = vld [vmem:[#allocation3 + $0x98] sm:$0x1]
        %v5502 = vld [vmem:[#allocation3 + $0x9c] sm:$0xe]
        %v5503 = vld [vmem:[#allocation3 + $0xa0] sm:$0xf]
        %v5504 = vld [vmem:[#allocation3 + $0xa4] sm:$0x1]
        %v5505 = vld [vmem:[#allocation3 + $0xa8] sm:$0xe]
        %v5506 = vld [vmem:[#allocation3 + $0xac] sm:$0xf]
        %v5507 = vld [vmem:[#allocation3 + $0xb0] sm:$0x1]
        %v5508 = vld [vmem:[#allocation3 + $0xb4] sm:$0xe]
        %v5509 = vld [vmem:[#allocation3 + $0xb8] sm:$0xf]
        %v5510 = vld [vmem:[#allocation3 + $0xbc] sm:$0x1]
        %v5559 = vrot.slane %v5463, 5
        %v5560 = vrot.slane %v5559, 4
        %v5561 = vrot.slane %v5464, 5
        %v5562 = vsel %vm1015, %v5560, %v5561
        %v5563 = vrot.slane %v5561, 4
        %v5564 = vrot.slane %v5465, 5
        %v5565 = vsel %vm1015, %v5563, %v5564
        %v5566 = vrot.slane %v5466, 5
        %v5567 = vrot.slane %v5566, 4
        %v5568 = vrot.slane %v5467, 5
        %v5569 = vsel %vm1015, %v5567, %v5568
        %v5570 = vrot.slane %v5568, 4
        %v5571 = vrot.slane %v5468, 5
        %v5572 = vsel %vm1015, %v5570, %v5571
        %v5573 = vrot.slane %v5469, 5
        %v5574 = vrot.slane %v5573, 4
        %v5575 = vrot.slane %v5470, 5
        %v5576 = vsel %vm1015, %v5574, %v5575
        %v5577 = vrot.slane %v5575, 4
        %v5578 = vrot.slane %v5471, 5
        %v5579 = vsel %vm1015, %v5577, %v5578
        %v5580 = vrot.slane %v5472, 5
        %v5581 = vrot.slane %v5580, 4
        %v5582 = vrot.slane %v5473, 5
        %v5583 = vsel %vm1015, %v5581, %v5582
        %v5584 = vrot.slane %v5582, 4
        %v5585 = vrot.slane %v5474, 5
        %v5586 = vsel %vm1015, %v5584, %v5585
        %v5587 = vrot.slane %v5475, 5
        %v5588 = vrot.slane %v5587, 4
        %v5589 = vrot.slane %v5476, 5
        %v5590 = vsel %vm1015, %v5588, %v5589
        %v5591 = vrot.slane %v5589, 4
        %v5592 = vrot.slane %v5477, 5
        %v5593 = vsel %vm1015, %v5591, %v5592
        %v5594 = vrot.slane %v5478, 5
        %v5595 = vrot.slane %v5594, 4
        %v5596 = vrot.slane %v5479, 5
        %v5597 = vsel %vm1015, %v5595, %v5596
        %v5598 = vrot.slane %v5596, 4
        %v5599 = vrot.slane %v5480, 5
        %v5600 = vsel %vm1015, %v5598, %v5599
        %v5601 = vrot.slane %v5481, 5
        %v5602 = vrot.slane %v5601, 4
        %v5603 = vrot.slane %v5482, 5
        %v5604 = vsel %vm1015, %v5602, %v5603
        %v5605 = vrot.slane %v5603, 4
        %v5606 = vrot.slane %v5483, 5
        %v5607 = vsel %vm1015, %v5605, %v5606
        %v5608 = vrot.slane %v5484, 5
        %v5609 = vrot.slane %v5608, 4
        %v5610 = vrot.slane %v5485, 5
        %v5611 = vsel %vm1015, %v5609, %v5610
        %v5612 = vrot.slane %v5610, 4
        %v5613 = vrot.slane %v5486, 5
        %v5614 = vsel %vm1015, %v5612, %v5613
        %v5615 = vrot.slane %v5487, 5
        %v5616 = vrot.slane %v5615, 4
        %v5617 = vrot.slane %v5488, 5
        %v5618 = vsel %vm1015, %v5616, %v5617
        %v5619 = vrot.slane %v5617, 4
        %v5620 = vrot.slane %v5489, 5
        %v5621 = vsel %vm1015, %v5619, %v5620
        %v5622 = vrot.slane %v5490, 5
        %v5623 = vrot.slane %v5622, 4
        %v5624 = vrot.slane %v5491, 5
        %v5625 = vsel %vm1015, %v5623, %v5624
        %v5626 = vrot.slane %v5624, 4
        %v5627 = vrot.slane %v5492, 5
        %v5628 = vsel %vm1015, %v5626, %v5627
        %v5629 = vrot.slane %v5493, 5
        %v5630 = vrot.slane %v5629, 4
        %v5631 = vrot.slane %v5494, 5
        %v5632 = vsel %vm1015, %v5630, %v5631
        %v5633 = vrot.slane %v5631, 4
        %v5634 = vrot.slane %v5495, 5
        %v5635 = vsel %vm1015, %v5633, %v5634
        %v5636 = vrot.slane %v5496, 5
        %v5637 = vrot.slane %v5636, 4
        %v5638 = vrot.slane %v5497, 5
        %v5639 = vsel %vm1015, %v5637, %v5638
        %v5640 = vrot.slane %v5638, 4
        %v5641 = vrot.slane %v5498, 5
        %v5642 = vsel %vm1015, %v5640, %v5641
        %v5643 = vrot.slane %v5499, 5
        %v5644 = vrot.slane %v5643, 4
        %v5645 = vrot.slane %v5500, 5
        %v5646 = vsel %vm1015, %v5644, %v5645
        %v5647 = vrot.slane %v5645, 4
        %v5648 = vrot.slane %v5501, 5
        %v5649 = vsel %vm1015, %v5647, %v5648
        %v5650 = vrot.slane %v5502, 5
        %v5651 = vrot.slane %v5650, 4
        %v5652 = vrot.slane %v5503, 5
        %v5653 = vsel %vm1015, %v5651, %v5652
        %v5654 = vrot.slane %v5652, 4
        %v5655 = vrot.slane %v5504, 5
        %v5656 = vsel %vm1015, %v5654, %v5655
        %v5657 = vrot.slane %v5505, 5
        %v5658 = vrot.slane %v5657, 4
        %v5659 = vrot.slane %v5506, 5
        %v5660 = vsel %vm1015, %v5658, %v5659
        %v5661 = vrot.slane %v5659, 4
        %v5662 = vrot.slane %v5507, 5
        %v5663 = vsel %vm1015, %v5661, %v5662
        %v5664 = vrot.slane %v5508, 5
        %v5665 = vrot.slane %v5664, 4
        %v5666 = vrot.slane %v5509, 5
        %v5667 = vsel %vm1015, %v5665, %v5666
        %v5668 = vrot.slane %v5666, 4
        %v5669 = vrot.slane %v5510, 5
        %v5670 = vsel %vm1015, %v5668, %v5669
        %v5671 = vunpack.c.l.b16 %v5562
        %v5672 = vunpack.c.l.b16 %v5565
        %v5673 = vunpack.c.l.b16 %v5569
        %v5674 = vunpack.c.l.b16 %v5572
        %v5675 = vunpack.c.l.b16 %v5576
        %v5676 = vunpack.c.l.b16 %v5579
        %v5677 = vunpack.c.l.b16 %v5583
        %v5678 = vunpack.c.l.b16 %v5586
        %v5679 = vunpack.c.l.b16 %v5590
        %v5680 = vunpack.c.l.b16 %v5593
        %v5681 = vunpack.c.l.b16 %v5597
        %v5682 = vunpack.c.l.b16 %v5600
        %v5683 = vunpack.c.l.b16 %v5604
        %v5684 = vunpack.c.l.b16 %v5607
        %v5685 = vunpack.c.l.b16 %v5611
        %v5686 = vunpack.c.l.b16 %v5614
        %v5687 = vunpack.c.l.b16 %v5618
        %v5688 = vunpack.c.l.b16 %v5621
        %v5689 = vunpack.c.l.b16 %v5625
        %v5690 = vunpack.c.l.b16 %v5628
        %v5691 = vunpack.c.l.b16 %v5632
        %v5692 = vunpack.c.l.b16 %v5635
        %v5693 = vunpack.c.l.b16 %v5639
        %v5694 = vunpack.c.l.b16 %v5642
        %v5695 = vunpack.c.l.b16 %v5646
        %v5696 = vunpack.c.l.b16 %v5649
        %v5697 = vunpack.c.l.b16 %v5653
        %v5698 = vunpack.c.l.b16 %v5656
        %v5699 = vunpack.c.l.b16 %v5660
        %v5700 = vunpack.c.l.b16 %v5663
        %v5701 = vunpack.c.l.b16 %v5667
        %v5702 = vunpack.c.l.b16 %v5670
        %v5703 = vpack.c.b16 %v5672, %v5671
        %v5704 = vpack.c.b16 %v5674, %v5673
        %v5705 = vpack.c.b16 %v5676, %v5675
        %v5706 = vpack.c.b16 %v5678, %v5677
        %v5707 = vpack.c.b16 %v5680, %v5679
        %v5708 = vpack.c.b16 %v5682, %v5681
        %v5709 = vpack.c.b16 %v5684, %v5683
        %v5710 = vpack.c.b16 %v5686, %v5685
        %v5711 = vpack.c.b16 %v5688, %v5687
        %v5712 = vpack.c.b16 %v5690, %v5689
        %v5713 = vpack.c.b16 %v5692, %v5691
        %v5714 = vpack.c.b16 %v5694, %v5693
        %v5715 = vpack.c.b16 %v5696, %v5695
        %v5716 = vpack.c.b16 %v5698, %v5697
        %v5717 = vpack.c.b16 %v5700, %v5699
        %v5718 = vpack.c.b16 %v5702, %v5701
        %5735 = vst.msk [vmem:[#allocation2 + $0x8] sm:$0xff] %vm352, %v5703
        %5736 = vst.msk [vmem:[#allocation2 + $0x30] sm:$0xff] %vm352, %v5704
        %5737 = vst.msk [vmem:[#allocation2 + $0x58] sm:$0xff] %vm352, %v5705
        %5738 = vst.msk [vmem:[#allocation2 + $0x80] sm:$0xff] %vm352, %v5706
        %5739 = vst.msk [vmem:[#allocation2 + $0xa8] sm:$0xff] %vm352, %v5707
        %5740 = vst.msk [vmem:[#allocation2 + $0xd0] sm:$0xff] %vm352, %v5708
        %5741 = vst.msk [vmem:[#allocation2 + $0xf8] sm:$0xff] %vm352, %v5709
        %5742 = vst.msk [vmem:[#allocation2 + $0x120] sm:$0xff] %vm352, %v5710
        %5743 = vst.msk [vmem:[#allocation2 + $0x148] sm:$0xff] %vm352, %v5711
        %5744 = vst.msk [vmem:[#allocation2 + $0x170] sm:$0xff] %vm352, %v5712
        %5745 = vst.msk [vmem:[#allocation2 + $0x198] sm:$0xff] %vm352, %v5713
        %5746 = vst.msk [vmem:[#allocation2 + $0x1c0] sm:$0xff] %vm352, %v5714
        %5747 = vst.msk [vmem:[#allocation2 + $0x1e8] sm:$0xff] %vm352, %v5715
        %5748 = vst.msk [vmem:[#allocation2 + $0x210] sm:$0xff] %vm352, %v5716
        %5749 = vst.msk [vmem:[#allocation2 + $0x238] sm:$0xff] %vm352, %v5717
        %5750 = vst.msk [vmem:[#allocation2 + $0x260] sm:$0xff] %vm352, %v5718
        %v5751 = vld [vmem:[%s4157] sm:$0xf]
        %v5752 = vld [vmem:[%s4157 + $0x4] sm:$0xf]
        %v5753 = vld [vmem:[%s4157 + $0xc] sm:$0xf]
        %v5754 = vld [vmem:[%s4157 + $0x10] sm:$0xf]
        %v5755 = vld [vmem:[%s4157 + $0x18] sm:$0xf]
        %v5756 = vld [vmem:[%s4157 + $0x1c] sm:$0xf]
        %v5757 = vld [vmem:[%s4157 + $0x24] sm:$0xf]
        %v5758 = vld [vmem:[%s4157 + $0x28] sm:$0xf]
        %v5759 = vld [vmem:[%s4157 + $0x30] sm:$0xf]
        %v5760 = vld [vmem:[%s4157 + $0x34] sm:$0xf]
        %v5761 = vld [vmem:[%s4157 + $0x3c] sm:$0xf]
        %v5762 = vld [vmem:[%s4157 + $0x40] sm:$0xf]
        %v5763 = vld [vmem:[%s4157 + $0x48] sm:$0xf]
        %v5764 = vld [vmem:[%s4157 + $0x4c] sm:$0xf]
        %v5765 = vld [vmem:[%s4157 + $0x54] sm:$0xf]
        %v5766 = vld [vmem:[%s4157 + $0x58] sm:$0xf]
        %v5767 = vld [vmem:[%s4157 + $0x60] sm:$0xf]
        %v5768 = vld [vmem:[%s4157 + $0x64] sm:$0xf]
        %v5769 = vld [vmem:[%s4157 + $0x6c] sm:$0xf]
        %v5770 = vld [vmem:[%s4157 + $0x70] sm:$0xf]
        %v5771 = vld [vmem:[%s4157 + $0x78] sm:$0xf]
        %v5772 = vld [vmem:[%s4157 + $0x7c] sm:$0xf]
        %v5773 = vld [vmem:[%s4157 + $0x84] sm:$0xf]
        %v5774 = vld [vmem:[%s4157 + $0x88] sm:$0xf]
        %v5775 = vld [vmem:[%s4157 + $0x90] sm:$0xf]
        %v5776 = vld [vmem:[%s4157 + $0x94] sm:$0xf]
        %v5777 = vld [vmem:[%s4157 + $0x9c] sm:$0xf]
        %v5778 = vld [vmem:[%s4157 + $0xa0] sm:$0xf]
        %v5779 = vld [vmem:[%s4157 + $0xa8] sm:$0xf]
        %v5780 = vld [vmem:[%s4157 + $0xac] sm:$0xf]
        %v5781 = vld [vmem:[%s4157 + $0xb4] sm:$0xf]
        %v5782 = vld [vmem:[%s4157 + $0xb8] sm:$0xf]
        %v5815 = vunpack.c.l.b16 %v5751
        %v5816 = vunpack.c.l.b16 %v5752
        %v5817 = vunpack.c.l.b16 %v5753
        %v5818 = vunpack.c.l.b16 %v5754
        %v5819 = vunpack.c.l.b16 %v5755
        %v5820 = vunpack.c.l.b16 %v5756
        %v5821 = vunpack.c.l.b16 %v5757
        %v5822 = vunpack.c.l.b16 %v5758
        %v5823 = vunpack.c.l.b16 %v5759
        %v5824 = vunpack.c.l.b16 %v5760
        %v5825 = vunpack.c.l.b16 %v5761
        %v5826 = vunpack.c.l.b16 %v5762
        %v5827 = vunpack.c.l.b16 %v5763
        %v5828 = vunpack.c.l.b16 %v5764
        %v5829 = vunpack.c.l.b16 %v5765
        %v5830 = vunpack.c.l.b16 %v5766
        %v5831 = vunpack.c.l.b16 %v5767
        %v5832 = vunpack.c.l.b16 %v5768
        %v5833 = vunpack.c.l.b16 %v5769
        %v5834 = vunpack.c.l.b16 %v5770
        %v5835 = vunpack.c.l.b16 %v5771
        %v5836 = vunpack.c.l.b16 %v5772
        %v5837 = vunpack.c.l.b16 %v5773
        %v5838 = vunpack.c.l.b16 %v5774
        %v5839 = vunpack.c.l.b16 %v5775
        %v5840 = vunpack.c.l.b16 %v5776
        %v5841 = vunpack.c.l.b16 %v5777
        %v5842 = vunpack.c.l.b16 %v5778
        %v5843 = vunpack.c.l.b16 %v5779
        %v5844 = vunpack.c.l.b16 %v5780
        %v5845 = vunpack.c.l.b16 %v5781
        %v5846 = vunpack.c.l.b16 %v5782
        %v5847 = vpack.c.b16 %v5816, %v5815
        %v5848 = vpack.c.b16 %v5818, %v5817
        %v5849 = vpack.c.b16 %v5820, %v5819
        %v5850 = vpack.c.b16 %v5822, %v5821
        %v5851 = vpack.c.b16 %v5824, %v5823
        %v5852 = vpack.c.b16 %v5826, %v5825
        %v5853 = vpack.c.b16 %v5828, %v5827
        %v5854 = vpack.c.b16 %v5830, %v5829
        %v5855 = vpack.c.b16 %v5832, %v5831
        %v5856 = vpack.c.b16 %v5834, %v5833
        %v5857 = vpack.c.b16 %v5836, %v5835
        %v5858 = vpack.c.b16 %v5838, %v5837
        %v5859 = vpack.c.b16 %v5840, %v5839
        %v5860 = vpack.c.b16 %v5842, %v5841
        %v5861 = vpack.c.b16 %v5844, %v5843
        %v5862 = vpack.c.b16 %v5846, %v5845
        %5863 = vrot.lane.b32.xlu0 %v5847, 64
        %v5864 = vpop.permute.xlu0 %5863
        %5865 = vrot.lane.b32.xlu0 %v5848, 64
        %v5866 = vpop.permute.xlu0 %5865
        %5867 = vrot.lane.b32.xlu0 %v5849, 64
        %v5868 = vpop.permute.xlu0 %5867
        %5869 = vrot.lane.b32.xlu0 %v5850, 64
        %v5870 = vpop.permute.xlu0 %5869
        %5871 = vrot.lane.b32.xlu0 %v5851, 64
        %v5872 = vpop.permute.xlu0 %5871
        %5873 = vrot.lane.b32.xlu0 %v5852, 64
        %v5874 = vpop.permute.xlu0 %5873
        %5875 = vrot.lane.b32.xlu0 %v5853, 64
        %v5876 = vpop.permute.xlu0 %5875
        %5877 = vrot.lane.b32.xlu0 %v5854, 64
        %v5878 = vpop.permute.xlu0 %5877
        %5879 = vrot.lane.b32.xlu0 %v5855, 64
        %v5880 = vpop.permute.xlu0 %5879
        %5881 = vrot.lane.b32.xlu0 %v5856, 64
        %v5882 = vpop.permute.xlu0 %5881
        %5883 = vrot.lane.b32.xlu0 %v5857, 64
        %v5884 = vpop.permute.xlu0 %5883
        %5885 = vrot.lane.b32.xlu0 %v5858, 64
        %v5886 = vpop.permute.xlu0 %5885
        %5887 = vrot.lane.b32.xlu0 %v5859, 64
        %v5888 = vpop.permute.xlu0 %5887
        %5889 = vrot.lane.b32.xlu0 %v5860, 64
        %v5890 = vpop.permute.xlu0 %5889
        %5891 = vrot.lane.b32.xlu0 %v5861, 64
        %v5892 = vpop.permute.xlu0 %5891
        %5893 = vrot.lane.b32.xlu0 %v5862, 64
        %v5894 = vpop.permute.xlu0 %5893
        %5911 = vst.msk [vmem:[#allocation2 + $0x8] sm:$0xff] %vm900, %v5864
        %5912 = vst.msk [vmem:[#allocation2 + $0x30] sm:$0xff] %vm900, %v5866
        %5913 = vst.msk [vmem:[#allocation2 + $0x58] sm:$0xff] %vm900, %v5868
        %5914 = vst.msk [vmem:[#allocation2 + $0x80] sm:$0xff] %vm900, %v5870
        %5915 = vst.msk [vmem:[#allocation2 + $0xa8] sm:$0xff] %vm900, %v5872
        %5916 = vst.msk [vmem:[#allocation2 + $0xd0] sm:$0xff] %vm900, %v5874
        %5917 = vst.msk [vmem:[#allocation2 + $0xf8] sm:$0xff] %vm900, %v5876
        %5918 = vst.msk [vmem:[#allocation2 + $0x120] sm:$0xff] %vm900, %v5878
        %5919 = vst.msk [vmem:[#allocation2 + $0x148] sm:$0xff] %vm900, %v5880
        %5920 = vst.msk [vmem:[#allocation2 + $0x170] sm:$0xff] %vm900, %v5882
        %5921 = vst.msk [vmem:[#allocation2 + $0x198] sm:$0xff] %vm900, %v5884
        %5922 = vst.msk [vmem:[#allocation2 + $0x1c0] sm:$0xff] %vm900, %v5886
        %5923 = vst.msk [vmem:[#allocation2 + $0x1e8] sm:$0xff] %vm900, %v5888
        %5924 = vst.msk [vmem:[#allocation2 + $0x210] sm:$0xff] %vm900, %v5890
        %5925 = vst.msk [vmem:[#allocation2 + $0x238] sm:$0xff] %vm900, %v5892
        %5926 = vst.msk [vmem:[#allocation2 + $0x260] sm:$0xff] %vm900, %v5894
        %v5927 = vld [vmem:[%s4157] sm:$0xf]
        %v5928 = vld [vmem:[%s4157 + $0x4] sm:$0xf]
        %v5929 = vld [vmem:[%s4157 + $0x8] sm:$0x1]
        %v5930 = vld [vmem:[%s4157 + $0xc] sm:$0xf]
        %v5931 = vld [vmem:[%s4157 + $0x10] sm:$0xf]
        %v5932 = vld [vmem:[%s4157 + $0x14] sm:$0x1]
        %v5933 = vld [vmem:[%s4157 + $0x18] sm:$0xf]
        %v5934 = vld [vmem:[%s4157 + $0x1c] sm:$0xf]
        %v5935 = vld [vmem:[%s4157 + $0x20] sm:$0x1]
        %v5936 = vld [vmem:[%s4157 + $0x24] sm:$0xf]
        %v5937 = vld [vmem:[%s4157 + $0x28] sm:$0xf]
        %v5938 = vld [vmem:[%s4157 + $0x2c] sm:$0x1]
        %v5939 = vld [vmem:[%s4157 + $0x30] sm:$0xf]
        %v5940 = vld [vmem:[%s4157 + $0x34] sm:$0xf]
        %v5941 = vld [vmem:[%s4157 + $0x38] sm:$0x1]
        %v5942 = vld [vmem:[%s4157 + $0x3c] sm:$0xf]
        %v5943 = vld [vmem:[%s4157 + $0x40] sm:$0xf]
        %v5944 = vld [vmem:[%s4157 + $0x44] sm:$0x1]
        %v5945 = vld [vmem:[%s4157 + $0x48] sm:$0xf]
        %v5946 = vld [vmem:[%s4157 + $0x4c] sm:$0xf]
        %v5947 = vld [vmem:[%s4157 + $0x50] sm:$0x1]
        %v5948 = vld [vmem:[%s4157 + $0x54] sm:$0xf]
        %v5949 = vld [vmem:[%s4157 + $0x58] sm:$0xf]
        %v5950 = vld [vmem:[%s4157 + $0x5c] sm:$0x1]
        %v5951 = vld [vmem:[%s4157 + $0x60] sm:$0xf]
        %v5952 = vld [vmem:[%s4157 + $0x64] sm:$0xf]
        %v5953 = vld [vmem:[%s4157 + $0x68] sm:$0x1]
        %v5954 = vld [vmem:[%s4157 + $0x6c] sm:$0xf]
        %v5955 = vld [vmem:[%s4157 + $0x70] sm:$0xf]
        %v5956 = vld [vmem:[%s4157 + $0x74] sm:$0x1]
        %v5957 = vld [vmem:[%s4157 + $0x78] sm:$0xf]
        %v5958 = vld [vmem:[%s4157 + $0x7c] sm:$0xf]
        %v5959 = vld [vmem:[%s4157 + $0x80] sm:$0x1]
        %v5960 = vld [vmem:[%s4157 + $0x84] sm:$0xf]
        %v5961 = vld [vmem:[%s4157 + $0x88] sm:$0xf]
        %v5962 = vld [vmem:[%s4157 + $0x8c] sm:$0x1]
        %v5963 = vld [vmem:[%s4157 + $0x90] sm:$0xf]
        %v5964 = vld [vmem:[%s4157 + $0x94] sm:$0xf]
        %v5965 = vld [vmem:[%s4157 + $0x98] sm:$0x1]
        %v5966 = vld [vmem:[%s4157 + $0x9c] sm:$0xf]
        %v5967 = vld [vmem:[%s4157 + $0xa0] sm:$0xf]
        %v5968 = vld [vmem:[%s4157 + $0xa4] sm:$0x1]
        %v5969 = vld [vmem:[%s4157 + $0xa8] sm:$0xf]
        %v5970 = vld [vmem:[%s4157 + $0xac] sm:$0xf]
        %v5971 = vld [vmem:[%s4157 + $0xb0] sm:$0x1]
        %v5972 = vld [vmem:[%s4157 + $0xb4] sm:$0xf]
        %v5973 = vld [vmem:[%s4157 + $0xb8] sm:$0xf]
        %v5974 = vld [vmem:[%s4157 + $0xbc] sm:$0x1]
        %v5976 = vshrl.u32 %v5927, 16
        %v5978 = vrot.slane %v5976, 4
        %v5979 = vshll.u32 %v5927, 16
        %v5981 = vrot.slane %v5979, 5
        %v5982 = vor.u32 %v5978, %v5981
        %v5983 = vrot.slane %v5982, 4
        %v5985 = vshll.u32 %v5928, 16
        %v5987 = vrot.slane %v5985, 5
        %v5988 = vsel %vm419, %v5983, %v5987
        %v5989 = vshrl.u32 %v5928, 16
        %v5991 = vrot.slane %v5989, 4
        %v5992 = vor.u32 %v5991, %v5987
        %v5993 = vrot.slane %v5992, 4
        %v5995 = vshll.u32 %v5929, 16
        %v5997 = vrot.slane %v5995, 5
        %v5998 = vsel %vm419, %v5993, %v5997
        %v6000 = vshrl.u32 %v5930, 16
        %v6002 = vrot.slane %v6000, 4
        %v6003 = vshll.u32 %v5930, 16
        %v6005 = vrot.slane %v6003, 5
        %v6006 = vor.u32 %v6002, %v6005
        %v6007 = vrot.slane %v6006, 4
        %v6009 = vshll.u32 %v5931, 16
        %v6011 = vrot.slane %v6009, 5
        %v6012 = vsel %vm419, %v6007, %v6011
        %v6013 = vshrl.u32 %v5931, 16
        %v6015 = vrot.slane %v6013, 4
        %v6016 = vor.u32 %v6015, %v6011
        %v6017 = vrot.slane %v6016, 4
        %v6019 = vshll.u32 %v5932, 16
        %v6021 = vrot.slane %v6019, 5
        %v6022 = vsel %vm419, %v6017, %v6021
        %v6024 = vshrl.u32 %v5933, 16
        %v6026 = vrot.slane %v6024, 4
        %v6027 = vshll.u32 %v5933, 16
        %v6029 = vrot.slane %v6027, 5
        %v6030 = vor.u32 %v6026, %v6029
        %v6031 = vrot.slane %v6030, 4
        %v6033 = vshll.u32 %v5934, 16
        %v6035 = vrot.slane %v6033, 5
        %v6036 = vsel %vm419, %v6031, %v6035
        %v6037 = vshrl.u32 %v5934, 16
        %v6039 = vrot.slane %v6037, 4
        %v6040 = vor.u32 %v6039, %v6035
        %v6041 = vrot.slane %v6040, 4
        %v6043 = vshll.u32 %v5935, 16
        %v6045 = vrot.slane %v6043, 5
        %v6046 = vsel %vm419, %v6041, %v6045
        %v6048 = vshrl.u32 %v5936, 16
        %v6050 = vrot.slane %v6048, 4
        %v6051 = vshll.u32 %v5936, 16
        %v6053 = vrot.slane %v6051, 5
        %v6054 = vor.u32 %v6050, %v6053
        %v6055 = vrot.slane %v6054, 4
        %v6057 = vshll.u32 %v5937, 16
        %v6059 = vrot.slane %v6057, 5
        %v6060 = vsel %vm419, %v6055, %v6059
        %v6061 = vshrl.u32 %v5937, 16
        %v6063 = vrot.slane %v6061, 4
        %v6064 = vor.u32 %v6063, %v6059
        %v6065 = vrot.slane %v6064, 4
        %v6067 = vshll.u32 %v5938, 16
        %v6069 = vrot.slane %v6067, 5
        %v6070 = vsel %vm419, %v6065, %v6069
        %v6072 = vshrl.u32 %v5939, 16
        %v6074 = vrot.slane %v6072, 4
        %v6075 = vshll.u32 %v5939, 16
        %v6077 = vrot.slane %v6075, 5
        %v6078 = vor.u32 %v6074, %v6077
        %v6079 = vrot.slane %v6078, 4
        %v6081 = vshll.u32 %v5940, 16
        %v6083 = vrot.slane %v6081, 5
        %v6084 = vsel %vm419, %v6079, %v6083
        %v6085 = vshrl.u32 %v5940, 16
        %v6087 = vrot.slane %v6085, 4
        %v6088 = vor.u32 %v6087, %v6083
        %v6089 = vrot.slane %v6088, 4
        %v6091 = vshll.u32 %v5941, 16
        %v6093 = vrot.slane %v6091, 5
        %v6094 = vsel %vm419, %v6089, %v6093
        %v6096 = vshrl.u32 %v5942, 16
        %v6098 = vrot.slane %v6096, 4
        %v6099 = vshll.u32 %v5942, 16
        %v6101 = vrot.slane %v6099, 5
        %v6102 = vor.u32 %v6098, %v6101
        %v6103 = vrot.slane %v6102, 4
        %v6105 = vshll.u32 %v5943, 16
        %v6107 = vrot.slane %v6105, 5
        %v6108 = vsel %vm419, %v6103, %v6107
        %v6109 = vshrl.u32 %v5943, 16
        %v6111 = vrot.slane %v6109, 4
        %v6112 = vor.u32 %v6111, %v6107
        %v6113 = vrot.slane %v6112, 4
        %v6115 = vshll.u32 %v5944, 16
        %v6117 = vrot.slane %v6115, 5
        %v6118 = vsel %vm419, %v6113, %v6117
        %v6120 = vshrl.u32 %v5945, 16
        %v6122 = vrot.slane %v6120, 4
        %v6123 = vshll.u32 %v5945, 16
        %v6125 = vrot.slane %v6123, 5
        %v6126 = vor.u32 %v6122, %v6125
        %v6127 = vrot.slane %v6126, 4
        %v6129 = vshll.u32 %v5946, 16
        %v6131 = vrot.slane %v6129, 5
        %v6132 = vsel %vm419, %v6127, %v6131
        %v6133 = vshrl.u32 %v5946, 16
        %v6135 = vrot.slane %v6133, 4
        %v6136 = vor.u32 %v6135, %v6131
        %v6137 = vrot.slane %v6136, 4
        %v6139 = vshll.u32 %v5947, 16
        %v6141 = vrot.slane %v6139, 5
        %v6142 = vsel %vm419, %v6137, %v6141
        %v6144 = vshrl.u32 %v5948, 16
        %v6146 = vrot.slane %v6144, 4
        %v6147 = vshll.u32 %v5948, 16
        %v6149 = vrot.slane %v6147, 5
        %v6150 = vor.u32 %v6146, %v6149
        %v6151 = vrot.slane %v6150, 4
        %v6153 = vshll.u32 %v5949, 16
        %v6155 = vrot.slane %v6153, 5
        %v6156 = vsel %vm419, %v6151, %v6155
        %v6157 = vshrl.u32 %v5949, 16
        %v6159 = vrot.slane %v6157, 4
        %v6160 = vor.u32 %v6159, %v6155
        %v6161 = vrot.slane %v6160, 4
        %v6163 = vshll.u32 %v5950, 16
        %v6165 = vrot.slane %v6163, 5
        %v6166 = vsel %vm419, %v6161, %v6165
        %v6168 = vshrl.u32 %v5951, 16
        %v6170 = vrot.slane %v6168, 4
        %v6171 = vshll.u32 %v5951, 16
        %v6173 = vrot.slane %v6171, 5
        %v6174 = vor.u32 %v6170, %v6173
        %v6175 = vrot.slane %v6174, 4
        %v6177 = vshll.u32 %v5952, 16
        %v6179 = vrot.slane %v6177, 5
        %v6180 = vsel %vm419, %v6175, %v6179
        %v6181 = vshrl.u32 %v5952, 16
        %v6183 = vrot.slane %v6181, 4
        %v6184 = vor.u32 %v6183, %v6179
        %v6185 = vrot.slane %v6184, 4
        %v6187 = vshll.u32 %v5953, 16
        %v6189 = vrot.slane %v6187, 5
        %v6190 = vsel %vm419, %v6185, %v6189
        %v6192 = vshrl.u32 %v5954, 16
        %v6194 = vrot.slane %v6192, 4
        %v6195 = vshll.u32 %v5954, 16
        %v6197 = vrot.slane %v6195, 5
        %v6198 = vor.u32 %v6194, %v6197
        %v6199 = vrot.slane %v6198, 4
        %v6201 = vshll.u32 %v5955, 16
        %v6203 = vrot.slane %v6201, 5
        %v6204 = vsel %vm419, %v6199, %v6203
        %v6205 = vshrl.u32 %v5955, 16
        %v6207 = vrot.slane %v6205, 4
        %v6208 = vor.u32 %v6207, %v6203
        %v6209 = vrot.slane %v6208, 4
        %v6211 = vshll.u32 %v5956, 16
        %v6213 = vrot.slane %v6211, 5
        %v6214 = vsel %vm419, %v6209, %v6213
        %v6216 = vshrl.u32 %v5957, 16
        %v6218 = vrot.slane %v6216, 4
        %v6219 = vshll.u32 %v5957, 16
        %v6221 = vrot.slane %v6219, 5
        %v6222 = vor.u32 %v6218, %v6221
        %v6223 = vrot.slane %v6222, 4
        %v6225 = vshll.u32 %v5958, 16
        %v6227 = vrot.slane %v6225, 5
        %v6228 = vsel %vm419, %v6223, %v6227
        %v6229 = vshrl.u32 %v5958, 16
        %v6231 = vrot.slane %v6229, 4
        %v6232 = vor.u32 %v6231, %v6227
        %v6233 = vrot.slane %v6232, 4
        %v6235 = vshll.u32 %v5959, 16
        %v6237 = vrot.slane %v6235, 5
        %v6238 = vsel %vm419, %v6233, %v6237
        %v6240 = vshrl.u32 %v5960, 16
        %v6242 = vrot.slane %v6240, 4
        %v6243 = vshll.u32 %v5960, 16
        %v6245 = vrot.slane %v6243, 5
        %v6246 = vor.u32 %v6242, %v6245
        %v6247 = vrot.slane %v6246, 4
        %v6249 = vshll.u32 %v5961, 16
        %v6251 = vrot.slane %v6249, 5
        %v6252 = vsel %vm419, %v6247, %v6251
        %v6253 = vshrl.u32 %v5961, 16
        %v6255 = vrot.slane %v6253, 4
        %v6256 = vor.u32 %v6255, %v6251
        %v6257 = vrot.slane %v6256, 4
        %v6259 = vshll.u32 %v5962, 16
        %v6261 = vrot.slane %v6259, 5
        %v6262 = vsel %vm419, %v6257, %v6261
        %v6264 = vshrl.u32 %v5963, 16
        %v6266 = vrot.slane %v6264, 4
        %v6267 = vshll.u32 %v5963, 16
        %v6269 = vrot.slane %v6267, 5
        %v6270 = vor.u32 %v6266, %v6269
        %v6271 = vrot.slane %v6270, 4
        %v6273 = vshll.u32 %v5964, 16
        %v6275 = vrot.slane %v6273, 5
        %v6276 = vsel %vm419, %v6271, %v6275
        %v6277 = vshrl.u32 %v5964, 16
        %v6279 = vrot.slane %v6277, 4
        %v6280 = vor.u32 %v6279, %v6275
        %v6281 = vrot.slane %v6280, 4
        %v6283 = vshll.u32 %v5965, 16
        %v6285 = vrot.slane %v6283, 5
        %v6286 = vsel %vm419, %v6281, %v6285
        %v6288 = vshrl.u32 %v5966, 16
        %v6290 = vrot.slane %v6288, 4
        %v6291 = vshll.u32 %v5966, 16
        %v6293 = vrot.slane %v6291, 5
        %v6294 = vor.u32 %v6290, %v6293
        %v6295 = vrot.slane %v6294, 4
        %v6297 = vshll.u32 %v5967, 16
        %v6299 = vrot.slane %v6297, 5
        %v6300 = vsel %vm419, %v6295, %v6299
        %v6301 = vshrl.u32 %v5967, 16
        %v6303 = vrot.slane %v6301, 4
        %v6304 = vor.u32 %v6303, %v6299
        %v6305 = vrot.slane %v6304, 4
        %v6307 = vshll.u32 %v5968, 16
        %v6309 = vrot.slane %v6307, 5
        %v6310 = vsel %vm419, %v6305, %v6309
        %v6312 = vshrl.u32 %v5969, 16
        %v6314 = vrot.slane %v6312, 4
        %v6315 = vshll.u32 %v5969, 16
        %v6317 = vrot.slane %v6315, 5
        %v6318 = vor.u32 %v6314, %v6317
        %v6319 = vrot.slane %v6318, 4
        %v6321 = vshll.u32 %v5970, 16
        %v6323 = vrot.slane %v6321, 5
        %v6324 = vsel %vm419, %v6319, %v6323
        %v6325 = vshrl.u32 %v5970, 16
        %v6327 = vrot.slane %v6325, 4
        %v6328 = vor.u32 %v6327, %v6323
        %v6329 = vrot.slane %v6328, 4
        %v6331 = vshll.u32 %v5971, 16
        %v6333 = vrot.slane %v6331, 5
        %v6334 = vsel %vm419, %v6329, %v6333
        %v6336 = vshrl.u32 %v5972, 16
        %v6338 = vrot.slane %v6336, 4
        %v6339 = vshll.u32 %v5972, 16
        %v6341 = vrot.slane %v6339, 5
        %v6342 = vor.u32 %v6338, %v6341
        %v6343 = vrot.slane %v6342, 4
        %v6345 = vshll.u32 %v5973, 16
        %v6347 = vrot.slane %v6345, 5
        %v6348 = vsel %vm419, %v6343, %v6347
        %v6349 = vshrl.u32 %v5973, 16
        %v6351 = vrot.slane %v6349, 4
        %v6352 = vor.u32 %v6351, %v6347
        %v6353 = vrot.slane %v6352, 4
        %v6355 = vshll.u32 %v5974, 16
        %v6357 = vrot.slane %v6355, 5
        %v6358 = vsel %vm419, %v6353, %v6357
        %v6359 = vunpack.c.l.b16 %v5988
        %v6360 = vunpack.c.l.b16 %v5998
        %v6361 = vunpack.c.l.b16 %v6012
        %v6362 = vunpack.c.l.b16 %v6022
        %v6363 = vunpack.c.l.b16 %v6036
        %v6364 = vunpack.c.l.b16 %v6046
        %v6365 = vunpack.c.l.b16 %v6060
        %v6366 = vunpack.c.l.b16 %v6070
        %v6367 = vunpack.c.l.b16 %v6084
        %v6368 = vunpack.c.l.b16 %v6094
        %v6369 = vunpack.c.l.b16 %v6108
        %v6370 = vunpack.c.l.b16 %v6118
        %v6371 = vunpack.c.l.b16 %v6132
        %v6372 = vunpack.c.l.b16 %v6142
        %v6373 = vunpack.c.l.b16 %v6156
        %v6374 = vunpack.c.l.b16 %v6166
        %v6375 = vunpack.c.l.b16 %v6180
        %v6376 = vunpack.c.l.b16 %v6190
        %v6377 = vunpack.c.l.b16 %v6204
        %v6378 = vunpack.c.l.b16 %v6214
        %v6379 = vunpack.c.l.b16 %v6228
        %v6380 = vunpack.c.l.b16 %v6238
        %v6381 = vunpack.c.l.b16 %v6252
        %v6382 = vunpack.c.l.b16 %v6262
        %v6383 = vunpack.c.l.b16 %v6276
        %v6384 = vunpack.c.l.b16 %v6286
        %v6385 = vunpack.c.l.b16 %v6300
        %v6386 = vunpack.c.l.b16 %v6310
        %v6387 = vunpack.c.l.b16 %v6324
        %v6388 = vunpack.c.l.b16 %v6334
        %v6389 = vunpack.c.l.b16 %v6348
        %v6390 = vunpack.c.l.b16 %v6358
        %v6391 = vpack.c.b16 %v6360, %v6359
        %v6392 = vpack.c.b16 %v6362, %v6361
        %v6393 = vpack.c.b16 %v6364, %v6363
        %v6394 = vpack.c.b16 %v6366, %v6365
        %v6395 = vpack.c.b16 %v6368, %v6367
        %v6396 = vpack.c.b16 %v6370, %v6369
        %v6397 = vpack.c.b16 %v6372, %v6371
        %v6398 = vpack.c.b16 %v6374, %v6373
        %v6399 = vpack.c.b16 %v6376, %v6375
        %v6400 = vpack.c.b16 %v6378, %v6377
        %v6401 = vpack.c.b16 %v6380, %v6379
        %v6402 = vpack.c.b16 %v6382, %v6381
        %v6403 = vpack.c.b16 %v6384, %v6383
        %v6404 = vpack.c.b16 %v6386, %v6385
        %v6405 = vpack.c.b16 %v6388, %v6387
        %v6406 = vpack.c.b16 %v6390, %v6389
        %6423 = vst.msk [vmem:[#allocation2 + $0x10] sm:$0xff] %vm352, %v6391
        %6424 = vst.msk [vmem:[#allocation2 + $0x38] sm:$0xff] %vm352, %v6392
        %6425 = vst.msk [vmem:[#allocation2 + $0x60] sm:$0xff] %vm352, %v6393
        %6426 = vst.msk [vmem:[#allocation2 + $0x88] sm:$0xff] %vm352, %v6394
        %6427 = vst.msk [vmem:[#allocation2 + $0xb0] sm:$0xff] %vm352, %v6395
        %6428 = vst.msk [vmem:[#allocation2 + $0xd8] sm:$0xff] %vm352, %v6396
        %6429 = vst.msk [vmem:[#allocation2 + $0x100] sm:$0xff] %vm352, %v6397
        %6430 = vst.msk [vmem:[#allocation2 + $0x128] sm:$0xff] %vm352, %v6398
        %6431 = vst.msk [vmem:[#allocation2 + $0x150] sm:$0xff] %vm352, %v6399
        %6432 = vst.msk [vmem:[#allocation2 + $0x178] sm:$0xff] %vm352, %v6400
        %6433 = vst.msk [vmem:[#allocation2 + $0x1a0] sm:$0xff] %vm352, %v6401
        %6434 = vst.msk [vmem:[#allocation2 + $0x1c8] sm:$0xff] %vm352, %v6402
        %6435 = vst.msk [vmem:[#allocation2 + $0x1f0] sm:$0xff] %vm352, %v6403
        %6436 = vst.msk [vmem:[#allocation2 + $0x218] sm:$0xff] %vm352, %v6404
        %6437 = vst.msk [vmem:[#allocation2 + $0x240] sm:$0xff] %vm352, %v6405
        %6438 = vst.msk [vmem:[#allocation2 + $0x268] sm:$0xff] %vm352, %v6406
        %v6439 = vld [vmem:[%s4157] sm:$0xe]
        %v6440 = vld [vmem:[%s4157 + $0x4] sm:$0xf]
        %v6441 = vld [vmem:[%s4157 + $0x8] sm:$0x1]
        %v6442 = vld [vmem:[%s4157 + $0xc] sm:$0xe]
        %v6443 = vld [vmem:[%s4157 + $0x10] sm:$0xf]
        %v6444 = vld [vmem:[%s4157 + $0x14] sm:$0x1]
        %v6445 = vld [vmem:[%s4157 + $0x18] sm:$0xe]
        %v6446 = vld [vmem:[%s4157 + $0x1c] sm:$0xf]
        %v6447 = vld [vmem:[%s4157 + $0x20] sm:$0x1]
        %v6448 = vld [vmem:[%s4157 + $0x24] sm:$0xe]
        %v6449 = vld [vmem:[%s4157 + $0x28] sm:$0xf]
        %v6450 = vld [vmem:[%s4157 + $0x2c] sm:$0x1]
        %v6451 = vld [vmem:[%s4157 + $0x30] sm:$0xe]
        %v6452 = vld [vmem:[%s4157 + $0x34] sm:$0xf]
        %v6453 = vld [vmem:[%s4157 + $0x38] sm:$0x1]
        %v6454 = vld [vmem:[%s4157 + $0x3c] sm:$0xe]
        %v6455 = vld [vmem:[%s4157 + $0x40] sm:$0xf]
        %v6456 = vld [vmem:[%s4157 + $0x44] sm:$0x1]
        %v6457 = vld [vmem:[%s4157 + $0x48] sm:$0xe]
        %v6458 = vld [vmem:[%s4157 + $0x4c] sm:$0xf]
        %v6459 = vld [vmem:[%s4157 + $0x50] sm:$0x1]
        %v6460 = vld [vmem:[%s4157 + $0x54] sm:$0xe]
        %v6461 = vld [vmem:[%s4157 + $0x58] sm:$0xf]
        %v6462 = vld [vmem:[%s4157 + $0x5c] sm:$0x1]
        %v6463 = vld [vmem:[%s4157 + $0x60] sm:$0xe]
        %v6464 = vld [vmem:[%s4157 + $0x64] sm:$0xf]
        %v6465 = vld [vmem:[%s4157 + $0x68] sm:$0x1]
        %v6466 = vld [vmem:[%s4157 + $0x6c] sm:$0xe]
        %v6467 = vld [vmem:[%s4157 + $0x70] sm:$0xf]
        %v6468 = vld [vmem:[%s4157 + $0x74] sm:$0x1]
        %v6469 = vld [vmem:[%s4157 + $0x78] sm:$0xe]
        %v6470 = vld [vmem:[%s4157 + $0x7c] sm:$0xf]
        %v6471 = vld [vmem:[%s4157 + $0x80] sm:$0x1]
        %v6472 = vld [vmem:[%s4157 + $0x84] sm:$0xe]
        %v6473 = vld [vmem:[%s4157 + $0x88] sm:$0xf]
        %v6474 = vld [vmem:[%s4157 + $0x8c] sm:$0x1]
        %v6475 = vld [vmem:[%s4157 + $0x90] sm:$0xe]
        %v6476 = vld [vmem:[%s4157 + $0x94] sm:$0xf]
        %v6477 = vld [vmem:[%s4157 + $0x98] sm:$0x1]
        %v6478 = vld [vmem:[%s4157 + $0x9c] sm:$0xe]
        %v6479 = vld [vmem:[%s4157 + $0xa0] sm:$0xf]
        %v6480 = vld [vmem:[%s4157 + $0xa4] sm:$0x1]
        %v6481 = vld [vmem:[%s4157 + $0xa8] sm:$0xe]
        %v6482 = vld [vmem:[%s4157 + $0xac] sm:$0xf]
        %v6483 = vld [vmem:[%s4157 + $0xb0] sm:$0x1]
        %v6484 = vld [vmem:[%s4157 + $0xb4] sm:$0xe]
        %v6485 = vld [vmem:[%s4157 + $0xb8] sm:$0xf]
        %v6486 = vld [vmem:[%s4157 + $0xbc] sm:$0x1]
        %v6535 = vrot.slane %v6439, 5
        %v6536 = vrot.slane %v6535, 4
        %v6537 = vrot.slane %v6440, 5
        %v6538 = vsel %vm1015, %v6536, %v6537
        %v6539 = vrot.slane %v6537, 4
        %v6540 = vrot.slane %v6441, 5
        %v6541 = vsel %vm1015, %v6539, %v6540
        %v6542 = vrot.slane %v6442, 5
        %v6543 = vrot.slane %v6542, 4
        %v6544 = vrot.slane %v6443, 5
        %v6545 = vsel %vm1015, %v6543, %v6544
        %v6546 = vrot.slane %v6544, 4
        %v6547 = vrot.slane %v6444, 5
        %v6548 = vsel %vm1015, %v6546, %v6547
        %v6549 = vrot.slane %v6445, 5
        %v6550 = vrot.slane %v6549, 4
        %v6551 = vrot.slane %v6446, 5
        %v6552 = vsel %vm1015, %v6550, %v6551
        %v6553 = vrot.slane %v6551, 4
        %v6554 = vrot.slane %v6447, 5
        %v6555 = vsel %vm1015, %v6553, %v6554
        %v6556 = vrot.slane %v6448, 5
        %v6557 = vrot.slane %v6556, 4
        %v6558 = vrot.slane %v6449, 5
        %v6559 = vsel %vm1015, %v6557, %v6558
        %v6560 = vrot.slane %v6558, 4
        %v6561 = vrot.slane %v6450, 5
        %v6562 = vsel %vm1015, %v6560, %v6561
        %v6563 = vrot.slane %v6451, 5
        %v6564 = vrot.slane %v6563, 4
        %v6565 = vrot.slane %v6452, 5
        %v6566 = vsel %vm1015, %v6564, %v6565
        %v6567 = vrot.slane %v6565, 4
        %v6568 = vrot.slane %v6453, 5
        %v6569 = vsel %vm1015, %v6567, %v6568
        %v6570 = vrot.slane %v6454, 5
        %v6571 = vrot.slane %v6570, 4
        %v6572 = vrot.slane %v6455, 5
        %v6573 = vsel %vm1015, %v6571, %v6572
        %v6574 = vrot.slane %v6572, 4
        %v6575 = vrot.slane %v6456, 5
        %v6576 = vsel %vm1015, %v6574, %v6575
        %v6577 = vrot.slane %v6457, 5
        %v6578 = vrot.slane %v6577, 4
        %v6579 = vrot.slane %v6458, 5
        %v6580 = vsel %vm1015, %v6578, %v6579
        %v6581 = vrot.slane %v6579, 4
        %v6582 = vrot.slane %v6459, 5
        %v6583 = vsel %vm1015, %v6581, %v6582
        %v6584 = vrot.slane %v6460, 5
        %v6585 = vrot.slane %v6584, 4
        %v6586 = vrot.slane %v6461, 5
        %v6587 = vsel %vm1015, %v6585, %v6586
        %v6588 = vrot.slane %v6586, 4
        %v6589 = vrot.slane %v6462, 5
        %v6590 = vsel %vm1015, %v6588, %v6589
        %v6591 = vrot.slane %v6463, 5
        %v6592 = vrot.slane %v6591, 4
        %v6593 = vrot.slane %v6464, 5
        %v6594 = vsel %vm1015, %v6592, %v6593
        %v6595 = vrot.slane %v6593, 4
        %v6596 = vrot.slane %v6465, 5
        %v6597 = vsel %vm1015, %v6595, %v6596
        %v6598 = vrot.slane %v6466, 5
        %v6599 = vrot.slane %v6598, 4
        %v6600 = vrot.slane %v6467, 5
        %v6601 = vsel %vm1015, %v6599, %v6600
        %v6602 = vrot.slane %v6600, 4
        %v6603 = vrot.slane %v6468, 5
        %v6604 = vsel %vm1015, %v6602, %v6603
        %v6605 = vrot.slane %v6469, 5
        %v6606 = vrot.slane %v6605, 4
        %v6607 = vrot.slane %v6470, 5
        %v6608 = vsel %vm1015, %v6606, %v6607
        %v6609 = vrot.slane %v6607, 4
        %v6610 = vrot.slane %v6471, 5
        %v6611 = vsel %vm1015, %v6609, %v6610
        %v6612 = vrot.slane %v6472, 5
        %v6613 = vrot.slane %v6612, 4
        %v6614 = vrot.slane %v6473, 5
        %v6615 = vsel %vm1015, %v6613, %v6614
        %v6616 = vrot.slane %v6614, 4
        %v6617 = vrot.slane %v6474, 5
        %v6618 = vsel %vm1015, %v6616, %v6617
        %v6619 = vrot.slane %v6475, 5
        %v6620 = vrot.slane %v6619, 4
        %v6621 = vrot.slane %v6476, 5
        %v6622 = vsel %vm1015, %v6620, %v6621
        %v6623 = vrot.slane %v6621, 4
        %v6624 = vrot.slane %v6477, 5
        %v6625 = vsel %vm1015, %v6623, %v6624
        %v6626 = vrot.slane %v6478, 5
        %v6627 = vrot.slane %v6626, 4
        %v6628 = vrot.slane %v6479, 5
        %v6629 = vsel %vm1015, %v6627, %v6628
        %v6630 = vrot.slane %v6628, 4
        %v6631 = vrot.slane %v6480, 5
        %v6632 = vsel %vm1015, %v6630, %v6631
        %v6633 = vrot.slane %v6481, 5
        %v6634 = vrot.slane %v6633, 4
        %v6635 = vrot.slane %v6482, 5
        %v6636 = vsel %vm1015, %v6634, %v6635
        %v6637 = vrot.slane %v6635, 4
        %v6638 = vrot.slane %v6483, 5
        %v6639 = vsel %vm1015, %v6637, %v6638
        %v6640 = vrot.slane %v6484, 5
        %v6641 = vrot.slane %v6640, 4
        %v6642 = vrot.slane %v6485, 5
        %v6643 = vsel %vm1015, %v6641, %v6642
        %v6644 = vrot.slane %v6642, 4
        %v6645 = vrot.slane %v6486, 5
        %v6646 = vsel %vm1015, %v6644, %v6645
        %v6647 = vunpack.c.l.b16 %v6538
        %v6648 = vunpack.c.l.b16 %v6541
        %v6649 = vunpack.c.l.b16 %v6545
        %v6650 = vunpack.c.l.b16 %v6548
        %v6651 = vunpack.c.l.b16 %v6552
        %v6652 = vunpack.c.l.b16 %v6555
        %v6653 = vunpack.c.l.b16 %v6559
        %v6654 = vunpack.c.l.b16 %v6562
        %v6655 = vunpack.c.l.b16 %v6566
        %v6656 = vunpack.c.l.b16 %v6569
        %v6657 = vunpack.c.l.b16 %v6573
        %v6658 = vunpack.c.l.b16 %v6576
        %v6659 = vunpack.c.l.b16 %v6580
        %v6660 = vunpack.c.l.b16 %v6583
        %v6661 = vunpack.c.l.b16 %v6587
        %v6662 = vunpack.c.l.b16 %v6590
        %v6663 = vunpack.c.l.b16 %v6594
        %v6664 = vunpack.c.l.b16 %v6597
        %v6665 = vunpack.c.l.b16 %v6601
        %v6666 = vunpack.c.l.b16 %v6604
        %v6667 = vunpack.c.l.b16 %v6608
        %v6668 = vunpack.c.l.b16 %v6611
        %v6669 = vunpack.c.l.b16 %v6615
        %v6670 = vunpack.c.l.b16 %v6618
        %v6671 = vunpack.c.l.b16 %v6622
        %v6672 = vunpack.c.l.b16 %v6625
        %v6673 = vunpack.c.l.b16 %v6629
        %v6674 = vunpack.c.l.b16 %v6632
        %v6675 = vunpack.c.l.b16 %v6636
        %v6676 = vunpack.c.l.b16 %v6639
        %v6677 = vunpack.c.l.b16 %v6643
        %v6678 = vunpack.c.l.b16 %v6646
        %v6679 = vpack.c.b16 %v6648, %v6647
        %v6680 = vpack.c.b16 %v6650, %v6649
        %v6681 = vpack.c.b16 %v6652, %v6651
        %v6682 = vpack.c.b16 %v6654, %v6653
        %v6683 = vpack.c.b16 %v6656, %v6655
        %v6684 = vpack.c.b16 %v6658, %v6657
        %v6685 = vpack.c.b16 %v6660, %v6659
        %v6686 = vpack.c.b16 %v6662, %v6661
        %v6687 = vpack.c.b16 %v6664, %v6663
        %v6688 = vpack.c.b16 %v6666, %v6665
        %v6689 = vpack.c.b16 %v6668, %v6667
        %v6690 = vpack.c.b16 %v6670, %v6669
        %v6691 = vpack.c.b16 %v6672, %v6671
        %v6692 = vpack.c.b16 %v6674, %v6673
        %v6693 = vpack.c.b16 %v6676, %v6675
        %v6694 = vpack.c.b16 %v6678, %v6677
        %6695 = vrot.lane.b32.xlu0 %v6679, 64
        %v6696 = vpop.permute.xlu0 %6695
        %6697 = vrot.lane.b32.xlu0 %v6680, 64
        %v6698 = vpop.permute.xlu0 %6697
        %6699 = vrot.lane.b32.xlu0 %v6681, 64
        %v6700 = vpop.permute.xlu0 %6699
        %6701 = vrot.lane.b32.xlu0 %v6682, 64
        %v6702 = vpop.permute.xlu0 %6701
        %6703 = vrot.lane.b32.xlu0 %v6683, 64
        %v6704 = vpop.permute.xlu0 %6703
        %6705 = vrot.lane.b32.xlu0 %v6684, 64
        %v6706 = vpop.permute.xlu0 %6705
        %6707 = vrot.lane.b32.xlu0 %v6685, 64
        %v6708 = vpop.permute.xlu0 %6707
        %6709 = vrot.lane.b32.xlu0 %v6686, 64
        %v6710 = vpop.permute.xlu0 %6709
        %6711 = vrot.lane.b32.xlu0 %v6687, 64
        %v6712 = vpop.permute.xlu0 %6711
        %6713 = vrot.lane.b32.xlu0 %v6688, 64
        %v6714 = vpop.permute.xlu0 %6713
        %6715 = vrot.lane.b32.xlu0 %v6689, 64
        %v6716 = vpop.permute.xlu0 %6715
        %6717 = vrot.lane.b32.xlu0 %v6690, 64
        %v6718 = vpop.permute.xlu0 %6717
        %6719 = vrot.lane.b32.xlu0 %v6691, 64
        %v6720 = vpop.permute.xlu0 %6719
        %6721 = vrot.lane.b32.xlu0 %v6692, 64
        %v6722 = vpop.permute.xlu0 %6721
        %6723 = vrot.lane.b32.xlu0 %v6693, 64
        %v6724 = vpop.permute.xlu0 %6723
        %6725 = vrot.lane.b32.xlu0 %v6694, 64
        %v6726 = vpop.permute.xlu0 %6725
        %6743 = vst.msk [vmem:[#allocation2 + $0x10] sm:$0xff] %vm900, %v6696
        %6744 = vst.msk [vmem:[#allocation2 + $0x38] sm:$0xff] %vm900, %v6698
        %6745 = vst.msk [vmem:[#allocation2 + $0x60] sm:$0xff] %vm900, %v6700
        %6746 = vst.msk [vmem:[#allocation2 + $0x88] sm:$0xff] %vm900, %v6702
        %6747 = vst.msk [vmem:[#allocation2 + $0xb0] sm:$0xff] %vm900, %v6704
        %6748 = vst.msk [vmem:[#allocation2 + $0xd8] sm:$0xff] %vm900, %v6706
        %6749 = vst.msk [vmem:[#allocation2 + $0x100] sm:$0xff] %vm900, %v6708
        %6750 = vst.msk [vmem:[#allocation2 + $0x128] sm:$0xff] %vm900, %v6710
        %6751 = vst.msk [vmem:[#allocation2 + $0x150] sm:$0xff] %vm900, %v6712
        %6752 = vst.msk [vmem:[#allocation2 + $0x178] sm:$0xff] %vm900, %v6714
        %6753 = vst.msk [vmem:[#allocation2 + $0x1a0] sm:$0xff] %vm900, %v6716
        %6754 = vst.msk [vmem:[#allocation2 + $0x1c8] sm:$0xff] %vm900, %v6718
        %6755 = vst.msk [vmem:[#allocation2 + $0x1f0] sm:$0xff] %vm900, %v6720
        %6756 = vst.msk [vmem:[#allocation2 + $0x218] sm:$0xff] %vm900, %v6722
        %6757 = vst.msk [vmem:[#allocation2 + $0x240] sm:$0xff] %vm900, %v6724
        %6758 = vst.msk [vmem:[#allocation2 + $0x268] sm:$0xff] %vm900, %v6726
        %s6759 = scalar_lea.vmem [#allocation3], 24
        %v6760 = vld [vmem:[%s6759] sm:$0xf]
        %v6761 = vld [vmem:[%s6759 + $0x4] sm:$0xf]
        %v6762 = vld [vmem:[%s6759 + $0xc] sm:$0xf]
        %v6763 = vld [vmem:[%s6759 + $0x10] sm:$0xf]
        %v6764 = vld [vmem:[%s6759 + $0x18] sm:$0xf]
        %v6765 = vld [vmem:[%s6759 + $0x1c] sm:$0xf]
        %v6766 = vld [vmem:[%s6759 + $0x24] sm:$0xf]
        %v6767 = vld [vmem:[%s6759 + $0x28] sm:$0xf]
        %v6768 = vld [vmem:[%s6759 + $0x30] sm:$0xf]
        %v6769 = vld [vmem:[%s6759 + $0x34] sm:$0xf]
        %v6770 = vld [vmem:[%s6759 + $0x3c] sm:$0xf]
        %v6771 = vld [vmem:[%s6759 + $0x40] sm:$0xf]
        %v6772 = vld [vmem:[%s6759 + $0x48] sm:$0xf]
        %v6773 = vld [vmem:[%s6759 + $0x4c] sm:$0xf]
        %v6774 = vld [vmem:[%s6759 + $0x54] sm:$0xf]
        %v6775 = vld [vmem:[%s6759 + $0x58] sm:$0xf]
        %v6776 = vld [vmem:[%s6759 + $0x60] sm:$0xf]
        %v6777 = vld [vmem:[%s6759 + $0x64] sm:$0xf]
        %v6778 = vld [vmem:[%s6759 + $0x6c] sm:$0xf]
        %v6779 = vld [vmem:[%s6759 + $0x70] sm:$0xf]
        %v6780 = vld [vmem:[%s6759 + $0x78] sm:$0xf]
        %v6781 = vld [vmem:[%s6759 + $0x7c] sm:$0xf]
        %v6782 = vld [vmem:[%s6759 + $0x84] sm:$0xf]
        %v6783 = vld [vmem:[%s6759 + $0x88] sm:$0xf]
        %v6784 = vld [vmem:[%s6759 + $0x90] sm:$0xf]
        %v6785 = vld [vmem:[%s6759 + $0x94] sm:$0xf]
        %v6786 = vld [vmem:[%s6759 + $0x9c] sm:$0xf]
        %v6787 = vld [vmem:[%s6759 + $0xa0] sm:$0xf]
        %v6788 = vld [vmem:[%s6759 + $0xa8] sm:$0xf]
        %v6789 = vld [vmem:[%s6759 + $0xac] sm:$0xf]
        %v6790 = vld [vmem:[%s6759 + $0xb4] sm:$0xf]
        %v6791 = vld [vmem:[%s6759 + $0xb8] sm:$0xf]
        %v6824 = vunpack.c.l.b16 %v6760
        %v6825 = vunpack.c.l.b16 %v6761
        %v6826 = vunpack.c.l.b16 %v6762
        %v6827 = vunpack.c.l.b16 %v6763
        %v6828 = vunpack.c.l.b16 %v6764
        %v6829 = vunpack.c.l.b16 %v6765
        %v6830 = vunpack.c.l.b16 %v6766
        %v6831 = vunpack.c.l.b16 %v6767
        %v6832 = vunpack.c.l.b16 %v6768
        %v6833 = vunpack.c.l.b16 %v6769
        %v6834 = vunpack.c.l.b16 %v6770
        %v6835 = vunpack.c.l.b16 %v6771
        %v6836 = vunpack.c.l.b16 %v6772
        %v6837 = vunpack.c.l.b16 %v6773
        %v6838 = vunpack.c.l.b16 %v6774
        %v6839 = vunpack.c.l.b16 %v6775
        %v6840 = vunpack.c.l.b16 %v6776
        %v6841 = vunpack.c.l.b16 %v6777
        %v6842 = vunpack.c.l.b16 %v6778
        %v6843 = vunpack.c.l.b16 %v6779
        %v6844 = vunpack.c.l.b16 %v6780
        %v6845 = vunpack.c.l.b16 %v6781
        %v6846 = vunpack.c.l.b16 %v6782
        %v6847 = vunpack.c.l.b16 %v6783
        %v6848 = vunpack.c.l.b16 %v6784
        %v6849 = vunpack.c.l.b16 %v6785
        %v6850 = vunpack.c.l.b16 %v6786
        %v6851 = vunpack.c.l.b16 %v6787
        %v6852 = vunpack.c.l.b16 %v6788
        %v6853 = vunpack.c.l.b16 %v6789
        %v6854 = vunpack.c.l.b16 %v6790
        %v6855 = vunpack.c.l.b16 %v6791
        %v6856 = vpack.c.b16 %v6825, %v6824
        %v6857 = vpack.c.b16 %v6827, %v6826
        %v6858 = vpack.c.b16 %v6829, %v6828
        %v6859 = vpack.c.b16 %v6831, %v6830
        %v6860 = vpack.c.b16 %v6833, %v6832
        %v6861 = vpack.c.b16 %v6835, %v6834
        %v6862 = vpack.c.b16 %v6837, %v6836
        %v6863 = vpack.c.b16 %v6839, %v6838
        %v6864 = vpack.c.b16 %v6841, %v6840
        %v6865 = vpack.c.b16 %v6843, %v6842
        %v6866 = vpack.c.b16 %v6845, %v6844
        %v6867 = vpack.c.b16 %v6847, %v6846
        %v6868 = vpack.c.b16 %v6849, %v6848
        %v6869 = vpack.c.b16 %v6851, %v6850
        %v6870 = vpack.c.b16 %v6853, %v6852
        %v6871 = vpack.c.b16 %v6855, %v6854
        %6888 = vst.msk [vmem:[#allocation2 + $0x18] sm:$0xff] %vm352, %v6856
        %6889 = vst.msk [vmem:[#allocation2 + $0x40] sm:$0xff] %vm352, %v6857
        %6890 = vst.msk [vmem:[#allocation2 + $0x68] sm:$0xff] %vm352, %v6858
        %6891 = vst.msk [vmem:[#allocation2 + $0x90] sm:$0xff] %vm352, %v6859
        %6892 = vst.msk [vmem:[#allocation2 + $0xb8] sm:$0xff] %vm352, %v6860
        %6893 = vst.msk [vmem:[#allocation2 + $0xe0] sm:$0xff] %vm352, %v6861
        %6894 = vst.msk [vmem:[#allocation2 + $0x108] sm:$0xff] %vm352, %v6862
        %6895 = vst.msk [vmem:[#allocation2 + $0x130] sm:$0xff] %vm352, %v6863
        %6896 = vst.msk [vmem:[#allocation2 + $0x158] sm:$0xff] %vm352, %v6864
        %6897 = vst.msk [vmem:[#allocation2 + $0x180] sm:$0xff] %vm352, %v6865
        %6898 = vst.msk [vmem:[#allocation2 + $0x1a8] sm:$0xff] %vm352, %v6866
        %6899 = vst.msk [vmem:[#allocation2 + $0x1d0] sm:$0xff] %vm352, %v6867
        %6900 = vst.msk [vmem:[#allocation2 + $0x1f8] sm:$0xff] %vm352, %v6868
        %6901 = vst.msk [vmem:[#allocation2 + $0x220] sm:$0xff] %vm352, %v6869
        %6902 = vst.msk [vmem:[#allocation2 + $0x248] sm:$0xff] %vm352, %v6870
        %6903 = vst.msk [vmem:[#allocation2 + $0x270] sm:$0xff] %vm352, %v6871
        %v6904 = vld [vmem:[%s6759] sm:$0xf]
        %v6905 = vld [vmem:[%s6759 + $0x4] sm:$0xf]
        %v6906 = vld [vmem:[%s6759 + $0x8] sm:$0x1]
        %v6907 = vld [vmem:[%s6759 + $0xc] sm:$0xf]
        %v6908 = vld [vmem:[%s6759 + $0x10] sm:$0xf]
        %v6909 = vld [vmem:[%s6759 + $0x14] sm:$0x1]
        %v6910 = vld [vmem:[%s6759 + $0x18] sm:$0xf]
        %v6911 = vld [vmem:[%s6759 + $0x1c] sm:$0xf]
        %v6912 = vld [vmem:[%s6759 + $0x20] sm:$0x1]
        %v6913 = vld [vmem:[%s6759 + $0x24] sm:$0xf]
        %v6914 = vld [vmem:[%s6759 + $0x28] sm:$0xf]
        %v6915 = vld [vmem:[%s6759 + $0x2c] sm:$0x1]
        %v6916 = vld [vmem:[%s6759 + $0x30] sm:$0xf]
        %v6917 = vld [vmem:[%s6759 + $0x34] sm:$0xf]
        %v6918 = vld [vmem:[%s6759 + $0x38] sm:$0x1]
        %v6919 = vld [vmem:[%s6759 + $0x3c] sm:$0xf]
        %v6920 = vld [vmem:[%s6759 + $0x40] sm:$0xf]
        %v6921 = vld [vmem:[%s6759 + $0x44] sm:$0x1]
        %v6922 = vld [vmem:[%s6759 + $0x48] sm:$0xf]
        %v6923 = vld [vmem:[%s6759 + $0x4c] sm:$0xf]
        %v6924 = vld [vmem:[%s6759 + $0x50] sm:$0x1]
        %v6925 = vld [vmem:[%s6759 + $0x54] sm:$0xf]
        %v6926 = vld [vmem:[%s6759 + $0x58] sm:$0xf]
        %v6927 = vld [vmem:[%s6759 + $0x5c] sm:$0x1]
        %v6928 = vld [vmem:[%s6759 + $0x60] sm:$0xf]
        %v6929 = vld [vmem:[%s6759 + $0x64] sm:$0xf]
        %v6930 = vld [vmem:[%s6759 + $0x68] sm:$0x1]
        %v6931 = vld [vmem:[%s6759 + $0x6c] sm:$0xf]
        %v6932 = vld [vmem:[%s6759 + $0x70] sm:$0xf]
        %v6933 = vld [vmem:[%s6759 + $0x74] sm:$0x1]
        %v6934 = vld [vmem:[%s6759 + $0x78] sm:$0xf]
        %v6935 = vld [vmem:[%s6759 + $0x7c] sm:$0xf]
        %v6936 = vld [vmem:[%s6759 + $0x80] sm:$0x1]
        %v6937 = vld [vmem:[%s6759 + $0x84] sm:$0xf]
        %v6938 = vld [vmem:[%s6759 + $0x88] sm:$0xf]
        %v6939 = vld [vmem:[%s6759 + $0x8c] sm:$0x1]
        %v6940 = vld [vmem:[%s6759 + $0x90] sm:$0xf]
        %v6941 = vld [vmem:[%s6759 + $0x94] sm:$0xf]
        %v6942 = vld [vmem:[%s6759 + $0x98] sm:$0x1]
        %v6943 = vld [vmem:[%s6759 + $0x9c] sm:$0xf]
        %v6944 = vld [vmem:[%s6759 + $0xa0] sm:$0xf]
        %v6945 = vld [vmem:[%s6759 + $0xa4] sm:$0x1]
        %v6946 = vld [vmem:[%s6759 + $0xa8] sm:$0xf]
        %v6947 = vld [vmem:[%s6759 + $0xac] sm:$0xf]
        %v6948 = vld [vmem:[%s6759 + $0xb0] sm:$0x1]
        %v6949 = vld [vmem:[%s6759 + $0xb4] sm:$0xf]
        %v6950 = vld [vmem:[%s6759 + $0xb8] sm:$0xf]
        %v6951 = vld [vmem:[%s6759 + $0xbc] sm:$0x1]
        %v6953 = vshrl.u32 %v6904, 16
        %v6955 = vrot.slane %v6953, 4
        %v6956 = vshll.u32 %v6904, 16
        %v6958 = vrot.slane %v6956, 5
        %v6959 = vor.u32 %v6955, %v6958
        %v6960 = vrot.slane %v6959, 4
        %v6962 = vshll.u32 %v6905, 16
        %v6964 = vrot.slane %v6962, 5
        %v6965 = vsel %vm419, %v6960, %v6964
        %v6966 = vshrl.u32 %v6905, 16
        %v6968 = vrot.slane %v6966, 4
        %v6969 = vor.u32 %v6968, %v6964
        %v6970 = vrot.slane %v6969, 4
        %v6972 = vshll.u32 %v6906, 16
        %v6974 = vrot.slane %v6972, 5
        %v6975 = vsel %vm419, %v6970, %v6974
        %v6977 = vshrl.u32 %v6907, 16
        %v6979 = vrot.slane %v6977, 4
        %v6980 = vshll.u32 %v6907, 16
        %v6982 = vrot.slane %v6980, 5
        %v6983 = vor.u32 %v6979, %v6982
        %v6984 = vrot.slane %v6983, 4
        %v6986 = vshll.u32 %v6908, 16
        %v6988 = vrot.slane %v6986, 5
        %v6989 = vsel %vm419, %v6984, %v6988
        %v6990 = vshrl.u32 %v6908, 16
        %v6992 = vrot.slane %v6990, 4
        %v6993 = vor.u32 %v6992, %v6988
        %v6994 = vrot.slane %v6993, 4
        %v6996 = vshll.u32 %v6909, 16
        %v6998 = vrot.slane %v6996, 5
        %v6999 = vsel %vm419, %v6994, %v6998
        %v7001 = vshrl.u32 %v6910, 16
        %v7003 = vrot.slane %v7001, 4
        %v7004 = vshll.u32 %v6910, 16
        %v7006 = vrot.slane %v7004, 5
        %v7007 = vor.u32 %v7003, %v7006
        %v7008 = vrot.slane %v7007, 4
        %v7010 = vshll.u32 %v6911, 16
        %v7012 = vrot.slane %v7010, 5
        %v7013 = vsel %vm419, %v7008, %v7012
        %v7014 = vshrl.u32 %v6911, 16
        %v7016 = vrot.slane %v7014, 4
        %v7017 = vor.u32 %v7016, %v7012
        %v7018 = vrot.slane %v7017, 4
        %v7020 = vshll.u32 %v6912, 16
        %v7022 = vrot.slane %v7020, 5
        %v7023 = vsel %vm419, %v7018, %v7022
        %v7025 = vshrl.u32 %v6913, 16
        %v7027 = vrot.slane %v7025, 4
        %v7028 = vshll.u32 %v6913, 16
        %v7030 = vrot.slane %v7028, 5
        %v7031 = vor.u32 %v7027, %v7030
        %v7032 = vrot.slane %v7031, 4
        %v7034 = vshll.u32 %v6914, 16
        %v7036 = vrot.slane %v7034, 5
        %v7037 = vsel %vm419, %v7032, %v7036
        %v7038 = vshrl.u32 %v6914, 16
        %v7040 = vrot.slane %v7038, 4
        %v7041 = vor.u32 %v7040, %v7036
        %v7042 = vrot.slane %v7041, 4
        %v7044 = vshll.u32 %v6915, 16
        %v7046 = vrot.slane %v7044, 5
        %v7047 = vsel %vm419, %v7042, %v7046
        %v7049 = vshrl.u32 %v6916, 16
        %v7051 = vrot.slane %v7049, 4
        %v7052 = vshll.u32 %v6916, 16
        %v7054 = vrot.slane %v7052, 5
        %v7055 = vor.u32 %v7051, %v7054
        %v7056 = vrot.slane %v7055, 4
        %v7058 = vshll.u32 %v6917, 16
        %v7060 = vrot.slane %v7058, 5
        %v7061 = vsel %vm419, %v7056, %v7060
        %v7062 = vshrl.u32 %v6917, 16
        %v7064 = vrot.slane %v7062, 4
        %v7065 = vor.u32 %v7064, %v7060
        %v7066 = vrot.slane %v7065, 4
        %v7068 = vshll.u32 %v6918, 16
        %v7070 = vrot.slane %v7068, 5
        %v7071 = vsel %vm419, %v7066, %v7070
        %v7073 = vshrl.u32 %v6919, 16
        %v7075 = vrot.slane %v7073, 4
        %v7076 = vshll.u32 %v6919, 16
        %v7078 = vrot.slane %v7076, 5
        %v7079 = vor.u32 %v7075, %v7078
        %v7080 = vrot.slane %v7079, 4
        %v7082 = vshll.u32 %v6920, 16
        %v7084 = vrot.slane %v7082, 5
        %v7085 = vsel %vm419, %v7080, %v7084
        %v7086 = vshrl.u32 %v6920, 16
        %v7088 = vrot.slane %v7086, 4
        %v7089 = vor.u32 %v7088, %v7084
        %v7090 = vrot.slane %v7089, 4
        %v7092 = vshll.u32 %v6921, 16
        %v7094 = vrot.slane %v7092, 5
        %v7095 = vsel %vm419, %v7090, %v7094
        %v7097 = vshrl.u32 %v6922, 16
        %v7099 = vrot.slane %v7097, 4
        %v7100 = vshll.u32 %v6922, 16
        %v7102 = vrot.slane %v7100, 5
        %v7103 = vor.u32 %v7099, %v7102
        %v7104 = vrot.slane %v7103, 4
        %v7106 = vshll.u32 %v6923, 16
        %v7108 = vrot.slane %v7106, 5
        %v7109 = vsel %vm419, %v7104, %v7108
        %v7110 = vshrl.u32 %v6923, 16
        %v7112 = vrot.slane %v7110, 4
        %v7113 = vor.u32 %v7112, %v7108
        %v7114 = vrot.slane %v7113, 4
        %v7116 = vshll.u32 %v6924, 16
        %v7118 = vrot.slane %v7116, 5
        %v7119 = vsel %vm419, %v7114, %v7118
        %v7121 = vshrl.u32 %v6925, 16
        %v7123 = vrot.slane %v7121, 4
        %v7124 = vshll.u32 %v6925, 16
        %v7126 = vrot.slane %v7124, 5
        %v7127 = vor.u32 %v7123, %v7126
        %v7128 = vrot.slane %v7127, 4
        %v7130 = vshll.u32 %v6926, 16
        %v7132 = vrot.slane %v7130, 5
        %v7133 = vsel %vm419, %v7128, %v7132
        %v7134 = vshrl.u32 %v6926, 16
        %v7136 = vrot.slane %v7134, 4
        %v7137 = vor.u32 %v7136, %v7132
        %v7138 = vrot.slane %v7137, 4
        %v7140 = vshll.u32 %v6927, 16
        %v7142 = vrot.slane %v7140, 5
        %v7143 = vsel %vm419, %v7138, %v7142
        %v7145 = vshrl.u32 %v6928, 16
        %v7147 = vrot.slane %v7145, 4
        %v7148 = vshll.u32 %v6928, 16
        %v7150 = vrot.slane %v7148, 5
        %v7151 = vor.u32 %v7147, %v7150
        %v7152 = vrot.slane %v7151, 4
        %v7154 = vshll.u32 %v6929, 16
        %v7156 = vrot.slane %v7154, 5
        %v7157 = vsel %vm419, %v7152, %v7156
        %v7158 = vshrl.u32 %v6929, 16
        %v7160 = vrot.slane %v7158, 4
        %v7161 = vor.u32 %v7160, %v7156
        %v7162 = vrot.slane %v7161, 4
        %v7164 = vshll.u32 %v6930, 16
        %v7166 = vrot.slane %v7164, 5
        %v7167 = vsel %vm419, %v7162, %v7166
        %v7169 = vshrl.u32 %v6931, 16
        %v7171 = vrot.slane %v7169, 4
        %v7172 = vshll.u32 %v6931, 16
        %v7174 = vrot.slane %v7172, 5
        %v7175 = vor.u32 %v7171, %v7174
        %v7176 = vrot.slane %v7175, 4
        %v7178 = vshll.u32 %v6932, 16
        %v7180 = vrot.slane %v7178, 5
        %v7181 = vsel %vm419, %v7176, %v7180
        %v7182 = vshrl.u32 %v6932, 16
        %v7184 = vrot.slane %v7182, 4
        %v7185 = vor.u32 %v7184, %v7180
        %v7186 = vrot.slane %v7185, 4
        %v7188 = vshll.u32 %v6933, 16
        %v7190 = vrot.slane %v7188, 5
        %v7191 = vsel %vm419, %v7186, %v7190
        %v7193 = vshrl.u32 %v6934, 16
        %v7195 = vrot.slane %v7193, 4
        %v7196 = vshll.u32 %v6934, 16
        %v7198 = vrot.slane %v7196, 5
        %v7199 = vor.u32 %v7195, %v7198
        %v7200 = vrot.slane %v7199, 4
        %v7202 = vshll.u32 %v6935, 16
        %v7204 = vrot.slane %v7202, 5
        %v7205 = vsel %vm419, %v7200, %v7204
        %v7206 = vshrl.u32 %v6935, 16
        %v7208 = vrot.slane %v7206, 4
        %v7209 = vor.u32 %v7208, %v7204
        %v7210 = vrot.slane %v7209, 4
        %v7212 = vshll.u32 %v6936, 16
        %v7214 = vrot.slane %v7212, 5
        %v7215 = vsel %vm419, %v7210, %v7214
        %v7217 = vshrl.u32 %v6937, 16
        %v7219 = vrot.slane %v7217, 4
        %v7220 = vshll.u32 %v6937, 16
        %v7222 = vrot.slane %v7220, 5
        %v7223 = vor.u32 %v7219, %v7222
        %v7224 = vrot.slane %v7223, 4
        %v7226 = vshll.u32 %v6938, 16
        %v7228 = vrot.slane %v7226, 5
        %v7229 = vsel %vm419, %v7224, %v7228
        %v7230 = vshrl.u32 %v6938, 16
        %v7232 = vrot.slane %v7230, 4
        %v7233 = vor.u32 %v7232, %v7228
        %v7234 = vrot.slane %v7233, 4
        %v7236 = vshll.u32 %v6939, 16
        %v7238 = vrot.slane %v7236, 5
        %v7239 = vsel %vm419, %v7234, %v7238
        %v7241 = vshrl.u32 %v6940, 16
        %v7243 = vrot.slane %v7241, 4
        %v7244 = vshll.u32 %v6940, 16
        %v7246 = vrot.slane %v7244, 5
        %v7247 = vor.u32 %v7243, %v7246
        %v7248 = vrot.slane %v7247, 4
        %v7250 = vshll.u32 %v6941, 16
        %v7252 = vrot.slane %v7250, 5
        %v7253 = vsel %vm419, %v7248, %v7252
        %v7254 = vshrl.u32 %v6941, 16
        %v7256 = vrot.slane %v7254, 4
        %v7257 = vor.u32 %v7256, %v7252
        %v7258 = vrot.slane %v7257, 4
        %v7260 = vshll.u32 %v6942, 16
        %v7262 = vrot.slane %v7260, 5
        %v7263 = vsel %vm419, %v7258, %v7262
        %v7265 = vshrl.u32 %v6943, 16
        %v7267 = vrot.slane %v7265, 4
        %v7268 = vshll.u32 %v6943, 16
        %v7270 = vrot.slane %v7268, 5
        %v7271 = vor.u32 %v7267, %v7270
        %v7272 = vrot.slane %v7271, 4
        %v7274 = vshll.u32 %v6944, 16
        %v7276 = vrot.slane %v7274, 5
        %v7277 = vsel %vm419, %v7272, %v7276
        %v7278 = vshrl.u32 %v6944, 16
        %v7280 = vrot.slane %v7278, 4
        %v7281 = vor.u32 %v7280, %v7276
        %v7282 = vrot.slane %v7281, 4
        %v7284 = vshll.u32 %v6945, 16
        %v7286 = vrot.slane %v7284, 5
        %v7287 = vsel %vm419, %v7282, %v7286
        %v7289 = vshrl.u32 %v6946, 16
        %v7291 = vrot.slane %v7289, 4
        %v7292 = vshll.u32 %v6946, 16
        %v7294 = vrot.slane %v7292, 5
        %v7295 = vor.u32 %v7291, %v7294
        %v7296 = vrot.slane %v7295, 4
        %v7298 = vshll.u32 %v6947, 16
        %v7300 = vrot.slane %v7298, 5
        %v7301 = vsel %vm419, %v7296, %v7300
        %v7302 = vshrl.u32 %v6947, 16
        %v7304 = vrot.slane %v7302, 4
        %v7305 = vor.u32 %v7304, %v7300
        %v7306 = vrot.slane %v7305, 4
        %v7308 = vshll.u32 %v6948, 16
        %v7310 = vrot.slane %v7308, 5
        %v7311 = vsel %vm419, %v7306, %v7310
        %v7313 = vshrl.u32 %v6949, 16
        %v7315 = vrot.slane %v7313, 4
        %v7316 = vshll.u32 %v6949, 16
        %v7318 = vrot.slane %v7316, 5
        %v7319 = vor.u32 %v7315, %v7318
        %v7320 = vrot.slane %v7319, 4
        %v7322 = vshll.u32 %v6950, 16
        %v7324 = vrot.slane %v7322, 5
        %v7325 = vsel %vm419, %v7320, %v7324
        %v7326 = vshrl.u32 %v6950, 16
        %v7328 = vrot.slane %v7326, 4
        %v7329 = vor.u32 %v7328, %v7324
        %v7330 = vrot.slane %v7329, 4
        %v7332 = vshll.u32 %v6951, 16
        %v7334 = vrot.slane %v7332, 5
        %v7335 = vsel %vm419, %v7330, %v7334
        %v7336 = vunpack.c.l.b16 %v6965
        %v7337 = vunpack.c.l.b16 %v6975
        %v7338 = vunpack.c.l.b16 %v6989
        %v7339 = vunpack.c.l.b16 %v6999
        %v7340 = vunpack.c.l.b16 %v7013
        %v7341 = vunpack.c.l.b16 %v7023
        %v7342 = vunpack.c.l.b16 %v7037
        %v7343 = vunpack.c.l.b16 %v7047
        %v7344 = vunpack.c.l.b16 %v7061
        %v7345 = vunpack.c.l.b16 %v7071
        %v7346 = vunpack.c.l.b16 %v7085
        %v7347 = vunpack.c.l.b16 %v7095
        %v7348 = vunpack.c.l.b16 %v7109
        %v7349 = vunpack.c.l.b16 %v7119
        %v7350 = vunpack.c.l.b16 %v7133
        %v7351 = vunpack.c.l.b16 %v7143
        %v7352 = vunpack.c.l.b16 %v7157
        %v7353 = vunpack.c.l.b16 %v7167
        %v7354 = vunpack.c.l.b16 %v7181
        %v7355 = vunpack.c.l.b16 %v7191
        %v7356 = vunpack.c.l.b16 %v7205
        %v7357 = vunpack.c.l.b16 %v7215
        %v7358 = vunpack.c.l.b16 %v7229
        %v7359 = vunpack.c.l.b16 %v7239
        %v7360 = vunpack.c.l.b16 %v7253
        %v7361 = vunpack.c.l.b16 %v7263
        %v7362 = vunpack.c.l.b16 %v7277
        %v7363 = vunpack.c.l.b16 %v7287
        %v7364 = vunpack.c.l.b16 %v7301
        %v7365 = vunpack.c.l.b16 %v7311
        %v7366 = vunpack.c.l.b16 %v7325
        %v7367 = vunpack.c.l.b16 %v7335
        %v7368 = vpack.c.b16 %v7337, %v7336
        %v7369 = vpack.c.b16 %v7339, %v7338
        %v7370 = vpack.c.b16 %v7341, %v7340
        %v7371 = vpack.c.b16 %v7343, %v7342
        %v7372 = vpack.c.b16 %v7345, %v7344
        %v7373 = vpack.c.b16 %v7347, %v7346
        %v7374 = vpack.c.b16 %v7349, %v7348
        %v7375 = vpack.c.b16 %v7351, %v7350
        %v7376 = vpack.c.b16 %v7353, %v7352
        %v7377 = vpack.c.b16 %v7355, %v7354
        %v7378 = vpack.c.b16 %v7357, %v7356
        %v7379 = vpack.c.b16 %v7359, %v7358
        %v7380 = vpack.c.b16 %v7361, %v7360
        %v7381 = vpack.c.b16 %v7363, %v7362
        %v7382 = vpack.c.b16 %v7365, %v7364
        %v7383 = vpack.c.b16 %v7367, %v7366
        %7384 = vrot.lane.b32.xlu0 %v7368, 64
        %v7385 = vpop.permute.xlu0 %7384
        %7386 = vrot.lane.b32.xlu0 %v7369, 64
        %v7387 = vpop.permute.xlu0 %7386
        %7388 = vrot.lane.b32.xlu0 %v7370, 64
        %v7389 = vpop.permute.xlu0 %7388
        %7390 = vrot.lane.b32.xlu0 %v7371, 64
        %v7391 = vpop.permute.xlu0 %7390
        %7392 = vrot.lane.b32.xlu0 %v7372, 64
        %v7393 = vpop.permute.xlu0 %7392
        %7394 = vrot.lane.b32.xlu0 %v7373, 64
        %v7395 = vpop.permute.xlu0 %7394
        %7396 = vrot.lane.b32.xlu0 %v7374, 64
        %v7397 = vpop.permute.xlu0 %7396
        %7398 = vrot.lane.b32.xlu0 %v7375, 64
        %v7399 = vpop.permute.xlu0 %7398
        %7400 = vrot.lane.b32.xlu0 %v7376, 64
        %v7401 = vpop.permute.xlu0 %7400
        %7402 = vrot.lane.b32.xlu0 %v7377, 64
        %v7403 = vpop.permute.xlu0 %7402
        %7404 = vrot.lane.b32.xlu0 %v7378, 64
        %v7405 = vpop.permute.xlu0 %7404
        %7406 = vrot.lane.b32.xlu0 %v7379, 64
        %v7407 = vpop.permute.xlu0 %7406
        %7408 = vrot.lane.b32.xlu0 %v7380, 64
        %v7409 = vpop.permute.xlu0 %7408
        %7410 = vrot.lane.b32.xlu0 %v7381, 64
        %v7411 = vpop.permute.xlu0 %7410
        %7412 = vrot.lane.b32.xlu0 %v7382, 64
        %v7413 = vpop.permute.xlu0 %7412
        %7414 = vrot.lane.b32.xlu0 %v7383, 64
        %v7415 = vpop.permute.xlu0 %7414
        %7432 = vst.msk [vmem:[#allocation2 + $0x18] sm:$0xff] %vm900, %v7385
        %7433 = vst.msk [vmem:[#allocation2 + $0x40] sm:$0xff] %vm900, %v7387
        %7434 = vst.msk [vmem:[#allocation2 + $0x68] sm:$0xff] %vm900, %v7389
        %7435 = vst.msk [vmem:[#allocation2 + $0x90] sm:$0xff] %vm900, %v7391
        %7436 = vst.msk [vmem:[#allocation2 + $0xb8] sm:$0xff] %vm900, %v7393
        %7437 = vst.msk [vmem:[#allocation2 + $0xe0] sm:$0xff] %vm900, %v7395
        %7438 = vst.msk [vmem:[#allocation2 + $0x108] sm:$0xff] %vm900, %v7397
        %7439 = vst.msk [vmem:[#allocation2 + $0x130] sm:$0xff] %vm900, %v7399
        %7440 = vst.msk [vmem:[#allocation2 + $0x158] sm:$0xff] %vm900, %v7401
        %7441 = vst.msk [vmem:[#allocation2 + $0x180] sm:$0xff] %vm900, %v7403
        %7442 = vst.msk [vmem:[#allocation2 + $0x1a8] sm:$0xff] %vm900, %v7405
        %7443 = vst.msk [vmem:[#allocation2 + $0x1d0] sm:$0xff] %vm900, %v7407
        %7444 = vst.msk [vmem:[#allocation2 + $0x1f8] sm:$0xff] %vm900, %v7409
        %7445 = vst.msk [vmem:[#allocation2 + $0x220] sm:$0xff] %vm900, %v7411
        %7446 = vst.msk [vmem:[#allocation2 + $0x248] sm:$0xff] %vm900, %v7413
        %7447 = vst.msk [vmem:[#allocation2 + $0x270] sm:$0xff] %vm900, %v7415
        %v7448 = vld [vmem:[%s6759] sm:$0xe]
        %v7449 = vld [vmem:[%s6759 + $0x4] sm:$0xf]
        %v7450 = vld [vmem:[%s6759 + $0x8] sm:$0x1]
        %v7451 = vld [vmem:[%s6759 + $0xc] sm:$0xe]
        %v7452 = vld [vmem:[%s6759 + $0x10] sm:$0xf]
        %v7453 = vld [vmem:[%s6759 + $0x14] sm:$0x1]
        %v7454 = vld [vmem:[%s6759 + $0x18] sm:$0xe]
        %v7455 = vld [vmem:[%s6759 + $0x1c] sm:$0xf]
        %v7456 = vld [vmem:[%s6759 + $0x20] sm:$0x1]
        %v7457 = vld [vmem:[%s6759 + $0x24] sm:$0xe]
        %v7458 = vld [vmem:[%s6759 + $0x28] sm:$0xf]
        %v7459 = vld [vmem:[%s6759 + $0x2c] sm:$0x1]
        %v7460 = vld [vmem:[%s6759 + $0x30] sm:$0xe]
        %v7461 = vld [vmem:[%s6759 + $0x34] sm:$0xf]
        %v7462 = vld [vmem:[%s6759 + $0x38] sm:$0x1]
        %v7463 = vld [vmem:[%s6759 + $0x3c] sm:$0xe]
        %v7464 = vld [vmem:[%s6759 + $0x40] sm:$0xf]
        %v7465 = vld [vmem:[%s6759 + $0x44] sm:$0x1]
        %v7466 = vld [vmem:[%s6759 + $0x48] sm:$0xe]
        %v7467 = vld [vmem:[%s6759 + $0x4c] sm:$0xf]
        %v7468 = vld [vmem:[%s6759 + $0x50] sm:$0x1]
        %v7469 = vld [vmem:[%s6759 + $0x54] sm:$0xe]
        %v7470 = vld [vmem:[%s6759 + $0x58] sm:$0xf]
        %v7471 = vld [vmem:[%s6759 + $0x5c] sm:$0x1]
        %v7472 = vld [vmem:[%s6759 + $0x60] sm:$0xe]
        %v7473 = vld [vmem:[%s6759 + $0x64] sm:$0xf]
        %v7474 = vld [vmem:[%s6759 + $0x68] sm:$0x1]
        %v7475 = vld [vmem:[%s6759 + $0x6c] sm:$0xe]
        %v7476 = vld [vmem:[%s6759 + $0x70] sm:$0xf]
        %v7477 = vld [vmem:[%s6759 + $0x74] sm:$0x1]
        %v7478 = vld [vmem:[%s6759 + $0x78] sm:$0xe]
        %v7479 = vld [vmem:[%s6759 + $0x7c] sm:$0xf]
        %v7480 = vld [vmem:[%s6759 + $0x80] sm:$0x1]
        %v7481 = vld [vmem:[%s6759 + $0x84] sm:$0xe]
        %v7482 = vld [vmem:[%s6759 + $0x88] sm:$0xf]
        %v7483 = vld [vmem:[%s6759 + $0x8c] sm:$0x1]
        %v7484 = vld [vmem:[%s6759 + $0x90] sm:$0xe]
        %v7485 = vld [vmem:[%s6759 + $0x94] sm:$0xf]
        %v7486 = vld [vmem:[%s6759 + $0x98] sm:$0x1]
        %v7487 = vld [vmem:[%s6759 + $0x9c] sm:$0xe]
        %v7488 = vld [vmem:[%s6759 + $0xa0] sm:$0xf]
        %v7489 = vld [vmem:[%s6759 + $0xa4] sm:$0x1]
        %v7490 = vld [vmem:[%s6759 + $0xa8] sm:$0xe]
        %v7491 = vld [vmem:[%s6759 + $0xac] sm:$0xf]
        %v7492 = vld [vmem:[%s6759 + $0xb0] sm:$0x1]
        %v7493 = vld [vmem:[%s6759 + $0xb4] sm:$0xe]
        %v7494 = vld [vmem:[%s6759 + $0xb8] sm:$0xf]
        %v7495 = vld [vmem:[%s6759 + $0xbc] sm:$0x1]
        %v7544 = vrot.slane %v7448, 5
        %v7545 = vrot.slane %v7544, 4
        %v7546 = vrot.slane %v7449, 5
        %v7547 = vsel %vm1015, %v7545, %v7546
        %v7548 = vrot.slane %v7546, 4
        %v7549 = vrot.slane %v7450, 5
        %v7550 = vsel %vm1015, %v7548, %v7549
        %v7551 = vrot.slane %v7451, 5
        %v7552 = vrot.slane %v7551, 4
        %v7553 = vrot.slane %v7452, 5
        %v7554 = vsel %vm1015, %v7552, %v7553
        %v7555 = vrot.slane %v7553, 4
        %v7556 = vrot.slane %v7453, 5
        %v7557 = vsel %vm1015, %v7555, %v7556
        %v7558 = vrot.slane %v7454, 5
        %v7559 = vrot.slane %v7558, 4
        %v7560 = vrot.slane %v7455, 5
        %v7561 = vsel %vm1015, %v7559, %v7560
        %v7562 = vrot.slane %v7560, 4
        %v7563 = vrot.slane %v7456, 5
        %v7564 = vsel %vm1015, %v7562, %v7563
        %v7565 = vrot.slane %v7457, 5
        %v7566 = vrot.slane %v7565, 4
        %v7567 = vrot.slane %v7458, 5
        %v7568 = vsel %vm1015, %v7566, %v7567
        %v7569 = vrot.slane %v7567, 4
        %v7570 = vrot.slane %v7459, 5
        %v7571 = vsel %vm1015, %v7569, %v7570
        %v7572 = vrot.slane %v7460, 5
        %v7573 = vrot.slane %v7572, 4
        %v7574 = vrot.slane %v7461, 5
        %v7575 = vsel %vm1015, %v7573, %v7574
        %v7576 = vrot.slane %v7574, 4
        %v7577 = vrot.slane %v7462, 5
        %v7578 = vsel %vm1015, %v7576, %v7577
        %v7579 = vrot.slane %v7463, 5
        %v7580 = vrot.slane %v7579, 4
        %v7581 = vrot.slane %v7464, 5
        %v7582 = vsel %vm1015, %v7580, %v7581
        %v7583 = vrot.slane %v7581, 4
        %v7584 = vrot.slane %v7465, 5
        %v7585 = vsel %vm1015, %v7583, %v7584
        %v7586 = vrot.slane %v7466, 5
        %v7587 = vrot.slane %v7586, 4
        %v7588 = vrot.slane %v7467, 5
        %v7589 = vsel %vm1015, %v7587, %v7588
        %v7590 = vrot.slane %v7588, 4
        %v7591 = vrot.slane %v7468, 5
        %v7592 = vsel %vm1015, %v7590, %v7591
        %v7593 = vrot.slane %v7469, 5
        %v7594 = vrot.slane %v7593, 4
        %v7595 = vrot.slane %v7470, 5
        %v7596 = vsel %vm1015, %v7594, %v7595
        %v7597 = vrot.slane %v7595, 4
        %v7598 = vrot.slane %v7471, 5
        %v7599 = vsel %vm1015, %v7597, %v7598
        %v7600 = vrot.slane %v7472, 5
        %v7601 = vrot.slane %v7600, 4
        %v7602 = vrot.slane %v7473, 5
        %v7603 = vsel %vm1015, %v7601, %v7602
        %v7604 = vrot.slane %v7602, 4
        %v7605 = vrot.slane %v7474, 5
        %v7606 = vsel %vm1015, %v7604, %v7605
        %v7607 = vrot.slane %v7475, 5
        %v7608 = vrot.slane %v7607, 4
        %v7609 = vrot.slane %v7476, 5
        %v7610 = vsel %vm1015, %v7608, %v7609
        %v7611 = vrot.slane %v7609, 4
        %v7612 = vrot.slane %v7477, 5
        %v7613 = vsel %vm1015, %v7611, %v7612
        %v7614 = vrot.slane %v7478, 5
        %v7615 = vrot.slane %v7614, 4
        %v7616 = vrot.slane %v7479, 5
        %v7617 = vsel %vm1015, %v7615, %v7616
        %v7618 = vrot.slane %v7616, 4
        %v7619 = vrot.slane %v7480, 5
        %v7620 = vsel %vm1015, %v7618, %v7619
        %v7621 = vrot.slane %v7481, 5
        %v7622 = vrot.slane %v7621, 4
        %v7623 = vrot.slane %v7482, 5
        %v7624 = vsel %vm1015, %v7622, %v7623
        %v7625 = vrot.slane %v7623, 4
        %v7626 = vrot.slane %v7483, 5
        %v7627 = vsel %vm1015, %v7625, %v7626
        %v7628 = vrot.slane %v7484, 5
        %v7629 = vrot.slane %v7628, 4
        %v7630 = vrot.slane %v7485, 5
        %v7631 = vsel %vm1015, %v7629, %v7630
        %v7632 = vrot.slane %v7630, 4
        %v7633 = vrot.slane %v7486, 5
        %v7634 = vsel %vm1015, %v7632, %v7633
        %v7635 = vrot.slane %v7487, 5
        %v7636 = vrot.slane %v7635, 4
        %v7637 = vrot.slane %v7488, 5
        %v7638 = vsel %vm1015, %v7636, %v7637
        %v7639 = vrot.slane %v7637, 4
        %v7640 = vrot.slane %v7489, 5
        %v7641 = vsel %vm1015, %v7639, %v7640
        %v7642 = vrot.slane %v7490, 5
        %v7643 = vrot.slane %v7642, 4
        %v7644 = vrot.slane %v7491, 5
        %v7645 = vsel %vm1015, %v7643, %v7644
        %v7646 = vrot.slane %v7644, 4
        %v7647 = vrot.slane %v7492, 5
        %v7648 = vsel %vm1015, %v7646, %v7647
        %v7649 = vrot.slane %v7493, 5
        %v7650 = vrot.slane %v7649, 4
        %v7651 = vrot.slane %v7494, 5
        %v7652 = vsel %vm1015, %v7650, %v7651
        %v7653 = vrot.slane %v7651, 4
        %v7654 = vrot.slane %v7495, 5
        %v7655 = vsel %vm1015, %v7653, %v7654
        %v7656 = vunpack.c.l.b16 %v7547
        %v7657 = vunpack.c.l.b16 %v7550
        %v7658 = vunpack.c.l.b16 %v7554
        %v7659 = vunpack.c.l.b16 %v7557
        %v7660 = vunpack.c.l.b16 %v7561
        %v7661 = vunpack.c.l.b16 %v7564
        %v7662 = vunpack.c.l.b16 %v7568
        %v7663 = vunpack.c.l.b16 %v7571
        %v7664 = vunpack.c.l.b16 %v7575
        %v7665 = vunpack.c.l.b16 %v7578
        %v7666 = vunpack.c.l.b16 %v7582
        %v7667 = vunpack.c.l.b16 %v7585
        %v7668 = vunpack.c.l.b16 %v7589
        %v7669 = vunpack.c.l.b16 %v7592
        %v7670 = vunpack.c.l.b16 %v7596
        %v7671 = vunpack.c.l.b16 %v7599
        %v7672 = vunpack.c.l.b16 %v7603
        %v7673 = vunpack.c.l.b16 %v7606
        %v7674 = vunpack.c.l.b16 %v7610
        %v7675 = vunpack.c.l.b16 %v7613
        %v7676 = vunpack.c.l.b16 %v7617
        %v7677 = vunpack.c.l.b16 %v7620
        %v7678 = vunpack.c.l.b16 %v7624
        %v7679 = vunpack.c.l.b16 %v7627
        %v7680 = vunpack.c.l.b16 %v7631
        %v7681 = vunpack.c.l.b16 %v7634
        %v7682 = vunpack.c.l.b16 %v7638
        %v7683 = vunpack.c.l.b16 %v7641
        %v7684 = vunpack.c.l.b16 %v7645
        %v7685 = vunpack.c.l.b16 %v7648
        %v7686 = vunpack.c.l.b16 %v7652
        %v7687 = vunpack.c.l.b16 %v7655
        %v7688 = vpack.c.b16 %v7657, %v7656
        %v7689 = vpack.c.b16 %v7659, %v7658
        %v7690 = vpack.c.b16 %v7661, %v7660
        %v7691 = vpack.c.b16 %v7663, %v7662
        %v7692 = vpack.c.b16 %v7665, %v7664
        %v7693 = vpack.c.b16 %v7667, %v7666
        %v7694 = vpack.c.b16 %v7669, %v7668
        %v7695 = vpack.c.b16 %v7671, %v7670
        %v7696 = vpack.c.b16 %v7673, %v7672
        %v7697 = vpack.c.b16 %v7675, %v7674
        %v7698 = vpack.c.b16 %v7677, %v7676
        %v7699 = vpack.c.b16 %v7679, %v7678
        %v7700 = vpack.c.b16 %v7681, %v7680
        %v7701 = vpack.c.b16 %v7683, %v7682
        %v7702 = vpack.c.b16 %v7685, %v7684
        %v7703 = vpack.c.b16 %v7687, %v7686
        %7720 = vst.msk [vmem:[#allocation2 + $0x20] sm:$0xff] %vm352, %v7688
        %7721 = vst.msk [vmem:[#allocation2 + $0x48] sm:$0xff] %vm352, %v7689
        %7722 = vst.msk [vmem:[#allocation2 + $0x70] sm:$0xff] %vm352, %v7690
        %7723 = vst.msk [vmem:[#allocation2 + $0x98] sm:$0xff] %vm352, %v7691
        %7724 = vst.msk [vmem:[#allocation2 + $0xc0] sm:$0xff] %vm352, %v7692
        %7725 = vst.msk [vmem:[#allocation2 + $0xe8] sm:$0xff] %vm352, %v7693
        %7726 = vst.msk [vmem:[#allocation2 + $0x110] sm:$0xff] %vm352, %v7694
        %7727 = vst.msk [vmem:[#allocation2 + $0x138] sm:$0xff] %vm352, %v7695
        %7728 = vst.msk [vmem:[#allocation2 + $0x160] sm:$0xff] %vm352, %v7696
        %7729 = vst.msk [vmem:[#allocation2 + $0x188] sm:$0xff] %vm352, %v7697
        %7730 = vst.msk [vmem:[#allocation2 + $0x1b0] sm:$0xff] %vm352, %v7698
        %7731 = vst.msk [vmem:[#allocation2 + $0x1d8] sm:$0xff] %vm352, %v7699
        %7732 = vst.msk [vmem:[#allocation2 + $0x200] sm:$0xff] %vm352, %v7700
        %7733 = vst.msk [vmem:[#allocation2 + $0x228] sm:$0xff] %vm352, %v7701
        %7734 = vst.msk [vmem:[#allocation2 + $0x250] sm:$0xff] %vm352, %v7702
        %7735 = vst.msk [vmem:[#allocation2 + $0x278] sm:$0xff] %vm352, %v7703
        %v7736 = vld [vmem:[#allocation2] sm:$0xff]
        %v7737 = vld [vmem:[#allocation2 + $0x8] sm:$0xff]
        %v7738 = vld [vmem:[#allocation2 + $0x10] sm:$0xff]
        %v7739 = vld [vmem:[#allocation2 + $0x18] sm:$0xff]
        %v7740 = vld [vmem:[#allocation2 + $0x20] sm:$0xff]
        %v7741 = vld [vmem:[#allocation2 + $0x28] sm:$0xff]
        %v7742 = vld [vmem:[#allocation2 + $0x30] sm:$0xff]
        %v7743 = vld [vmem:[#allocation2 + $0x38] sm:$0xff]
        %v7744 = vld [vmem:[#allocation2 + $0x40] sm:$0xff]
        %v7745 = vld [vmem:[#allocation2 + $0x48] sm:$0xff]
        %v7746 = vld [vmem:[#allocation2 + $0x50] sm:$0xff]
        %v7747 = vld [vmem:[#allocation2 + $0x58] sm:$0xff]
        %v7748 = vld [vmem:[#allocation2 + $0x60] sm:$0xff]
        %v7749 = vld [vmem:[#allocation2 + $0x68] sm:$0xff]
        %v7750 = vld [vmem:[#allocation2 + $0x70] sm:$0xff]
        %v7751 = vld [vmem:[#allocation2 + $0x78] sm:$0xff]
        %v7752 = vld [vmem:[#allocation2 + $0x80] sm:$0xff]
        %v7753 = vld [vmem:[#allocation2 + $0x88] sm:$0xff]
        %v7754 = vld [vmem:[#allocation2 + $0x90] sm:$0xff]
        %v7755 = vld [vmem:[#allocation2 + $0x98] sm:$0xff]
        %v7756 = vld [vmem:[#allocation2 + $0xa0] sm:$0xff]
        %v7757 = vld [vmem:[#allocation2 + $0xa8] sm:$0xff]
        %v7758 = vld [vmem:[#allocation2 + $0xb0] sm:$0xff]
        %v7759 = vld [vmem:[#allocation2 + $0xb8] sm:$0xff]
        %v7760 = vld [vmem:[#allocation2 + $0xc0] sm:$0xff]
        %v7761 = vld [vmem:[#allocation2 + $0xc8] sm:$0xff]
        %v7762 = vld [vmem:[#allocation2 + $0xd0] sm:$0xff]
        %v7763 = vld [vmem:[#allocation2 + $0xd8] sm:$0xff]
        %v7764 = vld [vmem:[#allocation2 + $0xe0] sm:$0xff]
        %v7765 = vld [vmem:[#allocation2 + $0xe8] sm:$0xff]
        %v7766 = vld [vmem:[#allocation2 + $0xf0] sm:$0xff]
        %v7767 = vld [vmem:[#allocation2 + $0xf8] sm:$0xff]
        %v7768 = vld [vmem:[#allocation2 + $0x100] sm:$0xff]
        %v7769 = vld [vmem:[#allocation2 + $0x108] sm:$0xff]
        %v7770 = vld [vmem:[#allocation2 + $0x110] sm:$0xff]
        %v7771 = vld [vmem:[#allocation2 + $0x118] sm:$0xff]
        %v7772 = vld [vmem:[#allocation2 + $0x120] sm:$0xff]
        %v7773 = vld [vmem:[#allocation2 + $0x128] sm:$0xff]
        %v7774 = vld [vmem:[#allocation2 + $0x130] sm:$0xff]
        %v7775 = vld [vmem:[#allocation2 + $0x138] sm:$0xff]
        %v7776 = vld [vmem:[#allocation2 + $0x140] sm:$0xff]
        %v7777 = vld [vmem:[#allocation2 + $0x148] sm:$0xff]
        %v7778 = vld [vmem:[#allocation2 + $0x150] sm:$0xff]
        %v7779 = vld [vmem:[#allocation2 + $0x158] sm:$0xff]
        %v7780 = vld [vmem:[#allocation2 + $0x160] sm:$0xff]
        %v7781 = vld [vmem:[#allocation2 + $0x168] sm:$0xff]
        %v7782 = vld [vmem:[#allocation2 + $0x170] sm:$0xff]
        %v7783 = vld [vmem:[#allocation2 + $0x178] sm:$0xff]
        %v7784 = vld [vmem:[#allocation2 + $0x180] sm:$0xff]
        %v7785 = vld [vmem:[#allocation2 + $0x188] sm:$0xff]
        %v7786 = vld [vmem:[#allocation2 + $0x190] sm:$0xff]
        %v7787 = vld [vmem:[#allocation2 + $0x198] sm:$0xff]
        %v7788 = vld [vmem:[#allocation2 + $0x1a0] sm:$0xff]
        %v7789 = vld [vmem:[#allocation2 + $0x1a8] sm:$0xff]
        %v7790 = vld [vmem:[#allocation2 + $0x1b0] sm:$0xff]
        %v7791 = vld [vmem:[#allocation2 + $0x1b8] sm:$0xff]
        %v7792 = vld [vmem:[#allocation2 + $0x1c0] sm:$0xff]
        %v7793 = vld [vmem:[#allocation2 + $0x1c8] sm:$0xff]
        %v7794 = vld [vmem:[#allocation2 + $0x1d0] sm:$0xff]
        %v7795 = vld [vmem:[#allocation2 + $0x1d8] sm:$0xff]
        %v7796 = vld [vmem:[#allocation2 + $0x1e0] sm:$0xff]
        %v7797 = vld [vmem:[#allocation2 + $0x1e8] sm:$0xff]
        %v7798 = vld [vmem:[#allocation2 + $0x1f0] sm:$0xff]
        %v7799 = vld [vmem:[#allocation2 + $0x1f8] sm:$0xff]
        %v7800 = vld [vmem:[#allocation2 + $0x200] sm:$0xff]
        %v7801 = vld [vmem:[#allocation2 + $0x208] sm:$0xff]
        %v7802 = vld [vmem:[#allocation2 + $0x210] sm:$0xff]
        %v7803 = vld [vmem:[#allocation2 + $0x218] sm:$0xff]
        %v7804 = vld [vmem:[#allocation2 + $0x220] sm:$0xff]
        %v7805 = vld [vmem:[#allocation2 + $0x228] sm:$0xff]
        %v7806 = vld [vmem:[#allocation2 + $0x230] sm:$0xff]
        %v7807 = vld [vmem:[#allocation2 + $0x238] sm:$0xff]
        %v7808 = vld [vmem:[#allocation2 + $0x240] sm:$0xff]
        %v7809 = vld [vmem:[#allocation2 + $0x248] sm:$0xff]
        %v7810 = vld [vmem:[#allocation2 + $0x250] sm:$0xff]
        %v7811 = vld [vmem:[#allocation2 + $0x258] sm:$0xff]
        %v7812 = vld [vmem:[#allocation2 + $0x260] sm:$0xff]
        %v7813 = vld [vmem:[#allocation2 + $0x268] sm:$0xff]
        %v7814 = vld [vmem:[#allocation2 + $0x270] sm:$0xff]
        %v7815 = vld [vmem:[#allocation2 + $0x278] sm:$0xff]
        %v7816 = vld [vmem:[%s3] sm:$0xf]
        %v7817 = vld [vmem:[%s3 + $0x4] sm:$0xf]
        %v7818 = vld [vmem:[%s3 + $0x8] sm:$0xf]
        %v7819 = vld [vmem:[%s3 + $0xc] sm:$0xf]
        %v7820 = vld [vmem:[%s3 + $0x10] sm:$0xf]
        %v7821 = vld [vmem:[%s3 + $0x14] sm:$0xf]
        %v7822 = vld [vmem:[%s3 + $0x18] sm:$0xf]
        %v7823 = vld [vmem:[%s3 + $0x1c] sm:$0xf]
        %v7824 = vld [vmem:[%s3 + $0x20] sm:$0xf]
        %v7825 = vld [vmem:[%s3 + $0x24] sm:$0xf]
        %v7826 = vld [vmem:[%s3 + $0x28] sm:$0xf]
        %v7827 = vld [vmem:[%s3 + $0x2c] sm:$0xf]
        %v7828 = vld [vmem:[%s3 + $0x30] sm:$0xf]
        %v7829 = vld [vmem:[%s3 + $0x34] sm:$0xf]
        %v7830 = vld [vmem:[%s3 + $0x38] sm:$0xf]
        %v7831 = vld [vmem:[%s3 + $0x3c] sm:$0xf]
        %v7832 = vld [vmem:[%s3 + $0x40] sm:$0xf]
        %v7833 = vld [vmem:[%s3 + $0x44] sm:$0xf]
        %v7834 = vld [vmem:[%s3 + $0x48] sm:$0xf]
        %v7835 = vld [vmem:[%s3 + $0x4c] sm:$0xf]
        %v7836 = vld [vmem:[%s3 + $0x50] sm:$0xf]
        %v7837 = vld [vmem:[%s3 + $0x54] sm:$0xf]
        %v7838 = vld [vmem:[%s3 + $0x58] sm:$0xf]
        %v7839 = vld [vmem:[%s3 + $0x5c] sm:$0xf]
        %v7840 = vld [vmem:[%s3 + $0x60] sm:$0xf]
        %v7841 = vld [vmem:[%s3 + $0x64] sm:$0xf]
        %v7842 = vld [vmem:[%s3 + $0x68] sm:$0xf]
        %v7843 = vld [vmem:[%s3 + $0x6c] sm:$0xf]
        %v7844 = vld [vmem:[%s3 + $0x70] sm:$0xf]
        %v7845 = vld [vmem:[%s3 + $0x74] sm:$0xf]
        %v7846 = vld [vmem:[%s3 + $0x78] sm:$0xf]
        %v7847 = vld [vmem:[%s3 + $0x7c] sm:$0xf]
        %v7848 = vld [vmem:[%s3 + $0x80] sm:$0xf]
        %v7849 = vld [vmem:[%s3 + $0x84] sm:$0xf]
        %v7850 = vld [vmem:[%s3 + $0x88] sm:$0xf]
        %v7851 = vld [vmem:[%s3 + $0x8c] sm:$0xf]
        %v7852 = vld [vmem:[%s3 + $0x90] sm:$0xf]
        %v7853 = vld [vmem:[%s3 + $0x94] sm:$0xf]
        %v7854 = vld [vmem:[%s3 + $0x98] sm:$0xf]
        %v7855 = vld [vmem:[%s3 + $0x9c] sm:$0xf]
        %v7856 = vld [vmem:[%s3 + $0xa0] sm:$0xf]
        %v7857 = vld [vmem:[%s3 + $0xa4] sm:$0xf]
        %v7858 = vld [vmem:[%s3 + $0xa8] sm:$0xf]
        %v7859 = vld [vmem:[%s3 + $0xac] sm:$0xf]
        %v7860 = vld [vmem:[%s3 + $0xb0] sm:$0xf]
        %v7861 = vld [vmem:[%s3 + $0xb4] sm:$0xf]
        %v7862 = vld [vmem:[%s3 + $0xb8] sm:$0xf]
        %v7863 = vld [vmem:[%s3 + $0xbc] sm:$0xf]
        %v7864 = vld [vmem:[%s3 + $0xc0] sm:$0xf]
        %v7865 = vld [vmem:[%s3 + $0xc4] sm:$0xf]
        %v7866 = vld [vmem:[%s3 + $0xc8] sm:$0xf]
        %v7867 = vld [vmem:[%s3 + $0xcc] sm:$0xf]
        %v7868 = vld [vmem:[%s3 + $0xd0] sm:$0xf]
        %v7869 = vld [vmem:[%s3 + $0xd4] sm:$0xf]
        %v7870 = vld [vmem:[%s3 + $0xd8] sm:$0xf]
        %v7871 = vld [vmem:[%s3 + $0xdc] sm:$0xf]
        %v7872 = vld [vmem:[%s3 + $0xe0] sm:$0xf]
        %v7873 = vld [vmem:[%s3 + $0xe4] sm:$0xf]
        %v7874 = vld [vmem:[%s3 + $0xe8] sm:$0xf]
        %v7875 = vld [vmem:[%s3 + $0xec] sm:$0xf]
        %v7876 = vld [vmem:[%s3 + $0xf0] sm:$0xf]
        %v7877 = vld [vmem:[%s3 + $0xf4] sm:$0xf]
        %v7878 = vld [vmem:[%s3 + $0xf8] sm:$0xf]
        %v7879 = vld [vmem:[%s3 + $0xfc] sm:$0xf]
        %v7880 = vld [vmem:[%s3 + $0x100] sm:$0xf]
        %v7881 = vld [vmem:[%s3 + $0x104] sm:$0xf]
        %v7882 = vld [vmem:[%s3 + $0x108] sm:$0xf]
        %v7883 = vld [vmem:[%s3 + $0x10c] sm:$0xf]
        %v7884 = vld [vmem:[%s3 + $0x110] sm:$0xf]
        %v7885 = vld [vmem:[%s3 + $0x114] sm:$0xf]
        %v7886 = vld [vmem:[%s3 + $0x118] sm:$0xf]
        %v7887 = vld [vmem:[%s3 + $0x11c] sm:$0xf]
        %v7888 = vld [vmem:[%s4] sm:$0x1]
        %v7890 = vlaneseq
        %v7891 = vshrl.u32 %v7890, 7
        %v7892 = vsub.s32 0, %v7891
        %v7893 = vrot.slane %v7888, %v7892
        %v7967 = vunpack.c.l.b16 %v7816
        %v7968 = vunpack.c.l.b16 %v7817
        %v7969 = vunpack.c.l.b16 %v7818
        %v7970 = vunpack.c.l.b16 %v7819
        %v7971 = vunpack.c.l.b16 %v7820
        %v7972 = vunpack.c.l.b16 %v7821
        %v7973 = vunpack.c.l.b16 %v7822
        %v7974 = vunpack.c.l.b16 %v7823
        %v7975 = vunpack.c.l.b16 %v7824
        %v7976 = vunpack.c.l.b16 %v7825
        %v7977 = vunpack.c.l.b16 %v7826
        %v7978 = vunpack.c.l.b16 %v7827
        %v7979 = vunpack.c.l.b16 %v7828
        %v7980 = vunpack.c.l.b16 %v7829
        %v7981 = vunpack.c.l.b16 %v7830
        %v7982 = vunpack.c.l.b16 %v7831
        %v7983 = vunpack.c.l.b16 %v7832
        %v7984 = vunpack.c.l.b16 %v7833
        %v7985 = vunpack.c.l.b16 %v7834
        %v7986 = vunpack.c.l.b16 %v7835
        %v7987 = vunpack.c.l.b16 %v7836
        %v7988 = vunpack.c.l.b16 %v7837
        %v7989 = vunpack.c.l.b16 %v7838
        %v7990 = vunpack.c.l.b16 %v7839
        %v7991 = vunpack.c.l.b16 %v7840
        %v7992 = vunpack.c.l.b16 %v7841
        %v7993 = vunpack.c.l.b16 %v7842
        %v7994 = vunpack.c.l.b16 %v7843
        %v7995 = vunpack.c.l.b16 %v7844
        %v7996 = vunpack.c.l.b16 %v7845
        %v7997 = vunpack.c.l.b16 %v7846
        %v7998 = vunpack.c.l.b16 %v7847
        %v7999 = vunpack.c.l.b16 %v7848
        %v8000 = vunpack.c.l.b16 %v7849
        %v8001 = vunpack.c.l.b16 %v7850
        %v8002 = vunpack.c.l.b16 %v7851
        %v8003 = vunpack.c.l.b16 %v7852
        %v8004 = vunpack.c.l.b16 %v7853
        %v8005 = vunpack.c.l.b16 %v7854
        %v8006 = vunpack.c.l.b16 %v7855
        %v8007 = vunpack.c.l.b16 %v7856
        %v8008 = vunpack.c.l.b16 %v7857
        %v8009 = vunpack.c.l.b16 %v7858
        %v8010 = vunpack.c.l.b16 %v7859
        %v8011 = vunpack.c.l.b16 %v7860
        %v8012 = vunpack.c.l.b16 %v7861
        %v8013 = vunpack.c.l.b16 %v7862
        %v8014 = vunpack.c.l.b16 %v7863
        %v8015 = vunpack.c.l.b16 %v7864
        %v8016 = vunpack.c.l.b16 %v7865
        %v8017 = vunpack.c.l.b16 %v7866
        %v8018 = vunpack.c.l.b16 %v7867
        %v8019 = vunpack.c.l.b16 %v7868
        %v8020 = vunpack.c.l.b16 %v7869
        %v8021 = vunpack.c.l.b16 %v7870
        %v8022 = vunpack.c.l.b16 %v7871
        %v8023 = vunpack.c.l.b16 %v7872
        %v8024 = vunpack.c.l.b16 %v7873
        %v8025 = vunpack.c.l.b16 %v7874
        %v8026 = vunpack.c.l.b16 %v7875
        %v8027 = vunpack.c.l.b16 %v7876
        %v8028 = vunpack.c.l.b16 %v7877
        %v8029 = vunpack.c.l.b16 %v7878
        %v8030 = vunpack.c.l.b16 %v7879
        %v8031 = vunpack.c.l.b16 %v7880
        %v8032 = vunpack.c.l.b16 %v7881
        %v8033 = vunpack.c.l.b16 %v7882
        %v8034 = vunpack.c.l.b16 %v7883
        %v8035 = vunpack.c.l.b16 %v7884
        %v8036 = vunpack.c.l.b16 %v7885
        %v8037 = vunpack.c.l.b16 %v7886
        %v8038 = vunpack.c.l.b16 %v7887
        %v8039 = vpack.c.b16 %v7968, %v7967
        %v8040 = vpack.c.b16 %v7970, %v7969
        %v8041 = vpack.c.b16 %v7972, %v7971
        %v8042 = vpack.c.b16 %v7974, %v7973
        %v8043 = vpack.c.b16 %v7976, %v7975
        %v8044 = vpack.c.b16 %v7978, %v7977
        %v8045 = vpack.c.b16 %v7980, %v7979
        %v8046 = vpack.c.b16 %v7982, %v7981
        %v8047 = vpack.c.b16 %v7984, %v7983
        %v8048 = vpack.c.b16 %v7986, %v7985
        %v8049 = vpack.c.b16 %v7988, %v7987
        %v8050 = vpack.c.b16 %v7990, %v7989
        %v8051 = vpack.c.b16 %v7992, %v7991
        %v8052 = vpack.c.b16 %v7994, %v7993
        %v8053 = vpack.c.b16 %v7996, %v7995
        %v8054 = vpack.c.b16 %v7998, %v7997
        %v8055 = vpack.c.b16 %v8000, %v7999
        %v8056 = vpack.c.b16 %v8002, %v8001
        %v8057 = vpack.c.b16 %v8004, %v8003
        %v8058 = vpack.c.b16 %v8006, %v8005
        %v8059 = vpack.c.b16 %v8008, %v8007
        %v8060 = vpack.c.b16 %v8010, %v8009
        %v8061 = vpack.c.b16 %v8012, %v8011
        %v8062 = vpack.c.b16 %v8014, %v8013
        %v8063 = vpack.c.b16 %v8016, %v8015
        %v8064 = vpack.c.b16 %v8018, %v8017
        %v8065 = vpack.c.b16 %v8020, %v8019
        %v8066 = vpack.c.b16 %v8022, %v8021
        %v8067 = vpack.c.b16 %v8024, %v8023
        %v8068 = vpack.c.b16 %v8026, %v8025
        %v8069 = vpack.c.b16 %v8028, %v8027
        %v8070 = vpack.c.b16 %v8030, %v8029
        %v8071 = vpack.c.b16 %v8032, %v8031
        %v8072 = vpack.c.b16 %v8034, %v8033
        %v8073 = vpack.c.b16 %v8036, %v8035
        %v8074 = vpack.c.b16 %v8038, %v8037
        %v8112 = vsel %vm352, %v7740, 0
        %v8115 = vsel %vm352, %v7745, 0
        %v8118 = vsel %vm352, %v7750, 0
        %v8121 = vsel %vm352, %v7755, 0
        %v8124 = vsel %vm352, %v7760, 0
        %v8127 = vsel %vm352, %v7765, 0
        %v8130 = vsel %vm352, %v7770, 0
        %v8133 = vsel %vm352, %v7775, 0
        %v8136 = vsel %vm352, %v7780, 0
        %v8139 = vsel %vm352, %v7785, 0
        %v8142 = vsel %vm352, %v7790, 0
        %v8145 = vsel %vm352, %v7795, 0
        %v8148 = vsel %vm352, %v7800, 0
        %v8151 = vsel %vm352, %v7805, 0
        %v8154 = vsel %vm352, %v7810, 0
        %v8157 = vsel %vm352, %v7815, 0
        %8159 = vmatprep.subr.bf16.mxu0 0
        %8160 = vmatpush1.bf16.msra.mxu0 %v8039
        %8161 = vmatprep.subr.bf16.mxu0 0
        %8162 = vmatpush1.bf16.msra.mxu0 %v8040
        %8163 = vmatprep.subr.bf16.mxu0 0
        %8164 = vmatpush1.bf16.msra.mxu0 %v8041
        %8165 = vmatprep.subr.bf16.mxu0 0
        %8166 = vmatpush1.bf16.msra.mxu0 %v8042
        %8167 = vmatprep.subr.bf16.mxu0 0
        %8168 = vmatpush1.bf16.msra.mxu0 %v8043
        %8169 = vmatprep.subr.bf16.mxu0 0
        %8170 = vmatpush1.bf16.msra.mxu0 %v8044
        %8171 = vmatprep.subr.bf16.mxu0 0
        %8172 = vmatpush1.bf16.msra.mxu0 %v8045
        %8173 = vmatprep.subr.bf16.mxu0 0
        %8174 = vmatpush1.bf16.msra.mxu0 %v8046
        %8175 = vmatprep.subr.bf16.mxu0 0
        %8176 = vmatpush1.bf16.msra.mxu0 %v8047
        %8177 = vmatprep.subr.bf16.mxu0 0
        %8178 = vmatpush1.bf16.msra.mxu0 %v8048
        %8179 = vmatprep.subr.bf16.mxu0 0
        %8180 = vmatpush1.bf16.msra.mxu0 %v8049
        %8181 = vmatprep.subr.bf16.mxu0 0
        %8182 = vmatpush1.bf16.msra.mxu0 %v8050
        %8183 = vmatprep.subr.bf16.mxu0 0
        %8184 = vmatpush1.bf16.msra.mxu0 %v8051
        %8185 = vmatprep.subr.bf16.mxu0 0
        %8186 = vmatpush1.bf16.msra.mxu0 %v8052
        %8187 = vmatprep.subr.bf16.mxu0 0
        %8188 = vmatpush1.bf16.msra.mxu0 %v8053
        %8189 = vmatprep.subr.bf16.mxu0 0
        %8190 = vmatpush1.bf16.msra.mxu0 %v8054
        %8191 = vmatprep.mubr.bf16.mxu0 %v7737
        %8192 = vmatmul.mubr.bf16.gmra.mrb[0].mxu0 %v7736
        %v8193 = vpop.f32.mrb[0].mxu0
        %v8194 = vadd.f32 %v7893, %v8193
        %v8195 = vpop.f32.mrb[0].mxu0
        %v8196 = vpop.f32.mrb[0].mxu0
        %v8197 = vadd.f32 %v7893, %v8196
        %v8198 = vpop.f32.mrb[0].mxu0
        %8199 = vmatprep.mubr.bf16.mxu0 %v7742
        %8200 = vmatmul.mubr.bf16.gmra.mrb[0].mxu0 %v7741
        %v8201 = vpop.f32.mrb[0].mxu0
        %v8202 = vadd.f32 %v7893, %v8201
        %v8203 = vpop.f32.mrb[0].mxu0
        %v8204 = vpop.f32.mrb[0].mxu0
        %v8205 = vadd.f32 %v7893, %v8204
        %v8206 = vpop.f32.mrb[0].mxu0
        %8207 = vmatprep.mubr.bf16.mxu0 %v7747
        %8208 = vmatmul.mubr.bf16.gmra.mrb[0].mxu0 %v7746
        %v8209 = vpop.f32.mrb[0].mxu0
        %v8210 = vadd.f32 %v7893, %v8209
        %v8211 = vpop.f32.mrb[0].mxu0
        %v8212 = vpop.f32.mrb[0].mxu0
        %v8213 = vadd.f32 %v7893, %v8212
        %v8214 = vpop.f32.mrb[0].mxu0
        %8215 = vmatprep.mubr.bf16.mxu0 %v7752
        %8216 = vmatmul.mubr.bf16.gmra.mrb[0].mxu0 %v7751
        %v8217 = vpop.f32.mrb[0].mxu0
        %v8218 = vadd.f32 %v7893, %v8217
        %v8219 = vpop.f32.mrb[0].mxu0
        %v8220 = vpop.f32.mrb[0].mxu0
        %v8221 = vadd.f32 %v7893, %v8220
        %v8222 = vpop.f32.mrb[0].mxu0
        %8223 = vmatprep.mubr.bf16.mxu0 %v7757
        %8224 = vmatmul.mubr.bf16.gmra.mrb[0].mxu0 %v7756
        %v8225 = vpop.f32.mrb[0].mxu0
        %v8226 = vadd.f32 %v7893, %v8225
        %v8227 = vpop.f32.mrb[0].mxu0
        %v8228 = vpop.f32.mrb[0].mxu0
        %v8229 = vadd.f32 %v7893, %v8228
        %v8230 = vpop.f32.mrb[0].mxu0
        %8231 = vmatprep.mubr.bf16.mxu0 %v7762
        %8232 = vmatmul.mubr.bf16.gmra.mrb[0].mxu0 %v7761
        %v8233 = vpop.f32.mrb[0].mxu0
        %v8234 = vadd.f32 %v7893, %v8233
        %v8235 = vpop.f32.mrb[0].mxu0
        %v8236 = vpop.f32.mrb[0].mxu0
        %v8237 = vadd.f32 %v7893, %v8236
        %v8238 = vpop.f32.mrb[0].mxu0
        %8239 = vmatprep.mubr.bf16.mxu0 %v7767
        %8240 = vmatmul.mubr.bf16.gmra.mrb[0].mxu0 %v7766
        %v8241 = vpop.f32.mrb[0].mxu0
        %v8242 = vadd.f32 %v7893, %v8241
        %v8243 = vpop.f32.mrb[0].mxu0
        %v8244 = vpop.f32.mrb[0].mxu0
        %v8245 = vadd.f32 %v7893, %v8244
        %v8246 = vpop.f32.mrb[0].mxu0
        %8247 = vmatprep.mubr.bf16.mxu0 %v7772
        %8248 = vmatmul.mubr.bf16.gmra.mrb[0].mxu0 %v7771
        %v8249 = vpop.f32.mrb[0].mxu0
        %v8250 = vadd.f32 %v7893, %v8249
        %v8251 = vpop.f32.mrb[0].mxu0
        %v8252 = vpop.f32.mrb[0].mxu0
        %v8253 = vadd.f32 %v7893, %v8252
        %v8254 = vpop.f32.mrb[0].mxu0
        %8255 = vmatprep.mubr.bf16.mxu0 %v7777
        %8256 = vmatmul.mubr.bf16.gmra.mrb[0].mxu0 %v7776
        %v8257 = vpop.f32.mrb[0].mxu0
        %v8258 = vadd.f32 %v7893, %v8257
        %v8259 = vpop.f32.mrb[0].mxu0
        %v8260 = vpop.f32.mrb[0].mxu0
        %v8261 = vadd.f32 %v7893, %v8260
        %v8262 = vpop.f32.mrb[0].mxu0
        %8263 = vmatprep.mubr.bf16.mxu0 %v7782
        %8264 = vmatmul.mubr.bf16.gmra.mrb[0].mxu0 %v7781
        %v8265 = vpop.f32.mrb[0].mxu0
        %v8266 = vadd.f32 %v7893, %v8265
        %v8267 = vpop.f32.mrb[0].mxu0
        %v8268 = vpop.f32.mrb[0].mxu0
        %v8269 = vadd.f32 %v7893, %v8268
        %v8270 = vpop.f32.mrb[0].mxu0
        %8271 = vmatprep.mubr.bf16.mxu0 %v7787
        %8272 = vmatmul.mubr.bf16.gmra.mrb[0].mxu0 %v7786
        %v8273 = vpop.f32.mrb[0].mxu0
        %v8274 = vadd.f32 %v7893, %v8273
        %v8275 = vpop.f32.mrb[0].mxu0
        %v8276 = vpop.f32.mrb[0].mxu0
        %v8277 = vadd.f32 %v7893, %v8276
        %v8278 = vpop.f32.mrb[0].mxu0
        %8279 = vmatprep.mubr.bf16.mxu0 %v7792
        %8280 = vmatmul.mubr.bf16.gmra.mrb[0].mxu0 %v7791
        %v8281 = vpop.f32.mrb[0].mxu0
        %v8282 = vadd.f32 %v7893, %v8281
        %v8283 = vpop.f32.mrb[0].mxu0
        %v8284 = vpop.f32.mrb[0].mxu0
        %v8285 = vadd.f32 %v7893, %v8284
        %v8286 = vpop.f32.mrb[0].mxu0
        %8287 = vmatprep.mubr.bf16.mxu0 %v7797
        %8288 = vmatmul.mubr.bf16.gmra.mrb[0].mxu0 %v7796
        %v8289 = vpop.f32.mrb[0].mxu0
        %v8290 = vadd.f32 %v7893, %v8289
        %v8291 = vpop.f32.mrb[0].mxu0
        %v8292 = vpop.f32.mrb[0].mxu0
        %v8293 = vadd.f32 %v7893, %v8292
        %v8294 = vpop.f32.mrb[0].mxu0
        %8295 = vmatprep.mubr.bf16.mxu0 %v7802
        %8296 = vmatmul.mubr.bf16.gmra.mrb[0].mxu0 %v7801
        %v8297 = vpop.f32.mrb[0].mxu0
        %v8298 = vadd.f32 %v7893, %v8297
        %v8299 = vpop.f32.mrb[0].mxu0
        %v8300 = vpop.f32.mrb[0].mxu0
        %v8301 = vadd.f32 %v7893, %v8300
        %v8302 = vpop.f32.mrb[0].mxu0
        %8303 = vmatprep.mubr.bf16.mxu0 %v7807
        %8304 = vmatmul.mubr.bf16.gmra.mrb[0].mxu0 %v7806
        %v8305 = vpop.f32.mrb[0].mxu0
        %v8306 = vadd.f32 %v7893, %v8305
        %v8307 = vpop.f32.mrb[0].mxu0
        %v8308 = vpop.f32.mrb[0].mxu0
        %v8309 = vadd.f32 %v7893, %v8308
        %v8310 = vpop.f32.mrb[0].mxu0
        %8311 = vmatprep.mubr.bf16.mxu0 %v7812
        %8312 = vmatmul.mubr.bf16.gmra.mrb[0].mxu0 %v7811
        %v8313 = vpop.f32.mrb[0].mxu0
        %v8314 = vadd.f32 %v7893, %v8313
        %v8315 = vpop.f32.mrb[0].mxu0
        %v8316 = vpop.f32.mrb[0].mxu0
        %v8317 = vadd.f32 %v7893, %v8316
        %v8318 = vpop.f32.mrb[0].mxu0
        %8319 = vdwg.mxu0
        %8320 = vmatprep.subr.bf16.mxu0 0
        %8321 = vmatpush1.bf16.msra.mxu0 %v8055
        %8322 = vmatprep.subr.bf16.mxu0 0
        %8323 = vmatpush1.bf16.msra.mxu0 %v8056
        %8324 = vmatprep.subr.bf16.mxu0 0
        %8325 = vmatpush1.bf16.msra.mxu0 %v8057
        %8326 = vmatprep.subr.bf16.mxu0 0
        %8327 = vmatpush1.bf16.msra.mxu0 %v8058
        %8328 = vmatprep.subr.bf16.mxu0 0
        %8329 = vmatpush1.bf16.msra.mxu0 %v8059
        %8330 = vmatprep.subr.bf16.mxu0 0
        %8331 = vmatpush1.bf16.msra.mxu0 %v8060
        %8332 = vmatprep.subr.bf16.mxu0 0
        %8333 = vmatpush1.bf16.msra.mxu0 %v8061
        %8334 = vmatprep.subr.bf16.mxu0 0
        %8335 = vmatpush1.bf16.msra.mxu0 %v8062
        %8336 = vmatprep.subr.bf16.mxu0 0
        %8337 = vmatpush1.bf16.msra.mxu0 %v8063
        %8338 = vmatprep.subr.bf16.mxu0 0
        %8339 = vmatpush1.bf16.msra.mxu0 %v8064
        %8340 = vmatprep.subr.bf16.mxu0 0
        %8341 = vmatpush1.bf16.msra.mxu0 %v8065
        %8342 = vmatprep.subr.bf16.mxu0 0
        %8343 = vmatpush1.bf16.msra.mxu0 %v8066
        %8344 = vmatprep.subr.bf16.mxu0 0
        %8345 = vmatpush1.bf16.msra.mxu0 %v8067
        %8346 = vmatprep.subr.bf16.mxu0 0
        %8347 = vmatpush1.bf16.msra.mxu0 %v8068
        %8348 = vmatprep.subr.bf16.mxu0 0
        %8349 = vmatpush1.bf16.msra.mxu0 %v8069
        %8350 = vmatprep.subr.bf16.mxu0 0
        %8351 = vmatpush1.bf16.msra.mxu0 %v8070
        %8352 = vmatprep.mubr.bf16.mxu0 %v7739
        %8353 = vmatmul.mubr.bf16.gmra.mrb[0].mxu0 %v7738
        %v8354 = vpop.f32.mrb[0].mxu0
        %v8355 = vadd.f32 %v8194, %v8354
        %v8356 = vpop.f32.mrb[0].mxu0
        %v8357 = vpop.f32.mrb[0].mxu0
        %v8358 = vadd.f32 %v8197, %v8357
        %v8359 = vpop.f32.mrb[0].mxu0
        %8360 = vmatprep.mubr.bf16.mxu0 %v7744
        %8361 = vmatmul.mubr.bf16.gmra.mrb[0].mxu0 %v7743
        %v8362 = vpop.f32.mrb[0].mxu0
        %v8363 = vadd.f32 %v8202, %v8362
        %v8364 = vpop.f32.mrb[0].mxu0
        %v8365 = vpop.f32.mrb[0].mxu0
        %v8366 = vadd.f32 %v8205, %v8365
        %v8367 = vpop.f32.mrb[0].mxu0
        %8368 = vmatprep.mubr.bf16.mxu0 %v7749
        %8369 = vmatmul.mubr.bf16.gmra.mrb[0].mxu0 %v7748
        %v8370 = vpop.f32.mrb[0].mxu0
        %v8371 = vadd.f32 %v8210, %v8370
        %v8372 = vpop.f32.mrb[0].mxu0
        %v8373 = vpop.f32.mrb[0].mxu0
        %v8374 = vadd.f32 %v8213, %v8373
        %v8375 = vpop.f32.mrb[0].mxu0
        %8376 = vmatprep.mubr.bf16.mxu0 %v7754
        %8377 = vmatmul.mubr.bf16.gmra.mrb[0].mxu0 %v7753
        %v8378 = vpop.f32.mrb[0].mxu0
        %v8379 = vadd.f32 %v8218, %v8378
        %v8380 = vpop.f32.mrb[0].mxu0
        %v8381 = vpop.f32.mrb[0].mxu0
        %v8382 = vadd.f32 %v8221, %v8381
        %v8383 = vpop.f32.mrb[0].mxu0
        %8384 = vmatprep.mubr.bf16.mxu0 %v7759
        %8385 = vmatmul.mubr.bf16.gmra.mrb[0].mxu0 %v7758
        %v8386 = vpop.f32.mrb[0].mxu0
        %v8387 = vadd.f32 %v8226, %v8386
        %v8388 = vpop.f32.mrb[0].mxu0
        %v8389 = vpop.f32.mrb[0].mxu0
        %v8390 = vadd.f32 %v8229, %v8389
        %v8391 = vpop.f32.mrb[0].mxu0
        %8392 = vmatprep.mubr.bf16.mxu0 %v7764
        %8393 = vmatmul.mubr.bf16.gmra.mrb[0].mxu0 %v7763
        %v8394 = vpop.f32.mrb[0].mxu0
        %v8395 = vadd.f32 %v8234, %v8394
        %v8396 = vpop.f32.mrb[0].mxu0
        %v8397 = vpop.f32.mrb[0].mxu0
        %v8398 = vadd.f32 %v8237, %v8397
        %v8399 = vpop.f32.mrb[0].mxu0
        %8400 = vmatprep.mubr.bf16.mxu0 %v7769
        %8401 = vmatmul.mubr.bf16.gmra.mrb[0].mxu0 %v7768
        %v8402 = vpop.f32.mrb[0].mxu0
        %v8403 = vadd.f32 %v8242, %v8402
        %v8404 = vpop.f32.mrb[0].mxu0
        %v8405 = vpop.f32.mrb[0].mxu0
        %v8406 = vadd.f32 %v8245, %v8405
        %v8407 = vpop.f32.mrb[0].mxu0
        %8408 = vmatprep.mubr.bf16.mxu0 %v7774
        %8409 = vmatmul.mubr.bf16.gmra.mrb[0].mxu0 %v7773
        %v8410 = vpop.f32.mrb[0].mxu0
        %v8411 = vadd.f32 %v8250, %v8410
        %v8412 = vpop.f32.mrb[0].mxu0
        %v8413 = vpop.f32.mrb[0].mxu0
        %v8414 = vadd.f32 %v8253, %v8413
        %v8415 = vpop.f32.mrb[0].mxu0
        %8416 = vmatprep.mubr.bf16.mxu0 %v7779
        %8417 = vmatmul.mubr.bf16.gmra.mrb[0].mxu0 %v7778
        %v8418 = vpop.f32.mrb[0].mxu0
        %v8419 = vadd.f32 %v8258, %v8418
        %v8420 = vpop.f32.mrb[0].mxu0
        %v8421 = vpop.f32.mrb[0].mxu0
        %v8422 = vadd.f32 %v8261, %v8421
        %v8423 = vpop.f32.mrb[0].mxu0
        %8424 = vmatprep.mubr.bf16.mxu0 %v7784
        %8425 = vmatmul.mubr.bf16.gmra.mrb[0].mxu0 %v7783
        %v8426 = vpop.f32.mrb[0].mxu0
        %v8427 = vadd.f32 %v8266, %v8426
        %v8428 = vpop.f32.mrb[0].mxu0
        %v8429 = vpop.f32.mrb[0].mxu0
        %v8430 = vadd.f32 %v8269, %v8429
        %v8431 = vpop.f32.mrb[0].mxu0
        %8432 = vmatprep.mubr.bf16.mxu0 %v7789
        %8433 = vmatmul.mubr.bf16.gmra.mrb[0].mxu0 %v7788
        %v8434 = vpop.f32.mrb[0].mxu0
        %v8435 = vadd.f32 %v8274, %v8434
        %v8436 = vpop.f32.mrb[0].mxu0
        %v8437 = vpop.f32.mrb[0].mxu0
        %v8438 = vadd.f32 %v8277, %v8437
        %v8439 = vpop.f32.mrb[0].mxu0
        %8440 = vmatprep.mubr.bf16.mxu0 %v7794
        %8441 = vmatmul.mubr.bf16.gmra.mrb[0].mxu0 %v7793
        %v8442 = vpop.f32.mrb[0].mxu0
        %v8443 = vadd.f32 %v8282, %v8442
        %v8444 = vpop.f32.mrb[0].mxu0
        %v8445 = vpop.f32.mrb[0].mxu0
        %v8446 = vadd.f32 %v8285, %v8445
        %v8447 = vpop.f32.mrb[0].mxu0
        %8448 = vmatprep.mubr.bf16.mxu0 %v7799
        %8449 = vmatmul.mubr.bf16.gmra.mrb[0].mxu0 %v7798
        %v8450 = vpop.f32.mrb[0].mxu0
        %v8451 = vadd.f32 %v8290, %v8450
        %v8452 = vpop.f32.mrb[0].mxu0
        %v8453 = vpop.f32.mrb[0].mxu0
        %v8454 = vadd.f32 %v8293, %v8453
        %v8455 = vpop.f32.mrb[0].mxu0
        %8456 = vmatprep.mubr.bf16.mxu0 %v7804
        %8457 = vmatmul.mubr.bf16.gmra.mrb[0].mxu0 %v7803
        %v8458 = vpop.f32.mrb[0].mxu0
        %v8459 = vadd.f32 %v8298, %v8458
        %v8460 = vpop.f32.mrb[0].mxu0
        %v8461 = vpop.f32.mrb[0].mxu0
        %v8462 = vadd.f32 %v8301, %v8461
        %v8463 = vpop.f32.mrb[0].mxu0
        %8464 = vmatprep.mubr.bf16.mxu0 %v7809
        %8465 = vmatmul.mubr.bf16.gmra.mrb[0].mxu0 %v7808
        %v8466 = vpop.f32.mrb[0].mxu0
        %v8467 = vadd.f32 %v8306, %v8466
        %v8468 = vpop.f32.mrb[0].mxu0
        %v8469 = vpop.f32.mrb[0].mxu0
        %v8470 = vadd.f32 %v8309, %v8469
        %v8471 = vpop.f32.mrb[0].mxu0
        %8472 = vmatprep.mubr.bf16.mxu0 %v7814
        %8473 = vmatmul.mubr.bf16.gmra.mrb[0].mxu0 %v7813
        %v8474 = vpop.f32.mrb[0].mxu0
        %v8475 = vadd.f32 %v8314, %v8474
        %v8476 = vpop.f32.mrb[0].mxu0
        %v8477 = vpop.f32.mrb[0].mxu0
        %v8478 = vadd.f32 %v8317, %v8477
        %v8479 = vpop.f32.mrb[0].mxu0
        %8480 = vdwg.mxu0
        %8481 = vmatprep.subr.bf16.mxu0 0
        %8482 = vmatpush1.bf16.msra.mxu0 %v8071
        %8483 = vmatprep.subr.bf16.mxu0 0
        %8484 = vmatpush1.bf16.msra.mxu0 %v8072
        %8485 = vmatprep.subr.bf16.mxu0 0
        %8486 = vmatpush1.bf16.msra.mxu0 %v8073
        %8487 = vmatprep.subr.bf16.mxu0 0
        %8488 = vmatpush1.bf16.msra.mxu0 %v8074
        %8489 = vmatprep.subr.bf16.mxu0 0
        %8490 = vmatpush1.bf16.msra.mxu0 0
        %8491 = vmatprep.subr.bf16.mxu0 0
        %8492 = vmatpush1.bf16.msra.mxu0 0
        %8493 = vmatprep.subr.bf16.mxu0 0
        %8494 = vmatpush1.bf16.msra.mxu0 0
        %8495 = vmatprep.subr.bf16.mxu0 0
        %8496 = vmatpush1.bf16.msra.mxu0 0
        %8497 = vmatprep.subr.bf16.mxu0 0
        %8498 = vmatpush1.bf16.msra.mxu0 0
        %8499 = vmatprep.subr.bf16.mxu0 0
        %8500 = vmatpush1.bf16.msra.mxu0 0
        %8501 = vmatprep.subr.bf16.mxu0 0
        %8502 = vmatpush1.bf16.msra.mxu0 0
        %8503 = vmatprep.subr.bf16.mxu0 0
        %8504 = vmatpush1.bf16.msra.mxu0 0
        %8505 = vmatprep.subr.bf16.mxu0 0
        %8506 = vmatpush1.bf16.msra.mxu0 0
        %8507 = vmatprep.subr.bf16.mxu0 0
        %8508 = vmatpush1.bf16.msra.mxu0 0
        %8509 = vmatprep.subr.bf16.mxu0 0
        %8510 = vmatpush1.bf16.msra.mxu0 0
        %8511 = vmatprep.subr.bf16.mxu0 0
        %8512 = vmatpush1.bf16.msra.mxu0 0
        %8513 = vmatprep.mubr.bf16.mxu0 0
        %8514 = vmatmul.mubr.bf16.gmra.mrb[0].mxu0 %v8112
        %v8515 = vpop.f32.mrb[0].mxu0
        %v8516 = vadd.f32 %v8355, %v8515
        %v8517 = vpop.f32.mrb[0].mxu0
        %v8518 = vpop.f32.mrb[0].mxu0
        %v8519 = vadd.f32 %v8358, %v8518
        %v8520 = vpop.f32.mrb[0].mxu0
        %8521 = vmatprep.mubr.bf16.mxu0 0
        %8522 = vmatmul.mubr.bf16.gmra.mrb[0].mxu0 %v8115
        %v8523 = vpop.f32.mrb[0].mxu0
        %v8524 = vadd.f32 %v8363, %v8523
        %v8525 = vpop.f32.mrb[0].mxu0
        %v8526 = vpop.f32.mrb[0].mxu0
        %v8527 = vadd.f32 %v8366, %v8526
        %v8528 = vpop.f32.mrb[0].mxu0
        %8529 = vmatprep.mubr.bf16.mxu0 0
        %8530 = vmatmul.mubr.bf16.gmra.mrb[0].mxu0 %v8118
        %v8531 = vpop.f32.mrb[0].mxu0
        %v8532 = vadd.f32 %v8371, %v8531
        %v8533 = vpop.f32.mrb[0].mxu0
        %v8534 = vpop.f32.mrb[0].mxu0
        %v8535 = vadd.f32 %v8374, %v8534
        %v8536 = vpop.f32.mrb[0].mxu0
        %8537 = vmatprep.mubr.bf16.mxu0 0
        %8538 = vmatmul.mubr.bf16.gmra.mrb[0].mxu0 %v8121
        %v8539 = vpop.f32.mrb[0].mxu0
        %v8540 = vadd.f32 %v8379, %v8539
        %v8541 = vpop.f32.mrb[0].mxu0
        %v8542 = vpop.f32.mrb[0].mxu0
        %v8543 = vadd.f32 %v8382, %v8542
        %v8544 = vpop.f32.mrb[0].mxu0
        %8545 = vmatprep.mubr.bf16.mxu0 0
        %8546 = vmatmul.mubr.bf16.gmra.mrb[0].mxu0 %v8124
        %v8547 = vpop.f32.mrb[0].mxu0
        %v8548 = vadd.f32 %v8387, %v8547
        %v8549 = vpop.f32.mrb[0].mxu0
        %v8550 = vpop.f32.mrb[0].mxu0
        %v8551 = vadd.f32 %v8390, %v8550
        %v8552 = vpop.f32.mrb[0].mxu0
        %8553 = vmatprep.mubr.bf16.mxu0 0
        %8554 = vmatmul.mubr.bf16.gmra.mrb[0].mxu0 %v8127
        %v8555 = vpop.f32.mrb[0].mxu0
        %v8556 = vadd.f32 %v8395, %v8555
        %v8557 = vpop.f32.mrb[0].mxu0
        %v8558 = vpop.f32.mrb[0].mxu0
        %v8559 = vadd.f32 %v8398, %v8558
        %v8560 = vpop.f32.mrb[0].mxu0
        %8561 = vmatprep.mubr.bf16.mxu0 0
        %8562 = vmatmul.mubr.bf16.gmra.mrb[0].mxu0 %v8130
        %v8563 = vpop.f32.mrb[0].mxu0
        %v8564 = vadd.f32 %v8403, %v8563
        %v8565 = vpop.f32.mrb[0].mxu0
        %v8566 = vpop.f32.mrb[0].mxu0
        %v8567 = vadd.f32 %v8406, %v8566
        %v8568 = vpop.f32.mrb[0].mxu0
        %8569 = vmatprep.mubr.bf16.mxu0 0
        %8570 = vmatmul.mubr.bf16.gmra.mrb[0].mxu0 %v8133
        %v8571 = vpop.f32.mrb[0].mxu0
        %v8572 = vadd.f32 %v8411, %v8571
        %v8573 = vpop.f32.mrb[0].mxu0
        %v8574 = vpop.f32.mrb[0].mxu0
        %v8575 = vadd.f32 %v8414, %v8574
        %v8576 = vpop.f32.mrb[0].mxu0
        %8577 = vmatprep.mubr.bf16.mxu0 0
        %8578 = vmatmul.mubr.bf16.gmra.mrb[0].mxu0 %v8136
        %v8579 = vpop.f32.mrb[0].mxu0
        %v8580 = vadd.f32 %v8419, %v8579
        %v8581 = vpop.f32.mrb[0].mxu0
        %v8582 = vpop.f32.mrb[0].mxu0
        %v8583 = vadd.f32 %v8422, %v8582
        %v8584 = vpop.f32.mrb[0].mxu0
        %8585 = vmatprep.mubr.bf16.mxu0 0
        %8586 = vmatmul.mubr.bf16.gmra.mrb[0].mxu0 %v8139
        %v8587 = vpop.f32.mrb[0].mxu0
        %v8588 = vadd.f32 %v8427, %v8587
        %v8589 = vpop.f32.mrb[0].mxu0
        %v8590 = vpop.f32.mrb[0].mxu0
        %v8591 = vadd.f32 %v8430, %v8590
        %v8592 = vpop.f32.mrb[0].mxu0
        %8593 = vmatprep.mubr.bf16.mxu0 0
        %8594 = vmatmul.mubr.bf16.gmra.mrb[0].mxu0 %v8142
        %v8595 = vpop.f32.mrb[0].mxu0
        %v8596 = vadd.f32 %v8435, %v8595
        %v8597 = vpop.f32.mrb[0].mxu0
        %v8598 = vpop.f32.mrb[0].mxu0
        %v8599 = vadd.f32 %v8438, %v8598
        %v8600 = vpop.f32.mrb[0].mxu0
        %8601 = vmatprep.mubr.bf16.mxu0 0
        %8602 = vmatmul.mubr.bf16.gmra.mrb[0].mxu0 %v8145
        %v8603 = vpop.f32.mrb[0].mxu0
        %v8604 = vadd.f32 %v8443, %v8603
        %v8605 = vpop.f32.mrb[0].mxu0
        %v8606 = vpop.f32.mrb[0].mxu0
        %v8607 = vadd.f32 %v8446, %v8606
        %v8608 = vpop.f32.mrb[0].mxu0
        %8609 = vmatprep.mubr.bf16.mxu0 0
        %8610 = vmatmul.mubr.bf16.gmra.mrb[0].mxu0 %v8148
        %v8611 = vpop.f32.mrb[0].mxu0
        %v8612 = vadd.f32 %v8451, %v8611
        %v8613 = vpop.f32.mrb[0].mxu0
        %v8614 = vpop.f32.mrb[0].mxu0
        %v8615 = vadd.f32 %v8454, %v8614
        %v8616 = vpop.f32.mrb[0].mxu0
        %8617 = vmatprep.mubr.bf16.mxu0 0
        %8618 = vmatmul.mubr.bf16.gmra.mrb[0].mxu0 %v8151
        %v8619 = vpop.f32.mrb[0].mxu0
        %v8620 = vadd.f32 %v8459, %v8619
        %v8621 = vpop.f32.mrb[0].mxu0
        %v8622 = vpop.f32.mrb[0].mxu0
        %v8623 = vadd.f32 %v8462, %v8622
        %v8624 = vpop.f32.mrb[0].mxu0
        %8625 = vmatprep.mubr.bf16.mxu0 0
        %8626 = vmatmul.mubr.bf16.gmra.mrb[0].mxu0 %v8154
        %v8627 = vpop.f32.mrb[0].mxu0
        %v8628 = vadd.f32 %v8467, %v8627
        %v8629 = vpop.f32.mrb[0].mxu0
        %v8630 = vpop.f32.mrb[0].mxu0
        %v8631 = vadd.f32 %v8470, %v8630
        %v8632 = vpop.f32.mrb[0].mxu0
        %8633 = vmatprep.mubr.bf16.mxu0 0
        %8634 = vmatmul.mubr.bf16.gmra.mrb[0].mxu0 %v8157
        %v8635 = vpop.f32.mrb[0].mxu0
        %v8636 = vadd.f32 %v8475, %v8635
        %v8637 = vpop.f32.mrb[0].mxu0
        %v8638 = vpop.f32.mrb[0].mxu0
        %v8639 = vadd.f32 %v8478, %v8638
        %v8640 = vpop.f32.mrb[0].mxu0
        %8641 = vdwg.mxu0
        %v8642 = vld [vmem:[%s1208] sm:$0xf]
        %v8643 = vld [vmem:[%s1208 + $0x4] sm:$0xf]
        %v8644 = vld [vmem:[%s1208 + $0x8] sm:$0x1]
        %v8645 = vld [vmem:[%s1208 + $0xc] sm:$0xf]
        %v8646 = vld [vmem:[%s1208 + $0x10] sm:$0xf]
        %v8647 = vld [vmem:[%s1208 + $0x14] sm:$0x1]
        %v8648 = vld [vmem:[%s1208 + $0x18] sm:$0xf]
        %v8649 = vld [vmem:[%s1208 + $0x1c] sm:$0xf]
        %v8650 = vld [vmem:[%s1208 + $0x20] sm:$0x1]
        %v8651 = vld [vmem:[%s1208 + $0x24] sm:$0xf]
        %v8652 = vld [vmem:[%s1208 + $0x28] sm:$0xf]
        %v8653 = vld [vmem:[%s1208 + $0x2c] sm:$0x1]
        %v8654 = vld [vmem:[%s1208 + $0x30] sm:$0xf]
        %v8655 = vld [vmem:[%s1208 + $0x34] sm:$0xf]
        %v8656 = vld [vmem:[%s1208 + $0x38] sm:$0x1]
        %v8657 = vld [vmem:[%s1208 + $0x3c] sm:$0xf]
        %v8658 = vld [vmem:[%s1208 + $0x40] sm:$0xf]
        %v8659 = vld [vmem:[%s1208 + $0x44] sm:$0x1]
        %v8660 = vld [vmem:[%s1208 + $0x48] sm:$0xf]
        %v8661 = vld [vmem:[%s1208 + $0x4c] sm:$0xf]
        %v8662 = vld [vmem:[%s1208 + $0x50] sm:$0x1]
        %v8663 = vld [vmem:[%s1208 + $0x54] sm:$0xf]
        %v8664 = vld [vmem:[%s1208 + $0x58] sm:$0xf]
        %v8665 = vld [vmem:[%s1208 + $0x5c] sm:$0x1]
        %v8666 = vld [vmem:[%s1208 + $0x60] sm:$0xf]
        %v8667 = vld [vmem:[%s1208 + $0x64] sm:$0xf]
        %v8668 = vld [vmem:[%s1208 + $0x68] sm:$0x1]
        %v8669 = vld [vmem:[%s1208 + $0x6c] sm:$0xf]
        %v8670 = vld [vmem:[%s1208 + $0x70] sm:$0xf]
        %v8671 = vld [vmem:[%s1208 + $0x74] sm:$0x1]
        %v8672 = vld [vmem:[%s1208 + $0x78] sm:$0xf]
        %v8673 = vld [vmem:[%s1208 + $0x7c] sm:$0xf]
        %v8674 = vld [vmem:[%s1208 + $0x80] sm:$0x1]
        %v8675 = vld [vmem:[%s1208 + $0x84] sm:$0xf]
        %v8676 = vld [vmem:[%s1208 + $0x88] sm:$0xf]
        %v8677 = vld [vmem:[%s1208 + $0x8c] sm:$0x1]
        %v8678 = vld [vmem:[%s1208 + $0x90] sm:$0xf]
        %v8679 = vld [vmem:[%s1208 + $0x94] sm:$0xf]
        %v8680 = vld [vmem:[%s1208 + $0x98] sm:$0x1]
        %v8681 = vld [vmem:[%s1208 + $0x9c] sm:$0xf]
        %v8682 = vld [vmem:[%s1208 + $0xa0] sm:$0xf]
        %v8683 = vld [vmem:[%s1208 + $0xa4] sm:$0x1]
        %v8684 = vld [vmem:[%s1208 + $0xa8] sm:$0xf]
        %v8685 = vld [vmem:[%s1208 + $0xac] sm:$0xf]
        %v8686 = vld [vmem:[%s1208 + $0xb0] sm:$0x1]
        %v8687 = vld [vmem:[%s1208 + $0xb4] sm:$0xf]
        %v8688 = vld [vmem:[%s1208 + $0xb8] sm:$0xf]
        %v8689 = vld [vmem:[%s1208 + $0xbc] sm:$0x1]
        %v8690 = vunpack.c.l.bf16 %v8642
        %v8691 = vunpack.c.l.bf16 %v8643
        %v8692 = vunpack.c.l.bf16 %v8644
        %v8693 = vunpack.c.l.bf16 %v8645
        %v8694 = vunpack.c.l.bf16 %v8646
        %v8695 = vunpack.c.l.bf16 %v8647
        %v8696 = vunpack.c.l.bf16 %v8648
        %v8697 = vunpack.c.l.bf16 %v8649
        %v8698 = vunpack.c.l.bf16 %v8650
        %v8699 = vunpack.c.l.bf16 %v8651
        %v8700 = vunpack.c.l.bf16 %v8652
        %v8701 = vunpack.c.l.bf16 %v8653
        %v8702 = vunpack.c.l.bf16 %v8654
        %v8703 = vunpack.c.l.bf16 %v8655
        %v8704 = vunpack.c.l.bf16 %v8656
        %v8705 = vunpack.c.l.bf16 %v8657
        %v8706 = vunpack.c.l.bf16 %v8658
        %v8707 = vunpack.c.l.bf16 %v8659
        %v8708 = vunpack.c.l.bf16 %v8660
        %v8709 = vunpack.c.l.bf16 %v8661
        %v8710 = vunpack.c.l.bf16 %v8662
        %v8711 = vunpack.c.l.bf16 %v8663
        %v8712 = vunpack.c.l.bf16 %v8664
        %v8713 = vunpack.c.l.bf16 %v8665
        %v8714 = vunpack.c.l.bf16 %v8666
        %v8715 = vunpack.c.l.bf16 %v8667
        %v8716 = vunpack.c.l.bf16 %v8668
        %v8717 = vunpack.c.l.bf16 %v8669
        %v8718 = vunpack.c.l.bf16 %v8670
        %v8719 = vunpack.c.l.bf16 %v8671
        %v8720 = vunpack.c.l.bf16 %v8672
        %v8721 = vunpack.c.l.bf16 %v8673
        %v8722 = vunpack.c.l.bf16 %v8674
        %v8723 = vunpack.c.l.bf16 %v8675
        %v8724 = vunpack.c.l.bf16 %v8676
        %v8725 = vunpack.c.l.bf16 %v8677
        %v8726 = vunpack.c.l.bf16 %v8678
        %v8727 = vunpack.c.l.bf16 %v8679
        %v8728 = vunpack.c.l.bf16 %v8680
        %v8729 = vunpack.c.l.bf16 %v8681
        %v8730 = vunpack.c.l.bf16 %v8682
        %v8731 = vunpack.c.l.bf16 %v8683
        %v8732 = vunpack.c.l.bf16 %v8684
        %v8733 = vunpack.c.l.bf16 %v8685
        %v8734 = vunpack.c.l.bf16 %v8686
        %v8735 = vunpack.c.l.bf16 %v8687
        %v8736 = vunpack.c.l.bf16 %v8688
        %v8737 = vunpack.c.l.bf16 %v8689
        %vm8786 = vcmask 1046528
        %v8787 = vrot.slane %v8690, 1
        %v8788 = vrot.slane %v8691, 1
        %v8789 = vsel %vm8786, %v8787, %v8788
        %v8790 = vrot.slane %v8692, 1
        %v8791 = vsel %vm8786, %v8788, %v8790
        %v8792 = vrot.slane %v8693, 1
        %v8793 = vrot.slane %v8694, 1
        %v8794 = vsel %vm8786, %v8792, %v8793
        %v8795 = vrot.slane %v8695, 1
        %v8796 = vsel %vm8786, %v8793, %v8795
        %v8797 = vrot.slane %v8696, 1
        %v8798 = vrot.slane %v8697, 1
        %v8799 = vsel %vm8786, %v8797, %v8798
        %v8800 = vrot.slane %v8698, 1
        %v8801 = vsel %vm8786, %v8798, %v8800
        %v8802 = vrot.slane %v8699, 1
        %v8803 = vrot.slane %v8700, 1
        %v8804 = vsel %vm8786, %v8802, %v8803
        %v8805 = vrot.slane %v8701, 1
        %v8806 = vsel %vm8786, %v8803, %v8805
        %v8807 = vrot.slane %v8702, 1
        %v8808 = vrot.slane %v8703, 1
        %v8809 = vsel %vm8786, %v8807, %v8808
        %v8810 = vrot.slane %v8704, 1
        %v8811 = vsel %vm8786, %v8808, %v8810
        %v8812 = vrot.slane %v8705, 1
        %v8813 = vrot.slane %v8706, 1
        %v8814 = vsel %vm8786, %v8812, %v8813
        %v8815 = vrot.slane %v8707, 1
        %v8816 = vsel %vm8786, %v8813, %v8815
        %v8817 = vrot.slane %v8708, 1
        %v8818 = vrot.slane %v8709, 1
        %v8819 = vsel %vm8786, %v8817, %v8818
        %v8820 = vrot.slane %v8710, 1
        %v8821 = vsel %vm8786, %v8818, %v8820
        %v8822 = vrot.slane %v8711, 1
        %v8823 = vrot.slane %v8712, 1
        %v8824 = vsel %vm8786, %v8822, %v8823
        %v8825 = vrot.slane %v8713, 1
        %v8826 = vsel %vm8786, %v8823, %v8825
        %v8827 = vrot.slane %v8714, 1
        %v8828 = vrot.slane %v8715, 1
        %v8829 = vsel %vm8786, %v8827, %v8828
        %v8830 = vrot.slane %v8716, 1
        %v8831 = vsel %vm8786, %v8828, %v8830
        %v8832 = vrot.slane %v8717, 1
        %v8833 = vrot.slane %v8718, 1
        %v8834 = vsel %vm8786, %v8832, %v8833
        %v8835 = vrot.slane %v8719, 1
        %v8836 = vsel %vm8786, %v8833, %v8835
        %v8837 = vrot.slane %v8720, 1
        %v8838 = vrot.slane %v8721, 1
        %v8839 = vsel %vm8786, %v8837, %v8838
        %v8840 = vrot.slane %v8722, 1
        %v8841 = vsel %vm8786, %v8838, %v8840
        %v8842 = vrot.slane %v8723, 1
        %v8843 = vrot.slane %v8724, 1
        %v8844 = vsel %vm8786, %v8842, %v8843
        %v8845 = vrot.slane %v8725, 1
        %v8846 = vsel %vm8786, %v8843, %v8845
        %v8847 = vrot.slane %v8726, 1
        %v8848 = vrot.slane %v8727, 1
        %v8849 = vsel %vm8786, %v8847, %v8848
        %v8850 = vrot.slane %v8728, 1
        %v8851 = vsel %vm8786, %v8848, %v8850
        %v8852 = vrot.slane %v8729, 1
        %v8853 = vrot.slane %v8730, 1
        %v8854 = vsel %vm8786, %v8852, %v8853
        %v8855 = vrot.slane %v8731, 1
        %v8856 = vsel %vm8786, %v8853, %v8855
        %v8857 = vrot.slane %v8732, 1
        %v8858 = vrot.slane %v8733, 1
        %v8859 = vsel %vm8786, %v8857, %v8858
        %v8860 = vrot.slane %v8734, 1
        %v8861 = vsel %vm8786, %v8858, %v8860
        %v8862 = vrot.slane %v8735, 1
        %v8863 = vrot.slane %v8736, 1
        %v8864 = vsel %vm8786, %v8862, %v8863
        %v8865 = vrot.slane %v8737, 1
        %v8866 = vsel %vm8786, %v8863, %v8865
        %v8899 = vadd.f32 %v8516, %v8789
        %v8900 = vadd.f32 %v8519, %v8791
        %v8901 = vadd.f32 %v8524, %v8794
        %v8902 = vadd.f32 %v8527, %v8796
        %v8903 = vadd.f32 %v8532, %v8799
        %v8904 = vadd.f32 %v8535, %v8801
        %v8905 = vadd.f32 %v8540, %v8804
        %v8906 = vadd.f32 %v8543, %v8806
        %v8907 = vadd.f32 %v8548, %v8809
        %v8908 = vadd.f32 %v8551, %v8811
        %v8909 = vadd.f32 %v8556, %v8814
        %v8910 = vadd.f32 %v8559, %v8816
        %v8911 = vadd.f32 %v8564, %v8819
        %v8912 = vadd.f32 %v8567, %v8821
        %v8913 = vadd.f32 %v8572, %v8824
        %v8914 = vadd.f32 %v8575, %v8826
        %v8915 = vadd.f32 %v8580, %v8829
        %v8916 = vadd.f32 %v8583, %v8831
        %v8917 = vadd.f32 %v8588, %v8834
        %v8918 = vadd.f32 %v8591, %v8836
        %v8919 = vadd.f32 %v8596, %v8839
        %v8920 = vadd.f32 %v8599, %v8841
        %v8921 = vadd.f32 %v8604, %v8844
        %v8922 = vadd.f32 %v8607, %v8846
        %v8923 = vadd.f32 %v8612, %v8849
        %v8924 = vadd.f32 %v8615, %v8851
        %v8925 = vadd.f32 %v8620, %v8854
        %v8926 = vadd.f32 %v8623, %v8856
        %v8927 = vadd.f32 %v8628, %v8859
        %v8928 = vadd.f32 %v8631, %v8861
        %v8929 = vadd.f32 %v8636, %v8864
        %v8930 = vadd.f32 %v8639, %v8866
        %v8931 = vmax.f32 %v8899, 0.0
        %v8932 = vmax.f32 %v8900, 0.0
        %v8933 = vmax.f32 %v8901, 0.0
        %v8934 = vmax.f32 %v8902, 0.0
        %v8935 = vmax.f32 %v8903, 0.0
        %v8936 = vmax.f32 %v8904, 0.0
        %v8937 = vmax.f32 %v8905, 0.0
        %v8938 = vmax.f32 %v8906, 0.0
        %v8939 = vmax.f32 %v8907, 0.0
        %v8940 = vmax.f32 %v8908, 0.0
        %v8941 = vmax.f32 %v8909, 0.0
        %v8942 = vmax.f32 %v8910, 0.0
        %v8943 = vmax.f32 %v8911, 0.0
        %v8944 = vmax.f32 %v8912, 0.0
        %v8945 = vmax.f32 %v8913, 0.0
        %v8946 = vmax.f32 %v8914, 0.0
        %v8947 = vmax.f32 %v8915, 0.0
        %v8948 = vmax.f32 %v8916, 0.0
        %v8949 = vmax.f32 %v8917, 0.0
        %v8950 = vmax.f32 %v8918, 0.0
        %v8951 = vmax.f32 %v8919, 0.0
        %v8952 = vmax.f32 %v8920, 0.0
        %v8953 = vmax.f32 %v8921, 0.0
        %v8954 = vmax.f32 %v8922, 0.0
        %v8955 = vmax.f32 %v8923, 0.0
        %v8956 = vmax.f32 %v8924, 0.0
        %v8957 = vmax.f32 %v8925, 0.0
        %v8958 = vmax.f32 %v8926, 0.0
        %v8959 = vmax.f32 %v8927, 0.0
        %v8960 = vmax.f32 %v8928, 0.0
        %v8961 = vmax.f32 %v8929, 0.0
        %v8962 = vmax.f32 %v8930, 0.0
        %8963 = vst.msk [vmem:[%s217] sm:$0xff] %vm352, %v8931
        %8964 = vst.msk [vmem:[%s217 + $0x8] sm:$0xff] %vm352, %v8932
        %8965 = vst.msk [vmem:[%s217 + $0x10] sm:$0xff] %vm352, %v8933
        %8966 = vst.msk [vmem:[%s217 + $0x18] sm:$0xff] %vm352, %v8934
        %8967 = vst.msk [vmem:[%s217 + $0x20] sm:$0xff] %vm352, %v8935
        %8968 = vst.msk [vmem:[%s217 + $0x28] sm:$0xff] %vm352, %v8936
        %8969 = vst.msk [vmem:[%s217 + $0x30] sm:$0xff] %vm352, %v8937
        %8970 = vst.msk [vmem:[%s217 + $0x38] sm:$0xff] %vm352, %v8938
        %8971 = vst.msk [vmem:[%s217 + $0x40] sm:$0xff] %vm352, %v8939
        %8972 = vst.msk [vmem:[%s217 + $0x48] sm:$0xff] %vm352, %v8940
        %8973 = vst.msk [vmem:[%s217 + $0x50] sm:$0xff] %vm352, %v8941
        %8974 = vst.msk [vmem:[%s217 + $0x58] sm:$0xff] %vm352, %v8942
        %8975 = vst.msk [vmem:[%s217 + $0x60] sm:$0xff] %vm352, %v8943
        %8976 = vst.msk [vmem:[%s217 + $0x68] sm:$0xff] %vm352, %v8944
        %8977 = vst.msk [vmem:[%s217 + $0x70] sm:$0xff] %vm352, %v8945
        %8978 = vst.msk [vmem:[%s217 + $0x78] sm:$0xff] %vm352, %v8946
        %8979 = vst.msk [vmem:[%s217 + $0x80] sm:$0xff] %vm352, %v8947
        %8980 = vst.msk [vmem:[%s217 + $0x88] sm:$0xff] %vm352, %v8948
        %8981 = vst.msk [vmem:[%s217 + $0x90] sm:$0xff] %vm352, %v8949
        %8982 = vst.msk [vmem:[%s217 + $0x98] sm:$0xff] %vm352, %v8950
        %8983 = vst.msk [vmem:[%s217 + $0xa0] sm:$0xff] %vm352, %v8951
        %8984 = vst.msk [vmem:[%s217 + $0xa8] sm:$0xff] %vm352, %v8952
        %8985 = vst.msk [vmem:[%s217 + $0xb0] sm:$0xff] %vm352, %v8953
        %8986 = vst.msk [vmem:[%s217 + $0xb8] sm:$0xff] %vm352, %v8954
        %8987 = vst.msk [vmem:[%s217 + $0xc0] sm:$0xff] %vm352, %v8955
        %8988 = vst.msk [vmem:[%s217 + $0xc8] sm:$0xff] %vm352, %v8956
        %8989 = vst.msk [vmem:[%s217 + $0xd0] sm:$0xff] %vm352, %v8957
        %8990 = vst.msk [vmem:[%s217 + $0xd8] sm:$0xff] %vm352, %v8958
        %8991 = vst.msk [vmem:[%s217 + $0xe0] sm:$0xff] %vm352, %v8959
        %8992 = vst.msk [vmem:[%s217 + $0xe8] sm:$0xff] %vm352, %v8960
        %8993 = vst.msk [vmem:[%s217 + $0xf0] sm:$0xff] %vm352, %v8961
        %8994 = vst.msk [vmem:[%s217 + $0xf8] sm:$0xff] %vm352, %v8962
        %s8995 = sand.u32 %s137, 1
        %s8996 = scalar_lea.sflag [#allocation5], %s8995
        %s8997 = sand.u32 %s137, 1
        %s8998 = smul.addr %s8997, 256
        %s8999 = scalar_lea.vmem [#allocation4], %s8998
        // Predicated region
        $region41: #{tpu_custom_call.1} parent=39 // pred_check
          %p9000 = pneg %p147
        $region42: #{tpu_custom_call.1} parent=39 // pred_check_branch
          %9002 = sbr.rel (%p9000) target = $region44
        $region43: #{tpu_custom_call.1} parent=39 // pred_region
          %s9004 = ssub.s32 4096, 4096
          %9005 = vsyncadd %s8996, %s9004
          %s9006 = smul.addr %s19, 32
          %s9007 = smul.addr %s9006, 128
          %s9008 = scalar_lea.hbm %s5, %s9007
          %s9009 = sshll.u32 %s8999, 4
          %s9010 = int_to_ptr.vmem [resolvable:$true] %s9009
          %9015 = dma.vmem_to_hbm [thread:$0]  %s9010, 4096, %s9008, %s8996, 128, 128, 8
        $region44: #{tpu_custom_call.1} parent=39 // pred_fallthru
          _
      $region40: #{tpu_custom_call.1} parent=5 // pred_fallthru
        _
      %p9016 = scmp.le.s32.totalorder 2, %s14
      // Predicated region
      $region45: #{tpu_custom_call.1} parent=5 // pred_check
        %p9017 = pneg %p9016
      $region46: #{tpu_custom_call.1} parent=5 // pred_check_branch
        %9019 = sbr.rel (%p9017) target = $region48
      $region47: #{tpu_custom_call.1} parent=5 // pred_region
        %s9020 = ssub.s32 %s14, 2
        // Predicated region
        $region49: #{tpu_custom_call.1} parent=47 // pred_check
          %p9021 = pneg %p153
        $region50: #{tpu_custom_call.1} parent=47 // pred_check_branch
          %9023 = sbr.rel (%p9021) target = $region52
        $region51: #{tpu_custom_call.1} parent=47 // pred_region
          %s9024 = sand.u32 %s138, 1
          %s9025 = scalar_lea.sflag [#allocation5], %s9024
          %s9026 = sand.u32 %s138, 1
          %s9027 = smul.addr %s9026, 256
          %s9028 = scalar_lea.vmem [#allocation4], %s9027
          %9029 = dma.done %s9025, 4096
        $region52: #{tpu_custom_call.1} parent=47 // pred_fallthru
          _
      $region48: #{tpu_custom_call.1} parent=5 // pred_fallthru
        _
    $region6: #{tpu_custom_call.1} parent=1 // loop_footer
      %s18 = sadd.s32 1, %s14
    $region7: #{tpu_custom_call.1} parent=1 // loop_footer_branch
      %13 = sbr.rel target = $region3
    $region8: #{tpu_custom_call.1} parent=1 // loop_exit
      _
    %9030 = vsyncpa [#allocation5], 1
    %s9031 = scalar_lea.sflag [#allocation5], 1
    %9032 = vsyncpa %s9031, 1

</llo_original>
